<compile_context>
chip_gen: v6e
topology: v6e:2x2x1
jax: 0.10.0
libtpu: 0.0.40
codegen_flags: <defaults>
</compile_context>

<pallas_src>
import functools

import jax
import jax.numpy as jnp
from jax.experimental import pallas as pl
from jax.experimental.pallas import tpu as pltpu

# ----- module hyper-parameters (PyTorch defaults, scaled small but structurally identical) -----
N_LEADS = 4            # module default is 12
WINDOW = 128           # must be divisible by 2 ** (len(CHANNELS) + 2) = 64
NUM_CLASSES = 2
CHANNELS = [8, 16, 32, 64]
KERNELS = [7, 7, 5, 5, 3]
BN_EPS = 1e-5

GUARD = 8              # guard rows around every activation slab (8-aligned valid window)


# ------------------------------ static layer geometry ------------------------------
def build_layer_cfgs():
    nb = len(CHANNELS)
    assert WINDOW % (2 ** (nb + 2)) == 0
    specs = [(2 * N_LEADS, CHANNELS[0], KERNELS[0], 4)]          # block 0, maxpool 4
    cin = CHANNELS[0]
    for i in range(nb):                                          # blocks 1..nb, maxpool 2
        cout = CHANNELS[i + 1] if i != nb - 1 else CHANNELS[i]
        specs.append((cin, cout, KERNELS[i], 2))
        cin = cout
    out_kernel = WINDOW // 2 ** (nb + 2)
    specs.append((cin, 1, out_kernel, 1))                        # final conv: no pad, no pool

    cfgs = []
    length = WINDOW
    for idx, (ci, co, k, pool) in enumerate(specs):
        final = idx == len(specs) - 1
        pad = 0 if final else k // 2
        l_out = length + 2 * pad - k + 1                         # == length for 'same' blocks
        cfgs.append(dict(c_in=ci, c_out=co, k=k, pad=pad, pool=pool,
                         L_in=length, L_out=l_out, lp=l_out // pool,
                         relu=not final, sigmoid=final, bn=not final, final=final))
        # layout invariants the fused kernel relies on: dense per-batch slabs (stride ==
        # L_in), power-of-two strides for the boundary mask, and pool windows that never
        # straddle a batch boundary.
        assert length & (length - 1) == 0
        if not final:
            assert l_out == length and l_out % pool == 0
        length = l_out // pool
    assert cfgs[-1]["lp"] == 1 and cfgs[-1]["c_out"] == 1        # mirrors the module asserts
    assert GUARD >= max(c["pad"] for c in cfgs)
    assert GUARD >= max(c["k"] - 1 - c["pad"] for c in cfgs)
    return cfgs


# --------------------------- fused Pallas kernel (hot path) -----------------------------
def _fused_disc_kernel(x_ref, *refs, cfgs, b_tile):
    """Whole Discriminator forward for one batch tile, entirely in VMEM.

    x_ref : (b_tile*WINDOW, 2*N_LEADS) bf16 flat NLC input (batch folded into rows)
    refs  : [w_0, scale_0, shift_0, ..., w_5, scale_5, shift_5, o_ref,
             act_0..act_5, ys_0..ys_5]
            w_l   (C_in*K, C_out) bf16 (im2col-flattened), scale_l/shift_l (1, C_out) f32
            o_ref (b_tile, 1) f32
            act_l (b_tile*L_in + 2*GUARD, C_in) bf16  guarded, batch-dense input slab
            ys_l  (b_tile*L_in, C_out) f32            conv+act output (pre-pool)
    """
    nl = len(cfgs)
    w_refs = refs[:3 * nl]
    o_ref = refs[3 * nl]
    act_refs = refs[3 * nl + 1: 3 * nl + 1 + nl]
    ys_refs = refs[3 * nl + 1 + nl: 3 * nl + 1 + 2 * nl]

    # Stage the (already bf16) input block into the guarded layer-0 slab: one aligned store.
    r0 = b_tile * cfgs[0]["L_in"]
    act_refs[0][GUARD:GUARD + r0, :] = x_ref[...]

    for l, cfg in enumerate(cfgs):
        w_ref, scale_ref, shift_ref = w_refs[3 * l: 3 * l + 3]
        act, ys = act_refs[l], ys_refs[l]
        k, pad, pool, t_len = cfg["k"], cfg["pad"], cfg["pool"], cfg["L_in"]
        rows = b_tile * t_len

        # Within-batch row index (per-batch stride is a power of two).  The comparisons
        # below implement the conv 'same' zero-padding at batch boundaries, so no slab
        # (guards included) ever needs a zero-fill.
        rb = jax.lax.broadcasted_iota(jnp.int32, (rows, 1), 0) & (t_len - 1)

        # im2col: k shifted whole-slab bf16 reads, boundary-masked, concatenated on lanes.
        pieces = []
        for t in range(k):
            start = GUARD + t - pad
            p = act[start:start + rows, :]
            if t < pad:
                p = jnp.where(rb >= (pad - t), p, jnp.zeros_like(p))
            elif t > pad:
                p = jnp.where(rb < (t_len - (t - pad)), p, jnp.zeros_like(p))
            pieces.append(p)
        xc = pieces[0] if k == 1 else jnp.concatenate(pieces, axis=1)   # (rows, C_in*k)

        # One MXU matmul per layer (bf16 in, f32 acc) + folded eval-mode BN (or conv bias).
        y = jnp.dot(xc, w_ref[...], preferred_element_type=jnp.float32)
        y = y * scale_ref[...] + shift_ref[...]
        if cfg["relu"]:
            y = jnp.maximum(y, 0.0)
        if cfg["sigmoid"]:
            y = jax.nn.sigmoid(y)
        # TODO(synk): Dropout(0.5) between activation and maxpool is identity in eval mode.

        ys[...] = y            # materialize once for sublane-strided (sub-sampled) reads

        if cfg["final"]:
            # Valid conv position j=0 of every batch element -> single (b_tile, 1) store.
            o_ref[...] = ys[pl.ds(0, b_tile, stride=t_len), :]
        else:
            # MaxPool1d(pool): `pool` whole-slab strided reads + running max, then write the
            # pooled slab straight into the next layer's guarded bf16 slab (one cast).
            rp = rows // pool
            pooled = ys[pl.ds(0, rp, stride=pool), :]
            for i in range(1, pool):
                pooled = jnp.maximum(pooled, ys[pl.ds(i, rp, stride=pool), :])
            act_refs[l + 1][GUARD:GUARD + rp, :] = pooled.astype(jnp.bfloat16)


# ------------------------------- forward pass (wrapper) -----------------------------------
def _choose_b_tile(batch):
    # Largest tile up to 64 that is a multiple of 8 (aligned slabs) and leaves >= 2 grid
    # steps (so v7x can shard the "parallel" axis over both TensorCores); otherwise fall
    # back to a single full-batch step (block == full array is always a legal BlockSpec).
    for cand in range(min(batch // 2, 64), 0, -1):
        if cand % 8 == 0 and batch % cand == 0:
            return cand
    return batch


def discriminator_forward(params, x, labels):
    """x: (B, n_leads, window) PyTorch NCW; labels: (B,) int32 -> (B,) sigmoid scores."""
    cfgs = build_layer_cfgs()
    batch = x.shape[0]
    emb = params["embed"][labels].reshape(batch, N_LEADS, WINDOW)     # nn.Embedding + view
    h = jnp.concatenate([x, emb], axis=1)                             # (B, 2*n_leads, W) NCW
    h = jnp.transpose(h, (0, 2, 1))                                   # NLC
    h_flat = h.reshape(batch * WINDOW, 2 * N_LEADS).astype(jnp.bfloat16)

    b_tile = _choose_b_tile(batch)
    nbt = batch // b_tile

    args = [h_flat]
    in_specs = [pl.BlockSpec((b_tile * WINDOW, 2 * N_LEADS), lambda i: (i, 0))]
    for lay in params["layers"]:                                      # weights resident in VMEM
        for name in ("w", "scale", "shift"):
            a = lay[name]
            args.append(a)
            in_specs.append(pl.BlockSpec(a.shape, lambda i, nd=a.ndim: (0,) * nd))

    scratch_shapes = []
    for cfg in cfgs:    # guarded bf16 activation slabs (per-batch stride == L_in, dense)
        scratch_shapes.append(
            pltpu.VMEM((b_tile * cfg["L_in"] + 2 * GUARD, cfg["c_in"]), jnp.bfloat16))
    for cfg in cfgs:    # f32 conv/act outputs (pre-pool)
        scratch_shapes.append(
            pltpu.VMEM((b_tile * cfg["L_in"], cfg["c_out"]), jnp.float32))

    out = pl.pallas_call(
        functools.partial(_fused_disc_kernel, cfgs=cfgs, b_tile=b_tile),
        out_shape=jax.ShapeDtypeStruct((batch, 1), jnp.float32),
        grid=(nbt,),
        in_specs=in_specs,
        out_specs=pl.BlockSpec((b_tile, 1), lambda i: (i, 0)),
        scratch_shapes=scratch_shapes,
        compiler_params=pltpu.CompilerParams(dimension_semantics=("parallel",)),
    )(*args)
    return out[:, 0]


# ------------------------------ parameters (deterministic) ------------------------------
def make_params(key):
    cfgs = build_layer_cfgs()
    keys = iter(jax.random.split(key, 40))
    layers = []
    for cfg in cfgs:
        ci, co, k = cfg["c_in"], cfg["c_out"], cfg["k"]
        w = 0.1 * jax.random.normal(next(keys), (co, ci, k), jnp.float32)   # torch (Cout,Cin,K)
        # im2col-flattened (K*Cin, Cout) bf16: row t*Cin + c == weight[o, c, t]
        w_flat = jnp.transpose(w, (2, 1, 0)).reshape(k * ci, co).astype(jnp.bfloat16)
        if cfg["bn"]:
            gamma = 1.0 + 0.1 * jax.random.normal(next(keys), (co,), jnp.float32)
            beta = 0.1 * jax.random.normal(next(keys), (co,), jnp.float32)
            r_mean = 0.1 * jax.random.normal(next(keys), (co,), jnp.float32)
            r_var = 1.0 + 0.5 * jnp.abs(jax.random.normal(next(keys), (co,), jnp.float32))
            scale = gamma / jnp.sqrt(r_var + BN_EPS)                        # eval-mode BN folded
            shift = beta - r_mean * scale
        else:                                                               # final conv bias
            scale = jnp.ones((co,), jnp.float32)
            shift = 0.1 * jax.random.normal(next(keys), (co,), jnp.float32)
        layers.append(dict(w=w_flat, scale=scale.reshape(1, co), shift=shift.reshape(1, co)))
    embed = 0.1 * jax.random.normal(next(keys), (NUM_CLASSES, N_LEADS * WINDOW), jnp.float32)
    return dict(layers=layers, embed=embed)


# ------------------------------- pure-JAX reference --------------------------------
def _reference_forward(params, x, labels):
    cfgs = build_layer_cfgs()
    batch = x.shape[0]
    emb = params["embed"][labels].reshape(batch, N_LEADS, WINDOW)
    h = jnp.concatenate([x, emb], axis=1)
    h = jnp.transpose(h, (0, 2, 1)).astype(jnp.float32)
    for cfg, lay in zip(cfgs, params["layers"]):
        pad, k, l_out, ci = cfg["pad"], cfg["k"], cfg["L_out"], cfg["c_in"]
        hp = jnp.pad(h, ((0, 0), (pad, pad), (0, 0))).astype(jnp.bfloat16)
        acc = sum(jnp.einsum("blc,co->blo", hp[:, t:t + l_out, :],
                             lay["w"][t * ci:(t + 1) * ci],
                             preferred_element_type=jnp.float32)
                  for t in range(k))
        y = acc * lay["scale"][None] + lay["shift"][None]
        if cfg["relu"]:
            y = jnp.maximum(y, 0.0)
        if cfg["sigmoid"]:
            y = jax.nn.sigmoid(y)
        if cfg["pool"] > 1:
            p = cfg["pool"]
            y = y.reshape(batch, l_out // p, p, y.shape[-1]).max(axis=2)
        h = y
    return h[:, 0, 0]


if __name__ == "__main__":
    root = jax.random.PRNGKey(0)
    k_params, k_x, k_lbl = jax.random.split(root, 3)
    params = make_params(k_params)

    batch = 2
    x = jax.random.normal(k_x, (batch, N_LEADS, WINDOW), jnp.float32)
    labels = jax.random.randint(k_lbl, (batch,), 0, NUM_CLASSES)

    out = jax.block_until_ready(discriminator_forward(params, x, labels))
    assert out.shape == (batch,), out.shape

    ref = jax.block_until_ready(_reference_forward(params, x, labels))
    assert jnp.allclose(out, ref, rtol=1e-3, atol=1e-3), (out, ref)

    print("KERNEL_OK")
</pallas_src>

<mosaic_0001>
module attributes {stable_mosaic.version = 11 : i64} {
  func.func @_fused_disc_kernel(%arg0: i32, %arg1: memref<256x8xbf16, #tpu.memory_space<vmem>>, %arg2: memref<56x8xbf16, #tpu.memory_space<vmem>>, %arg3: memref<1x8xf32, #tpu.memory_space<vmem>>, %arg4: memref<1x8xf32, #tpu.memory_space<vmem>>, %arg5: memref<56x16xbf16, #tpu.memory_space<vmem>>, %arg6: memref<1x16xf32, #tpu.memory_space<vmem>>, %arg7: memref<1x16xf32, #tpu.memory_space<vmem>>, %arg8: memref<112x32xbf16, #tpu.memory_space<vmem>>, %arg9: memref<1x32xf32, #tpu.memory_space<vmem>>, %arg10: memref<1x32xf32, #tpu.memory_space<vmem>>, %arg11: memref<160x64xbf16, #tpu.memory_space<vmem>>, %arg12: memref<1x64xf32, #tpu.memory_space<vmem>>, %arg13: memref<1x64xf32, #tpu.memory_space<vmem>>, %arg14: memref<320x64xbf16, #tpu.memory_space<vmem>>, %arg15: memref<1x64xf32, #tpu.memory_space<vmem>>, %arg16: memref<1x64xf32, #tpu.memory_space<vmem>>, %arg17: memref<128x1xbf16, #tpu.memory_space<vmem>>, %arg18: memref<1x1xf32, #tpu.memory_space<vmem>>, %arg19: memref<1x1xf32, #tpu.memory_space<vmem>>, %arg20: memref<2x1xf32, #tpu.memory_space<vmem>>, %arg21: memref<272x8xbf16, #tpu.memory_space<vmem>>, %arg22: memref<80x8xbf16, #tpu.memory_space<vmem>>, %arg23: memref<48x16xbf16, #tpu.memory_space<vmem>>, %arg24: memref<32x32xbf16, #tpu.memory_space<vmem>>, %arg25: memref<24x64xbf16, #tpu.memory_space<vmem>>, %arg26: memref<20x64xbf16, #tpu.memory_space<vmem>>, %arg27: memref<256x8xf32, #tpu.memory_space<vmem>>, %arg28: memref<64x16xf32, #tpu.memory_space<vmem>>, %arg29: memref<32x32xf32, #tpu.memory_space<vmem>>, %arg30: memref<16x64xf32, #tpu.memory_space<vmem>>, %arg31: memref<8x64xf32, #tpu.memory_space<vmem>>, %arg32: memref<4x1xf32, #tpu.memory_space<vmem>>) attributes {dimension_semantics = [#tpu.dimension_semantics<parallel>], iteration_bounds = array<i64: 1>, scalar_prefetch = 0 : i64, scratch_operands = 12 : i64, tpu.core_type = #tpu.core_type<tc>, window_params = [{transform_indices = @transform_0, window_bounds = array<i64: 256, 8>}, {pipeline_mode = #tpu.pipeline_mode<synchronous>, transform_indices = @transform_1, window_bounds = array<i64: 56, 8>}, {pipeline_mode = #tpu.pipeline_mode<synchronous>, transform_indices = @transform_2, window_bounds = array<i64: 1, 8>}, {pipeline_mode = #tpu.pipeline_mode<synchronous>, transform_indices = @transform_3, window_bounds = array<i64: 1, 8>}, {pipeline_mode = #tpu.pipeline_mode<synchronous>, transform_indices = @transform_4, window_bounds = array<i64: 56, 16>}, {pipeline_mode = #tpu.pipeline_mode<synchronous>, transform_indices = @transform_5, window_bounds = array<i64: 1, 16>}, {pipeline_mode = #tpu.pipeline_mode<synchronous>, transform_indices = @transform_6, window_bounds = array<i64: 1, 16>}, {pipeline_mode = #tpu.pipeline_mode<synchronous>, transform_indices = @transform_7, window_bounds = array<i64: 112, 32>}, {pipeline_mode = #tpu.pipeline_mode<synchronous>, transform_indices = @transform_8, window_bounds = array<i64: 1, 32>}, {pipeline_mode = #tpu.pipeline_mode<synchronous>, transform_indices = @transform_9, window_bounds = array<i64: 1, 32>}, {pipeline_mode = #tpu.pipeline_mode<synchronous>, transform_indices = @transform_10, window_bounds = array<i64: 160, 64>}, {pipeline_mode = #tpu.pipeline_mode<synchronous>, transform_indices = @transform_11, window_bounds = array<i64: 1, 64>}, {pipeline_mode = #tpu.pipeline_mode<synchronous>, transform_indices = @transform_12, window_bounds = array<i64: 1, 64>}, {pipeline_mode = #tpu.pipeline_mode<synchronous>, transform_indices = @transform_13, window_bounds = array<i64: 320, 64>}, {pipeline_mode = #tpu.pipeline_mode<synchronous>, transform_indices = @transform_14, window_bounds = array<i64: 1, 64>}, {pipeline_mode = #tpu.pipeline_mode<synchronous>, transform_indices = @transform_15, window_bounds = array<i64: 1, 64>}, {pipeline_mode = #tpu.pipeline_mode<synchronous>, transform_indices = @transform_16, window_bounds = array<i64: 128, 1>}, {pipeline_mode = #tpu.pipeline_mode<synchronous>, transform_indices = @transform_17, window_bounds = array<i64: 1, 1>}, {pipeline_mode = #tpu.pipeline_mode<synchronous>, transform_indices = @transform_18, window_bounds = array<i64: 1, 1>}, {transform_indices = @transform_19, window_bounds = array<i64: 2, 1>}]} {
    %c0 = arith.constant 0 : index
    %c0_0 = arith.constant 0 : index
    %0 = vector.load %arg1[%c0, %c0_0] : memref<256x8xbf16, #tpu.memory_space<vmem>>, vector<256x8xbf16>
    %c8 = arith.constant 8 : index
    %c0_1 = arith.constant 0 : index
    %1 = vector.load %arg21[%c8, %c0_1] : memref<272x8xbf16, #tpu.memory_space<vmem>>, vector<256x8xbf16>
    tpu.vector_store %arg21[%c8, %c0_1], %0 {strides = array<i32>} : memref<272x8xbf16, #tpu.memory_space<vmem>>, vector<256x8xbf16>,
    %2 = tpu.iota {dimensions = array<i32: 0>} : vector<256x1xi32>
    %c127_i32 = arith.constant 127 : i32
    %3 = vector.broadcast %c127_i32 : i32 to vector<256x1xi32>
    %4 = arith.andi %2, %3 : vector<256x1xi32>
    %c5 = arith.constant 5 : index
    %c0_2 = arith.constant 0 : index
    %5 = vector.load %arg21[%c5, %c0_2] : memref<272x8xbf16, #tpu.memory_space<vmem>>, vector<256x8xbf16>
    %c3_i32 = arith.constant 3 : i32
    %6 = vector.broadcast %c3_i32 : i32 to vector<256x1xi32>
    %7 = arith.cmpi sge, %4, %6 : vector<256x1xi32>
    %cst = arith.constant 0.000000e+00 : bf16
    %8 = vector.broadcast %cst : bf16 to vector<256x8xbf16>
    %9 = vector.shape_cast %7 : vector<256x1xi1> to vector<256x1xi1>
    %10 = vector.broadcast %9 : vector<256x1xi1> to vector<256x8xi1>
    %11 = arith.select %10, %5, %8 : vector<256x8xi1>, vector<256x8xbf16>
    %c6 = arith.constant 6 : index
    %c0_3 = arith.constant 0 : index
    %12 = vector.load %arg21[%c6, %c0_3] : memref<272x8xbf16, #tpu.memory_space<vmem>>, vector<256x8xbf16>
    %c2_i32 = arith.constant 2 : i32
    %13 = vector.broadcast %c2_i32 : i32 to vector<256x1xi32>
    %14 = arith.cmpi sge, %4, %13 : vector<256x1xi32>
    %cst_4 = arith.constant 0.000000e+00 : bf16
    %15 = vector.broadcast %cst_4 : bf16 to vector<256x8xbf16>
    %16 = vector.shape_cast %14 : vector<256x1xi1> to vector<256x1xi1>
    %17 = vector.broadcast %16 : vector<256x1xi1> to vector<256x8xi1>
    %18 = arith.select %17, %12, %15 : vector<256x8xi1>, vector<256x8xbf16>
    %c7 = arith.constant 7 : index
    %c0_5 = arith.constant 0 : index
    %19 = vector.load %arg21[%c7, %c0_5] : memref<272x8xbf16, #tpu.memory_space<vmem>>, vector<256x8xbf16>
    %c1_i32 = arith.constant 1 : i32
    %20 = vector.broadcast %c1_i32 : i32 to vector<256x1xi32>
    %21 = arith.cmpi sge, %4, %20 : vector<256x1xi32>
    %cst_6 = arith.constant 0.000000e+00 : bf16
    %22 = vector.broadcast %cst_6 : bf16 to vector<256x8xbf16>
    %23 = vector.shape_cast %21 : vector<256x1xi1> to vector<256x1xi1>
    %24 = vector.broadcast %23 : vector<256x1xi1> to vector<256x8xi1>
    %25 = arith.select %24, %19, %22 : vector<256x8xi1>, vector<256x8xbf16>
    %c8_7 = arith.constant 8 : index
    %c0_8 = arith.constant 0 : index
    %26 = vector.load %arg21[%c8_7, %c0_8] : memref<272x8xbf16, #tpu.memory_space<vmem>>, vector<256x8xbf16>
    %c9 = arith.constant 9 : index
    %c0_9 = arith.constant 0 : index
    %27 = vector.load %arg21[%c9, %c0_9] : memref<272x8xbf16, #tpu.memory_space<vmem>>, vector<256x8xbf16>
    %c127_i32_10 = arith.constant 127 : i32
    %28 = vector.broadcast %c127_i32_10 : i32 to vector<256x1xi32>
    %29 = arith.cmpi slt, %4, %28 : vector<256x1xi32>
    %cst_11 = arith.constant 0.000000e+00 : bf16
    %30 = vector.broadcast %cst_11 : bf16 to vector<256x8xbf16>
    %31 = vector.shape_cast %29 : vector<256x1xi1> to vector<256x1xi1>
    %32 = vector.broadcast %31 : vector<256x1xi1> to vector<256x8xi1>
    %33 = arith.select %32, %27, %30 : vector<256x8xi1>, vector<256x8xbf16>
    %c10 = arith.constant 10 : index
    %c0_12 = arith.constant 0 : index
    %34 = vector.load %arg21[%c10, %c0_12] : memref<272x8xbf16, #tpu.memory_space<vmem>>, vector<256x8xbf16>
    %c126_i32 = arith.constant 126 : i32
    %35 = vector.broadcast %c126_i32 : i32 to vector<256x1xi32>
    %36 = arith.cmpi slt, %4, %35 : vector<256x1xi32>
    %cst_13 = arith.constant 0.000000e+00 : bf16
    %37 = vector.broadcast %cst_13 : bf16 to vector<256x8xbf16>
    %38 = vector.shape_cast %36 : vector<256x1xi1> to vector<256x1xi1>
    %39 = vector.broadcast %38 : vector<256x1xi1> to vector<256x8xi1>
    %40 = arith.select %39, %34, %37 : vector<256x8xi1>, vector<256x8xbf16>
    %c11 = arith.constant 11 : index
    %c0_14 = arith.constant 0 : index
    %41 = vector.load %arg21[%c11, %c0_14] : memref<272x8xbf16, #tpu.memory_space<vmem>>, vector<256x8xbf16>
    %c125_i32 = arith.constant 125 : i32
    %42 = vector.broadcast %c125_i32 : i32 to vector<256x1xi32>
    %43 = arith.cmpi slt, %4, %42 : vector<256x1xi32>
    %cst_15 = arith.constant 0.000000e+00 : bf16
    %44 = vector.broadcast %cst_15 : bf16 to vector<256x8xbf16>
    %45 = vector.shape_cast %43 : vector<256x1xi1> to vector<256x1xi1>
    %46 = vector.broadcast %45 : vector<256x1xi1> to vector<256x8xi1>
    %47 = arith.select %46, %41, %44 : vector<256x8xi1>, vector<256x8xbf16>
    %48 = tpu.concatenate %11, %18, %25, %26, %33, %40, %47 in 1 : vector<256x8xbf16>, vector<256x8xbf16>, vector<256x8xbf16>, vector<256x8xbf16>, vector<256x8xbf16>, vector<256x8xbf16>, vector<256x8xbf16> -> vector<256x56xbf16>
    %c0_16 = arith.constant 0 : index
    %c0_17 = arith.constant 0 : index
    %49 = vector.load %arg2[%c0_16, %c0_17] : memref<56x8xbf16, #tpu.memory_space<vmem>>, vector<56x8xbf16>
    %cst_18 = arith.constant dense<0.000000e+00> : vector<256x8xf32>
    %50 = tpu.matmul %48, %49, %cst_18 {dimension_numbers = #tpu.dot_dimension_numbers<[1], [0], [0], [1], [0, 0, 1, 1], [], []>} : vector<256x56xbf16>, vector<56x8xbf16>, vector<256x8xf32> -> vector<256x8xf32>
    %c0_19 = arith.constant 0 : index
    %c0_20 = arith.constant 0 : index
    %51 = vector.load %arg3[%c0_19, %c0_20] : memref<1x8xf32, #tpu.memory_space<vmem>>, vector<1x8xf32>
    %52 = vector.broadcast %51 : vector<1x8xf32> to vector<256x8xf32>
    %53 = arith.mulf %50, %52 : vector<256x8xf32>
    %c0_21 = arith.constant 0 : index
    %c0_22 = arith.constant 0 : index
    %54 = vector.load %arg4[%c0_21, %c0_22] : memref<1x8xf32, #tpu.memory_space<vmem>>, vector<1x8xf32>
    %55 = vector.broadcast %54 : vector<1x8xf32> to vector<256x8xf32>
    %56 = arith.addf %53, %55 : vector<256x8xf32>
    %cst_23 = arith.constant 0.000000e+00 : f32
    %57 = vector.broadcast %cst_23 : f32 to vector<256x8xf32>
    %58 = arith.maximumf %56, %57 : vector<256x8xf32>
    %c0_24 = arith.constant 0 : index
    %c0_25 = arith.constant 0 : index
    %59 = vector.load %arg27[%c0_24, %c0_25] : memref<256x8xf32, #tpu.memory_space<vmem>>, vector<256x8xf32>
    tpu.vector_store %arg27[%c0_24, %c0_25], %58 {strides = array<i32>} : memref<256x8xf32, #tpu.memory_space<vmem>>, vector<256x8xf32>,
    %c0_26 = arith.constant 0 : index
    %c0_27 = arith.constant 0 : index
    %60 = tpu.strided_load %arg27[%c0_26, %c0_27] {strides = array<i32: 4, 1>} : memref<256x8xf32, #tpu.memory_space<vmem>>, vector<64x8xf32>
    %c1 = arith.constant 1 : index
    %c0_28 = arith.constant 0 : index
    %61 = tpu.strided_load %arg27[%c1, %c0_28] {strides = array<i32: 4, 1>} : memref<256x8xf32, #tpu.memory_space<vmem>>, vector<64x8xf32>
    %62 = arith.maximumf %60, %61 : vector<64x8xf32>
    %c2 = arith.constant 2 : index
    %c0_29 = arith.constant 0 : index
    %63 = tpu.strided_load %arg27[%c2, %c0_29] {strides = array<i32: 4, 1>} : memref<256x8xf32, #tpu.memory_space<vmem>>, vector<64x8xf32>
    %64 = arith.maximumf %62, %63 : vector<64x8xf32>
    %c3 = arith.constant 3 : index
    %c0_30 = arith.constant 0 : index
    %65 = tpu.strided_load %arg27[%c3, %c0_30] {strides = array<i32: 4, 1>} : memref<256x8xf32, #tpu.memory_space<vmem>>, vector<64x8xf32>
    %66 = arith.maximumf %64, %65 : vector<64x8xf32>
    %67 = arith.truncf %66 : vector<64x8xf32> to vector<64x8xbf16>
    %c8_31 = arith.constant 8 : index
    %c0_32 = arith.constant 0 : index
    %68 = vector.load %arg22[%c8_31, %c0_32] : memref<80x8xbf16, #tpu.memory_space<vmem>>, vector<64x8xbf16>
    tpu.vector_store %arg22[%c8_31, %c0_32], %67 {strides = array<i32>} : memref<80x8xbf16, #tpu.memory_space<vmem>>, vector<64x8xbf16>,
    %69 = tpu.iota {dimensions = array<i32: 0>} : vector<64x1xi32>
    %c31_i32 = arith.constant 31 : i32
    %70 = vector.broadcast %c31_i32 : i32 to vector<64x1xi32>
    %71 = arith.andi %69, %70 : vector<64x1xi32>
    %c5_33 = arith.constant 5 : index
    %c0_34 = arith.constant 0 : index
    %72 = vector.load %arg22[%c5_33, %c0_34] : memref<80x8xbf16, #tpu.memory_space<vmem>>, vector<64x8xbf16>
    %c3_i32_35 = arith.constant 3 : i32
    %73 = vector.broadcast %c3_i32_35 : i32 to vector<64x1xi32>
    %74 = arith.cmpi sge, %71, %73 : vector<64x1xi32>
    %cst_36 = arith.constant 0.000000e+00 : bf16
    %75 = vector.broadcast %cst_36 : bf16 to vector<64x8xbf16>
    %76 = vector.shape_cast %74 : vector<64x1xi1> to vector<64x1xi1>
    %77 = vector.broadcast %76 : vector<64x1xi1> to vector<64x8xi1>
    %78 = arith.select %77, %72, %75 : vector<64x8xi1>, vector<64x8xbf16>
    %c6_37 = arith.constant 6 : index
    %c0_38 = arith.constant 0 : index
    %79 = vector.load %arg22[%c6_37, %c0_38] : memref<80x8xbf16, #tpu.memory_space<vmem>>, vector<64x8xbf16>
    %c2_i32_39 = arith.constant 2 : i32
    %80 = vector.broadcast %c2_i32_39 : i32 to vector<64x1xi32>
    %81 = arith.cmpi sge, %71, %80 : vector<64x1xi32>
    %cst_40 = arith.constant 0.000000e+00 : bf16
    %82 = vector.broadcast %cst_40 : bf16 to vector<64x8xbf16>
    %83 = vector.shape_cast %81 : vector<64x1xi1> to vector<64x1xi1>
    %84 = vector.broadcast %83 : vector<64x1xi1> to vector<64x8xi1>
    %85 = arith.select %84, %79, %82 : vector<64x8xi1>, vector<64x8xbf16>
    %c7_41 = arith.constant 7 : index
    %c0_42 = arith.constant 0 : index
    %86 = vector.load %arg22[%c7_41, %c0_42] : memref<80x8xbf16, #tpu.memory_space<vmem>>, vector<64x8xbf16>
    %c1_i32_43 = arith.constant 1 : i32
    %87 = vector.broadcast %c1_i32_43 : i32 to vector<64x1xi32>
    %88 = arith.cmpi sge, %71, %87 : vector<64x1xi32>
    %cst_44 = arith.constant 0.000000e+00 : bf16
    %89 = vector.broadcast %cst_44 : bf16 to vector<64x8xbf16>
    %90 = vector.shape_cast %88 : vector<64x1xi1> to vector<64x1xi1>
    %91 = vector.broadcast %90 : vector<64x1xi1> to vector<64x8xi1>
    %92 = arith.select %91, %86, %89 : vector<64x8xi1>, vector<64x8xbf16>
    %c8_45 = arith.constant 8 : index
    %c0_46 = arith.constant 0 : index
    %93 = vector.load %arg22[%c8_45, %c0_46] : memref<80x8xbf16, #tpu.memory_space<vmem>>, vector<64x8xbf16>
    %c9_47 = arith.constant 9 : index
    %c0_48 = arith.constant 0 : index
    %94 = vector.load %arg22[%c9_47, %c0_48] : memref<80x8xbf16, #tpu.memory_space<vmem>>, vector<64x8xbf16>
    %c31_i32_49 = arith.constant 31 : i32
    %95 = vector.broadcast %c31_i32_49 : i32 to vector<64x1xi32>
    %96 = arith.cmpi slt, %71, %95 : vector<64x1xi32>
    %cst_50 = arith.constant 0.000000e+00 : bf16
    %97 = vector.broadcast %cst_50 : bf16 to vector<64x8xbf16>
    %98 = vector.shape_cast %96 : vector<64x1xi1> to vector<64x1xi1>
    %99 = vector.broadcast %98 : vector<64x1xi1> to vector<64x8xi1>
    %100 = arith.select %99, %94, %97 : vector<64x8xi1>, vector<64x8xbf16>
    %c10_51 = arith.constant 10 : index
    %c0_52 = arith.constant 0 : index
    %101 = vector.load %arg22[%c10_51, %c0_52] : memref<80x8xbf16, #tpu.memory_space<vmem>>, vector<64x8xbf16>
    %c30_i32 = arith.constant 30 : i32
    %102 = vector.broadcast %c30_i32 : i32 to vector<64x1xi32>
    %103 = arith.cmpi slt, %71, %102 : vector<64x1xi32>
    %cst_53 = arith.constant 0.000000e+00 : bf16
    %104 = vector.broadcast %cst_53 : bf16 to vector<64x8xbf16>
    %105 = vector.shape_cast %103 : vector<64x1xi1> to vector<64x1xi1>
    %106 = vector.broadcast %105 : vector<64x1xi1> to vector<64x8xi1>
    %107 = arith.select %106, %101, %104 : vector<64x8xi1>, vector<64x8xbf16>
    %c11_54 = arith.constant 11 : index
    %c0_55 = arith.constant 0 : index
    %108 = vector.load %arg22[%c11_54, %c0_55] : memref<80x8xbf16, #tpu.memory_space<vmem>>, vector<64x8xbf16>
    %c29_i32 = arith.constant 29 : i32
    %109 = vector.broadcast %c29_i32 : i32 to vector<64x1xi32>
    %110 = arith.cmpi slt, %71, %109 : vector<64x1xi32>
    %cst_56 = arith.constant 0.000000e+00 : bf16
    %111 = vector.broadcast %cst_56 : bf16 to vector<64x8xbf16>
    %112 = vector.shape_cast %110 : vector<64x1xi1> to vector<64x1xi1>
    %113 = vector.broadcast %112 : vector<64x1xi1> to vector<64x8xi1>
    %114 = arith.select %113, %108, %111 : vector<64x8xi1>, vector<64x8xbf16>
    %115 = tpu.concatenate %78, %85, %92, %93, %100, %107, %114 in 1 : vector<64x8xbf16>, vector<64x8xbf16>, vector<64x8xbf16>, vector<64x8xbf16>, vector<64x8xbf16>, vector<64x8xbf16>, vector<64x8xbf16> -> vector<64x56xbf16>
    %c0_57 = arith.constant 0 : index
    %c0_58 = arith.constant 0 : index
    %116 = vector.load %arg5[%c0_57, %c0_58] : memref<56x16xbf16, #tpu.memory_space<vmem>>, vector<56x16xbf16>
    %cst_59 = arith.constant dense<0.000000e+00> : vector<64x16xf32>
    %117 = tpu.matmul %115, %116, %cst_59 {dimension_numbers = #tpu.dot_dimension_numbers<[1], [0], [0], [1], [0, 0, 1, 1], [], []>} : vector<64x56xbf16>, vector<56x16xbf16>, vector<64x16xf32> -> vector<64x16xf32>
    %c0_60 = arith.constant 0 : index
    %c0_61 = arith.constant 0 : index
    %118 = vector.load %arg6[%c0_60, %c0_61] : memref<1x16xf32, #tpu.memory_space<vmem>>, vector<1x16xf32>
    %119 = vector.broadcast %118 : vector<1x16xf32> to vector<64x16xf32>
    %120 = arith.mulf %117, %119 : vector<64x16xf32>
    %c0_62 = arith.constant 0 : index
    %c0_63 = arith.constant 0 : index
    %121 = vector.load %arg7[%c0_62, %c0_63] : memref<1x16xf32, #tpu.memory_space<vmem>>, vector<1x16xf32>
    %122 = vector.broadcast %121 : vector<1x16xf32> to vector<64x16xf32>
    %123 = arith.addf %120, %122 : vector<64x16xf32>
    %cst_64 = arith.constant 0.000000e+00 : f32
    %124 = vector.broadcast %cst_64 : f32 to vector<64x16xf32>
    %125 = arith.maximumf %123, %124 : vector<64x16xf32>
    %c0_65 = arith.constant 0 : index
    %c0_66 = arith.constant 0 : index
    %126 = vector.load %arg28[%c0_65, %c0_66] : memref<64x16xf32, #tpu.memory_space<vmem>>, vector<64x16xf32>
    tpu.vector_store %arg28[%c0_65, %c0_66], %125 {strides = array<i32>} : memref<64x16xf32, #tpu.memory_space<vmem>>, vector<64x16xf32>,
    %c0_67 = arith.constant 0 : index
    %c0_68 = arith.constant 0 : index
    %127 = tpu.strided_load %arg28[%c0_67, %c0_68] {strides = array<i32: 2, 1>} : memref<64x16xf32, #tpu.memory_space<vmem>>, vector<32x16xf32>
    %c1_69 = arith.constant 1 : index
    %c0_70 = arith.constant 0 : index
    %128 = tpu.strided_load %arg28[%c1_69, %c0_70] {strides = array<i32: 2, 1>} : memref<64x16xf32, #tpu.memory_space<vmem>>, vector<32x16xf32>
    %129 = arith.maximumf %127, %128 : vector<32x16xf32>
    %130 = arith.truncf %129 : vector<32x16xf32> to vector<32x16xbf16>
    %c8_71 = arith.constant 8 : index
    %c0_72 = arith.constant 0 : index
    %131 = vector.load %arg23[%c8_71, %c0_72] : memref<48x16xbf16, #tpu.memory_space<vmem>>, vector<32x16xbf16>
    tpu.vector_store %arg23[%c8_71, %c0_72], %130 {strides = array<i32>} : memref<48x16xbf16, #tpu.memory_space<vmem>>, vector<32x16xbf16>,
    %132 = tpu.iota {dimensions = array<i32: 0>} : vector<32x1xi32>
    %c15_i32 = arith.constant 15 : i32
    %133 = vector.broadcast %c15_i32 : i32 to vector<32x1xi32>
    %134 = arith.andi %132, %133 : vector<32x1xi32>
    %c5_73 = arith.constant 5 : index
    %c0_74 = arith.constant 0 : index
    %135 = vector.load %arg23[%c5_73, %c0_74] : memref<48x16xbf16, #tpu.memory_space<vmem>>, vector<32x16xbf16>
    %c3_i32_75 = arith.constant 3 : i32
    %136 = vector.broadcast %c3_i32_75 : i32 to vector<32x1xi32>
    %137 = arith.cmpi sge, %134, %136 : vector<32x1xi32>
    %cst_76 = arith.constant 0.000000e+00 : bf16
    %138 = vector.broadcast %cst_76 : bf16 to vector<32x16xbf16>
    %139 = vector.shape_cast %137 : vector<32x1xi1> to vector<32x1xi1>
    %140 = vector.broadcast %139 : vector<32x1xi1> to vector<32x16xi1>
    %141 = arith.select %140, %135, %138 : vector<32x16xi1>, vector<32x16xbf16>
    %c6_77 = arith.constant 6 : index
    %c0_78 = arith.constant 0 : index
    %142 = vector.load %arg23[%c6_77, %c0_78] : memref<48x16xbf16, #tpu.memory_space<vmem>>, vector<32x16xbf16>
    %c2_i32_79 = arith.constant 2 : i32
    %143 = vector.broadcast %c2_i32_79 : i32 to vector<32x1xi32>
    %144 = arith.cmpi sge, %134, %143 : vector<32x1xi32>
    %cst_80 = arith.constant 0.000000e+00 : bf16
    %145 = vector.broadcast %cst_80 : bf16 to vector<32x16xbf16>
    %146 = vector.shape_cast %144 : vector<32x1xi1> to vector<32x1xi1>
    %147 = vector.broadcast %146 : vector<32x1xi1> to vector<32x16xi1>
    %148 = arith.select %147, %142, %145 : vector<32x16xi1>, vector<32x16xbf16>
    %c7_81 = arith.constant 7 : index
    %c0_82 = arith.constant 0 : index
    %149 = vector.load %arg23[%c7_81, %c0_82] : memref<48x16xbf16, #tpu.memory_space<vmem>>, vector<32x16xbf16>
    %c1_i32_83 = arith.constant 1 : i32
    %150 = vector.broadcast %c1_i32_83 : i32 to vector<32x1xi32>
    %151 = arith.cmpi sge, %134, %150 : vector<32x1xi32>
    %cst_84 = arith.constant 0.000000e+00 : bf16
    %152 = vector.broadcast %cst_84 : bf16 to vector<32x16xbf16>
    %153 = vector.shape_cast %151 : vector<32x1xi1> to vector<32x1xi1>
    %154 = vector.broadcast %153 : vector<32x1xi1> to vector<32x16xi1>
    %155 = arith.select %154, %149, %152 : vector<32x16xi1>, vector<32x16xbf16>
    %c8_85 = arith.constant 8 : index
    %c0_86 = arith.constant 0 : index
    %156 = vector.load %arg23[%c8_85, %c0_86] : memref<48x16xbf16, #tpu.memory_space<vmem>>, vector<32x16xbf16>
    %c9_87 = arith.constant 9 : index
    %c0_88 = arith.constant 0 : index
    %157 = vector.load %arg23[%c9_87, %c0_88] : memref<48x16xbf16, #tpu.memory_space<vmem>>, vector<32x16xbf16>
    %c15_i32_89 = arith.constant 15 : i32
    %158 = vector.broadcast %c15_i32_89 : i32 to vector<32x1xi32>
    %159 = arith.cmpi slt, %134, %158 : vector<32x1xi32>
    %cst_90 = arith.constant 0.000000e+00 : bf16
    %160 = vector.broadcast %cst_90 : bf16 to vector<32x16xbf16>
    %161 = vector.shape_cast %159 : vector<32x1xi1> to vector<32x1xi1>
    %162 = vector.broadcast %161 : vector<32x1xi1> to vector<32x16xi1>
    %163 = arith.select %162, %157, %160 : vector<32x16xi1>, vector<32x16xbf16>
    %c10_91 = arith.constant 10 : index
    %c0_92 = arith.constant 0 : index
    %164 = vector.load %arg23[%c10_91, %c0_92] : memref<48x16xbf16, #tpu.memory_space<vmem>>, vector<32x16xbf16>
    %c14_i32 = arith.constant 14 : i32
    %165 = vector.broadcast %c14_i32 : i32 to vector<32x1xi32>
    %166 = arith.cmpi slt, %134, %165 : vector<32x1xi32>
    %cst_93 = arith.constant 0.000000e+00 : bf16
    %167 = vector.broadcast %cst_93 : bf16 to vector<32x16xbf16>
    %168 = vector.shape_cast %166 : vector<32x1xi1> to vector<32x1xi1>
    %169 = vector.broadcast %168 : vector<32x1xi1> to vector<32x16xi1>
    %170 = arith.select %169, %164, %167 : vector<32x16xi1>, vector<32x16xbf16>
    %c11_94 = arith.constant 11 : index
    %c0_95 = arith.constant 0 : index
    %171 = vector.load %arg23[%c11_94, %c0_95] : memref<48x16xbf16, #tpu.memory_space<vmem>>, vector<32x16xbf16>
    %c13_i32 = arith.constant 13 : i32
    %172 = vector.broadcast %c13_i32 : i32 to vector<32x1xi32>
    %173 = arith.cmpi slt, %134, %172 : vector<32x1xi32>
    %cst_96 = arith.constant 0.000000e+00 : bf16
    %174 = vector.broadcast %cst_96 : bf16 to vector<32x16xbf16>
    %175 = vector.shape_cast %173 : vector<32x1xi1> to vector<32x1xi1>
    %176 = vector.broadcast %175 : vector<32x1xi1> to vector<32x16xi1>
    %177 = arith.select %176, %171, %174 : vector<32x16xi1>, vector<32x16xbf16>
    %178 = tpu.concatenate %141, %148, %155, %156, %163, %170, %177 in 1 : vector<32x16xbf16>, vector<32x16xbf16>, vector<32x16xbf16>, vector<32x16xbf16>, vector<32x16xbf16>, vector<32x16xbf16>, vector<32x16xbf16> -> vector<32x112xbf16>
    %c0_97 = arith.constant 0 : index
    %c0_98 = arith.constant 0 : index
    %179 = vector.load %arg8[%c0_97, %c0_98] : memref<112x32xbf16, #tpu.memory_space<vmem>>, vector<112x32xbf16>
    %cst_99 = arith.constant dense<0.000000e+00> : vector<32x32xf32>
    %180 = tpu.matmul %178, %179, %cst_99 {dimension_numbers = #tpu.dot_dimension_numbers<[1], [0], [0], [1], [0, 0, 1, 1], [], []>} : vector<32x112xbf16>, vector<112x32xbf16>, vector<32x32xf32> -> vector<32x32xf32>
    %c0_100 = arith.constant 0 : index
    %c0_101 = arith.constant 0 : index
    %181 = vector.load %arg9[%c0_100, %c0_101] : memref<1x32xf32, #tpu.memory_space<vmem>>, vector<1x32xf32>
    %182 = vector.broadcast %181 : vector<1x32xf32> to vector<32x32xf32>
    %183 = arith.mulf %180, %182 : vector<32x32xf32>
    %c0_102 = arith.constant 0 : index
    %c0_103 = arith.constant 0 : index
    %184 = vector.load %arg10[%c0_102, %c0_103] : memref<1x32xf32, #tpu.memory_space<vmem>>, vector<1x32xf32>
    %185 = vector.broadcast %184 : vector<1x32xf32> to vector<32x32xf32>
    %186 = arith.addf %183, %185 : vector<32x32xf32>
    %cst_104 = arith.constant 0.000000e+00 : f32
    %187 = vector.broadcast %cst_104 : f32 to vector<32x32xf32>
    %188 = arith.maximumf %186, %187 : vector<32x32xf32>
    %c0_105 = arith.constant 0 : index
    %c0_106 = arith.constant 0 : index
    %189 = vector.load %arg29[%c0_105, %c0_106] : memref<32x32xf32, #tpu.memory_space<vmem>>, vector<32x32xf32>
    tpu.vector_store %arg29[%c0_105, %c0_106], %188 {strides = array<i32>} : memref<32x32xf32, #tpu.memory_space<vmem>>, vector<32x32xf32>,
    %c0_107 = arith.constant 0 : index
    %c0_108 = arith.constant 0 : index
    %190 = tpu.strided_load %arg29[%c0_107, %c0_108] {strides = array<i32: 2, 1>} : memref<32x32xf32, #tpu.memory_space<vmem>>, vector<16x32xf32>
    %c1_109 = arith.constant 1 : index
    %c0_110 = arith.constant 0 : index
    %191 = tpu.strided_load %arg29[%c1_109, %c0_110] {strides = array<i32: 2, 1>} : memref<32x32xf32, #tpu.memory_space<vmem>>, vector<16x32xf32>
    %192 = arith.maximumf %190, %191 : vector<16x32xf32>
    %193 = arith.truncf %192 : vector<16x32xf32> to vector<16x32xbf16>
    %c8_111 = arith.constant 8 : index
    %c0_112 = arith.constant 0 : index
    %194 = vector.load %arg24[%c8_111, %c0_112] : memref<32x32xbf16, #tpu.memory_space<vmem>>, vector<16x32xbf16>
    tpu.vector_store %arg24[%c8_111, %c0_112], %193 {strides = array<i32>} : memref<32x32xbf16, #tpu.memory_space<vmem>>, vector<16x32xbf16>,
    %195 = tpu.iota {dimensions = array<i32: 0>} : vector<16x1xi32>
    %c7_i32 = arith.constant 7 : i32
    %196 = vector.broadcast %c7_i32 : i32 to vector<16x1xi32>
    %197 = arith.andi %195, %196 : vector<16x1xi32>
    %c6_113 = arith.constant 6 : index
    %c0_114 = arith.constant 0 : index
    %198 = vector.load %arg24[%c6_113, %c0_114] : memref<32x32xbf16, #tpu.memory_space<vmem>>, vector<16x32xbf16>
    %c2_i32_115 = arith.constant 2 : i32
    %199 = vector.broadcast %c2_i32_115 : i32 to vector<16x1xi32>
    %200 = arith.cmpi sge, %197, %199 : vector<16x1xi32>
    %cst_116 = arith.constant 0.000000e+00 : bf16
    %201 = vector.broadcast %cst_116 : bf16 to vector<16x32xbf16>
    %202 = vector.shape_cast %200 : vector<16x1xi1> to vector<16x1xi1>
    %203 = vector.broadcast %202 : vector<16x1xi1> to vector<16x32xi1>
    %204 = arith.select %203, %198, %201 : vector<16x32xi1>, vector<16x32xbf16>
    %c7_117 = arith.constant 7 : index
    %c0_118 = arith.constant 0 : index
    %205 = vector.load %arg24[%c7_117, %c0_118] : memref<32x32xbf16, #tpu.memory_space<vmem>>, vector<16x32xbf16>
    %c1_i32_119 = arith.constant 1 : i32
    %206 = vector.broadcast %c1_i32_119 : i32 to vector<16x1xi32>
    %207 = arith.cmpi sge, %197, %206 : vector<16x1xi32>
    %cst_120 = arith.constant 0.000000e+00 : bf16
    %208 = vector.broadcast %cst_120 : bf16 to vector<16x32xbf16>
    %209 = vector.shape_cast %207 : vector<16x1xi1> to vector<16x1xi1>
    %210 = vector.broadcast %209 : vector<16x1xi1> to vector<16x32xi1>
    %211 = arith.select %210, %205, %208 : vector<16x32xi1>, vector<16x32xbf16>
    %c8_121 = arith.constant 8 : index
    %c0_122 = arith.constant 0 : index
    %212 = vector.load %arg24[%c8_121, %c0_122] : memref<32x32xbf16, #tpu.memory_space<vmem>>, vector<16x32xbf16>
    %c9_123 = arith.constant 9 : index
    %c0_124 = arith.constant 0 : index
    %213 = vector.load %arg24[%c9_123, %c0_124] : memref<32x32xbf16, #tpu.memory_space<vmem>>, vector<16x32xbf16>
    %c7_i32_125 = arith.constant 7 : i32
    %214 = vector.broadcast %c7_i32_125 : i32 to vector<16x1xi32>
    %215 = arith.cmpi slt, %197, %214 : vector<16x1xi32>
    %cst_126 = arith.constant 0.000000e+00 : bf16
    %216 = vector.broadcast %cst_126 : bf16 to vector<16x32xbf16>
    %217 = vector.shape_cast %215 : vector<16x1xi1> to vector<16x1xi1>
    %218 = vector.broadcast %217 : vector<16x1xi1> to vector<16x32xi1>
    %219 = arith.select %218, %213, %216 : vector<16x32xi1>, vector<16x32xbf16>
    %c10_127 = arith.constant 10 : index
    %c0_128 = arith.constant 0 : index
    %220 = vector.load %arg24[%c10_127, %c0_128] : memref<32x32xbf16, #tpu.memory_space<vmem>>, vector<16x32xbf16>
    %c6_i32 = arith.constant 6 : i32
    %221 = vector.broadcast %c6_i32 : i32 to vector<16x1xi32>
    %222 = arith.cmpi slt, %197, %221 : vector<16x1xi32>
    %cst_129 = arith.constant 0.000000e+00 : bf16
    %223 = vector.broadcast %cst_129 : bf16 to vector<16x32xbf16>
    %224 = vector.shape_cast %222 : vector<16x1xi1> to vector<16x1xi1>
    %225 = vector.broadcast %224 : vector<16x1xi1> to vector<16x32xi1>
    %226 = arith.select %225, %220, %223 : vector<16x32xi1>, vector<16x32xbf16>
    %227 = tpu.concatenate %204, %211, %212, %219, %226 in 1 : vector<16x32xbf16>, vector<16x32xbf16>, vector<16x32xbf16>, vector<16x32xbf16>, vector<16x32xbf16> -> vector<16x160xbf16>
    %c0_130 = arith.constant 0 : index
    %c0_131 = arith.constant 0 : index
    %228 = vector.load %arg11[%c0_130, %c0_131] : memref<160x64xbf16, #tpu.memory_space<vmem>>, vector<160x64xbf16>
    %cst_132 = arith.constant dense<0.000000e+00> : vector<16x64xf32>
    %229 = tpu.matmul %227, %228, %cst_132 {dimension_numbers = #tpu.dot_dimension_numbers<[1], [0], [0], [1], [0, 0, 1, 1], [], []>} : vector<16x160xbf16>, vector<160x64xbf16>, vector<16x64xf32> -> vector<16x64xf32>
    %c0_133 = arith.constant 0 : index
    %c0_134 = arith.constant 0 : index
    %230 = vector.load %arg12[%c0_133, %c0_134] : memref<1x64xf32, #tpu.memory_space<vmem>>, vector<1x64xf32>
    %231 = vector.broadcast %230 : vector<1x64xf32> to vector<16x64xf32>
    %232 = arith.mulf %229, %231 : vector<16x64xf32>
    %c0_135 = arith.constant 0 : index
    %c0_136 = arith.constant 0 : index
    %233 = vector.load %arg13[%c0_135, %c0_136] : memref<1x64xf32, #tpu.memory_space<vmem>>, vector<1x64xf32>
    %234 = vector.broadcast %233 : vector<1x64xf32> to vector<16x64xf32>
    %235 = arith.addf %232, %234 : vector<16x64xf32>
    %cst_137 = arith.constant 0.000000e+00 : f32
    %236 = vector.broadcast %cst_137 : f32 to vector<16x64xf32>
    %237 = arith.maximumf %235, %236 : vector<16x64xf32>
    %c0_138 = arith.constant 0 : index
    %c0_139 = arith.constant 0 : index
    %238 = vector.load %arg30[%c0_138, %c0_139] : memref<16x64xf32, #tpu.memory_space<vmem>>, vector<16x64xf32>
    tpu.vector_store %arg30[%c0_138, %c0_139], %237 {strides = array<i32>} : memref<16x64xf32, #tpu.memory_space<vmem>>, vector<16x64xf32>,
    %c0_140 = arith.constant 0 : index
    %c0_141 = arith.constant 0 : index
    %239 = tpu.strided_load %arg30[%c0_140, %c0_141] {strides = array<i32: 2, 1>} : memref<16x64xf32, #tpu.memory_space<vmem>>, vector<8x64xf32>
    %c1_142 = arith.constant 1 : index
    %c0_143 = arith.constant 0 : index
    %240 = tpu.strided_load %arg30[%c1_142, %c0_143] {strides = array<i32: 2, 1>} : memref<16x64xf32, #tpu.memory_space<vmem>>, vector<8x64xf32>
    %241 = arith.maximumf %239, %240 : vector<8x64xf32>
    %242 = arith.truncf %241 : vector<8x64xf32> to vector<8x64xbf16>
    %c8_144 = arith.constant 8 : index
    %c0_145 = arith.constant 0 : index
    %243 = vector.load %arg25[%c8_144, %c0_145] : memref<24x64xbf16, #tpu.memory_space<vmem>>, vector<8x64xbf16>
    tpu.vector_store %arg25[%c8_144, %c0_145], %242 {strides = array<i32>} : memref<24x64xbf16, #tpu.memory_space<vmem>>, vector<8x64xbf16>,
    %244 = tpu.iota {dimensions = array<i32: 0>} : vector<8x1xi32>
    %c3_i32_146 = arith.constant 3 : i32
    %245 = vector.broadcast %c3_i32_146 : i32 to vector<8x1xi32>
    %246 = arith.andi %244, %245 : vector<8x1xi32>
    %c6_147 = arith.constant 6 : index
    %c0_148 = arith.constant 0 : index
    %247 = vector.load %arg25[%c6_147, %c0_148] : memref<24x64xbf16, #tpu.memory_space<vmem>>, vector<8x64xbf16>
    %c2_i32_149 = arith.constant 2 : i32
    %248 = vector.broadcast %c2_i32_149 : i32 to vector<8x1xi32>
    %249 = arith.cmpi sge, %246, %248 : vector<8x1xi32>
    %cst_150 = arith.constant 0.000000e+00 : bf16
    %250 = vector.broadcast %cst_150 : bf16 to vector<8x64xbf16>
    %251 = vector.shape_cast %249 : vector<8x1xi1> to vector<8x1xi1>
    %252 = vector.broadcast %251 : vector<8x1xi1> to vector<8x64xi1>
    %253 = arith.select %252, %247, %250 : vector<8x64xi1>, vector<8x64xbf16>
    %c7_151 = arith.constant 7 : index
    %c0_152 = arith.constant 0 : index
    %254 = vector.load %arg25[%c7_151, %c0_152] : memref<24x64xbf16, #tpu.memory_space<vmem>>, vector<8x64xbf16>
    %c1_i32_153 = arith.constant 1 : i32
    %255 = vector.broadcast %c1_i32_153 : i32 to vector<8x1xi32>
    %256 = arith.cmpi sge, %246, %255 : vector<8x1xi32>
    %cst_154 = arith.constant 0.000000e+00 : bf16
    %257 = vector.broadcast %cst_154 : bf16 to vector<8x64xbf16>
    %258 = vector.shape_cast %256 : vector<8x1xi1> to vector<8x1xi1>
    %259 = vector.broadcast %258 : vector<8x1xi1> to vector<8x64xi1>
    %260 = arith.select %259, %254, %257 : vector<8x64xi1>, vector<8x64xbf16>
    %c8_155 = arith.constant 8 : index
    %c0_156 = arith.constant 0 : index
    %261 = vector.load %arg25[%c8_155, %c0_156] : memref<24x64xbf16, #tpu.memory_space<vmem>>, vector<8x64xbf16>
    %c9_157 = arith.constant 9 : index
    %c0_158 = arith.constant 0 : index
    %262 = vector.load %arg25[%c9_157, %c0_158] : memref<24x64xbf16, #tpu.memory_space<vmem>>, vector<8x64xbf16>
    %c3_i32_159 = arith.constant 3 : i32
    %263 = vector.broadcast %c3_i32_159 : i32 to vector<8x1xi32>
    %264 = arith.cmpi slt, %246, %263 : vector<8x1xi32>
    %cst_160 = arith.constant 0.000000e+00 : bf16
    %265 = vector.broadcast %cst_160 : bf16 to vector<8x64xbf16>
    %266 = vector.shape_cast %264 : vector<8x1xi1> to vector<8x1xi1>
    %267 = vector.broadcast %266 : vector<8x1xi1> to vector<8x64xi1>
    %268 = arith.select %267, %262, %265 : vector<8x64xi1>, vector<8x64xbf16>
    %c10_161 = arith.constant 10 : index
    %c0_162 = arith.constant 0 : index
    %269 = vector.load %arg25[%c10_161, %c0_162] : memref<24x64xbf16, #tpu.memory_space<vmem>>, vector<8x64xbf16>
    %c2_i32_163 = arith.constant 2 : i32
    %270 = vector.broadcast %c2_i32_163 : i32 to vector<8x1xi32>
    %271 = arith.cmpi slt, %246, %270 : vector<8x1xi32>
    %cst_164 = arith.constant 0.000000e+00 : bf16
    %272 = vector.broadcast %cst_164 : bf16 to vector<8x64xbf16>
    %273 = vector.shape_cast %271 : vector<8x1xi1> to vector<8x1xi1>
    %274 = vector.broadcast %273 : vector<8x1xi1> to vector<8x64xi1>
    %275 = arith.select %274, %269, %272 : vector<8x64xi1>, vector<8x64xbf16>
    %276 = tpu.concatenate %253, %260, %261, %268, %275 in 1 : vector<8x64xbf16>, vector<8x64xbf16>, vector<8x64xbf16>, vector<8x64xbf16>, vector<8x64xbf16> -> vector<8x320xbf16>
    %c0_165 = arith.constant 0 : index
    %c0_166 = arith.constant 0 : index
    %277 = vector.load %arg14[%c0_165, %c0_166] : memref<320x64xbf16, #tpu.memory_space<vmem>>, vector<320x64xbf16>
    %cst_167 = arith.constant dense<0.000000e+00> : vector<8x64xf32>
    %278 = tpu.matmul %276, %277, %cst_167 {dimension_numbers = #tpu.dot_dimension_numbers<[1], [0], [0], [1], [0, 0, 1, 1], [], []>} : vector<8x320xbf16>, vector<320x64xbf16>, vector<8x64xf32> -> vector<8x64xf32>
    %c0_168 = arith.constant 0 : index
    %c0_169 = arith.constant 0 : index
    %279 = vector.load %arg15[%c0_168, %c0_169] : memref<1x64xf32, #tpu.memory_space<vmem>>, vector<1x64xf32>
    %280 = vector.broadcast %279 : vector<1x64xf32> to vector<8x64xf32>
    %281 = arith.mulf %278, %280 : vector<8x64xf32>
    %c0_170 = arith.constant 0 : index
    %c0_171 = arith.constant 0 : index
    %282 = vector.load %arg16[%c0_170, %c0_171] : memref<1x64xf32, #tpu.memory_space<vmem>>, vector<1x64xf32>
    %283 = vector.broadcast %282 : vector<1x64xf32> to vector<8x64xf32>
    %284 = arith.addf %281, %283 : vector<8x64xf32>
    %cst_172 = arith.constant 0.000000e+00 : f32
    %285 = vector.broadcast %cst_172 : f32 to vector<8x64xf32>
    %286 = arith.maximumf %284, %285 : vector<8x64xf32>
    %c0_173 = arith.constant 0 : index
    %c0_174 = arith.constant 0 : index
    %287 = vector.load %arg31[%c0_173, %c0_174] : memref<8x64xf32, #tpu.memory_space<vmem>>, vector<8x64xf32>
    tpu.vector_store %arg31[%c0_173, %c0_174], %286 {strides = array<i32>} : memref<8x64xf32, #tpu.memory_space<vmem>>, vector<8x64xf32>,
    %c0_175 = arith.constant 0 : index
    %c0_176 = arith.constant 0 : index
    %288 = tpu.strided_load %arg31[%c0_175, %c0_176] {strides = array<i32: 2, 1>} : memref<8x64xf32, #tpu.memory_space<vmem>>, vector<4x64xf32>
    %c1_177 = arith.constant 1 : index
    %c0_178 = arith.constant 0 : index
    %289 = tpu.strided_load %arg31[%c1_177, %c0_178] {strides = array<i32: 2, 1>} : memref<8x64xf32, #tpu.memory_space<vmem>>, vector<4x64xf32>
    %290 = arith.maximumf %288, %289 : vector<4x64xf32>
    %291 = arith.truncf %290 : vector<4x64xf32> to vector<4x64xbf16>
    %c8_179 = arith.constant 8 : index
    %c0_180 = arith.constant 0 : index
    %292 = vector.load %arg26[%c8_179, %c0_180] : memref<20x64xbf16, #tpu.memory_space<vmem>>, vector<4x64xbf16>
    tpu.vector_store %arg26[%c8_179, %c0_180], %291 {strides = array<i32>} : memref<20x64xbf16, #tpu.memory_space<vmem>>, vector<4x64xbf16>,
    %293 = tpu.iota {dimensions = array<i32: 0>} : vector<4x1xi32>
    %c1_i32_181 = arith.constant 1 : i32
    %294 = vector.broadcast %c1_i32_181 : i32 to vector<4x1xi32>
    %295 = arith.andi %293, %294 : vector<4x1xi32>
    %c8_182 = arith.constant 8 : index
    %c0_183 = arith.constant 0 : index
    %296 = vector.load %arg26[%c8_182, %c0_183] : memref<20x64xbf16, #tpu.memory_space<vmem>>, vector<4x64xbf16>
    %c9_184 = arith.constant 9 : index
    %c0_185 = arith.constant 0 : index
    %297 = vector.load %arg26[%c9_184, %c0_185] : memref<20x64xbf16, #tpu.memory_space<vmem>>, vector<4x64xbf16>
    %c1_i32_186 = arith.constant 1 : i32
    %298 = vector.broadcast %c1_i32_186 : i32 to vector<4x1xi32>
    %299 = arith.cmpi slt, %295, %298 : vector<4x1xi32>
    %cst_187 = arith.constant 0.000000e+00 : bf16
    %300 = vector.broadcast %cst_187 : bf16 to vector<4x64xbf16>
    %301 = vector.shape_cast %299 : vector<4x1xi1> to vector<4x1xi1>
    %302 = vector.broadcast %301 : vector<4x1xi1> to vector<4x64xi1>
    %303 = arith.select %302, %297, %300 : vector<4x64xi1>, vector<4x64xbf16>
    %304 = tpu.concatenate %296, %303 in 1 : vector<4x64xbf16>, vector<4x64xbf16> -> vector<4x128xbf16>
    %c0_188 = arith.constant 0 : index
    %c0_189 = arith.constant 0 : index
    %305 = vector.load %arg17[%c0_188, %c0_189] : memref<128x1xbf16, #tpu.memory_space<vmem>>, vector<128x1xbf16>
    %cst_190 = arith.constant dense<0.000000e+00> : vector<4x1xf32>
    %306 = tpu.matmul %304, %305, %cst_190 {dimension_numbers = #tpu.dot_dimension_numbers<[1], [0], [0], [1], [0, 0, 1, 1], [], []>} : vector<4x128xbf16>, vector<128x1xbf16>, vector<4x1xf32> -> vector<4x1xf32>
    %c0_191 = arith.constant 0 : index
    %c0_192 = arith.constant 0 : index
    %307 = vector.load %arg18[%c0_191, %c0_192] : memref<1x1xf32, #tpu.memory_space<vmem>>, vector<1x1xf32>
    %308 = vector.broadcast %307 : vector<1x1xf32> to vector<4x1xf32>
    %309 = arith.mulf %306, %308 : vector<4x1xf32>
    %c0_193 = arith.constant 0 : index
    %c0_194 = arith.constant 0 : index
    %310 = vector.load %arg19[%c0_193, %c0_194] : memref<1x1xf32, #tpu.memory_space<vmem>>, vector<1x1xf32>
    %311 = vector.broadcast %310 : vector<1x1xf32> to vector<4x1xf32>
    %312 = arith.addf %309, %311 : vector<4x1xf32>
    %313 = arith.negf %312 : vector<4x1xf32>
    %314 = math.exp %313 : vector<4x1xf32>
    %cst_195 = arith.constant 1.000000e+00 : f32
    %315 = vector.broadcast %cst_195 : f32 to vector<4x1xf32>
    %316 = arith.addf %315, %314 : vector<4x1xf32>
    %317 = arith.divf %315, %316 : vector<4x1xf32>
    %c0_196 = arith.constant 0 : index
    %c0_197 = arith.constant 0 : index
    %318 = vector.load %arg32[%c0_196, %c0_197] : memref<4x1xf32, #tpu.memory_space<vmem>>, vector<4x1xf32>
    tpu.vector_store %arg32[%c0_196, %c0_197], %317 {strides = array<i32>} : memref<4x1xf32, #tpu.memory_space<vmem>>, vector<4x1xf32>,
    %c0_198 = arith.constant 0 : index
    %c0_199 = arith.constant 0 : index
    %319 = tpu.strided_load %arg32[%c0_198, %c0_199] {strides = array<i32: 2, 1>} : memref<4x1xf32, #tpu.memory_space<vmem>>, vector<2x1xf32>
    %c0_200 = arith.constant 0 : index
    %c0_201 = arith.constant 0 : index
    %320 = vector.load %arg20[%c0_200, %c0_201] : memref<2x1xf32, #tpu.memory_space<vmem>>, vector<2x1xf32>
    tpu.vector_store %arg20[%c0_200, %c0_201], %319 {strides = array<i32>} : memref<2x1xf32, #tpu.memory_space<vmem>>, vector<2x1xf32>,
    return
  }
  func.func @transform_0(%arg0: i32) -> (i32, i32) {
    %c0_i32 = arith.constant 0 : i32
    %c0_i32_0 = arith.constant 0 : i32
    return %arg0, %c0_i32 : i32, i32
  }
  func.func @transform_1(%arg0: i32) -> (i32, i32) {
    %c0_i32 = arith.constant 0 : i32
    %c0_i32_0 = arith.constant 0 : i32
    %c0_i32_1 = arith.constant 0 : i32
    return %c0_i32, %c0_i32_0 : i32, i32
  }
  func.func @transform_2(%arg0: i32) -> (i32, i32) {
    %c0_i32 = arith.constant 0 : i32
    %c0_i32_0 = arith.constant 0 : i32
    %c0_i32_1 = arith.constant 0 : i32
    return %c0_i32, %c0_i32_0 : i32, i32
  }
  func.func @transform_3(%arg0: i32) -> (i32, i32) {
    %c0_i32 = arith.constant 0 : i32
    %c0_i32_0 = arith.constant 0 : i32
    %c0_i32_1 = arith.constant 0 : i32
    return %c0_i32, %c0_i32_0 : i32, i32
  }
  func.func @transform_4(%arg0: i32) -> (i32, i32) {
    %c0_i32 = arith.constant 0 : i32
    %c0_i32_0 = arith.constant 0 : i32
    %c0_i32_1 = arith.constant 0 : i32
    return %c0_i32, %c0_i32_0 : i32, i32
  }
  func.func @transform_5(%arg0: i32) -> (i32, i32) {
    %c0_i32 = arith.constant 0 : i32
    %c0_i32_0 = arith.constant 0 : i32
    %c0_i32_1 = arith.constant 0 : i32
    return %c0_i32, %c0_i32_0 : i32, i32
  }
  func.func @transform_6(%arg0: i32) -> (i32, i32) {
    %c0_i32 = arith.constant 0 : i32
    %c0_i32_0 = arith.constant 0 : i32
    %c0_i32_1 = arith.constant 0 : i32
    return %c0_i32, %c0_i32_0 : i32, i32
  }
  func.func @transform_7(%arg0: i32) -> (i32, i32) {
    %c0_i32 = arith.constant 0 : i32
    %c0_i32_0 = arith.constant 0 : i32
    %c0_i32_1 = arith.constant 0 : i32
    return %c0_i32, %c0_i32_0 : i32, i32
  }
  func.func @transform_8(%arg0: i32) -> (i32, i32) {
    %c0_i32 = arith.constant 0 : i32
    %c0_i32_0 = arith.constant 0 : i32
    %c0_i32_1 = arith.constant 0 : i32
    return %c0_i32, %c0_i32_0 : i32, i32
  }
  func.func @transform_9(%arg0: i32) -> (i32, i32) {
    %c0_i32 = arith.constant 0 : i32
    %c0_i32_0 = arith.constant 0 : i32
    %c0_i32_1 = arith.constant 0 : i32
    return %c0_i32, %c0_i32_0 : i32, i32
  }
  func.func @transform_10(%arg0: i32) -> (i32, i32) {
    %c0_i32 = arith.constant 0 : i32
    %c0_i32_0 = arith.constant 0 : i32
    %c0_i32_1 = arith.constant 0 : i32
    return %c0_i32, %c0_i32_0 : i32, i32
  }
  func.func @transform_11(%arg0: i32) -> (i32, i32) {
    %c0_i32 = arith.constant 0 : i32
    %c0_i32_0 = arith.constant 0 : i32
    %c0_i32_1 = arith.constant 0 : i32
    return %c0_i32, %c0_i32_0 : i32, i32
  }
  func.func @transform_12(%arg0: i32) -> (i32, i32) {
    %c0_i32 = arith.constant 0 : i32
    %c0_i32_0 = arith.constant 0 : i32
    %c0_i32_1 = arith.constant 0 : i32
    return %c0_i32, %c0_i32_0 : i32, i32
  }
  func.func @transform_13(%arg0: i32) -> (i32, i32) {
    %c0_i32 = arith.constant 0 : i32
    %c0_i32_0 = arith.constant 0 : i32
    %c0_i32_1 = arith.constant 0 : i32
    return %c0_i32, %c0_i32_0 : i32, i32
  }
  func.func @transform_14(%arg0: i32) -> (i32, i32) {
    %c0_i32 = arith.constant 0 : i32
    %c0_i32_0 = arith.constant 0 : i32
    %c0_i32_1 = arith.constant 0 : i32
    return %c0_i32, %c0_i32_0 : i32, i32
  }
  func.func @transform_15(%arg0: i32) -> (i32, i32) {
    %c0_i32 = arith.constant 0 : i32
    %c0_i32_0 = arith.constant 0 : i32
    %c0_i32_1 = arith.constant 0 : i32
    return %c0_i32, %c0_i32_0 : i32, i32
  }
  func.func @transform_16(%arg0: i32) -> (i32, i32) {
    %c0_i32 = arith.constant 0 : i32
    %c0_i32_0 = arith.constant 0 : i32
    %c0_i32_1 = arith.constant 0 : i32
    return %c0_i32, %c0_i32_0 : i32, i32
  }
  func.func @transform_17(%arg0: i32) -> (i32, i32) {
    %c0_i32 = arith.constant 0 : i32
    %c0_i32_0 = arith.constant 0 : i32
    %c0_i32_1 = arith.constant 0 : i32
    return %c0_i32, %c0_i32_0 : i32, i32
  }
  func.func @transform_18(%arg0: i32) -> (i32, i32) {
    %c0_i32 = arith.constant 0 : i32
    %c0_i32_0 = arith.constant 0 : i32
    %c0_i32_1 = arith.constant 0 : i32
    return %c0_i32, %c0_i32_0 : i32, i32
  }
  func.func @transform_19(%arg0: i32) -> (i32, i32) {
    %c0_i32 = arith.constant 0 : i32
    %c0_i32_0 = arith.constant 0 : i32
    return %arg0, %c0_i32 : i32, i32
  }
}

</mosaic_0001>

<llo_original>
// kernel: tpu_custom_call.1
$region0: #{tpu_custom_call.1}
  #allocation0 [shape = 'u32[]', space=smem, size = 0x4, offset = 0x4, fixed_abs, tag = 'smem constant byte address 0x4 - core index']
  #allocation1 [shape = 'u32[144,128]{1,0:T(1,128)}', space=vmem, size = 0x12000, scoped, tag = 'internal scratch']
  #allocation2 [shape = 'bf16[272,8]{1,0:T(8,128)(2,1)}', space=vmem, size = 0x11000, scoped, tag = 'scratch operand']
  #allocation3 [shape = 'bf16[80,8]{1,0:T(8,128)(2,1)}', space=vmem, size = 0x5000, scoped, tag = 'scratch operand']
  #allocation4 [shape = 'bf16[48,16]{1,0:T(8,128)(2,1)}', space=vmem, size = 0x3000, scoped, tag = 'scratch operand']
  #allocation5 [shape = 'bf16[32,32]{1,0:T(8,128)(2,1)}', space=vmem, size = 0x2000, scoped, tag = 'scratch operand']
  #allocation6 [shape = 'bf16[24,64]{1,0:T(8,128)(2,1)}', space=vmem, size = 0x1800, scoped, tag = 'scratch operand']
  #allocation7 [shape = 'bf16[20,64]{1,0:T(8,128)(2,1)}', space=vmem, size = 0x1800, scoped, tag = 'scratch operand']
  #allocation8 [shape = 'f32[256,8]{1,0:T(8,128)}', space=vmem, size = 0x20000, scoped, tag = 'scratch operand']
  #allocation9 [shape = 'f32[64,16]{1,0:T(8,128)}', space=vmem, size = 0x8000, scoped, tag = 'scratch operand']
  #allocation10 [shape = 'f32[32,32]{1,0:T(8,128)}', space=vmem, size = 0x4000, scoped, tag = 'scratch operand']
  #allocation11 [shape = 'f32[16,64]{1,0:T(8,128)}', space=vmem, size = 0x2000, scoped, tag = 'scratch operand']
  #allocation12 [shape = 'f32[8,64]{1,0:T(8,128)}', space=vmem, size = 0x1000, scoped, tag = 'scratch operand']
  #allocation13 [shape = 'f32[4,1]{1,0:T(4,128)}', space=vmem, size = 0x800, scoped, tag = 'scratch operand']
  #allocation14 [shape = 'f32[1,1]{1,0:T(1,128)S(1)}', space=vmem, size = 0x200, scoped, tag = 'scoped memory for tpu_custom_call.1']
  #allocation15 [shape = 'f32[1,1]{1,0:T(1,128)S(1)}', space=vmem, size = 0x200, scoped, tag = 'scoped memory for tpu_custom_call.1']
  %s0 = inlined_call_operand.vmem [shape: bf16[256,8], index: 0, kind: input, shape index: {}]
  %s1 = inlined_call_operand.vmem [shape: bf16[56,8], index: 1, kind: input, shape index: {}]
  %s2 = inlined_call_operand.vmem [shape: f32[1,8], index: 2, kind: input, shape index: {}]
  %s3 = inlined_call_operand.vmem [shape: f32[1,8], index: 3, kind: input, shape index: {}]
  %s4 = inlined_call_operand.vmem [shape: bf16[56,16], index: 4, kind: input, shape index: {}]
  %s5 = inlined_call_operand.vmem [shape: f32[1,16], index: 5, kind: input, shape index: {}]
  %s6 = inlined_call_operand.vmem [shape: f32[1,16], index: 6, kind: input, shape index: {}]
  %s7 = inlined_call_operand.vmem [shape: bf16[112,32], index: 7, kind: input, shape index: {}]
  %s8 = inlined_call_operand.vmem [shape: f32[1,32], index: 8, kind: input, shape index: {}]
  %s9 = inlined_call_operand.vmem [shape: f32[1,32], index: 9, kind: input, shape index: {}]
  %s10 = inlined_call_operand.vmem [shape: bf16[160,64], index: 10, kind: input, shape index: {}]
  %s11 = inlined_call_operand.vmem [shape: f32[1,64], index: 11, kind: input, shape index: {}]
  %s12 = inlined_call_operand.vmem [shape: f32[1,64], index: 12, kind: input, shape index: {}]
  %s13 = inlined_call_operand.vmem [shape: bf16[320,64], index: 13, kind: input, shape index: {}]
  %s14 = inlined_call_operand.vmem [shape: f32[1,64], index: 14, kind: input, shape index: {}]
  %s15 = inlined_call_operand.vmem [shape: f32[1,64], index: 15, kind: input, shape index: {}]
  %s16 = inlined_call_operand.vmem [shape: bf16[128,1], index: 16, kind: input, shape index: {}]
  %s17 = inlined_call_operand.<no memory space> [shape: f32[1,1], index: 17, kind: input, shape index: {}]
  %s18 = inlined_call_operand.<no memory space> [shape: f32[1,1], index: 18, kind: input, shape index: {}]
  %s19 = inlined_call_operand.vmem [shape: f32[2,1], index: 19, kind: output, shape index: {}]
  %s20 = sld [smem:[#allocation0]]
  $region86: #{tpu_custom_call.1} parent=0
    _
  %s22 = ssub.s32 1, %s20
  %s23 = scalar_select 0, %s22, %s20
  %v24 = vstv %s17
  %25 = vst [vmem:[#allocation14] sm:$0x1] %v24
  %v26 = vstv %s18
  %27 = vst [vmem:[#allocation15] sm:$0x1] %v26
  // Predicated region
  $region2: #{tpu_custom_call.1} parent=0 // pred_check
    _
  $region3: #{tpu_custom_call.1} parent=0 // pred_check_branch
    %29 = sbr.rel (0) target = $region5
  $region4: #{tpu_custom_call.1} parent=0 // pred_region
    _
  $region5: #{tpu_custom_call.1} parent=0 // pred_fallthru
    _
  // Predicated region
  $region6: #{tpu_custom_call.1} parent=0 // pred_check
    _
  $region7: #{tpu_custom_call.1} parent=0 // pred_check_branch
    %31 = sbr.rel (0) target = $region9
  $region8: #{tpu_custom_call.1} parent=0 // pred_region
    _
  $region9: #{tpu_custom_call.1} parent=0 // pred_fallthru
    _
  // Predicated region
  $region10: #{tpu_custom_call.1} parent=0 // pred_check
    _
  $region11: #{tpu_custom_call.1} parent=0 // pred_check_branch
    %33 = sbr.rel (0) target = $region13
  $region12: #{tpu_custom_call.1} parent=0 // pred_region
    _
  $region13: #{tpu_custom_call.1} parent=0 // pred_fallthru
    _
  // Predicated region
  $region14: #{tpu_custom_call.1} parent=0 // pred_check
    _
  $region15: #{tpu_custom_call.1} parent=0 // pred_check_branch
    %35 = sbr.rel (0) target = $region17
  $region16: #{tpu_custom_call.1} parent=0 // pred_region
    _
  $region17: #{tpu_custom_call.1} parent=0 // pred_fallthru
    _
  // Predicated region
  $region18: #{tpu_custom_call.1} parent=0 // pred_check
    _
  $region19: #{tpu_custom_call.1} parent=0 // pred_check_branch
    %37 = sbr.rel (0) target = $region21
  $region20: #{tpu_custom_call.1} parent=0 // pred_region
    _
  $region21: #{tpu_custom_call.1} parent=0 // pred_fallthru
    _
  // Predicated region
  $region22: #{tpu_custom_call.1} parent=0 // pred_check
    _
  $region23: #{tpu_custom_call.1} parent=0 // pred_check_branch
    %39 = sbr.rel (0) target = $region25
  $region24: #{tpu_custom_call.1} parent=0 // pred_region
    _
  $region25: #{tpu_custom_call.1} parent=0 // pred_fallthru
    _
  // Predicated region
  $region26: #{tpu_custom_call.1} parent=0 // pred_check
    _
  $region27: #{tpu_custom_call.1} parent=0 // pred_check_branch
    %41 = sbr.rel (0) target = $region29
  $region28: #{tpu_custom_call.1} parent=0 // pred_region
    _
  $region29: #{tpu_custom_call.1} parent=0 // pred_fallthru
    _
  // Predicated region
  $region30: #{tpu_custom_call.1} parent=0 // pred_check
    _
  $region31: #{tpu_custom_call.1} parent=0 // pred_check_branch
    %43 = sbr.rel (0) target = $region33
  $region32: #{tpu_custom_call.1} parent=0 // pred_region
    _
  $region33: #{tpu_custom_call.1} parent=0 // pred_fallthru
    _
  // Predicated region
  $region34: #{tpu_custom_call.1} parent=0 // pred_check
    _
  $region35: #{tpu_custom_call.1} parent=0 // pred_check_branch
    %45 = sbr.rel (0) target = $region37
  $region36: #{tpu_custom_call.1} parent=0 // pred_region
    _
  $region37: #{tpu_custom_call.1} parent=0 // pred_fallthru
    _
  // Predicated region
  $region38: #{tpu_custom_call.1} parent=0 // pred_check
    _
  $region39: #{tpu_custom_call.1} parent=0 // pred_check_branch
    %47 = sbr.rel (0) target = $region41
  $region40: #{tpu_custom_call.1} parent=0 // pred_region
    _
  $region41: #{tpu_custom_call.1} parent=0 // pred_fallthru
    _
  // Predicated region
  $region42: #{tpu_custom_call.1} parent=0 // pred_check
    _
  $region43: #{tpu_custom_call.1} parent=0 // pred_check_branch
    %49 = sbr.rel (0) target = $region45
  $region44: #{tpu_custom_call.1} parent=0 // pred_region
    _
  $region45: #{tpu_custom_call.1} parent=0 // pred_fallthru
    _
  // Predicated region
  $region46: #{tpu_custom_call.1} parent=0 // pred_check
    _
  $region47: #{tpu_custom_call.1} parent=0 // pred_check_branch
    %51 = sbr.rel (0) target = $region49
  $region48: #{tpu_custom_call.1} parent=0 // pred_region
    _
  $region49: #{tpu_custom_call.1} parent=0 // pred_fallthru
    _
  // Predicated region
  $region50: #{tpu_custom_call.1} parent=0 // pred_check
    _
  $region51: #{tpu_custom_call.1} parent=0 // pred_check_branch
    %53 = sbr.rel (0) target = $region53
  $region52: #{tpu_custom_call.1} parent=0 // pred_region
    _
  $region53: #{tpu_custom_call.1} parent=0 // pred_fallthru
    _
  // Predicated region
  $region54: #{tpu_custom_call.1} parent=0 // pred_check
    _
  $region55: #{tpu_custom_call.1} parent=0 // pred_check_branch
    %55 = sbr.rel (0) target = $region57
  $region56: #{tpu_custom_call.1} parent=0 // pred_region
    _
  $region57: #{tpu_custom_call.1} parent=0 // pred_fallthru
    _
  // Predicated region
  $region58: #{tpu_custom_call.1} parent=0 // pred_check
    _
  $region59: #{tpu_custom_call.1} parent=0 // pred_check_branch
    %57 = sbr.rel (0) target = $region61
  $region60: #{tpu_custom_call.1} parent=0 // pred_region
    _
  $region61: #{tpu_custom_call.1} parent=0 // pred_fallthru
    _
  // Predicated region
  $region62: #{tpu_custom_call.1} parent=0 // pred_check
    _
  $region63: #{tpu_custom_call.1} parent=0 // pred_check_branch
    %59 = sbr.rel (0) target = $region65
  $region64: #{tpu_custom_call.1} parent=0 // pred_region
    _
  $region65: #{tpu_custom_call.1} parent=0 // pred_fallthru
    _
  // Predicated region
  $region66: #{tpu_custom_call.1} parent=0 // pred_check
    _
  $region67: #{tpu_custom_call.1} parent=0 // pred_check_branch
    %61 = sbr.rel (0) target = $region69
  $region68: #{tpu_custom_call.1} parent=0 // pred_region
    _
  $region69: #{tpu_custom_call.1} parent=0 // pred_fallthru
    _
  // Predicated region
  $region70: #{tpu_custom_call.1} parent=0 // pred_check
    _
  $region71: #{tpu_custom_call.1} parent=0 // pred_check_branch
    %63 = sbr.rel (0) target = $region73
  $region72: #{tpu_custom_call.1} parent=0 // pred_region
    _
  $region73: #{tpu_custom_call.1} parent=0 // pred_fallthru
    _
  // Predicated region
  $region74: #{tpu_custom_call.1} parent=0 // pred_check
    _
  $region75: #{tpu_custom_call.1} parent=0 // pred_check_branch
    %65 = sbr.rel (0) target = $region77
  $region76: #{tpu_custom_call.1} parent=0 // pred_region
    _
  $region77: #{tpu_custom_call.1} parent=0 // pred_fallthru
    _
  %v69 = vld [vmem:[%s0] sm:$0xf]
  %v70 = vld [vmem:[%s0 + $0x4] sm:$0xf]
  %v71 = vld [vmem:[%s0 + $0x8] sm:$0xf]
  %v72 = vld [vmem:[%s0 + $0xc] sm:$0xf]
  %v73 = vld [vmem:[%s0 + $0x10] sm:$0xf]
  %v74 = vld [vmem:[%s0 + $0x14] sm:$0xf]
  %v75 = vld [vmem:[%s0 + $0x18] sm:$0xf]
  %v76 = vld [vmem:[%s0 + $0x1c] sm:$0xf]
  %v77 = vld [vmem:[%s0 + $0x20] sm:$0xf]
  %v78 = vld [vmem:[%s0 + $0x24] sm:$0xf]
  %v79 = vld [vmem:[%s0 + $0x28] sm:$0xf]
  %v80 = vld [vmem:[%s0 + $0x2c] sm:$0xf]
  %v81 = vld [vmem:[%s0 + $0x30] sm:$0xf]
  %v82 = vld [vmem:[%s0 + $0x34] sm:$0xf]
  %v83 = vld [vmem:[%s0 + $0x38] sm:$0xf]
  %v84 = vld [vmem:[%s0 + $0x3c] sm:$0xf]
  %v85 = vld [vmem:[%s0 + $0x40] sm:$0xf]
  %v86 = vld [vmem:[%s0 + $0x44] sm:$0xf]
  %v87 = vld [vmem:[%s0 + $0x48] sm:$0xf]
  %v88 = vld [vmem:[%s0 + $0x4c] sm:$0xf]
  %v89 = vld [vmem:[%s0 + $0x50] sm:$0xf]
  %v90 = vld [vmem:[%s0 + $0x54] sm:$0xf]
  %v91 = vld [vmem:[%s0 + $0x58] sm:$0xf]
  %v92 = vld [vmem:[%s0 + $0x5c] sm:$0xf]
  %v93 = vld [vmem:[%s0 + $0x60] sm:$0xf]
  %v94 = vld [vmem:[%s0 + $0x64] sm:$0xf]
  %v95 = vld [vmem:[%s0 + $0x68] sm:$0xf]
  %v96 = vld [vmem:[%s0 + $0x6c] sm:$0xf]
  %v97 = vld [vmem:[%s0 + $0x70] sm:$0xf]
  %v98 = vld [vmem:[%s0 + $0x74] sm:$0xf]
  %v99 = vld [vmem:[%s0 + $0x78] sm:$0xf]
  %v100 = vld [vmem:[%s0 + $0x7c] sm:$0xf]
  %vm101 = vcmask 60416
  %102 = vst.msk [vmem:[#allocation2 + $0x4] sm:$0xf] %vm101, %v69
  %103 = vst.msk [vmem:[#allocation2 + $0x8] sm:$0xf] %vm101, %v70
  %104 = vst.msk [vmem:[#allocation2 + $0xc] sm:$0xf] %vm101, %v71
  %105 = vst.msk [vmem:[#allocation2 + $0x10] sm:$0xf] %vm101, %v72
  %106 = vst.msk [vmem:[#allocation2 + $0x14] sm:$0xf] %vm101, %v73
  %107 = vst.msk [vmem:[#allocation2 + $0x18] sm:$0xf] %vm101, %v74
  %108 = vst.msk [vmem:[#allocation2 + $0x1c] sm:$0xf] %vm101, %v75
  %109 = vst.msk [vmem:[#allocation2 + $0x20] sm:$0xf] %vm101, %v76
  %110 = vst.msk [vmem:[#allocation2 + $0x24] sm:$0xf] %vm101, %v77
  %111 = vst.msk [vmem:[#allocation2 + $0x28] sm:$0xf] %vm101, %v78
  %112 = vst.msk [vmem:[#allocation2 + $0x2c] sm:$0xf] %vm101, %v79
  %113 = vst.msk [vmem:[#allocation2 + $0x30] sm:$0xf] %vm101, %v80
  %114 = vst.msk [vmem:[#allocation2 + $0x34] sm:$0xf] %vm101, %v81
  %115 = vst.msk [vmem:[#allocation2 + $0x38] sm:$0xf] %vm101, %v82
  %116 = vst.msk [vmem:[#allocation2 + $0x3c] sm:$0xf] %vm101, %v83
  %117 = vst.msk [vmem:[#allocation2 + $0x40] sm:$0xf] %vm101, %v84
  %118 = vst.msk [vmem:[#allocation2 + $0x44] sm:$0xf] %vm101, %v85
  %119 = vst.msk [vmem:[#allocation2 + $0x48] sm:$0xf] %vm101, %v86
  %120 = vst.msk [vmem:[#allocation2 + $0x4c] sm:$0xf] %vm101, %v87
  %121 = vst.msk [vmem:[#allocation2 + $0x50] sm:$0xf] %vm101, %v88
  %122 = vst.msk [vmem:[#allocation2 + $0x54] sm:$0xf] %vm101, %v89
  %123 = vst.msk [vmem:[#allocation2 + $0x58] sm:$0xf] %vm101, %v90
  %124 = vst.msk [vmem:[#allocation2 + $0x5c] sm:$0xf] %vm101, %v91
  %125 = vst.msk [vmem:[#allocation2 + $0x60] sm:$0xf] %vm101, %v92
  %126 = vst.msk [vmem:[#allocation2 + $0x64] sm:$0xf] %vm101, %v93
  %127 = vst.msk [vmem:[#allocation2 + $0x68] sm:$0xf] %vm101, %v94
  %128 = vst.msk [vmem:[#allocation2 + $0x6c] sm:$0xf] %vm101, %v95
  %129 = vst.msk [vmem:[#allocation2 + $0x70] sm:$0xf] %vm101, %v96
  %130 = vst.msk [vmem:[#allocation2 + $0x74] sm:$0xf] %vm101, %v97
  %131 = vst.msk [vmem:[#allocation2 + $0x78] sm:$0xf] %vm101, %v98
  %132 = vst.msk [vmem:[#allocation2 + $0x7c] sm:$0xf] %vm101, %v99
  %133 = vst.msk [vmem:[#allocation2 + $0x80] sm:$0xf] %vm101, %v100
  %v134 = vlaneseq
  %v135 = vshrl.u32 %v134, 7
  %v136 = vadd.s32 %v135, 8
  %v137 = vadd.s32 %v135, 16
  %v138 = vadd.s32 %v135, 24
  %v139 = vadd.s32 %v135, 32
  %v140 = vadd.s32 %v135, 40
  %v141 = vadd.s32 %v135, 48
  %v142 = vadd.s32 %v135, 56
  %v143 = vadd.s32 %v135, 64
  %v144 = vadd.s32 %v135, 72
  %v145 = vadd.s32 %v135, 80
  %v146 = vadd.s32 %v135, 88
  %v147 = vadd.s32 %v135, 96
  %v148 = vadd.s32 %v135, 104
  %v149 = vadd.s32 %v135, 112
  %v150 = vadd.s32 %v135, 120
  %v151 = vadd.s32 %v135, 128
  %v152 = vadd.s32 %v135, 136
  %v153 = vadd.s32 %v135, 144
  %v154 = vadd.s32 %v135, 152
  %v155 = vadd.s32 %v135, 160
  %v156 = vadd.s32 %v135, 168
  %v157 = vadd.s32 %v135, 176
  %v158 = vadd.s32 %v135, 184
  %v159 = vadd.s32 %v135, 192
  %v160 = vadd.s32 %v135, 200
  %v161 = vadd.s32 %v135, 208
  %v162 = vadd.s32 %v135, 216
  %v163 = vadd.s32 %v135, 224
  %v164 = vadd.s32 %v135, 232
  %v165 = vadd.s32 %v135, 240
  %v166 = vadd.s32 %v135, 248
  %v167 = vand.u32 %v135, 127
  %v168 = vand.u32 %v136, 127
  %v169 = vand.u32 %v137, 127
  %v170 = vand.u32 %v138, 127
  %v171 = vand.u32 %v139, 127
  %v172 = vand.u32 %v140, 127
  %v173 = vand.u32 %v141, 127
  %v174 = vand.u32 %v142, 127
  %v175 = vand.u32 %v143, 127
  %v176 = vand.u32 %v144, 127
  %v177 = vand.u32 %v145, 127
  %v178 = vand.u32 %v146, 127
  %v179 = vand.u32 %v147, 127
  %v180 = vand.u32 %v148, 127
  %v181 = vand.u32 %v149, 127
  %v182 = vand.u32 %v150, 127
  %v183 = vand.u32 %v151, 127
  %v184 = vand.u32 %v152, 127
  %v185 = vand.u32 %v153, 127
  %v186 = vand.u32 %v154, 127
  %v187 = vand.u32 %v155, 127
  %v188 = vand.u32 %v156, 127
  %v189 = vand.u32 %v157, 127
  %v190 = vand.u32 %v158, 127
  %v191 = vand.u32 %v159, 127
  %v192 = vand.u32 %v160, 127
  %v193 = vand.u32 %v161, 127
  %v194 = vand.u32 %v162, 127
  %v195 = vand.u32 %v163, 127
  %v196 = vand.u32 %v164, 127
  %v197 = vand.u32 %v165, 127
  %v198 = vand.u32 %v166, 127
  %v199 = vld [vmem:[#allocation2] sm:$0xc]
  %v200 = vld [vmem:[#allocation2 + $0x4] sm:$0xf]
  %v201 = vld [vmem:[#allocation2 + $0x8] sm:$0xf]
  %v202 = vld [vmem:[#allocation2 + $0xc] sm:$0xf]
  %v203 = vld [vmem:[#allocation2 + $0x10] sm:$0xf]
  %v204 = vld [vmem:[#allocation2 + $0x14] sm:$0xf]
  %v205 = vld [vmem:[#allocation2 + $0x18] sm:$0xf]
  %v206 = vld [vmem:[#allocation2 + $0x1c] sm:$0xf]
  %v207 = vld [vmem:[#allocation2 + $0x20] sm:$0xf]
  %v208 = vld [vmem:[#allocation2 + $0x24] sm:$0xf]
  %v209 = vld [vmem:[#allocation2 + $0x28] sm:$0xf]
  %v210 = vld [vmem:[#allocation2 + $0x2c] sm:$0xf]
  %v211 = vld [vmem:[#allocation2 + $0x30] sm:$0xf]
  %v212 = vld [vmem:[#allocation2 + $0x34] sm:$0xf]
  %v213 = vld [vmem:[#allocation2 + $0x38] sm:$0xf]
  %v214 = vld [vmem:[#allocation2 + $0x3c] sm:$0xf]
  %v215 = vld [vmem:[#allocation2 + $0x40] sm:$0xf]
  %v216 = vld [vmem:[#allocation2 + $0x44] sm:$0xf]
  %v217 = vld [vmem:[#allocation2 + $0x48] sm:$0xf]
  %v218 = vld [vmem:[#allocation2 + $0x4c] sm:$0xf]
  %v219 = vld [vmem:[#allocation2 + $0x50] sm:$0xf]
  %v220 = vld [vmem:[#allocation2 + $0x54] sm:$0xf]
  %v221 = vld [vmem:[#allocation2 + $0x58] sm:$0xf]
  %v222 = vld [vmem:[#allocation2 + $0x5c] sm:$0xf]
  %v223 = vld [vmem:[#allocation2 + $0x60] sm:$0xf]
  %v224 = vld [vmem:[#allocation2 + $0x64] sm:$0xf]
  %v225 = vld [vmem:[#allocation2 + $0x68] sm:$0xf]
  %v226 = vld [vmem:[#allocation2 + $0x6c] sm:$0xf]
  %v227 = vld [vmem:[#allocation2 + $0x70] sm:$0xf]
  %v228 = vld [vmem:[#allocation2 + $0x74] sm:$0xf]
  %v229 = vld [vmem:[#allocation2 + $0x78] sm:$0xf]
  %v230 = vld [vmem:[#allocation2 + $0x7c] sm:$0xf]
  %v231 = vld [vmem:[#allocation2 + $0x80] sm:$0x7]
  %vm232 = vcmp.ge.s32.totalorder %v167, 3
  %vm233 = vcmp.ge.s32.totalorder %v168, 3
  %vm234 = vcmp.ge.s32.totalorder %v169, 3
  %vm235 = vcmp.ge.s32.totalorder %v170, 3
  %vm236 = vcmp.ge.s32.totalorder %v171, 3
  %vm237 = vcmp.ge.s32.totalorder %v172, 3
  %vm238 = vcmp.ge.s32.totalorder %v173, 3
  %vm239 = vcmp.ge.s32.totalorder %v174, 3
  %vm240 = vcmp.ge.s32.totalorder %v175, 3
  %vm241 = vcmp.ge.s32.totalorder %v176, 3
  %vm242 = vcmp.ge.s32.totalorder %v177, 3
  %vm243 = vcmp.ge.s32.totalorder %v178, 3
  %vm244 = vcmp.ge.s32.totalorder %v179, 3
  %vm245 = vcmp.ge.s32.totalorder %v180, 3
  %vm246 = vcmp.ge.s32.totalorder %v181, 3
  %vm247 = vcmp.ge.s32.totalorder %v182, 3
  %vm248 = vcmp.ge.s32.totalorder %v183, 3
  %vm249 = vcmp.ge.s32.totalorder %v184, 3
  %vm250 = vcmp.ge.s32.totalorder %v185, 3
  %vm251 = vcmp.ge.s32.totalorder %v186, 3
  %vm252 = vcmp.ge.s32.totalorder %v187, 3
  %vm253 = vcmp.ge.s32.totalorder %v188, 3
  %vm254 = vcmp.ge.s32.totalorder %v189, 3
  %vm255 = vcmp.ge.s32.totalorder %v190, 3
  %vm256 = vcmp.ge.s32.totalorder %v191, 3
  %vm257 = vcmp.ge.s32.totalorder %v192, 3
  %vm258 = vcmp.ge.s32.totalorder %v193, 3
  %vm259 = vcmp.ge.s32.totalorder %v194, 3
  %vm260 = vcmp.ge.s32.totalorder %v195, 3
  %vm261 = vcmp.ge.s32.totalorder %v196, 3
  %vm262 = vcmp.ge.s32.totalorder %v197, 3
  %vm263 = vcmp.ge.s32.totalorder %v198, 3
  %v264 = vsel %vm232, 1, 0
  %v265 = vsel %vm233, 1, 0
  %v266 = vsel %vm234, 1, 0
  %v267 = vsel %vm235, 1, 0
  %v268 = vsel %vm236, 1, 0
  %v269 = vsel %vm237, 1, 0
  %v270 = vsel %vm238, 1, 0
  %v271 = vsel %vm239, 1, 0
  %v272 = vsel %vm240, 1, 0
  %v273 = vsel %vm241, 1, 0
  %v274 = vsel %vm242, 1, 0
  %v275 = vsel %vm243, 1, 0
  %v276 = vsel %vm244, 1, 0
  %v277 = vsel %vm245, 1, 0
  %v278 = vsel %vm246, 1, 0
  %v279 = vsel %vm247, 1, 0
  %v280 = vsel %vm248, 1, 0
  %v281 = vsel %vm249, 1, 0
  %v282 = vsel %vm250, 1, 0
  %v283 = vsel %vm251, 1, 0
  %v284 = vsel %vm252, 1, 0
  %v285 = vsel %vm253, 1, 0
  %v286 = vsel %vm254, 1, 0
  %v287 = vsel %vm255, 1, 0
  %v288 = vsel %vm256, 1, 0
  %v289 = vsel %vm257, 1, 0
  %v290 = vsel %vm258, 1, 0
  %v291 = vsel %vm259, 1, 0
  %v292 = vsel %vm260, 1, 0
  %v293 = vsel %vm261, 1, 0
  %v294 = vsel %vm262, 1, 0
  %v295 = vsel %vm263, 1, 0
  %vm296 = vcmp.eq.s32.totalorder %v264, 1
  %vm297 = vcmp.eq.s32.totalorder %v265, 1
  %vm298 = vcmp.eq.s32.totalorder %v266, 1
  %vm299 = vcmp.eq.s32.totalorder %v267, 1
  %vm300 = vcmp.eq.s32.totalorder %v268, 1
  %vm301 = vcmp.eq.s32.totalorder %v269, 1
  %vm302 = vcmp.eq.s32.totalorder %v270, 1
  %vm303 = vcmp.eq.s32.totalorder %v271, 1
  %vm304 = vcmp.eq.s32.totalorder %v272, 1
  %vm305 = vcmp.eq.s32.totalorder %v273, 1
  %vm306 = vcmp.eq.s32.totalorder %v274, 1
  %vm307 = vcmp.eq.s32.totalorder %v275, 1
  %vm308 = vcmp.eq.s32.totalorder %v276, 1
  %vm309 = vcmp.eq.s32.totalorder %v277, 1
  %vm310 = vcmp.eq.s32.totalorder %v278, 1
  %vm311 = vcmp.eq.s32.totalorder %v279, 1
  %vm312 = vcmp.eq.s32.totalorder %v280, 1
  %vm313 = vcmp.eq.s32.totalorder %v281, 1
  %vm314 = vcmp.eq.s32.totalorder %v282, 1
  %vm315 = vcmp.eq.s32.totalorder %v283, 1
  %vm316 = vcmp.eq.s32.totalorder %v284, 1
  %vm317 = vcmp.eq.s32.totalorder %v285, 1
  %vm318 = vcmp.eq.s32.totalorder %v286, 1
  %vm319 = vcmp.eq.s32.totalorder %v287, 1
  %vm320 = vcmp.eq.s32.totalorder %v288, 1
  %vm321 = vcmp.eq.s32.totalorder %v289, 1
  %vm322 = vcmp.eq.s32.totalorder %v290, 1
  %vm323 = vcmp.eq.s32.totalorder %v291, 1
  %vm324 = vcmp.eq.s32.totalorder %v292, 1
  %vm325 = vcmp.eq.s32.totalorder %v293, 1
  %vm326 = vcmp.eq.s32.totalorder %v294, 1
  %vm327 = vcmp.eq.s32.totalorder %v295, 1
  %vm328 = vmpackc.low %vm296, %vm296
  %vm329 = vmpackc.low %vm297, %vm297
  %vm330 = vmpackc.low %vm298, %vm298
  %vm331 = vmpackc.low %vm299, %vm299
  %vm332 = vmpackc.low %vm300, %vm300
  %vm333 = vmpackc.low %vm301, %vm301
  %vm334 = vmpackc.low %vm302, %vm302
  %vm335 = vmpackc.low %vm303, %vm303
  %vm336 = vmpackc.low %vm304, %vm304
  %vm337 = vmpackc.low %vm305, %vm305
  %vm338 = vmpackc.low %vm306, %vm306
  %vm339 = vmpackc.low %vm307, %vm307
  %vm340 = vmpackc.low %vm308, %vm308
  %vm341 = vmpackc.low %vm309, %vm309
  %vm342 = vmpackc.low %vm310, %vm310
  %vm343 = vmpackc.low %vm311, %vm311
  %vm344 = vmpackc.low %vm312, %vm312
  %vm345 = vmpackc.low %vm313, %vm313
  %vm346 = vmpackc.low %vm314, %vm314
  %vm347 = vmpackc.low %vm315, %vm315
  %vm348 = vmpackc.low %vm316, %vm316
  %vm349 = vmpackc.low %vm317, %vm317
  %vm350 = vmpackc.low %vm318, %vm318
  %vm351 = vmpackc.low %vm319, %vm319
  %vm352 = vmpackc.low %vm320, %vm320
  %vm353 = vmpackc.low %vm321, %vm321
  %vm354 = vmpackc.low %vm322, %vm322
  %vm355 = vmpackc.low %vm323, %vm323
  %vm356 = vmpackc.low %vm324, %vm324
  %vm357 = vmpackc.low %vm325, %vm325
  %vm358 = vmpackc.low %vm326, %vm326
  %vm359 = vmpackc.low %vm327, %vm327
  %v360 = vsel %vm328, 65537, 0
  %v361 = vsel %vm329, 65537, 0
  %v362 = vsel %vm330, 65537, 0
  %v363 = vsel %vm331, 65537, 0
  %v364 = vsel %vm332, 65537, 0
  %v365 = vsel %vm333, 65537, 0
  %v366 = vsel %vm334, 65537, 0
  %v367 = vsel %vm335, 65537, 0
  %v368 = vsel %vm336, 65537, 0
  %v369 = vsel %vm337, 65537, 0
  %v370 = vsel %vm338, 65537, 0
  %v371 = vsel %vm339, 65537, 0
  %v372 = vsel %vm340, 65537, 0
  %v373 = vsel %vm341, 65537, 0
  %v374 = vsel %vm342, 65537, 0
  %v375 = vsel %vm343, 65537, 0
  %v376 = vsel %vm344, 65537, 0
  %v377 = vsel %vm345, 65537, 0
  %v378 = vsel %vm346, 65537, 0
  %v379 = vsel %vm347, 65537, 0
  %v380 = vsel %vm348, 65537, 0
  %v381 = vsel %vm349, 65537, 0
  %v382 = vsel %vm350, 65537, 0
  %v383 = vsel %vm351, 65537, 0
  %v384 = vsel %vm352, 65537, 0
  %v385 = vsel %vm353, 65537, 0
  %v386 = vsel %vm354, 65537, 0
  %v387 = vsel %vm355, 65537, 0
  %v388 = vsel %vm356, 65537, 0
  %v389 = vsel %vm357, 65537, 0
  %v390 = vsel %vm358, 65537, 0
  %v391 = vsel %vm359, 65537, 0
  %vm392 = vsmask.f32 2304
  %vm393 = vsmask.f32 6416
  %vm394 = vmor %vm392, %vm393
  %v396 = vshrl.u32 %v360, 16
  %v398 = vrot.slane %v396, 5
  %v399 = vshll.u32 %v360, 16
  %v401 = vrot.slane %v399, 6
  %v402 = vor.u32 %v398, %v401
  %v403 = vrot.slane %v402, 4
  %v405 = vshrl.u32 %v361, 16
  %v407 = vrot.slane %v405, 5
  %v408 = vshll.u32 %v361, 16
  %v410 = vrot.slane %v408, 6
  %v411 = vor.u32 %v407, %v410
  %v412 = vsel %vm394, %v403, %v411
  %v413 = vrot.slane %v411, 4
  %v415 = vshrl.u32 %v362, 16
  %v417 = vrot.slane %v415, 5
  %v418 = vshll.u32 %v362, 16
  %v420 = vrot.slane %v418, 6
  %v421 = vor.u32 %v417, %v420
  %v422 = vsel %vm394, %v413, %v421
  %v423 = vrot.slane %v421, 4
  %v425 = vshrl.u32 %v363, 16
  %v427 = vrot.slane %v425, 5
  %v428 = vshll.u32 %v363, 16
  %v430 = vrot.slane %v428, 6
  %v431 = vor.u32 %v427, %v430
  %v432 = vsel %vm394, %v423, %v431
  %v433 = vrot.slane %v431, 4
  %v435 = vshrl.u32 %v364, 16
  %v437 = vrot.slane %v435, 5
  %v438 = vshll.u32 %v364, 16
  %v440 = vrot.slane %v438, 6
  %v441 = vor.u32 %v437, %v440
  %v442 = vsel %vm394, %v433, %v441
  %v443 = vrot.slane %v441, 4
  %v445 = vshrl.u32 %v365, 16
  %v447 = vrot.slane %v445, 5
  %v448 = vshll.u32 %v365, 16
  %v450 = vrot.slane %v448, 6
  %v451 = vor.u32 %v447, %v450
  %v452 = vsel %vm394, %v443, %v451
  %v453 = vrot.slane %v451, 4
  %v455 = vshrl.u32 %v366, 16
  %v457 = vrot.slane %v455, 5
  %v458 = vshll.u32 %v366, 16
  %v460 = vrot.slane %v458, 6
  %v461 = vor.u32 %v457, %v460
  %v462 = vsel %vm394, %v453, %v461
  %v463 = vrot.slane %v461, 4
  %v465 = vshrl.u32 %v367, 16
  %v467 = vrot.slane %v465, 5
  %v468 = vshll.u32 %v367, 16
  %v470 = vrot.slane %v468, 6
  %v471 = vor.u32 %v467, %v470
  %v472 = vsel %vm394, %v463, %v471
  %v473 = vrot.slane %v471, 4
  %v475 = vshrl.u32 %v368, 16
  %v477 = vrot.slane %v475, 5
  %v478 = vshll.u32 %v368, 16
  %v480 = vrot.slane %v478, 6
  %v481 = vor.u32 %v477, %v480
  %v482 = vsel %vm394, %v473, %v481
  %v483 = vrot.slane %v481, 4
  %v485 = vshrl.u32 %v369, 16
  %v487 = vrot.slane %v485, 5
  %v488 = vshll.u32 %v369, 16
  %v490 = vrot.slane %v488, 6
  %v491 = vor.u32 %v487, %v490
  %v492 = vsel %vm394, %v483, %v491
  %v493 = vrot.slane %v491, 4
  %v495 = vshrl.u32 %v370, 16
  %v497 = vrot.slane %v495, 5
  %v498 = vshll.u32 %v370, 16
  %v500 = vrot.slane %v498, 6
  %v501 = vor.u32 %v497, %v500
  %v502 = vsel %vm394, %v493, %v501
  %v503 = vrot.slane %v501, 4
  %v505 = vshrl.u32 %v371, 16
  %v507 = vrot.slane %v505, 5
  %v508 = vshll.u32 %v371, 16
  %v510 = vrot.slane %v508, 6
  %v511 = vor.u32 %v507, %v510
  %v512 = vsel %vm394, %v503, %v511
  %v513 = vrot.slane %v511, 4
  %v515 = vshrl.u32 %v372, 16
  %v517 = vrot.slane %v515, 5
  %v518 = vshll.u32 %v372, 16
  %v520 = vrot.slane %v518, 6
  %v521 = vor.u32 %v517, %v520
  %v522 = vsel %vm394, %v513, %v521
  %v523 = vrot.slane %v521, 4
  %v525 = vshrl.u32 %v373, 16
  %v527 = vrot.slane %v525, 5
  %v528 = vshll.u32 %v373, 16
  %v530 = vrot.slane %v528, 6
  %v531 = vor.u32 %v527, %v530
  %v532 = vsel %vm394, %v523, %v531
  %v533 = vrot.slane %v531, 4
  %v535 = vshrl.u32 %v374, 16
  %v537 = vrot.slane %v535, 5
  %v538 = vshll.u32 %v374, 16
  %v540 = vrot.slane %v538, 6
  %v541 = vor.u32 %v537, %v540
  %v542 = vsel %vm394, %v533, %v541
  %v543 = vrot.slane %v541, 4
  %v545 = vshrl.u32 %v375, 16
  %v547 = vrot.slane %v545, 5
  %v548 = vshll.u32 %v375, 16
  %v550 = vrot.slane %v548, 6
  %v551 = vor.u32 %v547, %v550
  %v552 = vsel %vm394, %v543, %v551
  %v553 = vrot.slane %v551, 4
  %v555 = vshrl.u32 %v376, 16
  %v557 = vrot.slane %v555, 5
  %v558 = vshll.u32 %v376, 16
  %v560 = vrot.slane %v558, 6
  %v561 = vor.u32 %v557, %v560
  %v562 = vsel %vm394, %v553, %v561
  %v563 = vrot.slane %v561, 4
  %v565 = vshrl.u32 %v377, 16
  %v567 = vrot.slane %v565, 5
  %v568 = vshll.u32 %v377, 16
  %v570 = vrot.slane %v568, 6
  %v571 = vor.u32 %v567, %v570
  %v572 = vsel %vm394, %v563, %v571
  %v573 = vrot.slane %v571, 4
  %v575 = vshrl.u32 %v378, 16
  %v577 = vrot.slane %v575, 5
  %v578 = vshll.u32 %v378, 16
  %v580 = vrot.slane %v578, 6
  %v581 = vor.u32 %v577, %v580
  %v582 = vsel %vm394, %v573, %v581
  %v583 = vrot.slane %v581, 4
  %v585 = vshrl.u32 %v379, 16
  %v587 = vrot.slane %v585, 5
  %v588 = vshll.u32 %v379, 16
  %v590 = vrot.slane %v588, 6
  %v591 = vor.u32 %v587, %v590
  %v592 = vsel %vm394, %v583, %v591
  %v593 = vrot.slane %v591, 4
  %v595 = vshrl.u32 %v380, 16
  %v597 = vrot.slane %v595, 5
  %v598 = vshll.u32 %v380, 16
  %v600 = vrot.slane %v598, 6
  %v601 = vor.u32 %v597, %v600
  %v602 = vsel %vm394, %v593, %v601
  %v603 = vrot.slane %v601, 4
  %v605 = vshrl.u32 %v381, 16
  %v607 = vrot.slane %v605, 5
  %v608 = vshll.u32 %v381, 16
  %v610 = vrot.slane %v608, 6
  %v611 = vor.u32 %v607, %v610
  %v612 = vsel %vm394, %v603, %v611
  %v613 = vrot.slane %v611, 4
  %v615 = vshrl.u32 %v382, 16
  %v617 = vrot.slane %v615, 5
  %v618 = vshll.u32 %v382, 16
  %v620 = vrot.slane %v618, 6
  %v621 = vor.u32 %v617, %v620
  %v622 = vsel %vm394, %v613, %v621
  %v623 = vrot.slane %v621, 4
  %v625 = vshrl.u32 %v383, 16
  %v627 = vrot.slane %v625, 5
  %v628 = vshll.u32 %v383, 16
  %v630 = vrot.slane %v628, 6
  %v631 = vor.u32 %v627, %v630
  %v632 = vsel %vm394, %v623, %v631
  %v633 = vrot.slane %v631, 4
  %v635 = vshrl.u32 %v384, 16
  %v637 = vrot.slane %v635, 5
  %v638 = vshll.u32 %v384, 16
  %v640 = vrot.slane %v638, 6
  %v641 = vor.u32 %v637, %v640
  %v642 = vsel %vm394, %v633, %v641
  %v643 = vrot.slane %v641, 4
  %v645 = vshrl.u32 %v385, 16
  %v647 = vrot.slane %v645, 5
  %v648 = vshll.u32 %v385, 16
  %v650 = vrot.slane %v648, 6
  %v651 = vor.u32 %v647, %v650
  %v652 = vsel %vm394, %v643, %v651
  %v653 = vrot.slane %v651, 4
  %v655 = vshrl.u32 %v386, 16
  %v657 = vrot.slane %v655, 5
  %v658 = vshll.u32 %v386, 16
  %v660 = vrot.slane %v658, 6
  %v661 = vor.u32 %v657, %v660
  %v662 = vsel %vm394, %v653, %v661
  %v663 = vrot.slane %v661, 4
  %v665 = vshrl.u32 %v387, 16
  %v667 = vrot.slane %v665, 5
  %v668 = vshll.u32 %v387, 16
  %v670 = vrot.slane %v668, 6
  %v671 = vor.u32 %v667, %v670
  %v672 = vsel %vm394, %v663, %v671
  %v673 = vrot.slane %v671, 4
  %v675 = vshrl.u32 %v388, 16
  %v677 = vrot.slane %v675, 5
  %v678 = vshll.u32 %v388, 16
  %v680 = vrot.slane %v678, 6
  %v681 = vor.u32 %v677, %v680
  %v682 = vsel %vm394, %v673, %v681
  %v683 = vrot.slane %v681, 4
  %v685 = vshrl.u32 %v389, 16
  %v687 = vrot.slane %v685, 5
  %v688 = vshll.u32 %v389, 16
  %v690 = vrot.slane %v688, 6
  %v691 = vor.u32 %v687, %v690
  %v692 = vsel %vm394, %v683, %v691
  %v693 = vrot.slane %v691, 4
  %v695 = vshrl.u32 %v390, 16
  %v697 = vrot.slane %v695, 5
  %v698 = vshll.u32 %v390, 16
  %v700 = vrot.slane %v698, 6
  %v701 = vor.u32 %v697, %v700
  %v702 = vsel %vm394, %v693, %v701
  %v703 = vrot.slane %v701, 4
  %v705 = vshrl.u32 %v391, 16
  %v707 = vrot.slane %v705, 5
  %v708 = vshll.u32 %v391, 16
  %v710 = vrot.slane %v708, 6
  %v711 = vor.u32 %v707, %v710
  %v712 = vsel %vm394, %v703, %v711
  %v713 = vrot.slane %v711, 4
  %vm714 = vcmp.ne.s16.totalorder %v402, 0
  %vm715 = vcmp.ne.s16.totalorder %v412, 0
  %vm716 = vcmp.ne.s16.totalorder %v422, 0
  %vm717 = vcmp.ne.s16.totalorder %v432, 0
  %vm718 = vcmp.ne.s16.totalorder %v442, 0
  %vm719 = vcmp.ne.s16.totalorder %v452, 0
  %vm720 = vcmp.ne.s16.totalorder %v462, 0
  %vm721 = vcmp.ne.s16.totalorder %v472, 0
  %vm722 = vcmp.ne.s16.totalorder %v482, 0
  %vm723 = vcmp.ne.s16.totalorder %v492, 0
  %vm724 = vcmp.ne.s16.totalorder %v502, 0
  %vm725 = vcmp.ne.s16.totalorder %v512, 0
  %vm726 = vcmp.ne.s16.totalorder %v522, 0
  %vm727 = vcmp.ne.s16.totalorder %v532, 0
  %vm728 = vcmp.ne.s16.totalorder %v542, 0
  %vm729 = vcmp.ne.s16.totalorder %v552, 0
  %vm730 = vcmp.ne.s16.totalorder %v562, 0
  %vm731 = vcmp.ne.s16.totalorder %v572, 0
  %vm732 = vcmp.ne.s16.totalorder %v582, 0
  %vm733 = vcmp.ne.s16.totalorder %v592, 0
  %vm734 = vcmp.ne.s16.totalorder %v602, 0
  %vm735 = vcmp.ne.s16.totalorder %v612, 0
  %vm736 = vcmp.ne.s16.totalorder %v622, 0
  %vm737 = vcmp.ne.s16.totalorder %v632, 0
  %vm738 = vcmp.ne.s16.totalorder %v642, 0
  %vm739 = vcmp.ne.s16.totalorder %v652, 0
  %vm740 = vcmp.ne.s16.totalorder %v662, 0
  %vm741 = vcmp.ne.s16.totalorder %v672, 0
  %vm742 = vcmp.ne.s16.totalorder %v682, 0
  %vm743 = vcmp.ne.s16.totalorder %v692, 0
  %vm744 = vcmp.ne.s16.totalorder %v702, 0
  %vm745 = vcmp.ne.s16.totalorder %v712, 0
  %vm746 = vcmp.ne.s16.totalorder %v713, 0
  %v747 = vsel %vm714, %v199, 0
  %v748 = vsel %vm715, %v200, 0
  %v749 = vsel %vm716, %v201, 0
  %v750 = vsel %vm717, %v202, 0
  %v751 = vsel %vm718, %v203, 0
  %v752 = vsel %vm719, %v204, 0
  %v753 = vsel %vm720, %v205, 0
  %v754 = vsel %vm721, %v206, 0
  %v755 = vsel %vm722, %v207, 0
  %v756 = vsel %vm723, %v208, 0
  %v757 = vsel %vm724, %v209, 0
  %v758 = vsel %vm725, %v210, 0
  %v759 = vsel %vm726, %v211, 0
  %v760 = vsel %vm727, %v212, 0
  %v761 = vsel %vm728, %v213, 0
  %v762 = vsel %vm729, %v214, 0
  %v763 = vsel %vm730, %v215, 0
  %v764 = vsel %vm731, %v216, 0
  %v765 = vsel %vm732, %v217, 0
  %v766 = vsel %vm733, %v218, 0
  %v767 = vsel %vm734, %v219, 0
  %v768 = vsel %vm735, %v220, 0
  %v769 = vsel %vm736, %v221, 0
  %v770 = vsel %vm737, %v222, 0
  %v771 = vsel %vm738, %v223, 0
  %v772 = vsel %vm739, %v224, 0
  %v773 = vsel %vm740, %v225, 0
  %v774 = vsel %vm741, %v226, 0
  %v775 = vsel %vm742, %v227, 0
  %v776 = vsel %vm743, %v228, 0
  %v777 = vsel %vm744, %v229, 0
  %v778 = vsel %vm745, %v230, 0
  %v779 = vsel %vm746, %v231, 0
  %v780 = vld [vmem:[#allocation2] sm:$0x8]
  %vm781 = vcmp.ge.s32.totalorder %v167, 2
  %vm782 = vcmp.ge.s32.totalorder %v168, 2
  %vm783 = vcmp.ge.s32.totalorder %v169, 2
  %vm784 = vcmp.ge.s32.totalorder %v170, 2
  %vm785 = vcmp.ge.s32.totalorder %v171, 2
  %vm786 = vcmp.ge.s32.totalorder %v172, 2
  %vm787 = vcmp.ge.s32.totalorder %v173, 2
  %vm788 = vcmp.ge.s32.totalorder %v174, 2
  %vm789 = vcmp.ge.s32.totalorder %v175, 2
  %vm790 = vcmp.ge.s32.totalorder %v176, 2
  %vm791 = vcmp.ge.s32.totalorder %v177, 2
  %vm792 = vcmp.ge.s32.totalorder %v178, 2
  %vm793 = vcmp.ge.s32.totalorder %v179, 2
  %vm794 = vcmp.ge.s32.totalorder %v180, 2
  %vm795 = vcmp.ge.s32.totalorder %v181, 2
  %vm796 = vcmp.ge.s32.totalorder %v182, 2
  %vm797 = vcmp.ge.s32.totalorder %v183, 2
  %vm798 = vcmp.ge.s32.totalorder %v184, 2
  %vm799 = vcmp.ge.s32.totalorder %v185, 2
  %vm800 = vcmp.ge.s32.totalorder %v186, 2
  %vm801 = vcmp.ge.s32.totalorder %v187, 2
  %vm802 = vcmp.ge.s32.totalorder %v188, 2
  %vm803 = vcmp.ge.s32.totalorder %v189, 2
  %vm804 = vcmp.ge.s32.totalorder %v190, 2
  %vm805 = vcmp.ge.s32.totalorder %v191, 2
  %vm806 = vcmp.ge.s32.totalorder %v192, 2
  %vm807 = vcmp.ge.s32.totalorder %v193, 2
  %vm808 = vcmp.ge.s32.totalorder %v194, 2
  %vm809 = vcmp.ge.s32.totalorder %v195, 2
  %vm810 = vcmp.ge.s32.totalorder %v196, 2
  %vm811 = vcmp.ge.s32.totalorder %v197, 2
  %vm812 = vcmp.ge.s32.totalorder %v198, 2
  %v813 = vsel %vm781, 1, 0
  %v814 = vsel %vm782, 1, 0
  %v815 = vsel %vm783, 1, 0
  %v816 = vsel %vm784, 1, 0
  %v817 = vsel %vm785, 1, 0
  %v818 = vsel %vm786, 1, 0
  %v819 = vsel %vm787, 1, 0
  %v820 = vsel %vm788, 1, 0
  %v821 = vsel %vm789, 1, 0
  %v822 = vsel %vm790, 1, 0
  %v823 = vsel %vm791, 1, 0
  %v824 = vsel %vm792, 1, 0
  %v825 = vsel %vm793, 1, 0
  %v826 = vsel %vm794, 1, 0
  %v827 = vsel %vm795, 1, 0
  %v828 = vsel %vm796, 1, 0
  %v829 = vsel %vm797, 1, 0
  %v830 = vsel %vm798, 1, 0
  %v831 = vsel %vm799, 1, 0
  %v832 = vsel %vm800, 1, 0
  %v833 = vsel %vm801, 1, 0
  %v834 = vsel %vm802, 1, 0
  %v835 = vsel %vm803, 1, 0
  %v836 = vsel %vm804, 1, 0
  %v837 = vsel %vm805, 1, 0
  %v838 = vsel %vm806, 1, 0
  %v839 = vsel %vm807, 1, 0
  %v840 = vsel %vm808, 1, 0
  %v841 = vsel %vm809, 1, 0
  %v842 = vsel %vm810, 1, 0
  %v843 = vsel %vm811, 1, 0
  %v844 = vsel %vm812, 1, 0
  %vm845 = vcmp.eq.s32.totalorder %v813, 1
  %vm846 = vcmp.eq.s32.totalorder %v814, 1
  %vm847 = vcmp.eq.s32.totalorder %v815, 1
  %vm848 = vcmp.eq.s32.totalorder %v816, 1
  %vm849 = vcmp.eq.s32.totalorder %v817, 1
  %vm850 = vcmp.eq.s32.totalorder %v818, 1
  %vm851 = vcmp.eq.s32.totalorder %v819, 1
  %vm852 = vcmp.eq.s32.totalorder %v820, 1
  %vm853 = vcmp.eq.s32.totalorder %v821, 1
  %vm854 = vcmp.eq.s32.totalorder %v822, 1
  %vm855 = vcmp.eq.s32.totalorder %v823, 1
  %vm856 = vcmp.eq.s32.totalorder %v824, 1
  %vm857 = vcmp.eq.s32.totalorder %v825, 1
  %vm858 = vcmp.eq.s32.totalorder %v826, 1
  %vm859 = vcmp.eq.s32.totalorder %v827, 1
  %vm860 = vcmp.eq.s32.totalorder %v828, 1
  %vm861 = vcmp.eq.s32.totalorder %v829, 1
  %vm862 = vcmp.eq.s32.totalorder %v830, 1
  %vm863 = vcmp.eq.s32.totalorder %v831, 1
  %vm864 = vcmp.eq.s32.totalorder %v832, 1
  %vm865 = vcmp.eq.s32.totalorder %v833, 1
  %vm866 = vcmp.eq.s32.totalorder %v834, 1
  %vm867 = vcmp.eq.s32.totalorder %v835, 1
  %vm868 = vcmp.eq.s32.totalorder %v836, 1
  %vm869 = vcmp.eq.s32.totalorder %v837, 1
  %vm870 = vcmp.eq.s32.totalorder %v838, 1
  %vm871 = vcmp.eq.s32.totalorder %v839, 1
  %vm872 = vcmp.eq.s32.totalorder %v840, 1
  %vm873 = vcmp.eq.s32.totalorder %v841, 1
  %vm874 = vcmp.eq.s32.totalorder %v842, 1
  %vm875 = vcmp.eq.s32.totalorder %v843, 1
  %vm876 = vcmp.eq.s32.totalorder %v844, 1
  %vm877 = vmpackc.low %vm845, %vm845
  %vm878 = vmpackc.low %vm846, %vm846
  %vm879 = vmpackc.low %vm847, %vm847
  %vm880 = vmpackc.low %vm848, %vm848
  %vm881 = vmpackc.low %vm849, %vm849
  %vm882 = vmpackc.low %vm850, %vm850
  %vm883 = vmpackc.low %vm851, %vm851
  %vm884 = vmpackc.low %vm852, %vm852
  %vm885 = vmpackc.low %vm853, %vm853
  %vm886 = vmpackc.low %vm854, %vm854
  %vm887 = vmpackc.low %vm855, %vm855
  %vm888 = vmpackc.low %vm856, %vm856
  %vm889 = vmpackc.low %vm857, %vm857
  %vm890 = vmpackc.low %vm858, %vm858
  %vm891 = vmpackc.low %vm859, %vm859
  %vm892 = vmpackc.low %vm860, %vm860
  %vm893 = vmpackc.low %vm861, %vm861
  %vm894 = vmpackc.low %vm862, %vm862
  %vm895 = vmpackc.low %vm863, %vm863
  %vm896 = vmpackc.low %vm864, %vm864
  %vm897 = vmpackc.low %vm865, %vm865
  %vm898 = vmpackc.low %vm866, %vm866
  %vm899 = vmpackc.low %vm867, %vm867
  %vm900 = vmpackc.low %vm868, %vm868
  %vm901 = vmpackc.low %vm869, %vm869
  %vm902 = vmpackc.low %vm870, %vm870
  %vm903 = vmpackc.low %vm871, %vm871
  %vm904 = vmpackc.low %vm872, %vm872
  %vm905 = vmpackc.low %vm873, %vm873
  %vm906 = vmpackc.low %vm874, %vm874
  %vm907 = vmpackc.low %vm875, %vm875
  %vm908 = vmpackc.low %vm876, %vm876
  %v909 = vsel %vm877, 65537, 0
  %v910 = vsel %vm878, 65537, 0
  %v911 = vsel %vm879, 65537, 0
  %v912 = vsel %vm880, 65537, 0
  %v913 = vsel %vm881, 65537, 0
  %v914 = vsel %vm882, 65537, 0
  %v915 = vsel %vm883, 65537, 0
  %v916 = vsel %vm884, 65537, 0
  %v917 = vsel %vm885, 65537, 0
  %v918 = vsel %vm886, 65537, 0
  %v919 = vsel %vm887, 65537, 0
  %v920 = vsel %vm888, 65537, 0
  %v921 = vsel %vm889, 65537, 0
  %v922 = vsel %vm890, 65537, 0
  %v923 = vsel %vm891, 65537, 0
  %v924 = vsel %vm892, 65537, 0
  %v925 = vsel %vm893, 65537, 0
  %v926 = vsel %vm894, 65537, 0
  %v927 = vsel %vm895, 65537, 0
  %v928 = vsel %vm896, 65537, 0
  %v929 = vsel %vm897, 65537, 0
  %v930 = vsel %vm898, 65537, 0
  %v931 = vsel %vm899, 65537, 0
  %v932 = vsel %vm900, 65537, 0
  %v933 = vsel %vm901, 65537, 0
  %v934 = vsel %vm902, 65537, 0
  %v935 = vsel %vm903, 65537, 0
  %v936 = vsel %vm904, 65537, 0
  %v937 = vsel %vm905, 65537, 0
  %v938 = vsel %vm906, 65537, 0
  %v939 = vsel %vm907, 65537, 0
  %v940 = vsel %vm908, 65537, 0
  %vm941 = vcmask 1042432
  %vm942 = vcmask 1046532
  %vm943 = vmor %vm941, %vm942
  %v944 = vrot.slane %v909, 5
  %v945 = vrot.slane %v944, 4
  %v946 = vrot.slane %v910, 5
  %v947 = vsel %vm943, %v945, %v946
  %v948 = vrot.slane %v946, 4
  %v949 = vrot.slane %v911, 5
  %v950 = vsel %vm943, %v948, %v949
  %v951 = vrot.slane %v949, 4
  %v952 = vrot.slane %v912, 5
  %v953 = vsel %vm943, %v951, %v952
  %v954 = vrot.slane %v952, 4
  %v955 = vrot.slane %v913, 5
  %v956 = vsel %vm943, %v954, %v955
  %v957 = vrot.slane %v955, 4
  %v958 = vrot.slane %v914, 5
  %v959 = vsel %vm943, %v957, %v958
  %v960 = vrot.slane %v958, 4
  %v961 = vrot.slane %v915, 5
  %v962 = vsel %vm943, %v960, %v961
  %v963 = vrot.slane %v961, 4
  %v964 = vrot.slane %v916, 5
  %v965 = vsel %vm943, %v963, %v964
  %v966 = vrot.slane %v964, 4
  %v967 = vrot.slane %v917, 5
  %v968 = vsel %vm943, %v966, %v967
  %v969 = vrot.slane %v967, 4
  %v970 = vrot.slane %v918, 5
  %v971 = vsel %vm943, %v969, %v970
  %v972 = vrot.slane %v970, 4
  %v973 = vrot.slane %v919, 5
  %v974 = vsel %vm943, %v972, %v973
  %v975 = vrot.slane %v973, 4
  %v976 = vrot.slane %v920, 5
  %v977 = vsel %vm943, %v975, %v976
  %v978 = vrot.slane %v976, 4
  %v979 = vrot.slane %v921, 5
  %v980 = vsel %vm943, %v978, %v979
  %v981 = vrot.slane %v979, 4
  %v982 = vrot.slane %v922, 5
  %v983 = vsel %vm943, %v981, %v982
  %v984 = vrot.slane %v982, 4
  %v985 = vrot.slane %v923, 5
  %v986 = vsel %vm943, %v984, %v985
  %v987 = vrot.slane %v985, 4
  %v988 = vrot.slane %v924, 5
  %v989 = vsel %vm943, %v987, %v988
  %v990 = vrot.slane %v988, 4
  %v991 = vrot.slane %v925, 5
  %v992 = vsel %vm943, %v990, %v991
  %v993 = vrot.slane %v991, 4
  %v994 = vrot.slane %v926, 5
  %v995 = vsel %vm943, %v993, %v994
  %v996 = vrot.slane %v994, 4
  %v997 = vrot.slane %v927, 5
  %v998 = vsel %vm943, %v996, %v997
  %v999 = vrot.slane %v997, 4
  %v1000 = vrot.slane %v928, 5
  %v1001 = vsel %vm943, %v999, %v1000
  %v1002 = vrot.slane %v1000, 4
  %v1003 = vrot.slane %v929, 5
  %v1004 = vsel %vm943, %v1002, %v1003
  %v1005 = vrot.slane %v1003, 4
  %v1006 = vrot.slane %v930, 5
  %v1007 = vsel %vm943, %v1005, %v1006
  %v1008 = vrot.slane %v1006, 4
  %v1009 = vrot.slane %v931, 5
  %v1010 = vsel %vm943, %v1008, %v1009
  %v1011 = vrot.slane %v1009, 4
  %v1012 = vrot.slane %v932, 5
  %v1013 = vsel %vm943, %v1011, %v1012
  %v1014 = vrot.slane %v1012, 4
  %v1015 = vrot.slane %v933, 5
  %v1016 = vsel %vm943, %v1014, %v1015
  %v1017 = vrot.slane %v1015, 4
  %v1018 = vrot.slane %v934, 5
  %v1019 = vsel %vm943, %v1017, %v1018
  %v1020 = vrot.slane %v1018, 4
  %v1021 = vrot.slane %v935, 5
  %v1022 = vsel %vm943, %v1020, %v1021
  %v1023 = vrot.slane %v1021, 4
  %v1024 = vrot.slane %v936, 5
  %v1025 = vsel %vm943, %v1023, %v1024
  %v1026 = vrot.slane %v1024, 4
  %v1027 = vrot.slane %v937, 5
  %v1028 = vsel %vm943, %v1026, %v1027
  %v1029 = vrot.slane %v1027, 4
  %v1030 = vrot.slane %v938, 5
  %v1031 = vsel %vm943, %v1029, %v1030
  %v1032 = vrot.slane %v1030, 4
  %v1033 = vrot.slane %v939, 5
  %v1034 = vsel %vm943, %v1032, %v1033
  %v1035 = vrot.slane %v1033, 4
  %v1036 = vrot.slane %v940, 5
  %v1037 = vsel %vm943, %v1035, %v1036
  %v1038 = vrot.slane %v1036, 4
  %vm1039 = vcmp.ne.s16.totalorder %v944, 0
  %vm1040 = vcmp.ne.s16.totalorder %v947, 0
  %vm1041 = vcmp.ne.s16.totalorder %v950, 0
  %vm1042 = vcmp.ne.s16.totalorder %v953, 0
  %vm1043 = vcmp.ne.s16.totalorder %v956, 0
  %vm1044 = vcmp.ne.s16.totalorder %v959, 0
  %vm1045 = vcmp.ne.s16.totalorder %v962, 0
  %vm1046 = vcmp.ne.s16.totalorder %v965, 0
  %vm1047 = vcmp.ne.s16.totalorder %v968, 0
  %vm1048 = vcmp.ne.s16.totalorder %v971, 0
  %vm1049 = vcmp.ne.s16.totalorder %v974, 0
  %vm1050 = vcmp.ne.s16.totalorder %v977, 0
  %vm1051 = vcmp.ne.s16.totalorder %v980, 0
  %vm1052 = vcmp.ne.s16.totalorder %v983, 0
  %vm1053 = vcmp.ne.s16.totalorder %v986, 0
  %vm1054 = vcmp.ne.s16.totalorder %v989, 0
  %vm1055 = vcmp.ne.s16.totalorder %v992, 0
  %vm1056 = vcmp.ne.s16.totalorder %v995, 0
  %vm1057 = vcmp.ne.s16.totalorder %v998, 0
  %vm1058 = vcmp.ne.s16.totalorder %v1001, 0
  %vm1059 = vcmp.ne.s16.totalorder %v1004, 0
  %vm1060 = vcmp.ne.s16.totalorder %v1007, 0
  %vm1061 = vcmp.ne.s16.totalorder %v1010, 0
  %vm1062 = vcmp.ne.s16.totalorder %v1013, 0
  %vm1063 = vcmp.ne.s16.totalorder %v1016, 0
  %vm1064 = vcmp.ne.s16.totalorder %v1019, 0
  %vm1065 = vcmp.ne.s16.totalorder %v1022, 0
  %vm1066 = vcmp.ne.s16.totalorder %v1025, 0
  %vm1067 = vcmp.ne.s16.totalorder %v1028, 0
  %vm1068 = vcmp.ne.s16.totalorder %v1031, 0
  %vm1069 = vcmp.ne.s16.totalorder %v1034, 0
  %vm1070 = vcmp.ne.s16.totalorder %v1037, 0
  %vm1071 = vcmp.ne.s16.totalorder %v1038, 0
  %v1072 = vsel %vm1039, %v780, 0
  %v1073 = vsel %vm1040, %v200, 0
  %v1074 = vsel %vm1041, %v201, 0
  %v1075 = vsel %vm1042, %v202, 0
  %v1076 = vsel %vm1043, %v203, 0
  %v1077 = vsel %vm1044, %v204, 0
  %v1078 = vsel %vm1045, %v205, 0
  %v1079 = vsel %vm1046, %v206, 0
  %v1080 = vsel %vm1047, %v207, 0
  %v1081 = vsel %vm1048, %v208, 0
  %v1082 = vsel %vm1049, %v209, 0
  %v1083 = vsel %vm1050, %v210, 0
  %v1084 = vsel %vm1051, %v211, 0
  %v1085 = vsel %vm1052, %v212, 0
  %v1086 = vsel %vm1053, %v213, 0
  %v1087 = vsel %vm1054, %v214, 0
  %v1088 = vsel %vm1055, %v215, 0
  %v1089 = vsel %vm1056, %v216, 0
  %v1090 = vsel %vm1057, %v217, 0
  %v1091 = vsel %vm1058, %v218, 0
  %v1092 = vsel %vm1059, %v219, 0
  %v1093 = vsel %vm1060, %v220, 0
  %v1094 = vsel %vm1061, %v221, 0
  %v1095 = vsel %vm1062, %v222, 0
  %v1096 = vsel %vm1063, %v223, 0
  %v1097 = vsel %vm1064, %v224, 0
  %v1098 = vsel %vm1065, %v225, 0
  %v1099 = vsel %vm1066, %v226, 0
  %v1100 = vsel %vm1067, %v227, 0
  %v1101 = vsel %vm1068, %v228, 0
  %v1102 = vsel %vm1069, %v229, 0
  %v1103 = vsel %vm1070, %v230, 0
  %v1104 = vsel %vm1071, %v231, 0
  %v1105 = vld [vmem:[#allocation2 + $0x80] sm:$0xf]
  %vm1106 = vcmp.ge.s32.totalorder %v167, 1
  %vm1107 = vcmp.ge.s32.totalorder %v168, 1
  %vm1108 = vcmp.ge.s32.totalorder %v169, 1
  %vm1109 = vcmp.ge.s32.totalorder %v170, 1
  %vm1110 = vcmp.ge.s32.totalorder %v171, 1
  %vm1111 = vcmp.ge.s32.totalorder %v172, 1
  %vm1112 = vcmp.ge.s32.totalorder %v173, 1
  %vm1113 = vcmp.ge.s32.totalorder %v174, 1
  %vm1114 = vcmp.ge.s32.totalorder %v175, 1
  %vm1115 = vcmp.ge.s32.totalorder %v176, 1
  %vm1116 = vcmp.ge.s32.totalorder %v177, 1
  %vm1117 = vcmp.ge.s32.totalorder %v178, 1
  %vm1118 = vcmp.ge.s32.totalorder %v179, 1
  %vm1119 = vcmp.ge.s32.totalorder %v180, 1
  %vm1120 = vcmp.ge.s32.totalorder %v181, 1
  %vm1121 = vcmp.ge.s32.totalorder %v182, 1
  %vm1122 = vcmp.ge.s32.totalorder %v183, 1
  %vm1123 = vcmp.ge.s32.totalorder %v184, 1
  %vm1124 = vcmp.ge.s32.totalorder %v185, 1
  %vm1125 = vcmp.ge.s32.totalorder %v186, 1
  %vm1126 = vcmp.ge.s32.totalorder %v187, 1
  %vm1127 = vcmp.ge.s32.totalorder %v188, 1
  %vm1128 = vcmp.ge.s32.totalorder %v189, 1
  %vm1129 = vcmp.ge.s32.totalorder %v190, 1
  %vm1130 = vcmp.ge.s32.totalorder %v191, 1
  %vm1131 = vcmp.ge.s32.totalorder %v192, 1
  %vm1132 = vcmp.ge.s32.totalorder %v193, 1
  %vm1133 = vcmp.ge.s32.totalorder %v194, 1
  %vm1134 = vcmp.ge.s32.totalorder %v195, 1
  %vm1135 = vcmp.ge.s32.totalorder %v196, 1
  %vm1136 = vcmp.ge.s32.totalorder %v197, 1
  %vm1137 = vcmp.ge.s32.totalorder %v198, 1
  %v1138 = vsel %vm1106, 1, 0
  %v1139 = vsel %vm1107, 1, 0
  %v1140 = vsel %vm1108, 1, 0
  %v1141 = vsel %vm1109, 1, 0
  %v1142 = vsel %vm1110, 1, 0
  %v1143 = vsel %vm1111, 1, 0
  %v1144 = vsel %vm1112, 1, 0
  %v1145 = vsel %vm1113, 1, 0
  %v1146 = vsel %vm1114, 1, 0
  %v1147 = vsel %vm1115, 1, 0
  %v1148 = vsel %vm1116, 1, 0
  %v1149 = vsel %vm1117, 1, 0
  %v1150 = vsel %vm1118, 1, 0
  %v1151 = vsel %vm1119, 1, 0
  %v1152 = vsel %vm1120, 1, 0
  %v1153 = vsel %vm1121, 1, 0
  %v1154 = vsel %vm1122, 1, 0
  %v1155 = vsel %vm1123, 1, 0
  %v1156 = vsel %vm1124, 1, 0
  %v1157 = vsel %vm1125, 1, 0
  %v1158 = vsel %vm1126, 1, 0
  %v1159 = vsel %vm1127, 1, 0
  %v1160 = vsel %vm1128, 1, 0
  %v1161 = vsel %vm1129, 1, 0
  %v1162 = vsel %vm1130, 1, 0
  %v1163 = vsel %vm1131, 1, 0
  %v1164 = vsel %vm1132, 1, 0
  %v1165 = vsel %vm1133, 1, 0
  %v1166 = vsel %vm1134, 1, 0
  %v1167 = vsel %vm1135, 1, 0
  %v1168 = vsel %vm1136, 1, 0
  %v1169 = vsel %vm1137, 1, 0
  %vm1170 = vcmp.eq.s32.totalorder %v1138, 1
  %vm1171 = vcmp.eq.s32.totalorder %v1139, 1
  %vm1172 = vcmp.eq.s32.totalorder %v1140, 1
  %vm1173 = vcmp.eq.s32.totalorder %v1141, 1
  %vm1174 = vcmp.eq.s32.totalorder %v1142, 1
  %vm1175 = vcmp.eq.s32.totalorder %v1143, 1
  %vm1176 = vcmp.eq.s32.totalorder %v1144, 1
  %vm1177 = vcmp.eq.s32.totalorder %v1145, 1
  %vm1178 = vcmp.eq.s32.totalorder %v1146, 1
  %vm1179 = vcmp.eq.s32.totalorder %v1147, 1
  %vm1180 = vcmp.eq.s32.totalorder %v1148, 1
  %vm1181 = vcmp.eq.s32.totalorder %v1149, 1
  %vm1182 = vcmp.eq.s32.totalorder %v1150, 1
  %vm1183 = vcmp.eq.s32.totalorder %v1151, 1
  %vm1184 = vcmp.eq.s32.totalorder %v1152, 1
  %vm1185 = vcmp.eq.s32.totalorder %v1153, 1
  %vm1186 = vcmp.eq.s32.totalorder %v1154, 1
  %vm1187 = vcmp.eq.s32.totalorder %v1155, 1
  %vm1188 = vcmp.eq.s32.totalorder %v1156, 1
  %vm1189 = vcmp.eq.s32.totalorder %v1157, 1
  %vm1190 = vcmp.eq.s32.totalorder %v1158, 1
  %vm1191 = vcmp.eq.s32.totalorder %v1159, 1
  %vm1192 = vcmp.eq.s32.totalorder %v1160, 1
  %vm1193 = vcmp.eq.s32.totalorder %v1161, 1
  %vm1194 = vcmp.eq.s32.totalorder %v1162, 1
  %vm1195 = vcmp.eq.s32.totalorder %v1163, 1
  %vm1196 = vcmp.eq.s32.totalorder %v1164, 1
  %vm1197 = vcmp.eq.s32.totalorder %v1165, 1
  %vm1198 = vcmp.eq.s32.totalorder %v1166, 1
  %vm1199 = vcmp.eq.s32.totalorder %v1167, 1
  %vm1200 = vcmp.eq.s32.totalorder %v1168, 1
  %vm1201 = vcmp.eq.s32.totalorder %v1169, 1
  %vm1202 = vmpackc.low %vm1170, %vm1170
  %vm1203 = vmpackc.low %vm1171, %vm1171
  %vm1204 = vmpackc.low %vm1172, %vm1172
  %vm1205 = vmpackc.low %vm1173, %vm1173
  %vm1206 = vmpackc.low %vm1174, %vm1174
  %vm1207 = vmpackc.low %vm1175, %vm1175
  %vm1208 = vmpackc.low %vm1176, %vm1176
  %vm1209 = vmpackc.low %vm1177, %vm1177
  %vm1210 = vmpackc.low %vm1178, %vm1178
  %vm1211 = vmpackc.low %vm1179, %vm1179
  %vm1212 = vmpackc.low %vm1180, %vm1180
  %vm1213 = vmpackc.low %vm1181, %vm1181
  %vm1214 = vmpackc.low %vm1182, %vm1182
  %vm1215 = vmpackc.low %vm1183, %vm1183
  %vm1216 = vmpackc.low %vm1184, %vm1184
  %vm1217 = vmpackc.low %vm1185, %vm1185
  %vm1218 = vmpackc.low %vm1186, %vm1186
  %vm1219 = vmpackc.low %vm1187, %vm1187
  %vm1220 = vmpackc.low %vm1188, %vm1188
  %vm1221 = vmpackc.low %vm1189, %vm1189
  %vm1222 = vmpackc.low %vm1190, %vm1190
  %vm1223 = vmpackc.low %vm1191, %vm1191
  %vm1224 = vmpackc.low %vm1192, %vm1192
  %vm1225 = vmpackc.low %vm1193, %vm1193
  %vm1226 = vmpackc.low %vm1194, %vm1194
  %vm1227 = vmpackc.low %vm1195, %vm1195
  %vm1228 = vmpackc.low %vm1196, %vm1196
  %vm1229 = vmpackc.low %vm1197, %vm1197
  %vm1230 = vmpackc.low %vm1198, %vm1198
  %vm1231 = vmpackc.low %vm1199, %vm1199
  %vm1232 = vmpackc.low %vm1200, %vm1200
  %vm1233 = vmpackc.low %vm1201, %vm1201
  %v1234 = vsel %vm1202, 65537, 0
  %v1235 = vsel %vm1203, 65537, 0
  %v1236 = vsel %vm1204, 65537, 0
  %v1237 = vsel %vm1205, 65537, 0
  %v1238 = vsel %vm1206, 65537, 0
  %v1239 = vsel %vm1207, 65537, 0
  %v1240 = vsel %vm1208, 65537, 0
  %v1241 = vsel %vm1209, 65537, 0
  %v1242 = vsel %vm1210, 65537, 0
  %v1243 = vsel %vm1211, 65537, 0
  %v1244 = vsel %vm1212, 65537, 0
  %v1245 = vsel %vm1213, 65537, 0
  %v1246 = vsel %vm1214, 65537, 0
  %v1247 = vsel %vm1215, 65537, 0
  %v1248 = vsel %vm1216, 65537, 0
  %v1249 = vsel %vm1217, 65537, 0
  %v1250 = vsel %vm1218, 65537, 0
  %v1251 = vsel %vm1219, 65537, 0
  %v1252 = vsel %vm1220, 65537, 0
  %v1253 = vsel %vm1221, 65537, 0
  %v1254 = vsel %vm1222, 65537, 0
  %v1255 = vsel %vm1223, 65537, 0
  %v1256 = vsel %vm1224, 65537, 0
  %v1257 = vsel %vm1225, 65537, 0
  %v1258 = vsel %vm1226, 65537, 0
  %v1259 = vsel %vm1227, 65537, 0
  %v1260 = vsel %vm1228, 65537, 0
  %v1261 = vsel %vm1229, 65537, 0
  %v1262 = vsel %vm1230, 65537, 0
  %v1263 = vsel %vm1231, 65537, 0
  %v1264 = vsel %vm1232, 65537, 0
  %v1265 = vsel %vm1233, 65537, 0
  %vm1266 = vsmask.f32 3328
  %vm1267 = vsmask.f32 7440
  %vm1268 = vmor %vm1266, %vm1267
  %v1270 = vshll.u32 %v1234, 16
  %v1272 = vrot.slane %v1270, 5
  %v1273 = vshrl.u32 %v1234, 16
  %v1275 = vrot.slane %v1273, 4
  %v1276 = vor.u32 %v1275, %v1272
  %v1277 = vrot.slane %v1276, 4
  %v1279 = vshll.u32 %v1235, 16
  %v1281 = vrot.slane %v1279, 5
  %v1282 = vsel %vm1268, %v1277, %v1281
  %v1283 = vshrl.u32 %v1235, 16
  %v1285 = vrot.slane %v1283, 4
  %v1286 = vor.u32 %v1285, %v1281
  %v1287 = vrot.slane %v1286, 4
  %v1289 = vshll.u32 %v1236, 16
  %v1291 = vrot.slane %v1289, 5
  %v1292 = vsel %vm1268, %v1287, %v1291
  %v1293 = vshrl.u32 %v1236, 16
  %v1295 = vrot.slane %v1293, 4
  %v1296 = vor.u32 %v1295, %v1291
  %v1297 = vrot.slane %v1296, 4
  %v1299 = vshll.u32 %v1237, 16
  %v1301 = vrot.slane %v1299, 5
  %v1302 = vsel %vm1268, %v1297, %v1301
  %v1303 = vshrl.u32 %v1237, 16
  %v1305 = vrot.slane %v1303, 4
  %v1306 = vor.u32 %v1305, %v1301
  %v1307 = vrot.slane %v1306, 4
  %v1309 = vshll.u32 %v1238, 16
  %v1311 = vrot.slane %v1309, 5
  %v1312 = vsel %vm1268, %v1307, %v1311
  %v1313 = vshrl.u32 %v1238, 16
  %v1315 = vrot.slane %v1313, 4
  %v1316 = vor.u32 %v1315, %v1311
  %v1317 = vrot.slane %v1316, 4
  %v1319 = vshll.u32 %v1239, 16
  %v1321 = vrot.slane %v1319, 5
  %v1322 = vsel %vm1268, %v1317, %v1321
  %v1323 = vshrl.u32 %v1239, 16
  %v1325 = vrot.slane %v1323, 4
  %v1326 = vor.u32 %v1325, %v1321
  %v1327 = vrot.slane %v1326, 4
  %v1329 = vshll.u32 %v1240, 16
  %v1331 = vrot.slane %v1329, 5
  %v1332 = vsel %vm1268, %v1327, %v1331
  %v1333 = vshrl.u32 %v1240, 16
  %v1335 = vrot.slane %v1333, 4
  %v1336 = vor.u32 %v1335, %v1331
  %v1337 = vrot.slane %v1336, 4
  %v1339 = vshll.u32 %v1241, 16
  %v1341 = vrot.slane %v1339, 5
  %v1342 = vsel %vm1268, %v1337, %v1341
  %v1343 = vshrl.u32 %v1241, 16
  %v1345 = vrot.slane %v1343, 4
  %v1346 = vor.u32 %v1345, %v1341
  %v1347 = vrot.slane %v1346, 4
  %v1349 = vshll.u32 %v1242, 16
  %v1351 = vrot.slane %v1349, 5
  %v1352 = vsel %vm1268, %v1347, %v1351
  %v1353 = vshrl.u32 %v1242, 16
  %v1355 = vrot.slane %v1353, 4
  %v1356 = vor.u32 %v1355, %v1351
  %v1357 = vrot.slane %v1356, 4
  %v1359 = vshll.u32 %v1243, 16
  %v1361 = vrot.slane %v1359, 5
  %v1362 = vsel %vm1268, %v1357, %v1361
  %v1363 = vshrl.u32 %v1243, 16
  %v1365 = vrot.slane %v1363, 4
  %v1366 = vor.u32 %v1365, %v1361
  %v1367 = vrot.slane %v1366, 4
  %v1369 = vshll.u32 %v1244, 16
  %v1371 = vrot.slane %v1369, 5
  %v1372 = vsel %vm1268, %v1367, %v1371
  %v1373 = vshrl.u32 %v1244, 16
  %v1375 = vrot.slane %v1373, 4
  %v1376 = vor.u32 %v1375, %v1371
  %v1377 = vrot.slane %v1376, 4
  %v1379 = vshll.u32 %v1245, 16
  %v1381 = vrot.slane %v1379, 5
  %v1382 = vsel %vm1268, %v1377, %v1381
  %v1383 = vshrl.u32 %v1245, 16
  %v1385 = vrot.slane %v1383, 4
  %v1386 = vor.u32 %v1385, %v1381
  %v1387 = vrot.slane %v1386, 4
  %v1389 = vshll.u32 %v1246, 16
  %v1391 = vrot.slane %v1389, 5
  %v1392 = vsel %vm1268, %v1387, %v1391
  %v1393 = vshrl.u32 %v1246, 16
  %v1395 = vrot.slane %v1393, 4
  %v1396 = vor.u32 %v1395, %v1391
  %v1397 = vrot.slane %v1396, 4
  %v1399 = vshll.u32 %v1247, 16
  %v1401 = vrot.slane %v1399, 5
  %v1402 = vsel %vm1268, %v1397, %v1401
  %v1403 = vshrl.u32 %v1247, 16
  %v1405 = vrot.slane %v1403, 4
  %v1406 = vor.u32 %v1405, %v1401
  %v1407 = vrot.slane %v1406, 4
  %v1409 = vshll.u32 %v1248, 16
  %v1411 = vrot.slane %v1409, 5
  %v1412 = vsel %vm1268, %v1407, %v1411
  %v1413 = vshrl.u32 %v1248, 16
  %v1415 = vrot.slane %v1413, 4
  %v1416 = vor.u32 %v1415, %v1411
  %v1417 = vrot.slane %v1416, 4
  %v1419 = vshll.u32 %v1249, 16
  %v1421 = vrot.slane %v1419, 5
  %v1422 = vsel %vm1268, %v1417, %v1421
  %v1423 = vshrl.u32 %v1249, 16
  %v1425 = vrot.slane %v1423, 4
  %v1426 = vor.u32 %v1425, %v1421
  %v1427 = vrot.slane %v1426, 4
  %v1429 = vshll.u32 %v1250, 16
  %v1431 = vrot.slane %v1429, 5
  %v1432 = vsel %vm1268, %v1427, %v1431
  %v1433 = vshrl.u32 %v1250, 16
  %v1435 = vrot.slane %v1433, 4
  %v1436 = vor.u32 %v1435, %v1431
  %v1437 = vrot.slane %v1436, 4
  %v1439 = vshll.u32 %v1251, 16
  %v1441 = vrot.slane %v1439, 5
  %v1442 = vsel %vm1268, %v1437, %v1441
  %v1443 = vshrl.u32 %v1251, 16
  %v1445 = vrot.slane %v1443, 4
  %v1446 = vor.u32 %v1445, %v1441
  %v1447 = vrot.slane %v1446, 4
  %v1449 = vshll.u32 %v1252, 16
  %v1451 = vrot.slane %v1449, 5
  %v1452 = vsel %vm1268, %v1447, %v1451
  %v1453 = vshrl.u32 %v1252, 16
  %v1455 = vrot.slane %v1453, 4
  %v1456 = vor.u32 %v1455, %v1451
  %v1457 = vrot.slane %v1456, 4
  %v1459 = vshll.u32 %v1253, 16
  %v1461 = vrot.slane %v1459, 5
  %v1462 = vsel %vm1268, %v1457, %v1461
  %v1463 = vshrl.u32 %v1253, 16
  %v1465 = vrot.slane %v1463, 4
  %v1466 = vor.u32 %v1465, %v1461
  %v1467 = vrot.slane %v1466, 4
  %v1469 = vshll.u32 %v1254, 16
  %v1471 = vrot.slane %v1469, 5
  %v1472 = vsel %vm1268, %v1467, %v1471
  %v1473 = vshrl.u32 %v1254, 16
  %v1475 = vrot.slane %v1473, 4
  %v1476 = vor.u32 %v1475, %v1471
  %v1477 = vrot.slane %v1476, 4
  %v1479 = vshll.u32 %v1255, 16
  %v1481 = vrot.slane %v1479, 5
  %v1482 = vsel %vm1268, %v1477, %v1481
  %v1483 = vshrl.u32 %v1255, 16
  %v1485 = vrot.slane %v1483, 4
  %v1486 = vor.u32 %v1485, %v1481
  %v1487 = vrot.slane %v1486, 4
  %v1489 = vshll.u32 %v1256, 16
  %v1491 = vrot.slane %v1489, 5
  %v1492 = vsel %vm1268, %v1487, %v1491
  %v1493 = vshrl.u32 %v1256, 16
  %v1495 = vrot.slane %v1493, 4
  %v1496 = vor.u32 %v1495, %v1491
  %v1497 = vrot.slane %v1496, 4
  %v1499 = vshll.u32 %v1257, 16
  %v1501 = vrot.slane %v1499, 5
  %v1502 = vsel %vm1268, %v1497, %v1501
  %v1503 = vshrl.u32 %v1257, 16
  %v1505 = vrot.slane %v1503, 4
  %v1506 = vor.u32 %v1505, %v1501
  %v1507 = vrot.slane %v1506, 4
  %v1509 = vshll.u32 %v1258, 16
  %v1511 = vrot.slane %v1509, 5
  %v1512 = vsel %vm1268, %v1507, %v1511
  %v1513 = vshrl.u32 %v1258, 16
  %v1515 = vrot.slane %v1513, 4
  %v1516 = vor.u32 %v1515, %v1511
  %v1517 = vrot.slane %v1516, 4
  %v1519 = vshll.u32 %v1259, 16
  %v1521 = vrot.slane %v1519, 5
  %v1522 = vsel %vm1268, %v1517, %v1521
  %v1523 = vshrl.u32 %v1259, 16
  %v1525 = vrot.slane %v1523, 4
  %v1526 = vor.u32 %v1525, %v1521
  %v1527 = vrot.slane %v1526, 4
  %v1529 = vshll.u32 %v1260, 16
  %v1531 = vrot.slane %v1529, 5
  %v1532 = vsel %vm1268, %v1527, %v1531
  %v1533 = vshrl.u32 %v1260, 16
  %v1535 = vrot.slane %v1533, 4
  %v1536 = vor.u32 %v1535, %v1531
  %v1537 = vrot.slane %v1536, 4
  %v1539 = vshll.u32 %v1261, 16
  %v1541 = vrot.slane %v1539, 5
  %v1542 = vsel %vm1268, %v1537, %v1541
  %v1543 = vshrl.u32 %v1261, 16
  %v1545 = vrot.slane %v1543, 4
  %v1546 = vor.u32 %v1545, %v1541
  %v1547 = vrot.slane %v1546, 4
  %v1549 = vshll.u32 %v1262, 16
  %v1551 = vrot.slane %v1549, 5
  %v1552 = vsel %vm1268, %v1547, %v1551
  %v1553 = vshrl.u32 %v1262, 16
  %v1555 = vrot.slane %v1553, 4
  %v1556 = vor.u32 %v1555, %v1551
  %v1557 = vrot.slane %v1556, 4
  %v1559 = vshll.u32 %v1263, 16
  %v1561 = vrot.slane %v1559, 5
  %v1562 = vsel %vm1268, %v1557, %v1561
  %v1563 = vshrl.u32 %v1263, 16
  %v1565 = vrot.slane %v1563, 4
  %v1566 = vor.u32 %v1565, %v1561
  %v1567 = vrot.slane %v1566, 4
  %v1569 = vshll.u32 %v1264, 16
  %v1571 = vrot.slane %v1569, 5
  %v1572 = vsel %vm1268, %v1567, %v1571
  %v1573 = vshrl.u32 %v1264, 16
  %v1575 = vrot.slane %v1573, 4
  %v1576 = vor.u32 %v1575, %v1571
  %v1577 = vrot.slane %v1576, 4
  %v1579 = vshll.u32 %v1265, 16
  %v1581 = vrot.slane %v1579, 5
  %v1582 = vsel %vm1268, %v1577, %v1581
  %v1583 = vshrl.u32 %v1265, 16
  %v1585 = vrot.slane %v1583, 4
  %v1586 = vor.u32 %v1585, %v1581
  %v1587 = vrot.slane %v1586, 4
  %vm1588 = vcmp.ne.s16.totalorder %v1272, 0
  %vm1589 = vcmp.ne.s16.totalorder %v1282, 0
  %vm1590 = vcmp.ne.s16.totalorder %v1292, 0
  %vm1591 = vcmp.ne.s16.totalorder %v1302, 0
  %vm1592 = vcmp.ne.s16.totalorder %v1312, 0
  %vm1593 = vcmp.ne.s16.totalorder %v1322, 0
  %vm1594 = vcmp.ne.s16.totalorder %v1332, 0
  %vm1595 = vcmp.ne.s16.totalorder %v1342, 0
  %vm1596 = vcmp.ne.s16.totalorder %v1352, 0
  %vm1597 = vcmp.ne.s16.totalorder %v1362, 0
  %vm1598 = vcmp.ne.s16.totalorder %v1372, 0
  %vm1599 = vcmp.ne.s16.totalorder %v1382, 0
  %vm1600 = vcmp.ne.s16.totalorder %v1392, 0
  %vm1601 = vcmp.ne.s16.totalorder %v1402, 0
  %vm1602 = vcmp.ne.s16.totalorder %v1412, 0
  %vm1603 = vcmp.ne.s16.totalorder %v1422, 0
  %vm1604 = vcmp.ne.s16.totalorder %v1432, 0
  %vm1605 = vcmp.ne.s16.totalorder %v1442, 0
  %vm1606 = vcmp.ne.s16.totalorder %v1452, 0
  %vm1607 = vcmp.ne.s16.totalorder %v1462, 0
  %vm1608 = vcmp.ne.s16.totalorder %v1472, 0
  %vm1609 = vcmp.ne.s16.totalorder %v1482, 0
  %vm1610 = vcmp.ne.s16.totalorder %v1492, 0
  %vm1611 = vcmp.ne.s16.totalorder %v1502, 0
  %vm1612 = vcmp.ne.s16.totalorder %v1512, 0
  %vm1613 = vcmp.ne.s16.totalorder %v1522, 0
  %vm1614 = vcmp.ne.s16.totalorder %v1532, 0
  %vm1615 = vcmp.ne.s16.totalorder %v1542, 0
  %vm1616 = vcmp.ne.s16.totalorder %v1552, 0
  %vm1617 = vcmp.ne.s16.totalorder %v1562, 0
  %vm1618 = vcmp.ne.s16.totalorder %v1572, 0
  %vm1619 = vcmp.ne.s16.totalorder %v1582, 0
  %vm1620 = vcmp.ne.s16.totalorder %v1587, 0
  %v1621 = vsel %vm1588, %v780, 0
  %v1622 = vsel %vm1589, %v200, 0
  %v1623 = vsel %vm1590, %v201, 0
  %v1624 = vsel %vm1591, %v202, 0
  %v1625 = vsel %vm1592, %v203, 0
  %v1626 = vsel %vm1593, %v204, 0
  %v1627 = vsel %vm1594, %v205, 0
  %v1628 = vsel %vm1595, %v206, 0
  %v1629 = vsel %vm1596, %v207, 0
  %v1630 = vsel %vm1597, %v208, 0
  %v1631 = vsel %vm1598, %v209, 0
  %v1632 = vsel %vm1599, %v210, 0
  %v1633 = vsel %vm1600, %v211, 0
  %v1634 = vsel %vm1601, %v212, 0
  %v1635 = vsel %vm1602, %v213, 0
  %v1636 = vsel %vm1603, %v214, 0
  %v1637 = vsel %vm1604, %v215, 0
  %v1638 = vsel %vm1605, %v216, 0
  %v1639 = vsel %vm1606, %v217, 0
  %v1640 = vsel %vm1607, %v218, 0
  %v1641 = vsel %vm1608, %v219, 0
  %v1642 = vsel %vm1609, %v220, 0
  %v1643 = vsel %vm1610, %v221, 0
  %v1644 = vsel %vm1611, %v222, 0
  %v1645 = vsel %vm1612, %v223, 0
  %v1646 = vsel %vm1613, %v224, 0
  %v1647 = vsel %vm1614, %v225, 0
  %v1648 = vsel %vm1615, %v226, 0
  %v1649 = vsel %vm1616, %v227, 0
  %v1650 = vsel %vm1617, %v228, 0
  %v1651 = vsel %vm1618, %v229, 0
  %v1652 = vsel %vm1619, %v230, 0
  %v1653 = vsel %vm1620, %v1105, 0
  %v1654 = vld [vmem:[#allocation2 + $0x84] sm:$0x1]
  %vm1655 = vcmp.lt.s32.totalorder %v167, 127
  %vm1656 = vcmp.lt.s32.totalorder %v168, 127
  %vm1657 = vcmp.lt.s32.totalorder %v169, 127
  %vm1658 = vcmp.lt.s32.totalorder %v170, 127
  %vm1659 = vcmp.lt.s32.totalorder %v171, 127
  %vm1660 = vcmp.lt.s32.totalorder %v172, 127
  %vm1661 = vcmp.lt.s32.totalorder %v173, 127
  %vm1662 = vcmp.lt.s32.totalorder %v174, 127
  %vm1663 = vcmp.lt.s32.totalorder %v175, 127
  %vm1664 = vcmp.lt.s32.totalorder %v176, 127
  %vm1665 = vcmp.lt.s32.totalorder %v177, 127
  %vm1666 = vcmp.lt.s32.totalorder %v178, 127
  %vm1667 = vcmp.lt.s32.totalorder %v179, 127
  %vm1668 = vcmp.lt.s32.totalorder %v180, 127
  %vm1669 = vcmp.lt.s32.totalorder %v181, 127
  %vm1670 = vcmp.lt.s32.totalorder %v182, 127
  %vm1671 = vcmp.lt.s32.totalorder %v183, 127
  %vm1672 = vcmp.lt.s32.totalorder %v184, 127
  %vm1673 = vcmp.lt.s32.totalorder %v185, 127
  %vm1674 = vcmp.lt.s32.totalorder %v186, 127
  %vm1675 = vcmp.lt.s32.totalorder %v187, 127
  %vm1676 = vcmp.lt.s32.totalorder %v188, 127
  %vm1677 = vcmp.lt.s32.totalorder %v189, 127
  %vm1678 = vcmp.lt.s32.totalorder %v190, 127
  %vm1679 = vcmp.lt.s32.totalorder %v191, 127
  %vm1680 = vcmp.lt.s32.totalorder %v192, 127
  %vm1681 = vcmp.lt.s32.totalorder %v193, 127
  %vm1682 = vcmp.lt.s32.totalorder %v194, 127
  %vm1683 = vcmp.lt.s32.totalorder %v195, 127
  %vm1684 = vcmp.lt.s32.totalorder %v196, 127
  %vm1685 = vcmp.lt.s32.totalorder %v197, 127
  %vm1686 = vcmp.lt.s32.totalorder %v198, 127
  %v1687 = vsel %vm1655, 1, 0
  %v1688 = vsel %vm1656, 1, 0
  %v1689 = vsel %vm1657, 1, 0
  %v1690 = vsel %vm1658, 1, 0
  %v1691 = vsel %vm1659, 1, 0
  %v1692 = vsel %vm1660, 1, 0
  %v1693 = vsel %vm1661, 1, 0
  %v1694 = vsel %vm1662, 1, 0
  %v1695 = vsel %vm1663, 1, 0
  %v1696 = vsel %vm1664, 1, 0
  %v1697 = vsel %vm1665, 1, 0
  %v1698 = vsel %vm1666, 1, 0
  %v1699 = vsel %vm1667, 1, 0
  %v1700 = vsel %vm1668, 1, 0
  %v1701 = vsel %vm1669, 1, 0
  %v1702 = vsel %vm1670, 1, 0
  %v1703 = vsel %vm1671, 1, 0
  %v1704 = vsel %vm1672, 1, 0
  %v1705 = vsel %vm1673, 1, 0
  %v1706 = vsel %vm1674, 1, 0
  %v1707 = vsel %vm1675, 1, 0
  %v1708 = vsel %vm1676, 1, 0
  %v1709 = vsel %vm1677, 1, 0
  %v1710 = vsel %vm1678, 1, 0
  %v1711 = vsel %vm1679, 1, 0
  %v1712 = vsel %vm1680, 1, 0
  %v1713 = vsel %vm1681, 1, 0
  %v1714 = vsel %vm1682, 1, 0
  %v1715 = vsel %vm1683, 1, 0
  %v1716 = vsel %vm1684, 1, 0
  %v1717 = vsel %vm1685, 1, 0
  %v1718 = vsel %vm1686, 1, 0
  %vm1719 = vcmp.eq.s32.totalorder %v1687, 1
  %vm1720 = vcmp.eq.s32.totalorder %v1688, 1
  %vm1721 = vcmp.eq.s32.totalorder %v1689, 1
  %vm1722 = vcmp.eq.s32.totalorder %v1690, 1
  %vm1723 = vcmp.eq.s32.totalorder %v1691, 1
  %vm1724 = vcmp.eq.s32.totalorder %v1692, 1
  %vm1725 = vcmp.eq.s32.totalorder %v1693, 1
  %vm1726 = vcmp.eq.s32.totalorder %v1694, 1
  %vm1727 = vcmp.eq.s32.totalorder %v1695, 1
  %vm1728 = vcmp.eq.s32.totalorder %v1696, 1
  %vm1729 = vcmp.eq.s32.totalorder %v1697, 1
  %vm1730 = vcmp.eq.s32.totalorder %v1698, 1
  %vm1731 = vcmp.eq.s32.totalorder %v1699, 1
  %vm1732 = vcmp.eq.s32.totalorder %v1700, 1
  %vm1733 = vcmp.eq.s32.totalorder %v1701, 1
  %vm1734 = vcmp.eq.s32.totalorder %v1702, 1
  %vm1735 = vcmp.eq.s32.totalorder %v1703, 1
  %vm1736 = vcmp.eq.s32.totalorder %v1704, 1
  %vm1737 = vcmp.eq.s32.totalorder %v1705, 1
  %vm1738 = vcmp.eq.s32.totalorder %v1706, 1
  %vm1739 = vcmp.eq.s32.totalorder %v1707, 1
  %vm1740 = vcmp.eq.s32.totalorder %v1708, 1
  %vm1741 = vcmp.eq.s32.totalorder %v1709, 1
  %vm1742 = vcmp.eq.s32.totalorder %v1710, 1
  %vm1743 = vcmp.eq.s32.totalorder %v1711, 1
  %vm1744 = vcmp.eq.s32.totalorder %v1712, 1
  %vm1745 = vcmp.eq.s32.totalorder %v1713, 1
  %vm1746 = vcmp.eq.s32.totalorder %v1714, 1
  %vm1747 = vcmp.eq.s32.totalorder %v1715, 1
  %vm1748 = vcmp.eq.s32.totalorder %v1716, 1
  %vm1749 = vcmp.eq.s32.totalorder %v1717, 1
  %vm1750 = vcmp.eq.s32.totalorder %v1718, 1
  %vm1751 = vmpackc.low %vm1719, %vm1719
  %vm1752 = vmpackc.low %vm1720, %vm1720
  %vm1753 = vmpackc.low %vm1721, %vm1721
  %vm1754 = vmpackc.low %vm1722, %vm1722
  %vm1755 = vmpackc.low %vm1723, %vm1723
  %vm1756 = vmpackc.low %vm1724, %vm1724
  %vm1757 = vmpackc.low %vm1725, %vm1725
  %vm1758 = vmpackc.low %vm1726, %vm1726
  %vm1759 = vmpackc.low %vm1727, %vm1727
  %vm1760 = vmpackc.low %vm1728, %vm1728
  %vm1761 = vmpackc.low %vm1729, %vm1729
  %vm1762 = vmpackc.low %vm1730, %vm1730
  %vm1763 = vmpackc.low %vm1731, %vm1731
  %vm1764 = vmpackc.low %vm1732, %vm1732
  %vm1765 = vmpackc.low %vm1733, %vm1733
  %vm1766 = vmpackc.low %vm1734, %vm1734
  %vm1767 = vmpackc.low %vm1735, %vm1735
  %vm1768 = vmpackc.low %vm1736, %vm1736
  %vm1769 = vmpackc.low %vm1737, %vm1737
  %vm1770 = vmpackc.low %vm1738, %vm1738
  %vm1771 = vmpackc.low %vm1739, %vm1739
  %vm1772 = vmpackc.low %vm1740, %vm1740
  %vm1773 = vmpackc.low %vm1741, %vm1741
  %vm1774 = vmpackc.low %vm1742, %vm1742
  %vm1775 = vmpackc.low %vm1743, %vm1743
  %vm1776 = vmpackc.low %vm1744, %vm1744
  %vm1777 = vmpackc.low %vm1745, %vm1745
  %vm1778 = vmpackc.low %vm1746, %vm1746
  %vm1779 = vmpackc.low %vm1747, %vm1747
  %vm1780 = vmpackc.low %vm1748, %vm1748
  %vm1781 = vmpackc.low %vm1749, %vm1749
  %vm1782 = vmpackc.low %vm1750, %vm1750
  %v1783 = vsel %vm1751, 65537, 0
  %v1784 = vsel %vm1752, 65537, 0
  %v1785 = vsel %vm1753, 65537, 0
  %v1786 = vsel %vm1754, 65537, 0
  %v1787 = vsel %vm1755, 65537, 0
  %v1788 = vsel %vm1756, 65537, 0
  %v1789 = vsel %vm1757, 65537, 0
  %v1790 = vsel %vm1758, 65537, 0
  %v1791 = vsel %vm1759, 65537, 0
  %v1792 = vsel %vm1760, 65537, 0
  %v1793 = vsel %vm1761, 65537, 0
  %v1794 = vsel %vm1762, 65537, 0
  %v1795 = vsel %vm1763, 65537, 0
  %v1796 = vsel %vm1764, 65537, 0
  %v1797 = vsel %vm1765, 65537, 0
  %v1798 = vsel %vm1766, 65537, 0
  %v1799 = vsel %vm1767, 65537, 0
  %v1800 = vsel %vm1768, 65537, 0
  %v1801 = vsel %vm1769, 65537, 0
  %v1802 = vsel %vm1770, 65537, 0
  %v1803 = vsel %vm1771, 65537, 0
  %v1804 = vsel %vm1772, 65537, 0
  %v1805 = vsel %vm1773, 65537, 0
  %v1806 = vsel %vm1774, 65537, 0
  %v1807 = vsel %vm1775, 65537, 0
  %v1808 = vsel %vm1776, 65537, 0
  %v1809 = vsel %vm1777, 65537, 0
  %v1810 = vsel %vm1778, 65537, 0
  %v1811 = vsel %vm1779, 65537, 0
  %v1812 = vsel %vm1780, 65537, 0
  %v1813 = vsel %vm1781, 65537, 0
  %v1814 = vsel %vm1782, 65537, 0
  %vm1815 = vsmask.f32 256
  %vm1816 = vsmask.f32 4368
  %vm1817 = vmor %vm1815, %vm1816
  %v1819 = vshrl.u32 %v1783, 16
  %v1821 = vrot.slane %v1819, 7
  %v1822 = vshll.u32 %v1783, 16
  %v1824 = vor.u32 %v1821, %v1822
  %v1825 = vrot.slane %v1821, 4
  %v1827 = vshrl.u32 %v1784, 16
  %v1829 = vrot.slane %v1827, 7
  %v1830 = vshll.u32 %v1784, 16
  %v1832 = vor.u32 %v1829, %v1830
  %v1833 = vsel %vm1817, %v1825, %v1832
  %v1834 = vrot.slane %v1829, 4
  %v1836 = vshrl.u32 %v1785, 16
  %v1838 = vrot.slane %v1836, 7
  %v1839 = vshll.u32 %v1785, 16
  %v1841 = vor.u32 %v1838, %v1839
  %v1842 = vsel %vm1817, %v1834, %v1841
  %v1843 = vrot.slane %v1838, 4
  %v1845 = vshrl.u32 %v1786, 16
  %v1847 = vrot.slane %v1845, 7
  %v1848 = vshll.u32 %v1786, 16
  %v1850 = vor.u32 %v1847, %v1848
  %v1851 = vsel %vm1817, %v1843, %v1850
  %v1852 = vrot.slane %v1847, 4
  %v1854 = vshrl.u32 %v1787, 16
  %v1856 = vrot.slane %v1854, 7
  %v1857 = vshll.u32 %v1787, 16
  %v1859 = vor.u32 %v1856, %v1857
  %v1860 = vsel %vm1817, %v1852, %v1859
  %v1861 = vrot.slane %v1856, 4
  %v1863 = vshrl.u32 %v1788, 16
  %v1865 = vrot.slane %v1863, 7
  %v1866 = vshll.u32 %v1788, 16
  %v1868 = vor.u32 %v1865, %v1866
  %v1869 = vsel %vm1817, %v1861, %v1868
  %v1870 = vrot.slane %v1865, 4
  %v1872 = vshrl.u32 %v1789, 16
  %v1874 = vrot.slane %v1872, 7
  %v1875 = vshll.u32 %v1789, 16
  %v1877 = vor.u32 %v1874, %v1875
  %v1878 = vsel %vm1817, %v1870, %v1877
  %v1879 = vrot.slane %v1874, 4
  %v1881 = vshrl.u32 %v1790, 16
  %v1883 = vrot.slane %v1881, 7
  %v1884 = vshll.u32 %v1790, 16
  %v1886 = vor.u32 %v1883, %v1884
  %v1887 = vsel %vm1817, %v1879, %v1886
  %v1888 = vrot.slane %v1883, 4
  %v1890 = vshrl.u32 %v1791, 16
  %v1892 = vrot.slane %v1890, 7
  %v1893 = vshll.u32 %v1791, 16
  %v1895 = vor.u32 %v1892, %v1893
  %v1896 = vsel %vm1817, %v1888, %v1895
  %v1897 = vrot.slane %v1892, 4
  %v1899 = vshrl.u32 %v1792, 16
  %v1901 = vrot.slane %v1899, 7
  %v1902 = vshll.u32 %v1792, 16
  %v1904 = vor.u32 %v1901, %v1902
  %v1905 = vsel %vm1817, %v1897, %v1904
  %v1906 = vrot.slane %v1901, 4
  %v1908 = vshrl.u32 %v1793, 16
  %v1910 = vrot.slane %v1908, 7
  %v1911 = vshll.u32 %v1793, 16
  %v1913 = vor.u32 %v1910, %v1911
  %v1914 = vsel %vm1817, %v1906, %v1913
  %v1915 = vrot.slane %v1910, 4
  %v1917 = vshrl.u32 %v1794, 16
  %v1919 = vrot.slane %v1917, 7
  %v1920 = vshll.u32 %v1794, 16
  %v1922 = vor.u32 %v1919, %v1920
  %v1923 = vsel %vm1817, %v1915, %v1922
  %v1924 = vrot.slane %v1919, 4
  %v1926 = vshrl.u32 %v1795, 16
  %v1928 = vrot.slane %v1926, 7
  %v1929 = vshll.u32 %v1795, 16
  %v1931 = vor.u32 %v1928, %v1929
  %v1932 = vsel %vm1817, %v1924, %v1931
  %v1933 = vrot.slane %v1928, 4
  %v1935 = vshrl.u32 %v1796, 16
  %v1937 = vrot.slane %v1935, 7
  %v1938 = vshll.u32 %v1796, 16
  %v1940 = vor.u32 %v1937, %v1938
  %v1941 = vsel %vm1817, %v1933, %v1940
  %v1942 = vrot.slane %v1937, 4
  %v1944 = vshrl.u32 %v1797, 16
  %v1946 = vrot.slane %v1944, 7
  %v1947 = vshll.u32 %v1797, 16
  %v1949 = vor.u32 %v1946, %v1947
  %v1950 = vsel %vm1817, %v1942, %v1949
  %v1951 = vrot.slane %v1946, 4
  %v1953 = vshrl.u32 %v1798, 16
  %v1955 = vrot.slane %v1953, 7
  %v1956 = vshll.u32 %v1798, 16
  %v1958 = vor.u32 %v1955, %v1956
  %v1959 = vsel %vm1817, %v1951, %v1958
  %v1960 = vrot.slane %v1955, 4
  %v1962 = vshrl.u32 %v1799, 16
  %v1964 = vrot.slane %v1962, 7
  %v1965 = vshll.u32 %v1799, 16
  %v1967 = vor.u32 %v1964, %v1965
  %v1968 = vsel %vm1817, %v1960, %v1967
  %v1969 = vrot.slane %v1964, 4
  %v1971 = vshrl.u32 %v1800, 16
  %v1973 = vrot.slane %v1971, 7
  %v1974 = vshll.u32 %v1800, 16
  %v1976 = vor.u32 %v1973, %v1974
  %v1977 = vsel %vm1817, %v1969, %v1976
  %v1978 = vrot.slane %v1973, 4
  %v1980 = vshrl.u32 %v1801, 16
  %v1982 = vrot.slane %v1980, 7
  %v1983 = vshll.u32 %v1801, 16
  %v1985 = vor.u32 %v1982, %v1983
  %v1986 = vsel %vm1817, %v1978, %v1985
  %v1987 = vrot.slane %v1982, 4
  %v1989 = vshrl.u32 %v1802, 16
  %v1991 = vrot.slane %v1989, 7
  %v1992 = vshll.u32 %v1802, 16
  %v1994 = vor.u32 %v1991, %v1992
  %v1995 = vsel %vm1817, %v1987, %v1994
  %v1996 = vrot.slane %v1991, 4
  %v1998 = vshrl.u32 %v1803, 16
  %v2000 = vrot.slane %v1998, 7
  %v2001 = vshll.u32 %v1803, 16
  %v2003 = vor.u32 %v2000, %v2001
  %v2004 = vsel %vm1817, %v1996, %v2003
  %v2005 = vrot.slane %v2000, 4
  %v2007 = vshrl.u32 %v1804, 16
  %v2009 = vrot.slane %v2007, 7
  %v2010 = vshll.u32 %v1804, 16
  %v2012 = vor.u32 %v2009, %v2010
  %v2013 = vsel %vm1817, %v2005, %v2012
  %v2014 = vrot.slane %v2009, 4
  %v2016 = vshrl.u32 %v1805, 16
  %v2018 = vrot.slane %v2016, 7
  %v2019 = vshll.u32 %v1805, 16
  %v2021 = vor.u32 %v2018, %v2019
  %v2022 = vsel %vm1817, %v2014, %v2021
  %v2023 = vrot.slane %v2018, 4
  %v2025 = vshrl.u32 %v1806, 16
  %v2027 = vrot.slane %v2025, 7
  %v2028 = vshll.u32 %v1806, 16
  %v2030 = vor.u32 %v2027, %v2028
  %v2031 = vsel %vm1817, %v2023, %v2030
  %v2032 = vrot.slane %v2027, 4
  %v2034 = vshrl.u32 %v1807, 16
  %v2036 = vrot.slane %v2034, 7
  %v2037 = vshll.u32 %v1807, 16
  %v2039 = vor.u32 %v2036, %v2037
  %v2040 = vsel %vm1817, %v2032, %v2039
  %v2041 = vrot.slane %v2036, 4
  %v2043 = vshrl.u32 %v1808, 16
  %v2045 = vrot.slane %v2043, 7
  %v2046 = vshll.u32 %v1808, 16
  %v2048 = vor.u32 %v2045, %v2046
  %v2049 = vsel %vm1817, %v2041, %v2048
  %v2050 = vrot.slane %v2045, 4
  %v2052 = vshrl.u32 %v1809, 16
  %v2054 = vrot.slane %v2052, 7
  %v2055 = vshll.u32 %v1809, 16
  %v2057 = vor.u32 %v2054, %v2055
  %v2058 = vsel %vm1817, %v2050, %v2057
  %v2059 = vrot.slane %v2054, 4
  %v2061 = vshrl.u32 %v1810, 16
  %v2063 = vrot.slane %v2061, 7
  %v2064 = vshll.u32 %v1810, 16
  %v2066 = vor.u32 %v2063, %v2064
  %v2067 = vsel %vm1817, %v2059, %v2066
  %v2068 = vrot.slane %v2063, 4
  %v2070 = vshrl.u32 %v1811, 16
  %v2072 = vrot.slane %v2070, 7
  %v2073 = vshll.u32 %v1811, 16
  %v2075 = vor.u32 %v2072, %v2073
  %v2076 = vsel %vm1817, %v2068, %v2075
  %v2077 = vrot.slane %v2072, 4
  %v2079 = vshrl.u32 %v1812, 16
  %v2081 = vrot.slane %v2079, 7
  %v2082 = vshll.u32 %v1812, 16
  %v2084 = vor.u32 %v2081, %v2082
  %v2085 = vsel %vm1817, %v2077, %v2084
  %v2086 = vrot.slane %v2081, 4
  %v2088 = vshrl.u32 %v1813, 16
  %v2090 = vrot.slane %v2088, 7
  %v2091 = vshll.u32 %v1813, 16
  %v2093 = vor.u32 %v2090, %v2091
  %v2094 = vsel %vm1817, %v2086, %v2093
  %v2095 = vrot.slane %v2090, 4
  %v2097 = vshrl.u32 %v1814, 16
  %v2099 = vrot.slane %v2097, 7
  %v2100 = vshll.u32 %v1814, 16
  %v2102 = vor.u32 %v2099, %v2100
  %v2103 = vsel %vm1817, %v2095, %v2102
  %v2104 = vrot.slane %v2099, 4
  %vm2105 = vcmp.ne.s16.totalorder %v1824, 0
  %vm2106 = vcmp.ne.s16.totalorder %v1833, 0
  %vm2107 = vcmp.ne.s16.totalorder %v1842, 0
  %vm2108 = vcmp.ne.s16.totalorder %v1851, 0
  %vm2109 = vcmp.ne.s16.totalorder %v1860, 0
  %vm2110 = vcmp.ne.s16.totalorder %v1869, 0
  %vm2111 = vcmp.ne.s16.totalorder %v1878, 0
  %vm2112 = vcmp.ne.s16.totalorder %v1887, 0
  %vm2113 = vcmp.ne.s16.totalorder %v1896, 0
  %vm2114 = vcmp.ne.s16.totalorder %v1905, 0
  %vm2115 = vcmp.ne.s16.totalorder %v1914, 0
  %vm2116 = vcmp.ne.s16.totalorder %v1923, 0
  %vm2117 = vcmp.ne.s16.totalorder %v1932, 0
  %vm2118 = vcmp.ne.s16.totalorder %v1941, 0
  %vm2119 = vcmp.ne.s16.totalorder %v1950, 0
  %vm2120 = vcmp.ne.s16.totalorder %v1959, 0
  %vm2121 = vcmp.ne.s16.totalorder %v1968, 0
  %vm2122 = vcmp.ne.s16.totalorder %v1977, 0
  %vm2123 = vcmp.ne.s16.totalorder %v1986, 0
  %vm2124 = vcmp.ne.s16.totalorder %v1995, 0
  %vm2125 = vcmp.ne.s16.totalorder %v2004, 0
  %vm2126 = vcmp.ne.s16.totalorder %v2013, 0
  %vm2127 = vcmp.ne.s16.totalorder %v2022, 0
  %vm2128 = vcmp.ne.s16.totalorder %v2031, 0
  %vm2129 = vcmp.ne.s16.totalorder %v2040, 0
  %vm2130 = vcmp.ne.s16.totalorder %v2049, 0
  %vm2131 = vcmp.ne.s16.totalorder %v2058, 0
  %vm2132 = vcmp.ne.s16.totalorder %v2067, 0
  %vm2133 = vcmp.ne.s16.totalorder %v2076, 0
  %vm2134 = vcmp.ne.s16.totalorder %v2085, 0
  %vm2135 = vcmp.ne.s16.totalorder %v2094, 0
  %vm2136 = vcmp.ne.s16.totalorder %v2103, 0
  %vm2137 = vcmp.ne.s16.totalorder %v2104, 0
  %v2138 = vsel %vm2105, %v200, 0
  %v2139 = vsel %vm2106, %v201, 0
  %v2140 = vsel %vm2107, %v202, 0
  %v2141 = vsel %vm2108, %v203, 0
  %v2142 = vsel %vm2109, %v204, 0
  %v2143 = vsel %vm2110, %v205, 0
  %v2144 = vsel %vm2111, %v206, 0
  %v2145 = vsel %vm2112, %v207, 0
  %v2146 = vsel %vm2113, %v208, 0
  %v2147 = vsel %vm2114, %v209, 0
  %v2148 = vsel %vm2115, %v210, 0
  %v2149 = vsel %vm2116, %v211, 0
  %v2150 = vsel %vm2117, %v212, 0
  %v2151 = vsel %vm2118, %v213, 0
  %v2152 = vsel %vm2119, %v214, 0
  %v2153 = vsel %vm2120, %v215, 0
  %v2154 = vsel %vm2121, %v216, 0
  %v2155 = vsel %vm2122, %v217, 0
  %v2156 = vsel %vm2123, %v218, 0
  %v2157 = vsel %vm2124, %v219, 0
  %v2158 = vsel %vm2125, %v220, 0
  %v2159 = vsel %vm2126, %v221, 0
  %v2160 = vsel %vm2127, %v222, 0
  %v2161 = vsel %vm2128, %v223, 0
  %v2162 = vsel %vm2129, %v224, 0
  %v2163 = vsel %vm2130, %v225, 0
  %v2164 = vsel %vm2131, %v226, 0
  %v2165 = vsel %vm2132, %v227, 0
  %v2166 = vsel %vm2133, %v228, 0
  %v2167 = vsel %vm2134, %v229, 0
  %v2168 = vsel %vm2135, %v230, 0
  %v2169 = vsel %vm2136, %v1105, 0
  %v2170 = vsel %vm2137, %v1654, 0
  %v2171 = vld [vmem:[#allocation2 + $0x4] sm:$0xe]
  %vm2172 = vcmp.lt.s32.totalorder %v167, 126
  %vm2173 = vcmp.lt.s32.totalorder %v168, 126
  %vm2174 = vcmp.lt.s32.totalorder %v169, 126
  %vm2175 = vcmp.lt.s32.totalorder %v170, 126
  %vm2176 = vcmp.lt.s32.totalorder %v171, 126
  %vm2177 = vcmp.lt.s32.totalorder %v172, 126
  %vm2178 = vcmp.lt.s32.totalorder %v173, 126
  %vm2179 = vcmp.lt.s32.totalorder %v174, 126
  %vm2180 = vcmp.lt.s32.totalorder %v175, 126
  %vm2181 = vcmp.lt.s32.totalorder %v176, 126
  %vm2182 = vcmp.lt.s32.totalorder %v177, 126
  %vm2183 = vcmp.lt.s32.totalorder %v178, 126
  %vm2184 = vcmp.lt.s32.totalorder %v179, 126
  %vm2185 = vcmp.lt.s32.totalorder %v180, 126
  %vm2186 = vcmp.lt.s32.totalorder %v181, 126
  %vm2187 = vcmp.lt.s32.totalorder %v182, 126
  %vm2188 = vcmp.lt.s32.totalorder %v183, 126
  %vm2189 = vcmp.lt.s32.totalorder %v184, 126
  %vm2190 = vcmp.lt.s32.totalorder %v185, 126
  %vm2191 = vcmp.lt.s32.totalorder %v186, 126
  %vm2192 = vcmp.lt.s32.totalorder %v187, 126
  %vm2193 = vcmp.lt.s32.totalorder %v188, 126
  %vm2194 = vcmp.lt.s32.totalorder %v189, 126
  %vm2195 = vcmp.lt.s32.totalorder %v190, 126
  %vm2196 = vcmp.lt.s32.totalorder %v191, 126
  %vm2197 = vcmp.lt.s32.totalorder %v192, 126
  %vm2198 = vcmp.lt.s32.totalorder %v193, 126
  %vm2199 = vcmp.lt.s32.totalorder %v194, 126
  %vm2200 = vcmp.lt.s32.totalorder %v195, 126
  %vm2201 = vcmp.lt.s32.totalorder %v196, 126
  %vm2202 = vcmp.lt.s32.totalorder %v197, 126
  %vm2203 = vcmp.lt.s32.totalorder %v198, 126
  %v2204 = vsel %vm2172, 1, 0
  %v2205 = vsel %vm2173, 1, 0
  %v2206 = vsel %vm2174, 1, 0
  %v2207 = vsel %vm2175, 1, 0
  %v2208 = vsel %vm2176, 1, 0
  %v2209 = vsel %vm2177, 1, 0
  %v2210 = vsel %vm2178, 1, 0
  %v2211 = vsel %vm2179, 1, 0
  %v2212 = vsel %vm2180, 1, 0
  %v2213 = vsel %vm2181, 1, 0
  %v2214 = vsel %vm2182, 1, 0
  %v2215 = vsel %vm2183, 1, 0
  %v2216 = vsel %vm2184, 1, 0
  %v2217 = vsel %vm2185, 1, 0
  %v2218 = vsel %vm2186, 1, 0
  %v2219 = vsel %vm2187, 1, 0
  %v2220 = vsel %vm2188, 1, 0
  %v2221 = vsel %vm2189, 1, 0
  %v2222 = vsel %vm2190, 1, 0
  %v2223 = vsel %vm2191, 1, 0
  %v2224 = vsel %vm2192, 1, 0
  %v2225 = vsel %vm2193, 1, 0
  %v2226 = vsel %vm2194, 1, 0
  %v2227 = vsel %vm2195, 1, 0
  %v2228 = vsel %vm2196, 1, 0
  %v2229 = vsel %vm2197, 1, 0
  %v2230 = vsel %vm2198, 1, 0
  %v2231 = vsel %vm2199, 1, 0
  %v2232 = vsel %vm2200, 1, 0
  %v2233 = vsel %vm2201, 1, 0
  %v2234 = vsel %vm2202, 1, 0
  %v2235 = vsel %vm2203, 1, 0
  %vm2236 = vcmp.eq.s32.totalorder %v2204, 1
  %vm2237 = vcmp.eq.s32.totalorder %v2205, 1
  %vm2238 = vcmp.eq.s32.totalorder %v2206, 1
  %vm2239 = vcmp.eq.s32.totalorder %v2207, 1
  %vm2240 = vcmp.eq.s32.totalorder %v2208, 1
  %vm2241 = vcmp.eq.s32.totalorder %v2209, 1
  %vm2242 = vcmp.eq.s32.totalorder %v2210, 1
  %vm2243 = vcmp.eq.s32.totalorder %v2211, 1
  %vm2244 = vcmp.eq.s32.totalorder %v2212, 1
  %vm2245 = vcmp.eq.s32.totalorder %v2213, 1
  %vm2246 = vcmp.eq.s32.totalorder %v2214, 1
  %vm2247 = vcmp.eq.s32.totalorder %v2215, 1
  %vm2248 = vcmp.eq.s32.totalorder %v2216, 1
  %vm2249 = vcmp.eq.s32.totalorder %v2217, 1
  %vm2250 = vcmp.eq.s32.totalorder %v2218, 1
  %vm2251 = vcmp.eq.s32.totalorder %v2219, 1
  %vm2252 = vcmp.eq.s32.totalorder %v2220, 1
  %vm2253 = vcmp.eq.s32.totalorder %v2221, 1
  %vm2254 = vcmp.eq.s32.totalorder %v2222, 1
  %vm2255 = vcmp.eq.s32.totalorder %v2223, 1
  %vm2256 = vcmp.eq.s32.totalorder %v2224, 1
  %vm2257 = vcmp.eq.s32.totalorder %v2225, 1
  %vm2258 = vcmp.eq.s32.totalorder %v2226, 1
  %vm2259 = vcmp.eq.s32.totalorder %v2227, 1
  %vm2260 = vcmp.eq.s32.totalorder %v2228, 1
  %vm2261 = vcmp.eq.s32.totalorder %v2229, 1
  %vm2262 = vcmp.eq.s32.totalorder %v2230, 1
  %vm2263 = vcmp.eq.s32.totalorder %v2231, 1
  %vm2264 = vcmp.eq.s32.totalorder %v2232, 1
  %vm2265 = vcmp.eq.s32.totalorder %v2233, 1
  %vm2266 = vcmp.eq.s32.totalorder %v2234, 1
  %vm2267 = vcmp.eq.s32.totalorder %v2235, 1
  %vm2268 = vmpackc.low %vm2236, %vm2236
  %vm2269 = vmpackc.low %vm2237, %vm2237
  %vm2270 = vmpackc.low %vm2238, %vm2238
  %vm2271 = vmpackc.low %vm2239, %vm2239
  %vm2272 = vmpackc.low %vm2240, %vm2240
  %vm2273 = vmpackc.low %vm2241, %vm2241
  %vm2274 = vmpackc.low %vm2242, %vm2242
  %vm2275 = vmpackc.low %vm2243, %vm2243
  %vm2276 = vmpackc.low %vm2244, %vm2244
  %vm2277 = vmpackc.low %vm2245, %vm2245
  %vm2278 = vmpackc.low %vm2246, %vm2246
  %vm2279 = vmpackc.low %vm2247, %vm2247
  %vm2280 = vmpackc.low %vm2248, %vm2248
  %vm2281 = vmpackc.low %vm2249, %vm2249
  %vm2282 = vmpackc.low %vm2250, %vm2250
  %vm2283 = vmpackc.low %vm2251, %vm2251
  %vm2284 = vmpackc.low %vm2252, %vm2252
  %vm2285 = vmpackc.low %vm2253, %vm2253
  %vm2286 = vmpackc.low %vm2254, %vm2254
  %vm2287 = vmpackc.low %vm2255, %vm2255
  %vm2288 = vmpackc.low %vm2256, %vm2256
  %vm2289 = vmpackc.low %vm2257, %vm2257
  %vm2290 = vmpackc.low %vm2258, %vm2258
  %vm2291 = vmpackc.low %vm2259, %vm2259
  %vm2292 = vmpackc.low %vm2260, %vm2260
  %vm2293 = vmpackc.low %vm2261, %vm2261
  %vm2294 = vmpackc.low %vm2262, %vm2262
  %vm2295 = vmpackc.low %vm2263, %vm2263
  %vm2296 = vmpackc.low %vm2264, %vm2264
  %vm2297 = vmpackc.low %vm2265, %vm2265
  %vm2298 = vmpackc.low %vm2266, %vm2266
  %vm2299 = vmpackc.low %vm2267, %vm2267
  %v2300 = vsel %vm2268, 65537, 0
  %v2301 = vsel %vm2269, 65537, 0
  %v2302 = vsel %vm2270, 65537, 0
  %v2303 = vsel %vm2271, 65537, 0
  %v2304 = vsel %vm2272, 65537, 0
  %v2305 = vsel %vm2273, 65537, 0
  %v2306 = vsel %vm2274, 65537, 0
  %v2307 = vsel %vm2275, 65537, 0
  %v2308 = vsel %vm2276, 65537, 0
  %v2309 = vsel %vm2277, 65537, 0
  %v2310 = vsel %vm2278, 65537, 0
  %v2311 = vsel %vm2279, 65537, 0
  %v2312 = vsel %vm2280, 65537, 0
  %v2313 = vsel %vm2281, 65537, 0
  %v2314 = vsel %vm2282, 65537, 0
  %v2315 = vsel %vm2283, 65537, 0
  %v2316 = vsel %vm2284, 65537, 0
  %v2317 = vsel %vm2285, 65537, 0
  %v2318 = vsel %vm2286, 65537, 0
  %v2319 = vsel %vm2287, 65537, 0
  %v2320 = vsel %vm2288, 65537, 0
  %v2321 = vsel %vm2289, 65537, 0
  %v2322 = vsel %vm2290, 65537, 0
  %v2323 = vsel %vm2291, 65537, 0
  %v2324 = vsel %vm2292, 65537, 0
  %v2325 = vsel %vm2293, 65537, 0
  %v2326 = vsel %vm2294, 65537, 0
  %v2327 = vsel %vm2295, 65537, 0
  %v2328 = vsel %vm2296, 65537, 0
  %v2329 = vsel %vm2297, 65537, 0
  %v2330 = vsel %vm2298, 65537, 0
  %v2331 = vsel %vm2299, 65537, 0
  %vm2332 = vcmask 1040384
  %vm2333 = vcmask 1044484
  %vm2334 = vmor %vm2332, %vm2333
  %v2335 = vrot.slane %v2300, 7
  %v2336 = vrot.slane %v2335, 4
  %v2337 = vrot.slane %v2301, 7
  %v2338 = vsel %vm2334, %v2336, %v2337
  %v2339 = vrot.slane %v2337, 4
  %v2340 = vrot.slane %v2302, 7
  %v2341 = vsel %vm2334, %v2339, %v2340
  %v2342 = vrot.slane %v2340, 4
  %v2343 = vrot.slane %v2303, 7
  %v2344 = vsel %vm2334, %v2342, %v2343
  %v2345 = vrot.slane %v2343, 4
  %v2346 = vrot.slane %v2304, 7
  %v2347 = vsel %vm2334, %v2345, %v2346
  %v2348 = vrot.slane %v2346, 4
  %v2349 = vrot.slane %v2305, 7
  %v2350 = vsel %vm2334, %v2348, %v2349
  %v2351 = vrot.slane %v2349, 4
  %v2352 = vrot.slane %v2306, 7
  %v2353 = vsel %vm2334, %v2351, %v2352
  %v2354 = vrot.slane %v2352, 4
  %v2355 = vrot.slane %v2307, 7
  %v2356 = vsel %vm2334, %v2354, %v2355
  %v2357 = vrot.slane %v2355, 4
  %v2358 = vrot.slane %v2308, 7
  %v2359 = vsel %vm2334, %v2357, %v2358
  %v2360 = vrot.slane %v2358, 4
  %v2361 = vrot.slane %v2309, 7
  %v2362 = vsel %vm2334, %v2360, %v2361
  %v2363 = vrot.slane %v2361, 4
  %v2364 = vrot.slane %v2310, 7
  %v2365 = vsel %vm2334, %v2363, %v2364
  %v2366 = vrot.slane %v2364, 4
  %v2367 = vrot.slane %v2311, 7
  %v2368 = vsel %vm2334, %v2366, %v2367
  %v2369 = vrot.slane %v2367, 4
  %v2370 = vrot.slane %v2312, 7
  %v2371 = vsel %vm2334, %v2369, %v2370
  %v2372 = vrot.slane %v2370, 4
  %v2373 = vrot.slane %v2313, 7
  %v2374 = vsel %vm2334, %v2372, %v2373
  %v2375 = vrot.slane %v2373, 4
  %v2376 = vrot.slane %v2314, 7
  %v2377 = vsel %vm2334, %v2375, %v2376
  %v2378 = vrot.slane %v2376, 4
  %v2379 = vrot.slane %v2315, 7
  %v2380 = vsel %vm2334, %v2378, %v2379
  %v2381 = vrot.slane %v2379, 4
  %v2382 = vrot.slane %v2316, 7
  %v2383 = vsel %vm2334, %v2381, %v2382
  %v2384 = vrot.slane %v2382, 4
  %v2385 = vrot.slane %v2317, 7
  %v2386 = vsel %vm2334, %v2384, %v2385
  %v2387 = vrot.slane %v2385, 4
  %v2388 = vrot.slane %v2318, 7
  %v2389 = vsel %vm2334, %v2387, %v2388
  %v2390 = vrot.slane %v2388, 4
  %v2391 = vrot.slane %v2319, 7
  %v2392 = vsel %vm2334, %v2390, %v2391
  %v2393 = vrot.slane %v2391, 4
  %v2394 = vrot.slane %v2320, 7
  %v2395 = vsel %vm2334, %v2393, %v2394
  %v2396 = vrot.slane %v2394, 4
  %v2397 = vrot.slane %v2321, 7
  %v2398 = vsel %vm2334, %v2396, %v2397
  %v2399 = vrot.slane %v2397, 4
  %v2400 = vrot.slane %v2322, 7
  %v2401 = vsel %vm2334, %v2399, %v2400
  %v2402 = vrot.slane %v2400, 4
  %v2403 = vrot.slane %v2323, 7
  %v2404 = vsel %vm2334, %v2402, %v2403
  %v2405 = vrot.slane %v2403, 4
  %v2406 = vrot.slane %v2324, 7
  %v2407 = vsel %vm2334, %v2405, %v2406
  %v2408 = vrot.slane %v2406, 4
  %v2409 = vrot.slane %v2325, 7
  %v2410 = vsel %vm2334, %v2408, %v2409
  %v2411 = vrot.slane %v2409, 4
  %v2412 = vrot.slane %v2326, 7
  %v2413 = vsel %vm2334, %v2411, %v2412
  %v2414 = vrot.slane %v2412, 4
  %v2415 = vrot.slane %v2327, 7
  %v2416 = vsel %vm2334, %v2414, %v2415
  %v2417 = vrot.slane %v2415, 4
  %v2418 = vrot.slane %v2328, 7
  %v2419 = vsel %vm2334, %v2417, %v2418
  %v2420 = vrot.slane %v2418, 4
  %v2421 = vrot.slane %v2329, 7
  %v2422 = vsel %vm2334, %v2420, %v2421
  %v2423 = vrot.slane %v2421, 4
  %v2424 = vrot.slane %v2330, 7
  %v2425 = vsel %vm2334, %v2423, %v2424
  %v2426 = vrot.slane %v2424, 4
  %v2427 = vrot.slane %v2331, 7
  %v2428 = vsel %vm2334, %v2426, %v2427
  %v2429 = vrot.slane %v2427, 4
  %vm2430 = vcmp.ne.s16.totalorder %v2335, 0
  %vm2431 = vcmp.ne.s16.totalorder %v2338, 0
  %vm2432 = vcmp.ne.s16.totalorder %v2341, 0
  %vm2433 = vcmp.ne.s16.totalorder %v2344, 0
  %vm2434 = vcmp.ne.s16.totalorder %v2347, 0
  %vm2435 = vcmp.ne.s16.totalorder %v2350, 0
  %vm2436 = vcmp.ne.s16.totalorder %v2353, 0
  %vm2437 = vcmp.ne.s16.totalorder %v2356, 0
  %vm2438 = vcmp.ne.s16.totalorder %v2359, 0
  %vm2439 = vcmp.ne.s16.totalorder %v2362, 0
  %vm2440 = vcmp.ne.s16.totalorder %v2365, 0
  %vm2441 = vcmp.ne.s16.totalorder %v2368, 0
  %vm2442 = vcmp.ne.s16.totalorder %v2371, 0
  %vm2443 = vcmp.ne.s16.totalorder %v2374, 0
  %vm2444 = vcmp.ne.s16.totalorder %v2377, 0
  %vm2445 = vcmp.ne.s16.totalorder %v2380, 0
  %vm2446 = vcmp.ne.s16.totalorder %v2383, 0
  %vm2447 = vcmp.ne.s16.totalorder %v2386, 0
  %vm2448 = vcmp.ne.s16.totalorder %v2389, 0
  %vm2449 = vcmp.ne.s16.totalorder %v2392, 0
  %vm2450 = vcmp.ne.s16.totalorder %v2395, 0
  %vm2451 = vcmp.ne.s16.totalorder %v2398, 0
  %vm2452 = vcmp.ne.s16.totalorder %v2401, 0
  %vm2453 = vcmp.ne.s16.totalorder %v2404, 0
  %vm2454 = vcmp.ne.s16.totalorder %v2407, 0
  %vm2455 = vcmp.ne.s16.totalorder %v2410, 0
  %vm2456 = vcmp.ne.s16.totalorder %v2413, 0
  %vm2457 = vcmp.ne.s16.totalorder %v2416, 0
  %vm2458 = vcmp.ne.s16.totalorder %v2419, 0
  %vm2459 = vcmp.ne.s16.totalorder %v2422, 0
  %vm2460 = vcmp.ne.s16.totalorder %v2425, 0
  %vm2461 = vcmp.ne.s16.totalorder %v2428, 0
  %vm2462 = vcmp.ne.s16.totalorder %v2429, 0
  %v2463 = vsel %vm2430, %v2171, 0
  %v2464 = vsel %vm2431, %v201, 0
  %v2465 = vsel %vm2432, %v202, 0
  %v2466 = vsel %vm2433, %v203, 0
  %v2467 = vsel %vm2434, %v204, 0
  %v2468 = vsel %vm2435, %v205, 0
  %v2469 = vsel %vm2436, %v206, 0
  %v2470 = vsel %vm2437, %v207, 0
  %v2471 = vsel %vm2438, %v208, 0
  %v2472 = vsel %vm2439, %v209, 0
  %v2473 = vsel %vm2440, %v210, 0
  %v2474 = vsel %vm2441, %v211, 0
  %v2475 = vsel %vm2442, %v212, 0
  %v2476 = vsel %vm2443, %v213, 0
  %v2477 = vsel %vm2444, %v214, 0
  %v2478 = vsel %vm2445, %v215, 0
  %v2479 = vsel %vm2446, %v216, 0
  %v2480 = vsel %vm2447, %v217, 0
  %v2481 = vsel %vm2448, %v218, 0
  %v2482 = vsel %vm2449, %v219, 0
  %v2483 = vsel %vm2450, %v220, 0
  %v2484 = vsel %vm2451, %v221, 0
  %v2485 = vsel %vm2452, %v222, 0
  %v2486 = vsel %vm2453, %v223, 0
  %v2487 = vsel %vm2454, %v224, 0
  %v2488 = vsel %vm2455, %v225, 0
  %v2489 = vsel %vm2456, %v226, 0
  %v2490 = vsel %vm2457, %v227, 0
  %v2491 = vsel %vm2458, %v228, 0
  %v2492 = vsel %vm2459, %v229, 0
  %v2493 = vsel %vm2460, %v230, 0
  %v2494 = vsel %vm2461, %v1105, 0
  %v2495 = vsel %vm2462, %v1654, 0
  %v2496 = vld [vmem:[#allocation2 + $0x84] sm:$0x3]
  %vm2497 = vcmp.lt.s32.totalorder %v167, 125
  %vm2498 = vcmp.lt.s32.totalorder %v168, 125
  %vm2499 = vcmp.lt.s32.totalorder %v169, 125
  %vm2500 = vcmp.lt.s32.totalorder %v170, 125
  %vm2501 = vcmp.lt.s32.totalorder %v171, 125
  %vm2502 = vcmp.lt.s32.totalorder %v172, 125
  %vm2503 = vcmp.lt.s32.totalorder %v173, 125
  %vm2504 = vcmp.lt.s32.totalorder %v174, 125
  %vm2505 = vcmp.lt.s32.totalorder %v175, 125
  %vm2506 = vcmp.lt.s32.totalorder %v176, 125
  %vm2507 = vcmp.lt.s32.totalorder %v177, 125
  %vm2508 = vcmp.lt.s32.totalorder %v178, 125
  %vm2509 = vcmp.lt.s32.totalorder %v179, 125
  %vm2510 = vcmp.lt.s32.totalorder %v180, 125
  %vm2511 = vcmp.lt.s32.totalorder %v181, 125
  %vm2512 = vcmp.lt.s32.totalorder %v182, 125
  %vm2513 = vcmp.lt.s32.totalorder %v183, 125
  %vm2514 = vcmp.lt.s32.totalorder %v184, 125
  %vm2515 = vcmp.lt.s32.totalorder %v185, 125
  %vm2516 = vcmp.lt.s32.totalorder %v186, 125
  %vm2517 = vcmp.lt.s32.totalorder %v187, 125
  %vm2518 = vcmp.lt.s32.totalorder %v188, 125
  %vm2519 = vcmp.lt.s32.totalorder %v189, 125
  %vm2520 = vcmp.lt.s32.totalorder %v190, 125
  %vm2521 = vcmp.lt.s32.totalorder %v191, 125
  %vm2522 = vcmp.lt.s32.totalorder %v192, 125
  %vm2523 = vcmp.lt.s32.totalorder %v193, 125
  %vm2524 = vcmp.lt.s32.totalorder %v194, 125
  %vm2525 = vcmp.lt.s32.totalorder %v195, 125
  %vm2526 = vcmp.lt.s32.totalorder %v196, 125
  %vm2527 = vcmp.lt.s32.totalorder %v197, 125
  %vm2528 = vcmp.lt.s32.totalorder %v198, 125
  %v2529 = vsel %vm2497, 1, 0
  %v2530 = vsel %vm2498, 1, 0
  %v2531 = vsel %vm2499, 1, 0
  %v2532 = vsel %vm2500, 1, 0
  %v2533 = vsel %vm2501, 1, 0
  %v2534 = vsel %vm2502, 1, 0
  %v2535 = vsel %vm2503, 1, 0
  %v2536 = vsel %vm2504, 1, 0
  %v2537 = vsel %vm2505, 1, 0
  %v2538 = vsel %vm2506, 1, 0
  %v2539 = vsel %vm2507, 1, 0
  %v2540 = vsel %vm2508, 1, 0
  %v2541 = vsel %vm2509, 1, 0
  %v2542 = vsel %vm2510, 1, 0
  %v2543 = vsel %vm2511, 1, 0
  %v2544 = vsel %vm2512, 1, 0
  %v2545 = vsel %vm2513, 1, 0
  %v2546 = vsel %vm2514, 1, 0
  %v2547 = vsel %vm2515, 1, 0
  %v2548 = vsel %vm2516, 1, 0
  %v2549 = vsel %vm2517, 1, 0
  %v2550 = vsel %vm2518, 1, 0
  %v2551 = vsel %vm2519, 1, 0
  %v2552 = vsel %vm2520, 1, 0
  %v2553 = vsel %vm2521, 1, 0
  %v2554 = vsel %vm2522, 1, 0
  %v2555 = vsel %vm2523, 1, 0
  %v2556 = vsel %vm2524, 1, 0
  %v2557 = vsel %vm2525, 1, 0
  %v2558 = vsel %vm2526, 1, 0
  %v2559 = vsel %vm2527, 1, 0
  %v2560 = vsel %vm2528, 1, 0
  %vm2561 = vcmp.eq.s32.totalorder %v2529, 1
  %vm2562 = vcmp.eq.s32.totalorder %v2530, 1
  %vm2563 = vcmp.eq.s32.totalorder %v2531, 1
  %vm2564 = vcmp.eq.s32.totalorder %v2532, 1
  %vm2565 = vcmp.eq.s32.totalorder %v2533, 1
  %vm2566 = vcmp.eq.s32.totalorder %v2534, 1
  %vm2567 = vcmp.eq.s32.totalorder %v2535, 1
  %vm2568 = vcmp.eq.s32.totalorder %v2536, 1
  %vm2569 = vcmp.eq.s32.totalorder %v2537, 1
  %vm2570 = vcmp.eq.s32.totalorder %v2538, 1
  %vm2571 = vcmp.eq.s32.totalorder %v2539, 1
  %vm2572 = vcmp.eq.s32.totalorder %v2540, 1
  %vm2573 = vcmp.eq.s32.totalorder %v2541, 1
  %vm2574 = vcmp.eq.s32.totalorder %v2542, 1
  %vm2575 = vcmp.eq.s32.totalorder %v2543, 1
  %vm2576 = vcmp.eq.s32.totalorder %v2544, 1
  %vm2577 = vcmp.eq.s32.totalorder %v2545, 1
  %vm2578 = vcmp.eq.s32.totalorder %v2546, 1
  %vm2579 = vcmp.eq.s32.totalorder %v2547, 1
  %vm2580 = vcmp.eq.s32.totalorder %v2548, 1
  %vm2581 = vcmp.eq.s32.totalorder %v2549, 1
  %vm2582 = vcmp.eq.s32.totalorder %v2550, 1
  %vm2583 = vcmp.eq.s32.totalorder %v2551, 1
  %vm2584 = vcmp.eq.s32.totalorder %v2552, 1
  %vm2585 = vcmp.eq.s32.totalorder %v2553, 1
  %vm2586 = vcmp.eq.s32.totalorder %v2554, 1
  %vm2587 = vcmp.eq.s32.totalorder %v2555, 1
  %vm2588 = vcmp.eq.s32.totalorder %v2556, 1
  %vm2589 = vcmp.eq.s32.totalorder %v2557, 1
  %vm2590 = vcmp.eq.s32.totalorder %v2558, 1
  %vm2591 = vcmp.eq.s32.totalorder %v2559, 1
  %vm2592 = vcmp.eq.s32.totalorder %v2560, 1
  %vm2593 = vmpackc.low %vm2561, %vm2561
  %vm2594 = vmpackc.low %vm2562, %vm2562
  %vm2595 = vmpackc.low %vm2563, %vm2563
  %vm2596 = vmpackc.low %vm2564, %vm2564
  %vm2597 = vmpackc.low %vm2565, %vm2565
  %vm2598 = vmpackc.low %vm2566, %vm2566
  %vm2599 = vmpackc.low %vm2567, %vm2567
  %vm2600 = vmpackc.low %vm2568, %vm2568
  %vm2601 = vmpackc.low %vm2569, %vm2569
  %vm2602 = vmpackc.low %vm2570, %vm2570
  %vm2603 = vmpackc.low %vm2571, %vm2571
  %vm2604 = vmpackc.low %vm2572, %vm2572
  %vm2605 = vmpackc.low %vm2573, %vm2573
  %vm2606 = vmpackc.low %vm2574, %vm2574
  %vm2607 = vmpackc.low %vm2575, %vm2575
  %vm2608 = vmpackc.low %vm2576, %vm2576
  %vm2609 = vmpackc.low %vm2577, %vm2577
  %vm2610 = vmpackc.low %vm2578, %vm2578
  %vm2611 = vmpackc.low %vm2579, %vm2579
  %vm2612 = vmpackc.low %vm2580, %vm2580
  %vm2613 = vmpackc.low %vm2581, %vm2581
  %vm2614 = vmpackc.low %vm2582, %vm2582
  %vm2615 = vmpackc.low %vm2583, %vm2583
  %vm2616 = vmpackc.low %vm2584, %vm2584
  %vm2617 = vmpackc.low %vm2585, %vm2585
  %vm2618 = vmpackc.low %vm2586, %vm2586
  %vm2619 = vmpackc.low %vm2587, %vm2587
  %vm2620 = vmpackc.low %vm2588, %vm2588
  %vm2621 = vmpackc.low %vm2589, %vm2589
  %vm2622 = vmpackc.low %vm2590, %vm2590
  %vm2623 = vmpackc.low %vm2591, %vm2591
  %vm2624 = vmpackc.low %vm2592, %vm2592
  %v2625 = vsel %vm2593, 65537, 0
  %v2626 = vsel %vm2594, 65537, 0
  %v2627 = vsel %vm2595, 65537, 0
  %v2628 = vsel %vm2596, 65537, 0
  %v2629 = vsel %vm2597, 65537, 0
  %v2630 = vsel %vm2598, 65537, 0
  %v2631 = vsel %vm2599, 65537, 0
  %v2632 = vsel %vm2600, 65537, 0
  %v2633 = vsel %vm2601, 65537, 0
  %v2634 = vsel %vm2602, 65537, 0
  %v2635 = vsel %vm2603, 65537, 0
  %v2636 = vsel %vm2604, 65537, 0
  %v2637 = vsel %vm2605, 65537, 0
  %v2638 = vsel %vm2606, 65537, 0
  %v2639 = vsel %vm2607, 65537, 0
  %v2640 = vsel %vm2608, 65537, 0
  %v2641 = vsel %vm2609, 65537, 0
  %v2642 = vsel %vm2610, 65537, 0
  %v2643 = vsel %vm2611, 65537, 0
  %v2644 = vsel %vm2612, 65537, 0
  %v2645 = vsel %vm2613, 65537, 0
  %v2646 = vsel %vm2614, 65537, 0
  %v2647 = vsel %vm2615, 65537, 0
  %v2648 = vsel %vm2616, 65537, 0
  %v2649 = vsel %vm2617, 65537, 0
  %v2650 = vsel %vm2618, 65537, 0
  %v2651 = vsel %vm2619, 65537, 0
  %v2652 = vsel %vm2620, 65537, 0
  %v2653 = vsel %vm2621, 65537, 0
  %v2654 = vsel %vm2622, 65537, 0
  %v2655 = vsel %vm2623, 65537, 0
  %v2656 = vsel %vm2624, 65537, 0
  %vm2657 = vsmask.f32 1280
  %vm2658 = vsmask.f32 5392
  %vm2659 = vmor %vm2657, %vm2658
  %v2661 = vshrl.u32 %v2625, 16
  %v2663 = vrot.slane %v2661, 6
  %v2664 = vshll.u32 %v2625, 16
  %v2666 = vrot.slane %v2664, 7
  %v2667 = vor.u32 %v2663, %v2666
  %v2668 = vrot.slane %v2667, 4
  %v2670 = vshrl.u32 %v2626, 16
  %v2672 = vrot.slane %v2670, 6
  %v2673 = vshll.u32 %v2626, 16
  %v2675 = vrot.slane %v2673, 7
  %v2676 = vor.u32 %v2672, %v2675
  %v2677 = vsel %vm2659, %v2668, %v2676
  %v2678 = vrot.slane %v2676, 4
  %v2680 = vshrl.u32 %v2627, 16
  %v2682 = vrot.slane %v2680, 6
  %v2683 = vshll.u32 %v2627, 16
  %v2685 = vrot.slane %v2683, 7
  %v2686 = vor.u32 %v2682, %v2685
  %v2687 = vsel %vm2659, %v2678, %v2686
  %v2688 = vrot.slane %v2686, 4
  %v2690 = vshrl.u32 %v2628, 16
  %v2692 = vrot.slane %v2690, 6
  %v2693 = vshll.u32 %v2628, 16
  %v2695 = vrot.slane %v2693, 7
  %v2696 = vor.u32 %v2692, %v2695
  %v2697 = vsel %vm2659, %v2688, %v2696
  %v2698 = vrot.slane %v2696, 4
  %v2700 = vshrl.u32 %v2629, 16
  %v2702 = vrot.slane %v2700, 6
  %v2703 = vshll.u32 %v2629, 16
  %v2705 = vrot.slane %v2703, 7
  %v2706 = vor.u32 %v2702, %v2705
  %v2707 = vsel %vm2659, %v2698, %v2706
  %v2708 = vrot.slane %v2706, 4
  %v2710 = vshrl.u32 %v2630, 16
  %v2712 = vrot.slane %v2710, 6
  %v2713 = vshll.u32 %v2630, 16
  %v2715 = vrot.slane %v2713, 7
  %v2716 = vor.u32 %v2712, %v2715
  %v2717 = vsel %vm2659, %v2708, %v2716
  %v2718 = vrot.slane %v2716, 4
  %v2720 = vshrl.u32 %v2631, 16
  %v2722 = vrot.slane %v2720, 6
  %v2723 = vshll.u32 %v2631, 16
  %v2725 = vrot.slane %v2723, 7
  %v2726 = vor.u32 %v2722, %v2725
  %v2727 = vsel %vm2659, %v2718, %v2726
  %v2728 = vrot.slane %v2726, 4
  %v2730 = vshrl.u32 %v2632, 16
  %v2732 = vrot.slane %v2730, 6
  %v2733 = vshll.u32 %v2632, 16
  %v2735 = vrot.slane %v2733, 7
  %v2736 = vor.u32 %v2732, %v2735
  %v2737 = vsel %vm2659, %v2728, %v2736
  %v2738 = vrot.slane %v2736, 4
  %v2740 = vshrl.u32 %v2633, 16
  %v2742 = vrot.slane %v2740, 6
  %v2743 = vshll.u32 %v2633, 16
  %v2745 = vrot.slane %v2743, 7
  %v2746 = vor.u32 %v2742, %v2745
  %v2747 = vsel %vm2659, %v2738, %v2746
  %v2748 = vrot.slane %v2746, 4
  %v2750 = vshrl.u32 %v2634, 16
  %v2752 = vrot.slane %v2750, 6
  %v2753 = vshll.u32 %v2634, 16
  %v2755 = vrot.slane %v2753, 7
  %v2756 = vor.u32 %v2752, %v2755
  %v2757 = vsel %vm2659, %v2748, %v2756
  %v2758 = vrot.slane %v2756, 4
  %v2760 = vshrl.u32 %v2635, 16
  %v2762 = vrot.slane %v2760, 6
  %v2763 = vshll.u32 %v2635, 16
  %v2765 = vrot.slane %v2763, 7
  %v2766 = vor.u32 %v2762, %v2765
  %v2767 = vsel %vm2659, %v2758, %v2766
  %v2768 = vrot.slane %v2766, 4
  %v2770 = vshrl.u32 %v2636, 16
  %v2772 = vrot.slane %v2770, 6
  %v2773 = vshll.u32 %v2636, 16
  %v2775 = vrot.slane %v2773, 7
  %v2776 = vor.u32 %v2772, %v2775
  %v2777 = vsel %vm2659, %v2768, %v2776
  %v2778 = vrot.slane %v2776, 4
  %v2780 = vshrl.u32 %v2637, 16
  %v2782 = vrot.slane %v2780, 6
  %v2783 = vshll.u32 %v2637, 16
  %v2785 = vrot.slane %v2783, 7
  %v2786 = vor.u32 %v2782, %v2785
  %v2787 = vsel %vm2659, %v2778, %v2786
  %v2788 = vrot.slane %v2786, 4
  %v2790 = vshrl.u32 %v2638, 16
  %v2792 = vrot.slane %v2790, 6
  %v2793 = vshll.u32 %v2638, 16
  %v2795 = vrot.slane %v2793, 7
  %v2796 = vor.u32 %v2792, %v2795
  %v2797 = vsel %vm2659, %v2788, %v2796
  %v2798 = vrot.slane %v2796, 4
  %v2800 = vshrl.u32 %v2639, 16
  %v2802 = vrot.slane %v2800, 6
  %v2803 = vshll.u32 %v2639, 16
  %v2805 = vrot.slane %v2803, 7
  %v2806 = vor.u32 %v2802, %v2805
  %v2807 = vsel %vm2659, %v2798, %v2806
  %v2808 = vrot.slane %v2806, 4
  %v2810 = vshrl.u32 %v2640, 16
  %v2812 = vrot.slane %v2810, 6
  %v2813 = vshll.u32 %v2640, 16
  %v2815 = vrot.slane %v2813, 7
  %v2816 = vor.u32 %v2812, %v2815
  %v2817 = vsel %vm2659, %v2808, %v2816
  %v2818 = vrot.slane %v2816, 4
  %v2820 = vshrl.u32 %v2641, 16
  %v2822 = vrot.slane %v2820, 6
  %v2823 = vshll.u32 %v2641, 16
  %v2825 = vrot.slane %v2823, 7
  %v2826 = vor.u32 %v2822, %v2825
  %v2827 = vsel %vm2659, %v2818, %v2826
  %v2828 = vrot.slane %v2826, 4
  %v2830 = vshrl.u32 %v2642, 16
  %v2832 = vrot.slane %v2830, 6
  %v2833 = vshll.u32 %v2642, 16
  %v2835 = vrot.slane %v2833, 7
  %v2836 = vor.u32 %v2832, %v2835
  %v2837 = vsel %vm2659, %v2828, %v2836
  %v2838 = vrot.slane %v2836, 4
  %v2840 = vshrl.u32 %v2643, 16
  %v2842 = vrot.slane %v2840, 6
  %v2843 = vshll.u32 %v2643, 16
  %v2845 = vrot.slane %v2843, 7
  %v2846 = vor.u32 %v2842, %v2845
  %v2847 = vsel %vm2659, %v2838, %v2846
  %v2848 = vrot.slane %v2846, 4
  %v2850 = vshrl.u32 %v2644, 16
  %v2852 = vrot.slane %v2850, 6
  %v2853 = vshll.u32 %v2644, 16
  %v2855 = vrot.slane %v2853, 7
  %v2856 = vor.u32 %v2852, %v2855
  %v2857 = vsel %vm2659, %v2848, %v2856
  %v2858 = vrot.slane %v2856, 4
  %v2860 = vshrl.u32 %v2645, 16
  %v2862 = vrot.slane %v2860, 6
  %v2863 = vshll.u32 %v2645, 16
  %v2865 = vrot.slane %v2863, 7
  %v2866 = vor.u32 %v2862, %v2865
  %v2867 = vsel %vm2659, %v2858, %v2866
  %v2868 = vrot.slane %v2866, 4
  %v2870 = vshrl.u32 %v2646, 16
  %v2872 = vrot.slane %v2870, 6
  %v2873 = vshll.u32 %v2646, 16
  %v2875 = vrot.slane %v2873, 7
  %v2876 = vor.u32 %v2872, %v2875
  %v2877 = vsel %vm2659, %v2868, %v2876
  %v2878 = vrot.slane %v2876, 4
  %v2880 = vshrl.u32 %v2647, 16
  %v2882 = vrot.slane %v2880, 6
  %v2883 = vshll.u32 %v2647, 16
  %v2885 = vrot.slane %v2883, 7
  %v2886 = vor.u32 %v2882, %v2885
  %v2887 = vsel %vm2659, %v2878, %v2886
  %v2888 = vrot.slane %v2886, 4
  %v2890 = vshrl.u32 %v2648, 16
  %v2892 = vrot.slane %v2890, 6
  %v2893 = vshll.u32 %v2648, 16
  %v2895 = vrot.slane %v2893, 7
  %v2896 = vor.u32 %v2892, %v2895
  %v2897 = vsel %vm2659, %v2888, %v2896
  %v2898 = vrot.slane %v2896, 4
  %v2900 = vshrl.u32 %v2649, 16
  %v2902 = vrot.slane %v2900, 6
  %v2903 = vshll.u32 %v2649, 16
  %v2905 = vrot.slane %v2903, 7
  %v2906 = vor.u32 %v2902, %v2905
  %v2907 = vsel %vm2659, %v2898, %v2906
  %v2908 = vrot.slane %v2906, 4
  %v2910 = vshrl.u32 %v2650, 16
  %v2912 = vrot.slane %v2910, 6
  %v2913 = vshll.u32 %v2650, 16
  %v2915 = vrot.slane %v2913, 7
  %v2916 = vor.u32 %v2912, %v2915
  %v2917 = vsel %vm2659, %v2908, %v2916
  %v2918 = vrot.slane %v2916, 4
  %v2920 = vshrl.u32 %v2651, 16
  %v2922 = vrot.slane %v2920, 6
  %v2923 = vshll.u32 %v2651, 16
  %v2925 = vrot.slane %v2923, 7
  %v2926 = vor.u32 %v2922, %v2925
  %v2927 = vsel %vm2659, %v2918, %v2926
  %v2928 = vrot.slane %v2926, 4
  %v2930 = vshrl.u32 %v2652, 16
  %v2932 = vrot.slane %v2930, 6
  %v2933 = vshll.u32 %v2652, 16
  %v2935 = vrot.slane %v2933, 7
  %v2936 = vor.u32 %v2932, %v2935
  %v2937 = vsel %vm2659, %v2928, %v2936
  %v2938 = vrot.slane %v2936, 4
  %v2940 = vshrl.u32 %v2653, 16
  %v2942 = vrot.slane %v2940, 6
  %v2943 = vshll.u32 %v2653, 16
  %v2945 = vrot.slane %v2943, 7
  %v2946 = vor.u32 %v2942, %v2945
  %v2947 = vsel %vm2659, %v2938, %v2946
  %v2948 = vrot.slane %v2946, 4
  %v2950 = vshrl.u32 %v2654, 16
  %v2952 = vrot.slane %v2950, 6
  %v2953 = vshll.u32 %v2654, 16
  %v2955 = vrot.slane %v2953, 7
  %v2956 = vor.u32 %v2952, %v2955
  %v2957 = vsel %vm2659, %v2948, %v2956
  %v2958 = vrot.slane %v2956, 4
  %v2960 = vshrl.u32 %v2655, 16
  %v2962 = vrot.slane %v2960, 6
  %v2963 = vshll.u32 %v2655, 16
  %v2965 = vrot.slane %v2963, 7
  %v2966 = vor.u32 %v2962, %v2965
  %v2967 = vsel %vm2659, %v2958, %v2966
  %v2968 = vrot.slane %v2966, 4
  %v2970 = vshrl.u32 %v2656, 16
  %v2972 = vrot.slane %v2970, 6
  %v2973 = vshll.u32 %v2656, 16
  %v2975 = vrot.slane %v2973, 7
  %v2976 = vor.u32 %v2972, %v2975
  %v2977 = vsel %vm2659, %v2968, %v2976
  %v2978 = vrot.slane %v2976, 4
  %vm2979 = vcmp.ne.s16.totalorder %v2667, 0
  %vm2980 = vcmp.ne.s16.totalorder %v2677, 0
  %vm2981 = vcmp.ne.s16.totalorder %v2687, 0
  %vm2982 = vcmp.ne.s16.totalorder %v2697, 0
  %vm2983 = vcmp.ne.s16.totalorder %v2707, 0
  %vm2984 = vcmp.ne.s16.totalorder %v2717, 0
  %vm2985 = vcmp.ne.s16.totalorder %v2727, 0
  %vm2986 = vcmp.ne.s16.totalorder %v2737, 0
  %vm2987 = vcmp.ne.s16.totalorder %v2747, 0
  %vm2988 = vcmp.ne.s16.totalorder %v2757, 0
  %vm2989 = vcmp.ne.s16.totalorder %v2767, 0
  %vm2990 = vcmp.ne.s16.totalorder %v2777, 0
  %vm2991 = vcmp.ne.s16.totalorder %v2787, 0
  %vm2992 = vcmp.ne.s16.totalorder %v2797, 0
  %vm2993 = vcmp.ne.s16.totalorder %v2807, 0
  %vm2994 = vcmp.ne.s16.totalorder %v2817, 0
  %vm2995 = vcmp.ne.s16.totalorder %v2827, 0
  %vm2996 = vcmp.ne.s16.totalorder %v2837, 0
  %vm2997 = vcmp.ne.s16.totalorder %v2847, 0
  %vm2998 = vcmp.ne.s16.totalorder %v2857, 0
  %vm2999 = vcmp.ne.s16.totalorder %v2867, 0
  %vm3000 = vcmp.ne.s16.totalorder %v2877, 0
  %vm3001 = vcmp.ne.s16.totalorder %v2887, 0
  %vm3002 = vcmp.ne.s16.totalorder %v2897, 0
  %vm3003 = vcmp.ne.s16.totalorder %v2907, 0
  %vm3004 = vcmp.ne.s16.totalorder %v2917, 0
  %vm3005 = vcmp.ne.s16.totalorder %v2927, 0
  %vm3006 = vcmp.ne.s16.totalorder %v2937, 0
  %vm3007 = vcmp.ne.s16.totalorder %v2947, 0
  %vm3008 = vcmp.ne.s16.totalorder %v2957, 0
  %vm3009 = vcmp.ne.s16.totalorder %v2967, 0
  %vm3010 = vcmp.ne.s16.totalorder %v2977, 0
  %vm3011 = vcmp.ne.s16.totalorder %v2978, 0
  %v3012 = vsel %vm2979, %v2171, 0
  %v3013 = vsel %vm2980, %v201, 0
  %v3014 = vsel %vm2981, %v202, 0
  %v3015 = vsel %vm2982, %v203, 0
  %v3016 = vsel %vm2983, %v204, 0
  %v3017 = vsel %vm2984, %v205, 0
  %v3018 = vsel %vm2985, %v206, 0
  %v3019 = vsel %vm2986, %v207, 0
  %v3020 = vsel %vm2987, %v208, 0
  %v3021 = vsel %vm2988, %v209, 0
  %v3022 = vsel %vm2989, %v210, 0
  %v3023 = vsel %vm2990, %v211, 0
  %v3024 = vsel %vm2991, %v212, 0
  %v3025 = vsel %vm2992, %v213, 0
  %v3026 = vsel %vm2993, %v214, 0
  %v3027 = vsel %vm2994, %v215, 0
  %v3028 = vsel %vm2995, %v216, 0
  %v3029 = vsel %vm2996, %v217, 0
  %v3030 = vsel %vm2997, %v218, 0
  %v3031 = vsel %vm2998, %v219, 0
  %v3032 = vsel %vm2999, %v220, 0
  %v3033 = vsel %vm3000, %v221, 0
  %v3034 = vsel %vm3001, %v222, 0
  %v3035 = vsel %vm3002, %v223, 0
  %v3036 = vsel %vm3003, %v224, 0
  %v3037 = vsel %vm3004, %v225, 0
  %v3038 = vsel %vm3005, %v226, 0
  %v3039 = vsel %vm3006, %v227, 0
  %v3040 = vsel %vm3007, %v228, 0
  %v3041 = vsel %vm3008, %v229, 0
  %v3042 = vsel %vm3009, %v230, 0
  %v3043 = vsel %vm3010, %v1105, 0
  %v3044 = vsel %vm3011, %v2496, 0
  %v3078 = vunpack.c.l.b16 %v747
  %v3079 = vunpack.c.l.b16 %v748
  %v3080 = vunpack.c.l.b16 %v749
  %v3081 = vunpack.c.l.b16 %v750
  %v3082 = vunpack.c.l.b16 %v751
  %v3083 = vunpack.c.l.b16 %v752
  %v3084 = vunpack.c.l.b16 %v753
  %v3085 = vunpack.c.l.b16 %v754
  %v3086 = vunpack.c.l.b16 %v755
  %v3087 = vunpack.c.l.b16 %v756
  %v3088 = vunpack.c.l.b16 %v757
  %v3089 = vunpack.c.l.b16 %v758
  %v3090 = vunpack.c.l.b16 %v759
  %v3091 = vunpack.c.l.b16 %v760
  %v3092 = vunpack.c.l.b16 %v761
  %v3093 = vunpack.c.l.b16 %v762
  %v3094 = vunpack.c.l.b16 %v763
  %v3095 = vunpack.c.l.b16 %v764
  %v3096 = vunpack.c.l.b16 %v765
  %v3097 = vunpack.c.l.b16 %v766
  %v3098 = vunpack.c.l.b16 %v767
  %v3099 = vunpack.c.l.b16 %v768
  %v3100 = vunpack.c.l.b16 %v769
  %v3101 = vunpack.c.l.b16 %v770
  %v3102 = vunpack.c.l.b16 %v771
  %v3103 = vunpack.c.l.b16 %v772
  %v3104 = vunpack.c.l.b16 %v773
  %v3105 = vunpack.c.l.b16 %v774
  %v3106 = vunpack.c.l.b16 %v775
  %v3107 = vunpack.c.l.b16 %v776
  %v3108 = vunpack.c.l.b16 %v777
  %v3109 = vunpack.c.l.b16 %v778
  %v3110 = vunpack.c.l.b16 %v779
  %v3111 = vpack.c.b16 %v3079, %v3078
  %v3112 = vpack.c.b16 %v3081, %v3080
  %v3113 = vpack.c.b16 %v3083, %v3082
  %v3114 = vpack.c.b16 %v3085, %v3084
  %v3115 = vpack.c.b16 %v3087, %v3086
  %v3116 = vpack.c.b16 %v3089, %v3088
  %v3117 = vpack.c.b16 %v3091, %v3090
  %v3118 = vpack.c.b16 %v3093, %v3092
  %v3119 = vpack.c.b16 %v3095, %v3094
  %v3120 = vpack.c.b16 %v3097, %v3096
  %v3121 = vpack.c.b16 %v3099, %v3098
  %v3122 = vpack.c.b16 %v3101, %v3100
  %v3123 = vpack.c.b16 %v3103, %v3102
  %v3124 = vpack.c.b16 %v3105, %v3104
  %v3125 = vpack.c.b16 %v3107, %v3106
  %v3126 = vpack.c.b16 %v3109, %v3108
  %v3127 = vpack.c.b16 %v3110, %v3110
  %v3161 = vunpack.c.l.b16 %v1072
  %v3162 = vunpack.c.l.b16 %v1073
  %v3163 = vunpack.c.l.b16 %v1074
  %v3164 = vunpack.c.l.b16 %v1075
  %v3165 = vunpack.c.l.b16 %v1076
  %v3166 = vunpack.c.l.b16 %v1077
  %v3167 = vunpack.c.l.b16 %v1078
  %v3168 = vunpack.c.l.b16 %v1079
  %v3169 = vunpack.c.l.b16 %v1080
  %v3170 = vunpack.c.l.b16 %v1081
  %v3171 = vunpack.c.l.b16 %v1082
  %v3172 = vunpack.c.l.b16 %v1083
  %v3173 = vunpack.c.l.b16 %v1084
  %v3174 = vunpack.c.l.b16 %v1085
  %v3175 = vunpack.c.l.b16 %v1086
  %v3176 = vunpack.c.l.b16 %v1087
  %v3177 = vunpack.c.l.b16 %v1088
  %v3178 = vunpack.c.l.b16 %v1089
  %v3179 = vunpack.c.l.b16 %v1090
  %v3180 = vunpack.c.l.b16 %v1091
  %v3181 = vunpack.c.l.b16 %v1092
  %v3182 = vunpack.c.l.b16 %v1093
  %v3183 = vunpack.c.l.b16 %v1094
  %v3184 = vunpack.c.l.b16 %v1095
  %v3185 = vunpack.c.l.b16 %v1096
  %v3186 = vunpack.c.l.b16 %v1097
  %v3187 = vunpack.c.l.b16 %v1098
  %v3188 = vunpack.c.l.b16 %v1099
  %v3189 = vunpack.c.l.b16 %v1100
  %v3190 = vunpack.c.l.b16 %v1101
  %v3191 = vunpack.c.l.b16 %v1102
  %v3192 = vunpack.c.l.b16 %v1103
  %v3193 = vunpack.c.l.b16 %v1104
  %v3194 = vpack.c.b16 %v3162, %v3161
  %v3195 = vpack.c.b16 %v3164, %v3163
  %v3196 = vpack.c.b16 %v3166, %v3165
  %v3197 = vpack.c.b16 %v3168, %v3167
  %v3198 = vpack.c.b16 %v3170, %v3169
  %v3199 = vpack.c.b16 %v3172, %v3171
  %v3200 = vpack.c.b16 %v3174, %v3173
  %v3201 = vpack.c.b16 %v3176, %v3175
  %v3202 = vpack.c.b16 %v3178, %v3177
  %v3203 = vpack.c.b16 %v3180, %v3179
  %v3204 = vpack.c.b16 %v3182, %v3181
  %v3205 = vpack.c.b16 %v3184, %v3183
  %v3206 = vpack.c.b16 %v3186, %v3185
  %v3207 = vpack.c.b16 %v3188, %v3187
  %v3208 = vpack.c.b16 %v3190, %v3189
  %v3209 = vpack.c.b16 %v3192, %v3191
  %v3210 = vpack.c.b16 %v3193, %v3193
  %vm3211 = vsmask.f32 7424
  %v3213 = vshrl.u32 %v3194, 16
  %v3215 = vshll.u32 %v3194, 16
  %v3217 = vrot.slane %v3215, 1
  %v3218 = vor.u32 %v3213, %v3217
  %v3220 = vshll.u32 %v3195, 16
  %v3222 = vrot.slane %v3220, 1
  %v3223 = vsel %vm3211, %v3218, %v3222
  %v3224 = vshrl.u32 %v3195, 16
  %v3226 = vor.u32 %v3224, %v3222
  %v3228 = vshll.u32 %v3196, 16
  %v3230 = vrot.slane %v3228, 1
  %v3231 = vsel %vm3211, %v3226, %v3230
  %v3232 = vshrl.u32 %v3196, 16
  %v3234 = vor.u32 %v3232, %v3230
  %v3236 = vshll.u32 %v3197, 16
  %v3238 = vrot.slane %v3236, 1
  %v3239 = vsel %vm3211, %v3234, %v3238
  %v3240 = vshrl.u32 %v3197, 16
  %v3242 = vor.u32 %v3240, %v3238
  %v3244 = vshll.u32 %v3198, 16
  %v3246 = vrot.slane %v3244, 1
  %v3247 = vsel %vm3211, %v3242, %v3246
  %v3248 = vshrl.u32 %v3198, 16
  %v3250 = vor.u32 %v3248, %v3246
  %v3252 = vshll.u32 %v3199, 16
  %v3254 = vrot.slane %v3252, 1
  %v3255 = vsel %vm3211, %v3250, %v3254
  %v3256 = vshrl.u32 %v3199, 16
  %v3258 = vor.u32 %v3256, %v3254
  %v3260 = vshll.u32 %v3200, 16
  %v3262 = vrot.slane %v3260, 1
  %v3263 = vsel %vm3211, %v3258, %v3262
  %v3264 = vshrl.u32 %v3200, 16
  %v3266 = vor.u32 %v3264, %v3262
  %v3268 = vshll.u32 %v3201, 16
  %v3270 = vrot.slane %v3268, 1
  %v3271 = vsel %vm3211, %v3266, %v3270
  %v3272 = vshrl.u32 %v3201, 16
  %v3274 = vor.u32 %v3272, %v3270
  %v3276 = vshll.u32 %v3202, 16
  %v3278 = vrot.slane %v3276, 1
  %v3279 = vsel %vm3211, %v3274, %v3278
  %v3280 = vshrl.u32 %v3202, 16
  %v3282 = vor.u32 %v3280, %v3278
  %v3284 = vshll.u32 %v3203, 16
  %v3286 = vrot.slane %v3284, 1
  %v3287 = vsel %vm3211, %v3282, %v3286
  %v3288 = vshrl.u32 %v3203, 16
  %v3290 = vor.u32 %v3288, %v3286
  %v3292 = vshll.u32 %v3204, 16
  %v3294 = vrot.slane %v3292, 1
  %v3295 = vsel %vm3211, %v3290, %v3294
  %v3296 = vshrl.u32 %v3204, 16
  %v3298 = vor.u32 %v3296, %v3294
  %v3300 = vshll.u32 %v3205, 16
  %v3302 = vrot.slane %v3300, 1
  %v3303 = vsel %vm3211, %v3298, %v3302
  %v3304 = vshrl.u32 %v3205, 16
  %v3306 = vor.u32 %v3304, %v3302
  %v3308 = vshll.u32 %v3206, 16
  %v3310 = vrot.slane %v3308, 1
  %v3311 = vsel %vm3211, %v3306, %v3310
  %v3312 = vshrl.u32 %v3206, 16
  %v3314 = vor.u32 %v3312, %v3310
  %v3316 = vshll.u32 %v3207, 16
  %v3318 = vrot.slane %v3316, 1
  %v3319 = vsel %vm3211, %v3314, %v3318
  %v3320 = vshrl.u32 %v3207, 16
  %v3322 = vor.u32 %v3320, %v3318
  %v3324 = vshll.u32 %v3208, 16
  %v3326 = vrot.slane %v3324, 1
  %v3327 = vsel %vm3211, %v3322, %v3326
  %v3328 = vshrl.u32 %v3208, 16
  %v3330 = vor.u32 %v3328, %v3326
  %v3332 = vshll.u32 %v3209, 16
  %v3334 = vrot.slane %v3332, 1
  %v3335 = vsel %vm3211, %v3330, %v3334
  %v3336 = vshrl.u32 %v3209, 16
  %v3338 = vor.u32 %v3336, %v3334
  %v3340 = vshll.u32 %v3210, 16
  %v3342 = vrot.slane %v3340, 1
  %v3343 = vsel %vm3211, %v3338, %v3342
  %v3344 = vshrl.u32 %v3210, 16
  %v3346 = vor.u32 %v3344, %v3342
  %3347 = vrot.lane.b32.xlu0 %v3223, 8
  %v3348 = vpop.permute.xlu0 %3347
  %3349 = vrot.lane.b32.xlu0 %v3231, 8
  %v3350 = vpop.permute.xlu0 %3349
  %3351 = vrot.lane.b32.xlu0 %v3239, 8
  %v3352 = vpop.permute.xlu0 %3351
  %3353 = vrot.lane.b32.xlu0 %v3247, 8
  %v3354 = vpop.permute.xlu0 %3353
  %3355 = vrot.lane.b32.xlu0 %v3255, 8
  %v3356 = vpop.permute.xlu0 %3355
  %3357 = vrot.lane.b32.xlu0 %v3263, 8
  %v3358 = vpop.permute.xlu0 %3357
  %3359 = vrot.lane.b32.xlu0 %v3271, 8
  %v3360 = vpop.permute.xlu0 %3359
  %3361 = vrot.lane.b32.xlu0 %v3279, 8
  %v3362 = vpop.permute.xlu0 %3361
  %3363 = vrot.lane.b32.xlu0 %v3287, 8
  %v3364 = vpop.permute.xlu0 %3363
  %3365 = vrot.lane.b32.xlu0 %v3295, 8
  %v3366 = vpop.permute.xlu0 %3365
  %3367 = vrot.lane.b32.xlu0 %v3303, 8
  %v3368 = vpop.permute.xlu0 %3367
  %3369 = vrot.lane.b32.xlu0 %v3311, 8
  %v3370 = vpop.permute.xlu0 %3369
  %3371 = vrot.lane.b32.xlu0 %v3319, 8
  %v3372 = vpop.permute.xlu0 %3371
  %3373 = vrot.lane.b32.xlu0 %v3327, 8
  %v3374 = vpop.permute.xlu0 %3373
  %3375 = vrot.lane.b32.xlu0 %v3335, 8
  %v3376 = vpop.permute.xlu0 %3375
  %3377 = vrot.lane.b32.xlu0 %v3343, 8
  %v3378 = vpop.permute.xlu0 %3377
  %3379 = vrot.lane.b32.xlu0 %v3346, 8
  %v3380 = vpop.permute.xlu0 %3379
  %v3414 = vunpack.c.l.b16 %v1621
  %v3415 = vunpack.c.l.b16 %v1622
  %v3416 = vunpack.c.l.b16 %v1623
  %v3417 = vunpack.c.l.b16 %v1624
  %v3418 = vunpack.c.l.b16 %v1625
  %v3419 = vunpack.c.l.b16 %v1626
  %v3420 = vunpack.c.l.b16 %v1627
  %v3421 = vunpack.c.l.b16 %v1628
  %v3422 = vunpack.c.l.b16 %v1629
  %v3423 = vunpack.c.l.b16 %v1630
  %v3424 = vunpack.c.l.b16 %v1631
  %v3425 = vunpack.c.l.b16 %v1632
  %v3426 = vunpack.c.l.b16 %v1633
  %v3427 = vunpack.c.l.b16 %v1634
  %v3428 = vunpack.c.l.b16 %v1635
  %v3429 = vunpack.c.l.b16 %v1636
  %v3430 = vunpack.c.l.b16 %v1637
  %v3431 = vunpack.c.l.b16 %v1638
  %v3432 = vunpack.c.l.b16 %v1639
  %v3433 = vunpack.c.l.b16 %v1640
  %v3434 = vunpack.c.l.b16 %v1641
  %v3435 = vunpack.c.l.b16 %v1642
  %v3436 = vunpack.c.l.b16 %v1643
  %v3437 = vunpack.c.l.b16 %v1644
  %v3438 = vunpack.c.l.b16 %v1645
  %v3439 = vunpack.c.l.b16 %v1646
  %v3440 = vunpack.c.l.b16 %v1647
  %v3441 = vunpack.c.l.b16 %v1648
  %v3442 = vunpack.c.l.b16 %v1649
  %v3443 = vunpack.c.l.b16 %v1650
  %v3444 = vunpack.c.l.b16 %v1651
  %v3445 = vunpack.c.l.b16 %v1652
  %v3446 = vunpack.c.l.b16 %v1653
  %v3447 = vpack.c.b16 %v3415, %v3414
  %v3448 = vpack.c.b16 %v3417, %v3416
  %v3449 = vpack.c.b16 %v3419, %v3418
  %v3450 = vpack.c.b16 %v3421, %v3420
  %v3451 = vpack.c.b16 %v3423, %v3422
  %v3452 = vpack.c.b16 %v3425, %v3424
  %v3453 = vpack.c.b16 %v3427, %v3426
  %v3454 = vpack.c.b16 %v3429, %v3428
  %v3455 = vpack.c.b16 %v3431, %v3430
  %v3456 = vpack.c.b16 %v3433, %v3432
  %v3457 = vpack.c.b16 %v3435, %v3434
  %v3458 = vpack.c.b16 %v3437, %v3436
  %v3459 = vpack.c.b16 %v3439, %v3438
  %v3460 = vpack.c.b16 %v3441, %v3440
  %v3461 = vpack.c.b16 %v3443, %v3442
  %v3462 = vpack.c.b16 %v3445, %v3444
  %v3463 = vpack.c.b16 %v3446, %v3446
  %vm3464 = vcmask 1046528
  %v3465 = vrot.slane %v3447, 1
  %v3466 = vrot.slane %v3448, 1
  %v3467 = vsel %vm3464, %v3465, %v3466
  %v3468 = vrot.slane %v3449, 1
  %v3469 = vsel %vm3464, %v3466, %v3468
  %v3470 = vrot.slane %v3450, 1
  %v3471 = vsel %vm3464, %v3468, %v3470
  %v3472 = vrot.slane %v3451, 1
  %v3473 = vsel %vm3464, %v3470, %v3472
  %v3474 = vrot.slane %v3452, 1
  %v3475 = vsel %vm3464, %v3472, %v3474
  %v3476 = vrot.slane %v3453, 1
  %v3477 = vsel %vm3464, %v3474, %v3476
  %v3478 = vrot.slane %v3454, 1
  %v3479 = vsel %vm3464, %v3476, %v3478
  %v3480 = vrot.slane %v3455, 1
  %v3481 = vsel %vm3464, %v3478, %v3480
  %v3482 = vrot.slane %v3456, 1
  %v3483 = vsel %vm3464, %v3480, %v3482
  %v3484 = vrot.slane %v3457, 1
  %v3485 = vsel %vm3464, %v3482, %v3484
  %v3486 = vrot.slane %v3458, 1
  %v3487 = vsel %vm3464, %v3484, %v3486
  %v3488 = vrot.slane %v3459, 1
  %v3489 = vsel %vm3464, %v3486, %v3488
  %v3490 = vrot.slane %v3460, 1
  %v3491 = vsel %vm3464, %v3488, %v3490
  %v3492 = vrot.slane %v3461, 1
  %v3493 = vsel %vm3464, %v3490, %v3492
  %v3494 = vrot.slane %v3462, 1
  %v3495 = vsel %vm3464, %v3492, %v3494
  %v3496 = vrot.slane %v3463, 1
  %v3497 = vsel %vm3464, %v3494, %v3496
  %3498 = vrot.lane.b32.xlu0 %v3467, 16
  %v3499 = vpop.permute.xlu0 %3498
  %3500 = vrot.lane.b32.xlu0 %v3469, 16
  %v3501 = vpop.permute.xlu0 %3500
  %3502 = vrot.lane.b32.xlu0 %v3471, 16
  %v3503 = vpop.permute.xlu0 %3502
  %3504 = vrot.lane.b32.xlu0 %v3473, 16
  %v3505 = vpop.permute.xlu0 %3504
  %3506 = vrot.lane.b32.xlu0 %v3475, 16
  %v3507 = vpop.permute.xlu0 %3506
  %3508 = vrot.lane.b32.xlu0 %v3477, 16
  %v3509 = vpop.permute.xlu0 %3508
  %3510 = vrot.lane.b32.xlu0 %v3479, 16
  %v3511 = vpop.permute.xlu0 %3510
  %3512 = vrot.lane.b32.xlu0 %v3481, 16
  %v3513 = vpop.permute.xlu0 %3512
  %3514 = vrot.lane.b32.xlu0 %v3483, 16
  %v3515 = vpop.permute.xlu0 %3514
  %3516 = vrot.lane.b32.xlu0 %v3485, 16
  %v3517 = vpop.permute.xlu0 %3516
  %3518 = vrot.lane.b32.xlu0 %v3487, 16
  %v3519 = vpop.permute.xlu0 %3518
  %3520 = vrot.lane.b32.xlu0 %v3489, 16
  %v3521 = vpop.permute.xlu0 %3520
  %3522 = vrot.lane.b32.xlu0 %v3491, 16
  %v3523 = vpop.permute.xlu0 %3522
  %3524 = vrot.lane.b32.xlu0 %v3493, 16
  %v3525 = vpop.permute.xlu0 %3524
  %3526 = vrot.lane.b32.xlu0 %v3495, 16
  %v3527 = vpop.permute.xlu0 %3526
  %3528 = vrot.lane.b32.xlu0 %v3497, 16
  %v3529 = vpop.permute.xlu0 %3528
  %3530 = vrot.lane.b32.xlu0 %v3496, 16
  %v3531 = vpop.permute.xlu0 %3530
  %v3564 = vunpack.c.l.b16 %v200
  %v3565 = vunpack.c.l.b16 %v201
  %v3566 = vunpack.c.l.b16 %v202
  %v3567 = vunpack.c.l.b16 %v203
  %v3568 = vunpack.c.l.b16 %v204
  %v3569 = vunpack.c.l.b16 %v205
  %v3570 = vunpack.c.l.b16 %v206
  %v3571 = vunpack.c.l.b16 %v207
  %v3572 = vunpack.c.l.b16 %v208
  %v3573 = vunpack.c.l.b16 %v209
  %v3574 = vunpack.c.l.b16 %v210
  %v3575 = vunpack.c.l.b16 %v211
  %v3576 = vunpack.c.l.b16 %v212
  %v3577 = vunpack.c.l.b16 %v213
  %v3578 = vunpack.c.l.b16 %v214
  %v3579 = vunpack.c.l.b16 %v215
  %v3580 = vunpack.c.l.b16 %v216
  %v3581 = vunpack.c.l.b16 %v217
  %v3582 = vunpack.c.l.b16 %v218
  %v3583 = vunpack.c.l.b16 %v219
  %v3584 = vunpack.c.l.b16 %v220
  %v3585 = vunpack.c.l.b16 %v221
  %v3586 = vunpack.c.l.b16 %v222
  %v3587 = vunpack.c.l.b16 %v223
  %v3588 = vunpack.c.l.b16 %v224
  %v3589 = vunpack.c.l.b16 %v225
  %v3590 = vunpack.c.l.b16 %v226
  %v3591 = vunpack.c.l.b16 %v227
  %v3592 = vunpack.c.l.b16 %v228
  %v3593 = vunpack.c.l.b16 %v229
  %v3594 = vunpack.c.l.b16 %v230
  %v3595 = vunpack.c.l.b16 %v1105
  %v3596 = vpack.c.b16 %v3565, %v3564
  %v3597 = vpack.c.b16 %v3567, %v3566
  %v3598 = vpack.c.b16 %v3569, %v3568
  %v3599 = vpack.c.b16 %v3571, %v3570
  %v3600 = vpack.c.b16 %v3573, %v3572
  %v3601 = vpack.c.b16 %v3575, %v3574
  %v3602 = vpack.c.b16 %v3577, %v3576
  %v3603 = vpack.c.b16 %v3579, %v3578
  %v3604 = vpack.c.b16 %v3581, %v3580
  %v3605 = vpack.c.b16 %v3583, %v3582
  %v3606 = vpack.c.b16 %v3585, %v3584
  %v3607 = vpack.c.b16 %v3587, %v3586
  %v3608 = vpack.c.b16 %v3589, %v3588
  %v3609 = vpack.c.b16 %v3591, %v3590
  %v3610 = vpack.c.b16 %v3593, %v3592
  %v3611 = vpack.c.b16 %v3595, %v3594
  %v3613 = vshrl.u32 %v3596, 16
  %v3615 = vrot.slane %v3613, 5
  %v3616 = vshll.u32 %v3596, 16
  %v3618 = vrot.slane %v3616, 6
  %v3619 = vor.u32 %v3615, %v3618
  %v3621 = vshrl.u32 %v3597, 16
  %v3623 = vrot.slane %v3621, 5
  %v3624 = vshll.u32 %v3597, 16
  %v3626 = vrot.slane %v3624, 6
  %v3627 = vor.u32 %v3623, %v3626
  %v3628 = vsel %vm392, %v3619, %v3627
  %v3630 = vshrl.u32 %v3598, 16
  %v3632 = vrot.slane %v3630, 5
  %v3633 = vshll.u32 %v3598, 16
  %v3635 = vrot.slane %v3633, 6
  %v3636 = vor.u32 %v3632, %v3635
  %v3637 = vsel %vm392, %v3627, %v3636
  %v3639 = vshrl.u32 %v3599, 16
  %v3641 = vrot.slane %v3639, 5
  %v3642 = vshll.u32 %v3599, 16
  %v3644 = vrot.slane %v3642, 6
  %v3645 = vor.u32 %v3641, %v3644
  %v3646 = vsel %vm392, %v3636, %v3645
  %v3648 = vshrl.u32 %v3600, 16
  %v3650 = vrot.slane %v3648, 5
  %v3651 = vshll.u32 %v3600, 16
  %v3653 = vrot.slane %v3651, 6
  %v3654 = vor.u32 %v3650, %v3653
  %v3655 = vsel %vm392, %v3645, %v3654
  %v3657 = vshrl.u32 %v3601, 16
  %v3659 = vrot.slane %v3657, 5
  %v3660 = vshll.u32 %v3601, 16
  %v3662 = vrot.slane %v3660, 6
  %v3663 = vor.u32 %v3659, %v3662
  %v3664 = vsel %vm392, %v3654, %v3663
  %v3666 = vshrl.u32 %v3602, 16
  %v3668 = vrot.slane %v3666, 5
  %v3669 = vshll.u32 %v3602, 16
  %v3671 = vrot.slane %v3669, 6
  %v3672 = vor.u32 %v3668, %v3671
  %v3673 = vsel %vm392, %v3663, %v3672
  %v3675 = vshrl.u32 %v3603, 16
  %v3677 = vrot.slane %v3675, 5
  %v3678 = vshll.u32 %v3603, 16
  %v3680 = vrot.slane %v3678, 6
  %v3681 = vor.u32 %v3677, %v3680
  %v3682 = vsel %vm392, %v3672, %v3681
  %v3684 = vshrl.u32 %v3604, 16
  %v3686 = vrot.slane %v3684, 5
  %v3687 = vshll.u32 %v3604, 16
  %v3689 = vrot.slane %v3687, 6
  %v3690 = vor.u32 %v3686, %v3689
  %v3691 = vsel %vm392, %v3681, %v3690
  %v3693 = vshrl.u32 %v3605, 16
  %v3695 = vrot.slane %v3693, 5
  %v3696 = vshll.u32 %v3605, 16
  %v3698 = vrot.slane %v3696, 6
  %v3699 = vor.u32 %v3695, %v3698
  %v3700 = vsel %vm392, %v3690, %v3699
  %v3702 = vshrl.u32 %v3606, 16
  %v3704 = vrot.slane %v3702, 5
  %v3705 = vshll.u32 %v3606, 16
  %v3707 = vrot.slane %v3705, 6
  %v3708 = vor.u32 %v3704, %v3707
  %v3709 = vsel %vm392, %v3699, %v3708
  %v3711 = vshrl.u32 %v3607, 16
  %v3713 = vrot.slane %v3711, 5
  %v3714 = vshll.u32 %v3607, 16
  %v3716 = vrot.slane %v3714, 6
  %v3717 = vor.u32 %v3713, %v3716
  %v3718 = vsel %vm392, %v3708, %v3717
  %v3720 = vshrl.u32 %v3608, 16
  %v3722 = vrot.slane %v3720, 5
  %v3723 = vshll.u32 %v3608, 16
  %v3725 = vrot.slane %v3723, 6
  %v3726 = vor.u32 %v3722, %v3725
  %v3727 = vsel %vm392, %v3717, %v3726
  %v3729 = vshrl.u32 %v3609, 16
  %v3731 = vrot.slane %v3729, 5
  %v3732 = vshll.u32 %v3609, 16
  %v3734 = vrot.slane %v3732, 6
  %v3735 = vor.u32 %v3731, %v3734
  %v3736 = vsel %vm392, %v3726, %v3735
  %v3738 = vshrl.u32 %v3610, 16
  %v3740 = vrot.slane %v3738, 5
  %v3741 = vshll.u32 %v3610, 16
  %v3743 = vrot.slane %v3741, 6
  %v3744 = vor.u32 %v3740, %v3743
  %v3745 = vsel %vm392, %v3735, %v3744
  %v3747 = vshrl.u32 %v3611, 16
  %v3749 = vrot.slane %v3747, 5
  %v3750 = vshll.u32 %v3611, 16
  %v3752 = vrot.slane %v3750, 6
  %v3753 = vor.u32 %v3749, %v3752
  %v3754 = vsel %vm392, %v3744, %v3753
  %3755 = vrot.lane.b32.xlu0 %v3619, 24
  %v3756 = vpop.permute.xlu0 %3755
  %3757 = vrot.lane.b32.xlu0 %v3628, 24
  %v3758 = vpop.permute.xlu0 %3757
  %3759 = vrot.lane.b32.xlu0 %v3637, 24
  %v3760 = vpop.permute.xlu0 %3759
  %3761 = vrot.lane.b32.xlu0 %v3646, 24
  %v3762 = vpop.permute.xlu0 %3761
  %3763 = vrot.lane.b32.xlu0 %v3655, 24
  %v3764 = vpop.permute.xlu0 %3763
  %3765 = vrot.lane.b32.xlu0 %v3664, 24
  %v3766 = vpop.permute.xlu0 %3765
  %3767 = vrot.lane.b32.xlu0 %v3673, 24
  %v3768 = vpop.permute.xlu0 %3767
  %3769 = vrot.lane.b32.xlu0 %v3682, 24
  %v3770 = vpop.permute.xlu0 %3769
  %3771 = vrot.lane.b32.xlu0 %v3691, 24
  %v3772 = vpop.permute.xlu0 %3771
  %3773 = vrot.lane.b32.xlu0 %v3700, 24
  %v3774 = vpop.permute.xlu0 %3773
  %3775 = vrot.lane.b32.xlu0 %v3709, 24
  %v3776 = vpop.permute.xlu0 %3775
  %3777 = vrot.lane.b32.xlu0 %v3718, 24
  %v3778 = vpop.permute.xlu0 %3777
  %3779 = vrot.lane.b32.xlu0 %v3727, 24
  %v3780 = vpop.permute.xlu0 %3779
  %3781 = vrot.lane.b32.xlu0 %v3736, 24
  %v3782 = vpop.permute.xlu0 %3781
  %3783 = vrot.lane.b32.xlu0 %v3745, 24
  %v3784 = vpop.permute.xlu0 %3783
  %3785 = vrot.lane.b32.xlu0 %v3754, 24
  %v3786 = vpop.permute.xlu0 %3785
  %3787 = vrot.lane.b32.xlu0 %v3753, 24
  %v3788 = vpop.permute.xlu0 %3787
  %v3822 = vunpack.c.l.b16 %v2138
  %v3823 = vunpack.c.l.b16 %v2139
  %v3824 = vunpack.c.l.b16 %v2140
  %v3825 = vunpack.c.l.b16 %v2141
  %v3826 = vunpack.c.l.b16 %v2142
  %v3827 = vunpack.c.l.b16 %v2143
  %v3828 = vunpack.c.l.b16 %v2144
  %v3829 = vunpack.c.l.b16 %v2145
  %v3830 = vunpack.c.l.b16 %v2146
  %v3831 = vunpack.c.l.b16 %v2147
  %v3832 = vunpack.c.l.b16 %v2148
  %v3833 = vunpack.c.l.b16 %v2149
  %v3834 = vunpack.c.l.b16 %v2150
  %v3835 = vunpack.c.l.b16 %v2151
  %v3836 = vunpack.c.l.b16 %v2152
  %v3837 = vunpack.c.l.b16 %v2153
  %v3838 = vunpack.c.l.b16 %v2154
  %v3839 = vunpack.c.l.b16 %v2155
  %v3840 = vunpack.c.l.b16 %v2156
  %v3841 = vunpack.c.l.b16 %v2157
  %v3842 = vunpack.c.l.b16 %v2158
  %v3843 = vunpack.c.l.b16 %v2159
  %v3844 = vunpack.c.l.b16 %v2160
  %v3845 = vunpack.c.l.b16 %v2161
  %v3846 = vunpack.c.l.b16 %v2162
  %v3847 = vunpack.c.l.b16 %v2163
  %v3848 = vunpack.c.l.b16 %v2164
  %v3849 = vunpack.c.l.b16 %v2165
  %v3850 = vunpack.c.l.b16 %v2166
  %v3851 = vunpack.c.l.b16 %v2167
  %v3852 = vunpack.c.l.b16 %v2168
  %v3853 = vunpack.c.l.b16 %v2169
  %v3854 = vunpack.c.l.b16 %v2170
  %v3855 = vpack.c.b16 %v3823, %v3822
  %v3856 = vpack.c.b16 %v3825, %v3824
  %v3857 = vpack.c.b16 %v3827, %v3826
  %v3858 = vpack.c.b16 %v3829, %v3828
  %v3859 = vpack.c.b16 %v3831, %v3830
  %v3860 = vpack.c.b16 %v3833, %v3832
  %v3861 = vpack.c.b16 %v3835, %v3834
  %v3862 = vpack.c.b16 %v3837, %v3836
  %v3863 = vpack.c.b16 %v3839, %v3838
  %v3864 = vpack.c.b16 %v3841, %v3840
  %v3865 = vpack.c.b16 %v3843, %v3842
  %v3866 = vpack.c.b16 %v3845, %v3844
  %v3867 = vpack.c.b16 %v3847, %v3846
  %v3868 = vpack.c.b16 %v3849, %v3848
  %v3869 = vpack.c.b16 %v3851, %v3850
  %v3870 = vpack.c.b16 %v3853, %v3852
  %v3871 = vpack.c.b16 %v3854, %v3854
  %vm3872 = vcmask 1041408
  %v3873 = vrot.slane %v3855, 6
  %v3874 = vrot.slane %v3856, 6
  %v3875 = vsel %vm3872, %v3873, %v3874
  %v3876 = vrot.slane %v3857, 6
  %v3877 = vsel %vm3872, %v3874, %v3876
  %v3878 = vrot.slane %v3858, 6
  %v3879 = vsel %vm3872, %v3876, %v3878
  %v3880 = vrot.slane %v3859, 6
  %v3881 = vsel %vm3872, %v3878, %v3880
  %v3882 = vrot.slane %v3860, 6
  %v3883 = vsel %vm3872, %v3880, %v3882
  %v3884 = vrot.slane %v3861, 6
  %v3885 = vsel %vm3872, %v3882, %v3884
  %v3886 = vrot.slane %v3862, 6
  %v3887 = vsel %vm3872, %v3884, %v3886
  %v3888 = vrot.slane %v3863, 6
  %v3889 = vsel %vm3872, %v3886, %v3888
  %v3890 = vrot.slane %v3864, 6
  %v3891 = vsel %vm3872, %v3888, %v3890
  %v3892 = vrot.slane %v3865, 6
  %v3893 = vsel %vm3872, %v3890, %v3892
  %v3894 = vrot.slane %v3866, 6
  %v3895 = vsel %vm3872, %v3892, %v3894
  %v3896 = vrot.slane %v3867, 6
  %v3897 = vsel %vm3872, %v3894, %v3896
  %v3898 = vrot.slane %v3868, 6
  %v3899 = vsel %vm3872, %v3896, %v3898
  %v3900 = vrot.slane %v3869, 6
  %v3901 = vsel %vm3872, %v3898, %v3900
  %v3902 = vrot.slane %v3870, 6
  %v3903 = vsel %vm3872, %v3900, %v3902
  %v3904 = vrot.slane %v3871, 6
  %v3905 = vsel %vm3872, %v3902, %v3904
  %3906 = vrot.lane.b32.xlu0 %v3873, 32
  %v3907 = vpop.permute.xlu0 %3906
  %3908 = vrot.lane.b32.xlu0 %v3875, 32
  %v3909 = vpop.permute.xlu0 %3908
  %3910 = vrot.lane.b32.xlu0 %v3877, 32
  %v3911 = vpop.permute.xlu0 %3910
  %3912 = vrot.lane.b32.xlu0 %v3879, 32
  %v3913 = vpop.permute.xlu0 %3912
  %3914 = vrot.lane.b32.xlu0 %v3881, 32
  %v3915 = vpop.permute.xlu0 %3914
  %3916 = vrot.lane.b32.xlu0 %v3883, 32
  %v3917 = vpop.permute.xlu0 %3916
  %3918 = vrot.lane.b32.xlu0 %v3885, 32
  %v3919 = vpop.permute.xlu0 %3918
  %3920 = vrot.lane.b32.xlu0 %v3887, 32
  %v3921 = vpop.permute.xlu0 %3920
  %3922 = vrot.lane.b32.xlu0 %v3889, 32
  %v3923 = vpop.permute.xlu0 %3922
  %3924 = vrot.lane.b32.xlu0 %v3891, 32
  %v3925 = vpop.permute.xlu0 %3924
  %3926 = vrot.lane.b32.xlu0 %v3893, 32
  %v3927 = vpop.permute.xlu0 %3926
  %3928 = vrot.lane.b32.xlu0 %v3895, 32
  %v3929 = vpop.permute.xlu0 %3928
  %3930 = vrot.lane.b32.xlu0 %v3897, 32
  %v3931 = vpop.permute.xlu0 %3930
  %3932 = vrot.lane.b32.xlu0 %v3899, 32
  %v3933 = vpop.permute.xlu0 %3932
  %3934 = vrot.lane.b32.xlu0 %v3901, 32
  %v3935 = vpop.permute.xlu0 %3934
  %3936 = vrot.lane.b32.xlu0 %v3903, 32
  %v3937 = vpop.permute.xlu0 %3936
  %3938 = vrot.lane.b32.xlu0 %v3905, 32
  %v3939 = vpop.permute.xlu0 %3938
  %v3973 = vunpack.c.l.b16 %v2463
  %v3974 = vunpack.c.l.b16 %v2464
  %v3975 = vunpack.c.l.b16 %v2465
  %v3976 = vunpack.c.l.b16 %v2466
  %v3977 = vunpack.c.l.b16 %v2467
  %v3978 = vunpack.c.l.b16 %v2468
  %v3979 = vunpack.c.l.b16 %v2469
  %v3980 = vunpack.c.l.b16 %v2470
  %v3981 = vunpack.c.l.b16 %v2471
  %v3982 = vunpack.c.l.b16 %v2472
  %v3983 = vunpack.c.l.b16 %v2473
  %v3984 = vunpack.c.l.b16 %v2474
  %v3985 = vunpack.c.l.b16 %v2475
  %v3986 = vunpack.c.l.b16 %v2476
  %v3987 = vunpack.c.l.b16 %v2477
  %v3988 = vunpack.c.l.b16 %v2478
  %v3989 = vunpack.c.l.b16 %v2479
  %v3990 = vunpack.c.l.b16 %v2480
  %v3991 = vunpack.c.l.b16 %v2481
  %v3992 = vunpack.c.l.b16 %v2482
  %v3993 = vunpack.c.l.b16 %v2483
  %v3994 = vunpack.c.l.b16 %v2484
  %v3995 = vunpack.c.l.b16 %v2485
  %v3996 = vunpack.c.l.b16 %v2486
  %v3997 = vunpack.c.l.b16 %v2487
  %v3998 = vunpack.c.l.b16 %v2488
  %v3999 = vunpack.c.l.b16 %v2489
  %v4000 = vunpack.c.l.b16 %v2490
  %v4001 = vunpack.c.l.b16 %v2491
  %v4002 = vunpack.c.l.b16 %v2492
  %v4003 = vunpack.c.l.b16 %v2493
  %v4004 = vunpack.c.l.b16 %v2494
  %v4005 = vunpack.c.l.b16 %v2495
  %v4006 = vpack.c.b16 %v3974, %v3973
  %v4007 = vpack.c.b16 %v3976, %v3975
  %v4008 = vpack.c.b16 %v3978, %v3977
  %v4009 = vpack.c.b16 %v3980, %v3979
  %v4010 = vpack.c.b16 %v3982, %v3981
  %v4011 = vpack.c.b16 %v3984, %v3983
  %v4012 = vpack.c.b16 %v3986, %v3985
  %v4013 = vpack.c.b16 %v3988, %v3987
  %v4014 = vpack.c.b16 %v3990, %v3989
  %v4015 = vpack.c.b16 %v3992, %v3991
  %v4016 = vpack.c.b16 %v3994, %v3993
  %v4017 = vpack.c.b16 %v3996, %v3995
  %v4018 = vpack.c.b16 %v3998, %v3997
  %v4019 = vpack.c.b16 %v4000, %v3999
  %v4020 = vpack.c.b16 %v4002, %v4001
  %v4021 = vpack.c.b16 %v4004, %v4003
  %v4022 = vpack.c.b16 %v4005, %v4005
  %v4024 = vshrl.u32 %v4006, 16
  %v4026 = vrot.slane %v4024, 6
  %v4027 = vshll.u32 %v4006, 16
  %v4029 = vrot.slane %v4027, 7
  %v4030 = vor.u32 %v4026, %v4029
  %v4032 = vshrl.u32 %v4007, 16
  %v4034 = vrot.slane %v4032, 6
  %v4035 = vshll.u32 %v4007, 16
  %v4037 = vrot.slane %v4035, 7
  %v4038 = vor.u32 %v4034, %v4037
  %v4039 = vsel %vm2657, %v4030, %v4038
  %v4041 = vshrl.u32 %v4008, 16
  %v4043 = vrot.slane %v4041, 6
  %v4044 = vshll.u32 %v4008, 16
  %v4046 = vrot.slane %v4044, 7
  %v4047 = vor.u32 %v4043, %v4046
  %v4048 = vsel %vm2657, %v4038, %v4047
  %v4050 = vshrl.u32 %v4009, 16
  %v4052 = vrot.slane %v4050, 6
  %v4053 = vshll.u32 %v4009, 16
  %v4055 = vrot.slane %v4053, 7
  %v4056 = vor.u32 %v4052, %v4055
  %v4057 = vsel %vm2657, %v4047, %v4056
  %v4059 = vshrl.u32 %v4010, 16
  %v4061 = vrot.slane %v4059, 6
  %v4062 = vshll.u32 %v4010, 16
  %v4064 = vrot.slane %v4062, 7
  %v4065 = vor.u32 %v4061, %v4064
  %v4066 = vsel %vm2657, %v4056, %v4065
  %v4068 = vshrl.u32 %v4011, 16
  %v4070 = vrot.slane %v4068, 6
  %v4071 = vshll.u32 %v4011, 16
  %v4073 = vrot.slane %v4071, 7
  %v4074 = vor.u32 %v4070, %v4073
  %v4075 = vsel %vm2657, %v4065, %v4074
  %v4077 = vshrl.u32 %v4012, 16
  %v4079 = vrot.slane %v4077, 6
  %v4080 = vshll.u32 %v4012, 16
  %v4082 = vrot.slane %v4080, 7
  %v4083 = vor.u32 %v4079, %v4082
  %v4084 = vsel %vm2657, %v4074, %v4083
  %v4086 = vshrl.u32 %v4013, 16
  %v4088 = vrot.slane %v4086, 6
  %v4089 = vshll.u32 %v4013, 16
  %v4091 = vrot.slane %v4089, 7
  %v4092 = vor.u32 %v4088, %v4091
  %v4093 = vsel %vm2657, %v4083, %v4092
  %v4095 = vshrl.u32 %v4014, 16
  %v4097 = vrot.slane %v4095, 6
  %v4098 = vshll.u32 %v4014, 16
  %v4100 = vrot.slane %v4098, 7
  %v4101 = vor.u32 %v4097, %v4100
  %v4102 = vsel %vm2657, %v4092, %v4101
  %v4104 = vshrl.u32 %v4015, 16
  %v4106 = vrot.slane %v4104, 6
  %v4107 = vshll.u32 %v4015, 16
  %v4109 = vrot.slane %v4107, 7
  %v4110 = vor.u32 %v4106, %v4109
  %v4111 = vsel %vm2657, %v4101, %v4110
  %v4113 = vshrl.u32 %v4016, 16
  %v4115 = vrot.slane %v4113, 6
  %v4116 = vshll.u32 %v4016, 16
  %v4118 = vrot.slane %v4116, 7
  %v4119 = vor.u32 %v4115, %v4118
  %v4120 = vsel %vm2657, %v4110, %v4119
  %v4122 = vshrl.u32 %v4017, 16
  %v4124 = vrot.slane %v4122, 6
  %v4125 = vshll.u32 %v4017, 16
  %v4127 = vrot.slane %v4125, 7
  %v4128 = vor.u32 %v4124, %v4127
  %v4129 = vsel %vm2657, %v4119, %v4128
  %v4131 = vshrl.u32 %v4018, 16
  %v4133 = vrot.slane %v4131, 6
  %v4134 = vshll.u32 %v4018, 16
  %v4136 = vrot.slane %v4134, 7
  %v4137 = vor.u32 %v4133, %v4136
  %v4138 = vsel %vm2657, %v4128, %v4137
  %v4140 = vshrl.u32 %v4019, 16
  %v4142 = vrot.slane %v4140, 6
  %v4143 = vshll.u32 %v4019, 16
  %v4145 = vrot.slane %v4143, 7
  %v4146 = vor.u32 %v4142, %v4145
  %v4147 = vsel %vm2657, %v4137, %v4146
  %v4149 = vshrl.u32 %v4020, 16
  %v4151 = vrot.slane %v4149, 6
  %v4152 = vshll.u32 %v4020, 16
  %v4154 = vrot.slane %v4152, 7
  %v4155 = vor.u32 %v4151, %v4154
  %v4156 = vsel %vm2657, %v4146, %v4155
  %v4158 = vshrl.u32 %v4021, 16
  %v4160 = vrot.slane %v4158, 6
  %v4161 = vshll.u32 %v4021, 16
  %v4163 = vrot.slane %v4161, 7
  %v4164 = vor.u32 %v4160, %v4163
  %v4165 = vsel %vm2657, %v4155, %v4164
  %v4167 = vshrl.u32 %v4022, 16
  %v4169 = vrot.slane %v4167, 6
  %v4170 = vshll.u32 %v4022, 16
  %v4172 = vrot.slane %v4170, 7
  %v4173 = vor.u32 %v4169, %v4172
  %v4174 = vsel %vm2657, %v4164, %v4173
  %4175 = vrot.lane.b32.xlu0 %v4030, 40
  %v4176 = vpop.permute.xlu0 %4175
  %4177 = vrot.lane.b32.xlu0 %v4039, 40
  %v4178 = vpop.permute.xlu0 %4177
  %4179 = vrot.lane.b32.xlu0 %v4048, 40
  %v4180 = vpop.permute.xlu0 %4179
  %4181 = vrot.lane.b32.xlu0 %v4057, 40
  %v4182 = vpop.permute.xlu0 %4181
  %4183 = vrot.lane.b32.xlu0 %v4066, 40
  %v4184 = vpop.permute.xlu0 %4183
  %4185 = vrot.lane.b32.xlu0 %v4075, 40
  %v4186 = vpop.permute.xlu0 %4185
  %4187 = vrot.lane.b32.xlu0 %v4084, 40
  %v4188 = vpop.permute.xlu0 %4187
  %4189 = vrot.lane.b32.xlu0 %v4093, 40
  %v4190 = vpop.permute.xlu0 %4189
  %4191 = vrot.lane.b32.xlu0 %v4102, 40
  %v4192 = vpop.permute.xlu0 %4191
  %4193 = vrot.lane.b32.xlu0 %v4111, 40
  %v4194 = vpop.permute.xlu0 %4193
  %4195 = vrot.lane.b32.xlu0 %v4120, 40
  %v4196 = vpop.permute.xlu0 %4195
  %4197 = vrot.lane.b32.xlu0 %v4129, 40
  %v4198 = vpop.permute.xlu0 %4197
  %4199 = vrot.lane.b32.xlu0 %v4138, 40
  %v4200 = vpop.permute.xlu0 %4199
  %4201 = vrot.lane.b32.xlu0 %v4147, 40
  %v4202 = vpop.permute.xlu0 %4201
  %4203 = vrot.lane.b32.xlu0 %v4156, 40
  %v4204 = vpop.permute.xlu0 %4203
  %4205 = vrot.lane.b32.xlu0 %v4165, 40
  %v4206 = vpop.permute.xlu0 %4205
  %4207 = vrot.lane.b32.xlu0 %v4174, 40
  %v4208 = vpop.permute.xlu0 %4207
  %v4242 = vunpack.c.l.b16 %v3012
  %v4243 = vunpack.c.l.b16 %v3013
  %v4244 = vunpack.c.l.b16 %v3014
  %v4245 = vunpack.c.l.b16 %v3015
  %v4246 = vunpack.c.l.b16 %v3016
  %v4247 = vunpack.c.l.b16 %v3017
  %v4248 = vunpack.c.l.b16 %v3018
  %v4249 = vunpack.c.l.b16 %v3019
  %v4250 = vunpack.c.l.b16 %v3020
  %v4251 = vunpack.c.l.b16 %v3021
  %v4252 = vunpack.c.l.b16 %v3022
  %v4253 = vunpack.c.l.b16 %v3023
  %v4254 = vunpack.c.l.b16 %v3024
  %v4255 = vunpack.c.l.b16 %v3025
  %v4256 = vunpack.c.l.b16 %v3026
  %v4257 = vunpack.c.l.b16 %v3027
  %v4258 = vunpack.c.l.b16 %v3028
  %v4259 = vunpack.c.l.b16 %v3029
  %v4260 = vunpack.c.l.b16 %v3030
  %v4261 = vunpack.c.l.b16 %v3031
  %v4262 = vunpack.c.l.b16 %v3032
  %v4263 = vunpack.c.l.b16 %v3033
  %v4264 = vunpack.c.l.b16 %v3034
  %v4265 = vunpack.c.l.b16 %v3035
  %v4266 = vunpack.c.l.b16 %v3036
  %v4267 = vunpack.c.l.b16 %v3037
  %v4268 = vunpack.c.l.b16 %v3038
  %v4269 = vunpack.c.l.b16 %v3039
  %v4270 = vunpack.c.l.b16 %v3040
  %v4271 = vunpack.c.l.b16 %v3041
  %v4272 = vunpack.c.l.b16 %v3042
  %v4273 = vunpack.c.l.b16 %v3043
  %v4274 = vunpack.c.l.b16 %v3044
  %v4275 = vpack.c.b16 %v4243, %v4242
  %v4276 = vpack.c.b16 %v4245, %v4244
  %v4277 = vpack.c.b16 %v4247, %v4246
  %v4278 = vpack.c.b16 %v4249, %v4248
  %v4279 = vpack.c.b16 %v4251, %v4250
  %v4280 = vpack.c.b16 %v4253, %v4252
  %v4281 = vpack.c.b16 %v4255, %v4254
  %v4282 = vpack.c.b16 %v4257, %v4256
  %v4283 = vpack.c.b16 %v4259, %v4258
  %v4284 = vpack.c.b16 %v4261, %v4260
  %v4285 = vpack.c.b16 %v4263, %v4262
  %v4286 = vpack.c.b16 %v4265, %v4264
  %v4287 = vpack.c.b16 %v4267, %v4266
  %v4288 = vpack.c.b16 %v4269, %v4268
  %v4289 = vpack.c.b16 %v4271, %v4270
  %v4290 = vpack.c.b16 %v4273, %v4272
  %v4291 = vpack.c.b16 %v4274, %v4274
  %v4292 = vrot.slane %v4275, 7
  %v4293 = vrot.slane %v4276, 7
  %v4294 = vsel %vm2332, %v4292, %v4293
  %v4295 = vrot.slane %v4277, 7
  %v4296 = vsel %vm2332, %v4293, %v4295
  %v4297 = vrot.slane %v4278, 7
  %v4298 = vsel %vm2332, %v4295, %v4297
  %v4299 = vrot.slane %v4279, 7
  %v4300 = vsel %vm2332, %v4297, %v4299
  %v4301 = vrot.slane %v4280, 7
  %v4302 = vsel %vm2332, %v4299, %v4301
  %v4303 = vrot.slane %v4281, 7
  %v4304 = vsel %vm2332, %v4301, %v4303
  %v4305 = vrot.slane %v4282, 7
  %v4306 = vsel %vm2332, %v4303, %v4305
  %v4307 = vrot.slane %v4283, 7
  %v4308 = vsel %vm2332, %v4305, %v4307
  %v4309 = vrot.slane %v4284, 7
  %v4310 = vsel %vm2332, %v4307, %v4309
  %v4311 = vrot.slane %v4285, 7
  %v4312 = vsel %vm2332, %v4309, %v4311
  %v4313 = vrot.slane %v4286, 7
  %v4314 = vsel %vm2332, %v4311, %v4313
  %v4315 = vrot.slane %v4287, 7
  %v4316 = vsel %vm2332, %v4313, %v4315
  %v4317 = vrot.slane %v4288, 7
  %v4318 = vsel %vm2332, %v4315, %v4317
  %v4319 = vrot.slane %v4289, 7
  %v4320 = vsel %vm2332, %v4317, %v4319
  %v4321 = vrot.slane %v4290, 7
  %v4322 = vsel %vm2332, %v4319, %v4321
  %v4323 = vrot.slane %v4291, 7
  %v4324 = vsel %vm2332, %v4321, %v4323
  %4325 = vrot.lane.b32.xlu0 %v4292, 48
  %v4326 = vpop.permute.xlu0 %4325
  %4327 = vrot.lane.b32.xlu0 %v4294, 48
  %v4328 = vpop.permute.xlu0 %4327
  %4329 = vrot.lane.b32.xlu0 %v4296, 48
  %v4330 = vpop.permute.xlu0 %4329
  %4331 = vrot.lane.b32.xlu0 %v4298, 48
  %v4332 = vpop.permute.xlu0 %4331
  %4333 = vrot.lane.b32.xlu0 %v4300, 48
  %v4334 = vpop.permute.xlu0 %4333
  %4335 = vrot.lane.b32.xlu0 %v4302, 48
  %v4336 = vpop.permute.xlu0 %4335
  %4337 = vrot.lane.b32.xlu0 %v4304, 48
  %v4338 = vpop.permute.xlu0 %4337
  %4339 = vrot.lane.b32.xlu0 %v4306, 48
  %v4340 = vpop.permute.xlu0 %4339
  %4341 = vrot.lane.b32.xlu0 %v4308, 48
  %v4342 = vpop.permute.xlu0 %4341
  %4343 = vrot.lane.b32.xlu0 %v4310, 48
  %v4344 = vpop.permute.xlu0 %4343
  %4345 = vrot.lane.b32.xlu0 %v4312, 48
  %v4346 = vpop.permute.xlu0 %4345
  %4347 = vrot.lane.b32.xlu0 %v4314, 48
  %v4348 = vpop.permute.xlu0 %4347
  %4349 = vrot.lane.b32.xlu0 %v4316, 48
  %v4350 = vpop.permute.xlu0 %4349
  %4351 = vrot.lane.b32.xlu0 %v4318, 48
  %v4352 = vpop.permute.xlu0 %4351
  %4353 = vrot.lane.b32.xlu0 %v4320, 48
  %v4354 = vpop.permute.xlu0 %4353
  %4355 = vrot.lane.b32.xlu0 %v4322, 48
  %v4356 = vpop.permute.xlu0 %4355
  %4357 = vrot.lane.b32.xlu0 %v4324, 48
  %v4358 = vpop.permute.xlu0 %4357
  %vm4359 = vcmask 64512
  %v4362 = vsel %vm4359, %v3111, %v3348
  %v4365 = vsel %vm4359, %v3112, %v3350
  %v4368 = vsel %vm4359, %v3113, %v3352
  %v4371 = vsel %vm4359, %v3114, %v3354
  %v4374 = vsel %vm4359, %v3115, %v3356
  %v4377 = vsel %vm4359, %v3116, %v3358
  %v4380 = vsel %vm4359, %v3117, %v3360
  %v4383 = vsel %vm4359, %v3118, %v3362
  %v4386 = vsel %vm4359, %v3119, %v3364
  %v4389 = vsel %vm4359, %v3120, %v3366
  %v4392 = vsel %vm4359, %v3121, %v3368
  %v4395 = vsel %vm4359, %v3122, %v3370
  %v4398 = vsel %vm4359, %v3123, %v3372
  %v4401 = vsel %vm4359, %v3124, %v3374
  %v4404 = vsel %vm4359, %v3125, %v3376
  %v4407 = vsel %vm4359, %v3126, %v3378
  %v4410 = vsel %vm4359, %v3127, %v3380
  %vm4411 = vcmask 130048
  %v4413 = vsel %vm4411, %v4362, %v3499
  %v4415 = vsel %vm4411, %v4365, %v3501
  %v4417 = vsel %vm4411, %v4368, %v3503
  %v4419 = vsel %vm4411, %v4371, %v3505
  %v4421 = vsel %vm4411, %v4374, %v3507
  %v4423 = vsel %vm4411, %v4377, %v3509
  %v4425 = vsel %vm4411, %v4380, %v3511
  %v4427 = vsel %vm4411, %v4383, %v3513
  %v4429 = vsel %vm4411, %v4386, %v3515
  %v4431 = vsel %vm4411, %v4389, %v3517
  %v4433 = vsel %vm4411, %v4392, %v3519
  %v4435 = vsel %vm4411, %v4395, %v3521
  %v4437 = vsel %vm4411, %v4398, %v3523
  %v4439 = vsel %vm4411, %v4401, %v3525
  %v4441 = vsel %vm4411, %v4404, %v3527
  %v4443 = vsel %vm4411, %v4407, %v3529
  %v4445 = vsel %vm4411, %v4410, %v3531
  %vm4446 = vcmask 195584
  %v4448 = vsel %vm4446, %v4413, %v3756
  %v4450 = vsel %vm4446, %v4415, %v3758
  %v4452 = vsel %vm4446, %v4417, %v3760
  %v4454 = vsel %vm4446, %v4419, %v3762
  %v4456 = vsel %vm4446, %v4421, %v3764
  %v4458 = vsel %vm4446, %v4423, %v3766
  %v4460 = vsel %vm4446, %v4425, %v3768
  %v4462 = vsel %vm4446, %v4427, %v3770
  %v4464 = vsel %vm4446, %v4429, %v3772
  %v4466 = vsel %vm4446, %v4431, %v3774
  %v4468 = vsel %vm4446, %v4433, %v3776
  %v4470 = vsel %vm4446, %v4435, %v3778
  %v4472 = vsel %vm4446, %v4437, %v3780
  %v4474 = vsel %vm4446, %v4439, %v3782
  %v4476 = vsel %vm4446, %v4441, %v3784
  %v4478 = vsel %vm4446, %v4443, %v3786
  %v4480 = vsel %vm4446, %v4445, %v3788
  %vm4481 = vcmask 261120
  %v4483 = vsel %vm4481, %v4448, %v3907
  %v4485 = vsel %vm4481, %v4450, %v3909
  %v4487 = vsel %vm4481, %v4452, %v3911
  %v4489 = vsel %vm4481, %v4454, %v3913
  %v4491 = vsel %vm4481, %v4456, %v3915
  %v4493 = vsel %vm4481, %v4458, %v3917
  %v4495 = vsel %vm4481, %v4460, %v3919
  %v4497 = vsel %vm4481, %v4462, %v3921
  %v4499 = vsel %vm4481, %v4464, %v3923
  %v4501 = vsel %vm4481, %v4466, %v3925
  %v4503 = vsel %vm4481, %v4468, %v3927
  %v4505 = vsel %vm4481, %v4470, %v3929
  %v4507 = vsel %vm4481, %v4472, %v3931
  %v4509 = vsel %vm4481, %v4474, %v3933
  %v4511 = vsel %vm4481, %v4476, %v3935
  %v4513 = vsel %vm4481, %v4478, %v3937
  %v4515 = vsel %vm4481, %v4480, %v3939
  %vm4516 = vcmask 326656
  %v4518 = vsel %vm4516, %v4483, %v4176
  %v4520 = vsel %vm4516, %v4485, %v4178
  %v4522 = vsel %vm4516, %v4487, %v4180
  %v4524 = vsel %vm4516, %v4489, %v4182
  %v4526 = vsel %vm4516, %v4491, %v4184
  %v4528 = vsel %vm4516, %v4493, %v4186
  %v4530 = vsel %vm4516, %v4495, %v4188
  %v4532 = vsel %vm4516, %v4497, %v4190
  %v4534 = vsel %vm4516, %v4499, %v4192
  %v4536 = vsel %vm4516, %v4501, %v4194
  %v4538 = vsel %vm4516, %v4503, %v4196
  %v4540 = vsel %vm4516, %v4505, %v4198
  %v4542 = vsel %vm4516, %v4507, %v4200
  %v4544 = vsel %vm4516, %v4509, %v4202
  %v4546 = vsel %vm4516, %v4511, %v4204
  %v4548 = vsel %vm4516, %v4513, %v4206
  %v4550 = vsel %vm4516, %v4515, %v4208
  %vm4551 = vcmask 392192
  %v4553 = vsel %vm4551, %v4518, %v4326
  %v4555 = vsel %vm4551, %v4520, %v4328
  %v4557 = vsel %vm4551, %v4522, %v4330
  %v4559 = vsel %vm4551, %v4524, %v4332
  %v4561 = vsel %vm4551, %v4526, %v4334
  %v4563 = vsel %vm4551, %v4528, %v4336
  %v4565 = vsel %vm4551, %v4530, %v4338
  %v4567 = vsel %vm4551, %v4532, %v4340
  %v4569 = vsel %vm4551, %v4534, %v4342
  %v4571 = vsel %vm4551, %v4536, %v4344
  %v4573 = vsel %vm4551, %v4538, %v4346
  %v4575 = vsel %vm4551, %v4540, %v4348
  %v4577 = vsel %vm4551, %v4542, %v4350
  %v4579 = vsel %vm4551, %v4544, %v4352
  %v4581 = vsel %vm4551, %v4546, %v4354
  %v4583 = vsel %vm4551, %v4548, %v4356
  %v4585 = vsel %vm4551, %v4550, %v4358
  %v4586 = vld [vmem:[%s1] sm:$0xf]
  %v4587 = vld [vmem:[%s1 + $0x4] sm:$0xf]
  %v4588 = vld [vmem:[%s1 + $0x8] sm:$0xf]
  %v4589 = vld [vmem:[%s1 + $0xc] sm:$0xf]
  %v4590 = vld [vmem:[%s1 + $0x10] sm:$0xf]
  %v4591 = vld [vmem:[%s1 + $0x14] sm:$0xf]
  %v4592 = vld [vmem:[%s1 + $0x18] sm:$0xf]
  %vm4593 = vsmask.f32 5376
  %v4594 = vshrl.u32 %v4553, 16
  %v4596 = vrot.slane %v4594, 2
  %v4597 = vshll.u32 %v4553, 16
  %v4599 = vrot.slane %v4597, 3
  %v4600 = vor.u32 %v4596, %v4599
  %v4601 = vshrl.u32 %v4555, 16
  %v4603 = vrot.slane %v4601, 2
  %v4604 = vshll.u32 %v4555, 16
  %v4606 = vrot.slane %v4604, 3
  %v4607 = vor.u32 %v4603, %v4606
  %v4608 = vsel %vm4593, %v4600, %v4607
  %v4609 = vshrl.u32 %v4557, 16
  %v4611 = vrot.slane %v4609, 2
  %v4612 = vshll.u32 %v4557, 16
  %v4614 = vrot.slane %v4612, 3
  %v4615 = vor.u32 %v4611, %v4614
  %v4616 = vsel %vm4593, %v4607, %v4615
  %v4617 = vshrl.u32 %v4559, 16
  %v4619 = vrot.slane %v4617, 2
  %v4620 = vshll.u32 %v4559, 16
  %v4622 = vrot.slane %v4620, 3
  %v4623 = vor.u32 %v4619, %v4622
  %v4624 = vsel %vm4593, %v4615, %v4623
  %v4625 = vshrl.u32 %v4561, 16
  %v4627 = vrot.slane %v4625, 2
  %v4628 = vshll.u32 %v4561, 16
  %v4630 = vrot.slane %v4628, 3
  %v4631 = vor.u32 %v4627, %v4630
  %v4632 = vsel %vm4593, %v4623, %v4631
  %v4633 = vshrl.u32 %v4563, 16
  %v4635 = vrot.slane %v4633, 2
  %v4636 = vshll.u32 %v4563, 16
  %v4638 = vrot.slane %v4636, 3
  %v4639 = vor.u32 %v4635, %v4638
  %v4640 = vsel %vm4593, %v4631, %v4639
  %v4641 = vshrl.u32 %v4565, 16
  %v4643 = vrot.slane %v4641, 2
  %v4644 = vshll.u32 %v4565, 16
  %v4646 = vrot.slane %v4644, 3
  %v4647 = vor.u32 %v4643, %v4646
  %v4648 = vsel %vm4593, %v4639, %v4647
  %v4649 = vshrl.u32 %v4567, 16
  %v4651 = vrot.slane %v4649, 2
  %v4652 = vshll.u32 %v4567, 16
  %v4654 = vrot.slane %v4652, 3
  %v4655 = vor.u32 %v4651, %v4654
  %v4656 = vsel %vm4593, %v4647, %v4655
  %v4657 = vshrl.u32 %v4569, 16
  %v4659 = vrot.slane %v4657, 2
  %v4660 = vshll.u32 %v4569, 16
  %v4662 = vrot.slane %v4660, 3
  %v4663 = vor.u32 %v4659, %v4662
  %v4664 = vsel %vm4593, %v4655, %v4663
  %v4665 = vshrl.u32 %v4571, 16
  %v4667 = vrot.slane %v4665, 2
  %v4668 = vshll.u32 %v4571, 16
  %v4670 = vrot.slane %v4668, 3
  %v4671 = vor.u32 %v4667, %v4670
  %v4672 = vsel %vm4593, %v4663, %v4671
  %v4673 = vshrl.u32 %v4573, 16
  %v4675 = vrot.slane %v4673, 2
  %v4676 = vshll.u32 %v4573, 16
  %v4678 = vrot.slane %v4676, 3
  %v4679 = vor.u32 %v4675, %v4678
  %v4680 = vsel %vm4593, %v4671, %v4679
  %v4681 = vshrl.u32 %v4575, 16
  %v4683 = vrot.slane %v4681, 2
  %v4684 = vshll.u32 %v4575, 16
  %v4686 = vrot.slane %v4684, 3
  %v4687 = vor.u32 %v4683, %v4686
  %v4688 = vsel %vm4593, %v4679, %v4687
  %v4689 = vshrl.u32 %v4577, 16
  %v4691 = vrot.slane %v4689, 2
  %v4692 = vshll.u32 %v4577, 16
  %v4694 = vrot.slane %v4692, 3
  %v4695 = vor.u32 %v4691, %v4694
  %v4696 = vsel %vm4593, %v4687, %v4695
  %v4697 = vshrl.u32 %v4579, 16
  %v4699 = vrot.slane %v4697, 2
  %v4700 = vshll.u32 %v4579, 16
  %v4702 = vrot.slane %v4700, 3
  %v4703 = vor.u32 %v4699, %v4702
  %v4704 = vsel %vm4593, %v4695, %v4703
  %v4705 = vshrl.u32 %v4581, 16
  %v4707 = vrot.slane %v4705, 2
  %v4708 = vshll.u32 %v4581, 16
  %v4710 = vrot.slane %v4708, 3
  %v4711 = vor.u32 %v4707, %v4710
  %v4712 = vsel %vm4593, %v4703, %v4711
  %v4713 = vshrl.u32 %v4583, 16
  %v4715 = vrot.slane %v4713, 2
  %v4716 = vshll.u32 %v4583, 16
  %v4718 = vrot.slane %v4716, 3
  %v4719 = vor.u32 %v4715, %v4718
  %v4720 = vsel %vm4593, %v4711, %v4719
  %v4721 = vshrl.u32 %v4585, 16
  %v4723 = vrot.slane %v4721, 2
  %v4724 = vshll.u32 %v4585, 16
  %v4726 = vrot.slane %v4724, 3
  %v4727 = vor.u32 %v4723, %v4726
  %v4728 = vsel %vm4593, %v4719, %v4727
  %v4736 = vunpack.c.l.b16 %v4586
  %v4737 = vunpack.c.l.b16 %v4587
  %v4738 = vunpack.c.l.b16 %v4588
  %v4739 = vunpack.c.l.b16 %v4589
  %v4740 = vunpack.c.l.b16 %v4590
  %v4741 = vunpack.c.l.b16 %v4591
  %v4742 = vunpack.c.l.b16 %v4592
  %v4743 = vpack.c.b16 %v4737, %v4736
  %v4744 = vpack.c.b16 %v4739, %v4738
  %v4745 = vpack.c.b16 %v4741, %v4740
  %v4746 = vpack.c.b16 %v4742, %v4742
  %vm4750 = vcmask 457728
  %v4752 = vsel %vm4750, %v4608, 0
  %v4755 = vsel %vm4750, %v4616, 0
  %v4758 = vsel %vm4750, %v4624, 0
  %v4761 = vsel %vm4750, %v4632, 0
  %v4764 = vsel %vm4750, %v4640, 0
  %v4767 = vsel %vm4750, %v4648, 0
  %v4770 = vsel %vm4750, %v4656, 0
  %v4773 = vsel %vm4750, %v4664, 0
  %v4776 = vsel %vm4750, %v4672, 0
  %v4779 = vsel %vm4750, %v4680, 0
  %v4782 = vsel %vm4750, %v4688, 0
  %v4785 = vsel %vm4750, %v4696, 0
  %v4788 = vsel %vm4750, %v4704, 0
  %v4791 = vsel %vm4750, %v4712, 0
  %v4794 = vsel %vm4750, %v4720, 0
  %v4797 = vsel %vm4750, %v4728, 0
  %vm4799 = vcmask 1043456
  %v4801 = vsel %vm4799, %v4746, 0
  %4803 = vmatprep.subr.bf16.mxu0 0
  %4804 = vmatpush1.bf16.msra.mxu0 0
  %4805 = vmatprep.subr.bf16.mxu0 0
  %4806 = vmatpush1.bf16.msra.mxu0 0
  %4807 = vmatprep.subr.bf16.mxu0 0
  %4808 = vmatpush1.bf16.msra.mxu0 0
  %4809 = vmatprep.subr.bf16.mxu0 0
  %4810 = vmatpush1.bf16.msra.mxu0 0
  %4811 = vmatprep.subr.bf16.mxu0 0
  %4812 = vmatpush1.bf16.msra.mxu0 %v4801
  %4813 = vmatprep.subr.bf16.mxu0 0
  %4814 = vmatpush1.bf16.msra.mxu0 %v4745
  %4815 = vmatprep.subr.bf16.mxu0 0
  %4816 = vmatpush1.bf16.msra.mxu0 %v4744
  %4817 = vmatprep.subr.bf16.mxu0 0
  %4818 = vmatpush1.bf16.msra.mxu0 %v4743
  %4819 = vmatprep.subr.bf16.mxu0 0
  %4820 = vmatpush2.bf16.msra.mxu0 0
  %4821 = vmatprep.subr.bf16.mxu0 0
  %4822 = vmatpush2.bf16.msra.mxu0 0
  %4823 = vmatprep.subr.bf16.mxu0 0
  %4824 = vmatpush2.bf16.msra.mxu0 0
  %4825 = vmatprep.subr.bf16.mxu0 0
  %4826 = vmatpush2.bf16.msra.mxu0 0
  %4827 = vmatprep.subr.bf16.mxu0 0
  %4828 = vmatpush2.bf16.msra.mxu0 0
  %4829 = vmatprep.subr.bf16.mxu0 0
  %4830 = vmatpush2.bf16.msra.mxu0 0
  %4831 = vmatprep.subr.bf16.mxu0 0
  %4832 = vmatpush2.bf16.msra.mxu0 0
  %4833 = vmatprep.subr.bf16.mxu0 0
  %4834 = vmatpush2.bf16.msra.mxu0 0
  %4835 = vmatprep.mubr.bf16.mxu0 0
  %4836 = vmatmul.mubr.bf16.gmra.mxu0 %v4752
  %v4837 = vpop.f32.mrf.mxu0
  %v4838 = vadd.f32 0.0, %v4837
  %v4839 = vpop.f32.mrf.mxu0
  %v4840 = vpop.f32.mrf.mxu0
  %v4841 = vadd.f32 0.0, %v4840
  %v4842 = vpop.f32.mrf.mxu0
  %4843 = vmatprep.mubr.bf16.mxu0 0
  %4844 = vmatmul.mubr.bf16.gmra.mxu0 %v4755
  %v4845 = vpop.f32.mrf.mxu0
  %v4846 = vadd.f32 0.0, %v4845
  %v4847 = vpop.f32.mrf.mxu0
  %v4848 = vpop.f32.mrf.mxu0
  %v4849 = vadd.f32 0.0, %v4848
  %v4850 = vpop.f32.mrf.mxu0
  %4851 = vmatprep.mubr.bf16.mxu0 0
  %4852 = vmatmul.mubr.bf16.gmra.mxu0 %v4758
  %v4853 = vpop.f32.mrf.mxu0
  %v4854 = vadd.f32 0.0, %v4853
  %v4855 = vpop.f32.mrf.mxu0
  %v4856 = vpop.f32.mrf.mxu0
  %v4857 = vadd.f32 0.0, %v4856
  %v4858 = vpop.f32.mrf.mxu0
  %4859 = vmatprep.mubr.bf16.mxu0 0
  %4860 = vmatmul.mubr.bf16.gmra.mxu0 %v4761
  %v4861 = vpop.f32.mrf.mxu0
  %v4862 = vadd.f32 0.0, %v4861
  %v4863 = vpop.f32.mrf.mxu0
  %v4864 = vpop.f32.mrf.mxu0
  %v4865 = vadd.f32 0.0, %v4864
  %v4866 = vpop.f32.mrf.mxu0
  %4867 = vmatprep.mubr.bf16.mxu0 0
  %4868 = vmatmul.mubr.bf16.gmra.mxu0 %v4764
  %v4869 = vpop.f32.mrf.mxu0
  %v4870 = vadd.f32 0.0, %v4869
  %v4871 = vpop.f32.mrf.mxu0
  %v4872 = vpop.f32.mrf.mxu0
  %v4873 = vadd.f32 0.0, %v4872
  %v4874 = vpop.f32.mrf.mxu0
  %4875 = vmatprep.mubr.bf16.mxu0 0
  %4876 = vmatmul.mubr.bf16.gmra.mxu0 %v4767
  %v4877 = vpop.f32.mrf.mxu0
  %v4878 = vadd.f32 0.0, %v4877
  %v4879 = vpop.f32.mrf.mxu0
  %v4880 = vpop.f32.mrf.mxu0
  %v4881 = vadd.f32 0.0, %v4880
  %v4882 = vpop.f32.mrf.mxu0
  %4883 = vmatprep.mubr.bf16.mxu0 0
  %4884 = vmatmul.mubr.bf16.gmra.mxu0 %v4770
  %v4885 = vpop.f32.mrf.mxu0
  %v4886 = vadd.f32 0.0, %v4885
  %v4887 = vpop.f32.mrf.mxu0
  %v4888 = vpop.f32.mrf.mxu0
  %v4889 = vadd.f32 0.0, %v4888
  %v4890 = vpop.f32.mrf.mxu0
  %4891 = vmatprep.mubr.bf16.mxu0 0
  %4892 = vmatmul.mubr.bf16.gmra.mxu0 %v4773
  %v4893 = vpop.f32.mrf.mxu0
  %v4894 = vadd.f32 0.0, %v4893
  %v4895 = vpop.f32.mrf.mxu0
  %v4896 = vpop.f32.mrf.mxu0
  %v4897 = vadd.f32 0.0, %v4896
  %v4898 = vpop.f32.mrf.mxu0
  %4899 = vmatprep.mubr.bf16.mxu0 0
  %4900 = vmatmul.mubr.bf16.gmra.mxu0 %v4776
  %v4901 = vpop.f32.mrf.mxu0
  %v4902 = vadd.f32 0.0, %v4901
  %v4903 = vpop.f32.mrf.mxu0
  %v4904 = vpop.f32.mrf.mxu0
  %v4905 = vadd.f32 0.0, %v4904
  %v4906 = vpop.f32.mrf.mxu0
  %4907 = vmatprep.mubr.bf16.mxu0 0
  %4908 = vmatmul.mubr.bf16.gmra.mxu0 %v4779
  %v4909 = vpop.f32.mrf.mxu0
  %v4910 = vadd.f32 0.0, %v4909
  %v4911 = vpop.f32.mrf.mxu0
  %v4912 = vpop.f32.mrf.mxu0
  %v4913 = vadd.f32 0.0, %v4912
  %v4914 = vpop.f32.mrf.mxu0
  %4915 = vmatprep.mubr.bf16.mxu0 0
  %4916 = vmatmul.mubr.bf16.gmra.mxu0 %v4782
  %v4917 = vpop.f32.mrf.mxu0
  %v4918 = vadd.f32 0.0, %v4917
  %v4919 = vpop.f32.mrf.mxu0
  %v4920 = vpop.f32.mrf.mxu0
  %v4921 = vadd.f32 0.0, %v4920
  %v4922 = vpop.f32.mrf.mxu0
  %4923 = vmatprep.mubr.bf16.mxu0 0
  %4924 = vmatmul.mubr.bf16.gmra.mxu0 %v4785
  %v4925 = vpop.f32.mrf.mxu0
  %v4926 = vadd.f32 0.0, %v4925
  %v4927 = vpop.f32.mrf.mxu0
  %v4928 = vpop.f32.mrf.mxu0
  %v4929 = vadd.f32 0.0, %v4928
  %v4930 = vpop.f32.mrf.mxu0
  %4931 = vmatprep.mubr.bf16.mxu0 0
  %4932 = vmatmul.mubr.bf16.gmra.mxu0 %v4788
  %v4933 = vpop.f32.mrf.mxu0
  %v4934 = vadd.f32 0.0, %v4933
  %v4935 = vpop.f32.mrf.mxu0
  %v4936 = vpop.f32.mrf.mxu0
  %v4937 = vadd.f32 0.0, %v4936
  %v4938 = vpop.f32.mrf.mxu0
  %4939 = vmatprep.mubr.bf16.mxu0 0
  %4940 = vmatmul.mubr.bf16.gmra.mxu0 %v4791
  %v4941 = vpop.f32.mrf.mxu0
  %v4942 = vadd.f32 0.0, %v4941
  %v4943 = vpop.f32.mrf.mxu0
  %v4944 = vpop.f32.mrf.mxu0
  %v4945 = vadd.f32 0.0, %v4944
  %v4946 = vpop.f32.mrf.mxu0
  %4947 = vmatprep.mubr.bf16.mxu0 0
  %4948 = vmatmul.mubr.bf16.gmra.mxu0 %v4794
  %v4949 = vpop.f32.mrf.mxu0
  %v4950 = vadd.f32 0.0, %v4949
  %v4951 = vpop.f32.mrf.mxu0
  %v4952 = vpop.f32.mrf.mxu0
  %v4953 = vadd.f32 0.0, %v4952
  %v4954 = vpop.f32.mrf.mxu0
  %4955 = vmatprep.mubr.bf16.mxu0 0
  %4956 = vmatmul.mubr.bf16.gmra.mxu0 %v4797
  %v4957 = vpop.f32.mrf.mxu0
  %v4958 = vadd.f32 0.0, %v4957
  %v4959 = vpop.f32.mrf.mxu0
  %v4960 = vpop.f32.mrf.mxu0
  %v4961 = vadd.f32 0.0, %v4960
  %v4962 = vpop.f32.mrf.mxu0
  %4963 = vdwg.mxu0
  %v4964 = vld [vmem:[%s2] sm:$0x1]
  %v4966 = vlaneseq
  %v4967 = vshrl.u32 %v4966, 7
  %v4968 = vsub.s32 0, %v4967
  %v4969 = vrot.slane %v4964, %v4968
  %v4971 = vmul.f32 %v4838, %v4969
  %v4972 = vmul.f32 %v4841, %v4969
  %v4973 = vmul.f32 %v4846, %v4969
  %v4974 = vmul.f32 %v4849, %v4969
  %v4975 = vmul.f32 %v4854, %v4969
  %v4976 = vmul.f32 %v4857, %v4969
  %v4977 = vmul.f32 %v4862, %v4969
  %v4978 = vmul.f32 %v4865, %v4969
  %v4979 = vmul.f32 %v4870, %v4969
  %v4980 = vmul.f32 %v4873, %v4969
  %v4981 = vmul.f32 %v4878, %v4969
  %v4982 = vmul.f32 %v4881, %v4969
  %v4983 = vmul.f32 %v4886, %v4969
  %v4984 = vmul.f32 %v4889, %v4969
  %v4985 = vmul.f32 %v4894, %v4969
  %v4986 = vmul.f32 %v4897, %v4969
  %v4987 = vmul.f32 %v4902, %v4969
  %v4988 = vmul.f32 %v4905, %v4969
  %v4989 = vmul.f32 %v4910, %v4969
  %v4990 = vmul.f32 %v4913, %v4969
  %v4991 = vmul.f32 %v4918, %v4969
  %v4992 = vmul.f32 %v4921, %v4969
  %v4993 = vmul.f32 %v4926, %v4969
  %v4994 = vmul.f32 %v4929, %v4969
  %v4995 = vmul.f32 %v4934, %v4969
  %v4996 = vmul.f32 %v4937, %v4969
  %v4997 = vmul.f32 %v4942, %v4969
  %v4998 = vmul.f32 %v4945, %v4969
  %v4999 = vmul.f32 %v4950, %v4969
  %v5000 = vmul.f32 %v4953, %v4969
  %v5001 = vmul.f32 %v4958, %v4969
  %v5002 = vmul.f32 %v4961, %v4969
  %v5003 = vld [vmem:[%s3] sm:$0x1]
  %v5005 = vlaneseq
  %v5006 = vshrl.u32 %v5005, 7
  %v5007 = vsub.s32 0, %v5006
  %v5008 = vrot.slane %v5003, %v5007
  %v5010 = vadd.f32 %v4971, %v5008
  %v5011 = vadd.f32 %v4972, %v5008
  %v5012 = vadd.f32 %v4973, %v5008
  %v5013 = vadd.f32 %v4974, %v5008
  %v5014 = vadd.f32 %v4975, %v5008
  %v5015 = vadd.f32 %v4976, %v5008
  %v5016 = vadd.f32 %v4977, %v5008
  %v5017 = vadd.f32 %v4978, %v5008
  %v5018 = vadd.f32 %v4979, %v5008
  %v5019 = vadd.f32 %v4980, %v5008
  %v5020 = vadd.f32 %v4981, %v5008
  %v5021 = vadd.f32 %v4982, %v5008
  %v5022 = vadd.f32 %v4983, %v5008
  %v5023 = vadd.f32 %v4984, %v5008
  %v5024 = vadd.f32 %v4985, %v5008
  %v5025 = vadd.f32 %v4986, %v5008
  %v5026 = vadd.f32 %v4987, %v5008
  %v5027 = vadd.f32 %v4988, %v5008
  %v5028 = vadd.f32 %v4989, %v5008
  %v5029 = vadd.f32 %v4990, %v5008
  %v5030 = vadd.f32 %v4991, %v5008
  %v5031 = vadd.f32 %v4992, %v5008
  %v5032 = vadd.f32 %v4993, %v5008
  %v5033 = vadd.f32 %v4994, %v5008
  %v5034 = vadd.f32 %v4995, %v5008
  %v5035 = vadd.f32 %v4996, %v5008
  %v5036 = vadd.f32 %v4997, %v5008
  %v5037 = vadd.f32 %v4998, %v5008
  %v5038 = vadd.f32 %v4999, %v5008
  %v5039 = vadd.f32 %v5000, %v5008
  %v5040 = vadd.f32 %v5001, %v5008
  %v5041 = vadd.f32 %v5002, %v5008
  %v5042 = vmax.f32 %v5010, 0.0
  %v5043 = vmax.f32 %v5011, 0.0
  %v5044 = vmax.f32 %v5012, 0.0
  %v5045 = vmax.f32 %v5013, 0.0
  %v5046 = vmax.f32 %v5014, 0.0
  %v5047 = vmax.f32 %v5015, 0.0
  %v5048 = vmax.f32 %v5016, 0.0
  %v5049 = vmax.f32 %v5017, 0.0
  %v5050 = vmax.f32 %v5018, 0.0
  %v5051 = vmax.f32 %v5019, 0.0
  %v5052 = vmax.f32 %v5020, 0.0
  %v5053 = vmax.f32 %v5021, 0.0
  %v5054 = vmax.f32 %v5022, 0.0
  %v5055 = vmax.f32 %v5023, 0.0
  %v5056 = vmax.f32 %v5024, 0.0
  %v5057 = vmax.f32 %v5025, 0.0
  %v5058 = vmax.f32 %v5026, 0.0
  %v5059 = vmax.f32 %v5027, 0.0
  %v5060 = vmax.f32 %v5028, 0.0
  %v5061 = vmax.f32 %v5029, 0.0
  %v5062 = vmax.f32 %v5030, 0.0
  %v5063 = vmax.f32 %v5031, 0.0
  %v5064 = vmax.f32 %v5032, 0.0
  %v5065 = vmax.f32 %v5033, 0.0
  %v5066 = vmax.f32 %v5034, 0.0
  %v5067 = vmax.f32 %v5035, 0.0
  %v5068 = vmax.f32 %v5036, 0.0
  %v5069 = vmax.f32 %v5037, 0.0
  %v5070 = vmax.f32 %v5038, 0.0
  %v5071 = vmax.f32 %v5039, 0.0
  %v5072 = vmax.f32 %v5040, 0.0
  %v5073 = vmax.f32 %v5041, 0.0
  %5074 = vst.msk [vmem:[#allocation8] sm:$0xff] %vm4359, %v5042
  %5075 = vst.msk [vmem:[#allocation8 + $0x8] sm:$0xff] %vm4359, %v5043
  %5076 = vst.msk [vmem:[#allocation8 + $0x10] sm:$0xff] %vm4359, %v5044
  %5077 = vst.msk [vmem:[#allocation8 + $0x18] sm:$0xff] %vm4359, %v5045
  %5078 = vst.msk [vmem:[#allocation8 + $0x20] sm:$0xff] %vm4359, %v5046
  %5079 = vst.msk [vmem:[#allocation8 + $0x28] sm:$0xff] %vm4359, %v5047
  %5080 = vst.msk [vmem:[#allocation8 + $0x30] sm:$0xff] %vm4359, %v5048
  %5081 = vst.msk [vmem:[#allocation8 + $0x38] sm:$0xff] %vm4359, %v5049
  %5082 = vst.msk [vmem:[#allocation8 + $0x40] sm:$0xff] %vm4359, %v5050
  %5083 = vst.msk [vmem:[#allocation8 + $0x48] sm:$0xff] %vm4359, %v5051
  %5084 = vst.msk [vmem:[#allocation8 + $0x50] sm:$0xff] %vm4359, %v5052
  %5085 = vst.msk [vmem:[#allocation8 + $0x58] sm:$0xff] %vm4359, %v5053
  %5086 = vst.msk [vmem:[#allocation8 + $0x60] sm:$0xff] %vm4359, %v5054
  %5087 = vst.msk [vmem:[#allocation8 + $0x68] sm:$0xff] %vm4359, %v5055
  %5088 = vst.msk [vmem:[#allocation8 + $0x70] sm:$0xff] %vm4359, %v5056
  %5089 = vst.msk [vmem:[#allocation8 + $0x78] sm:$0xff] %vm4359, %v5057
  %5090 = vst.msk [vmem:[#allocation8 + $0x80] sm:$0xff] %vm4359, %v5058
  %5091 = vst.msk [vmem:[#allocation8 + $0x88] sm:$0xff] %vm4359, %v5059
  %5092 = vst.msk [vmem:[#allocation8 + $0x90] sm:$0xff] %vm4359, %v5060
  %5093 = vst.msk [vmem:[#allocation8 + $0x98] sm:$0xff] %vm4359, %v5061
  %5094 = vst.msk [vmem:[#allocation8 + $0xa0] sm:$0xff] %vm4359, %v5062
  %5095 = vst.msk [vmem:[#allocation8 + $0xa8] sm:$0xff] %vm4359, %v5063
  %5096 = vst.msk [vmem:[#allocation8 + $0xb0] sm:$0xff] %vm4359, %v5064
  %5097 = vst.msk [vmem:[#allocation8 + $0xb8] sm:$0xff] %vm4359, %v5065
  %5098 = vst.msk [vmem:[#allocation8 + $0xc0] sm:$0xff] %vm4359, %v5066
  %5099 = vst.msk [vmem:[#allocation8 + $0xc8] sm:$0xff] %vm4359, %v5067
  %5100 = vst.msk [vmem:[#allocation8 + $0xd0] sm:$0xff] %vm4359, %v5068
  %5101 = vst.msk [vmem:[#allocation8 + $0xd8] sm:$0xff] %vm4359, %v5069
  %5102 = vst.msk [vmem:[#allocation8 + $0xe0] sm:$0xff] %vm4359, %v5070
  %5103 = vst.msk [vmem:[#allocation8 + $0xe8] sm:$0xff] %vm4359, %v5071
  %5104 = vst.msk [vmem:[#allocation8 + $0xf0] sm:$0xff] %vm4359, %v5072
  %5105 = vst.msk [vmem:[#allocation8 + $0xf8] sm:$0xff] %vm4359, %v5073
  %v5106 = vld [vmem:[#allocation8] ss:$4 sm:$0xff]
  %s5107 = scalar_lea.vmem [#allocation8], 32
  %v5108 = vld [vmem:[%s5107] ss:$4 sm:$0xff]
  %s5109 = scalar_lea.vmem [#allocation8], 64
  %v5110 = vld [vmem:[%s5109] ss:$4 sm:$0xff]
  %s5111 = scalar_lea.vmem [#allocation8], 96
  %v5112 = vld [vmem:[%s5111] ss:$4 sm:$0xff]
  %s5113 = scalar_lea.vmem [#allocation8], 128
  %v5114 = vld [vmem:[%s5113] ss:$4 sm:$0xff]
  %s5115 = scalar_lea.vmem [#allocation8], 160
  %v5116 = vld [vmem:[%s5115] ss:$4 sm:$0xff]
  %s5117 = scalar_lea.vmem [#allocation8], 192
  %v5118 = vld [vmem:[%s5117] ss:$4 sm:$0xff]
  %s5119 = scalar_lea.vmem [#allocation8], 224
  %v5120 = vld [vmem:[%s5119] ss:$4 sm:$0xff]
  %s5121 = scalar_lea.vmem [#allocation8], 1
  %v5122 = vld [vmem:[%s5121] ss:$4 sm:$0xff]
  %s5123 = scalar_lea.vmem [#allocation8], 33
  %v5124 = vld [vmem:[%s5123] ss:$4 sm:$0xff]
  %s5125 = scalar_lea.vmem [#allocation8], 65
  %v5126 = vld [vmem:[%s5125] ss:$4 sm:$0xff]
  %s5127 = scalar_lea.vmem [#allocation8], 97
  %v5128 = vld [vmem:[%s5127] ss:$4 sm:$0xff]
  %s5129 = scalar_lea.vmem [#allocation8], 129
  %v5130 = vld [vmem:[%s5129] ss:$4 sm:$0xff]
  %s5131 = scalar_lea.vmem [#allocation8], 161
  %v5132 = vld [vmem:[%s5131] ss:$4 sm:$0xff]
  %s5133 = scalar_lea.vmem [#allocation8], 193
  %v5134 = vld [vmem:[%s5133] ss:$4 sm:$0xff]
  %s5135 = scalar_lea.vmem [#allocation8], 225
  %v5136 = vld [vmem:[%s5135] ss:$4 sm:$0xff]
  %v5137 = vmax.f32 %v5106, %v5122
  %v5138 = vmax.f32 %v5108, %v5124
  %v5139 = vmax.f32 %v5110, %v5126
  %v5140 = vmax.f32 %v5112, %v5128
  %v5141 = vmax.f32 %v5114, %v5130
  %v5142 = vmax.f32 %v5116, %v5132
  %v5143 = vmax.f32 %v5118, %v5134
  %v5144 = vmax.f32 %v5120, %v5136
  %s5145 = scalar_lea.vmem [#allocation8], 2
  %v5146 = vld [vmem:[%s5145] ss:$4 sm:$0xff]
  %s5147 = scalar_lea.vmem [#allocation8], 34
  %v5148 = vld [vmem:[%s5147] ss:$4 sm:$0xff]
  %s5149 = scalar_lea.vmem [#allocation8], 66
  %v5150 = vld [vmem:[%s5149] ss:$4 sm:$0xff]
  %s5151 = scalar_lea.vmem [#allocation8], 98
  %v5152 = vld [vmem:[%s5151] ss:$4 sm:$0xff]
  %s5153 = scalar_lea.vmem [#allocation8], 130
  %v5154 = vld [vmem:[%s5153] ss:$4 sm:$0xff]
  %s5155 = scalar_lea.vmem [#allocation8], 162
  %v5156 = vld [vmem:[%s5155] ss:$4 sm:$0xff]
  %s5157 = scalar_lea.vmem [#allocation8], 194
  %v5158 = vld [vmem:[%s5157] ss:$4 sm:$0xff]
  %s5159 = scalar_lea.vmem [#allocation8], 226
  %v5160 = vld [vmem:[%s5159] ss:$4 sm:$0xff]
  %v5161 = vmax.f32 %v5137, %v5146
  %v5162 = vmax.f32 %v5138, %v5148
  %v5163 = vmax.f32 %v5139, %v5150
  %v5164 = vmax.f32 %v5140, %v5152
  %v5165 = vmax.f32 %v5141, %v5154
  %v5166 = vmax.f32 %v5142, %v5156
  %v5167 = vmax.f32 %v5143, %v5158
  %v5168 = vmax.f32 %v5144, %v5160
  %s5169 = scalar_lea.vmem [#allocation8], 3
  %v5170 = vld [vmem:[%s5169] ss:$4 sm:$0xff]
  %s5171 = scalar_lea.vmem [#allocation8], 35
  %v5172 = vld [vmem:[%s5171] ss:$4 sm:$0xff]
  %s5173 = scalar_lea.vmem [#allocation8], 67
  %v5174 = vld [vmem:[%s5173] ss:$4 sm:$0xff]
  %s5175 = scalar_lea.vmem [#allocation8], 99
  %v5176 = vld [vmem:[%s5175] ss:$4 sm:$0xff]
  %s5177 = scalar_lea.vmem [#allocation8], 131
  %v5178 = vld [vmem:[%s5177] ss:$4 sm:$0xff]
  %s5179 = scalar_lea.vmem [#allocation8], 163
  %v5180 = vld [vmem:[%s5179] ss:$4 sm:$0xff]
  %s5181 = scalar_lea.vmem [#allocation8], 195
  %v5182 = vld [vmem:[%s5181] ss:$4 sm:$0xff]
  %s5183 = scalar_lea.vmem [#allocation8], 227
  %v5184 = vld [vmem:[%s5183] ss:$4 sm:$0xff]
  %v5185 = vmax.f32 %v5161, %v5170
  %v5186 = vmax.f32 %v5162, %v5172
  %v5187 = vmax.f32 %v5163, %v5174
  %v5188 = vmax.f32 %v5164, %v5176
  %v5189 = vmax.f32 %v5165, %v5178
  %v5190 = vmax.f32 %v5166, %v5180
  %v5191 = vmax.f32 %v5167, %v5182
  %v5192 = vmax.f32 %v5168, %v5184
  %v5193 = vpack.c.bf16 %v5186, %v5185
  %v5194 = vpack.c.bf16 %v5188, %v5187
  %v5195 = vpack.c.bf16 %v5190, %v5189
  %v5196 = vpack.c.bf16 %v5192, %v5191
  %v5201 = vunpack.c.l.b16 %v5193
  %v5202 = vunpack.c.h.b16 %v5193
  %v5203 = vunpack.c.l.b16 %v5194
  %v5204 = vunpack.c.h.b16 %v5194
  %v5205 = vunpack.c.l.b16 %v5195
  %v5206 = vunpack.c.h.b16 %v5195
  %v5207 = vunpack.c.l.b16 %v5196
  %v5208 = vunpack.c.h.b16 %v5196
  %v5209 = vpack.c.b16 %v5201, %v5201
  %v5210 = vpack.c.b16 %v5202, %v5202
  %v5211 = vpack.c.b16 %v5203, %v5203
  %v5212 = vpack.c.b16 %v5204, %v5204
  %v5213 = vpack.c.b16 %v5205, %v5205
  %v5214 = vpack.c.b16 %v5206, %v5206
  %v5215 = vpack.c.b16 %v5207, %v5207
  %v5216 = vpack.c.b16 %v5208, %v5208
  %5225 = vst.msk [vmem:[#allocation3 + $0x4] sm:$0xf] %vm101, %v5209
  %5226 = vst.msk [vmem:[#allocation3 + $0x8] sm:$0xf] %vm101, %v5210
  %5227 = vst.msk [vmem:[#allocation3 + $0xc] sm:$0xf] %vm101, %v5211
  %5228 = vst.msk [vmem:[#allocation3 + $0x10] sm:$0xf] %vm101, %v5212
  %5229 = vst.msk [vmem:[#allocation3 + $0x14] sm:$0xf] %vm101, %v5213
  %5230 = vst.msk [vmem:[#allocation3 + $0x18] sm:$0xf] %vm101, %v5214
  %5231 = vst.msk [vmem:[#allocation3 + $0x1c] sm:$0xf] %vm101, %v5215
  %5232 = vst.msk [vmem:[#allocation3 + $0x20] sm:$0xf] %vm101, %v5216
  %v5233 = vand.u32 %v135, 31
  %v5234 = vand.u32 %v136, 31
  %v5235 = vand.u32 %v137, 31
  %v5236 = vand.u32 %v138, 31
  %v5237 = vand.u32 %v139, 31
  %v5238 = vand.u32 %v140, 31
  %v5239 = vand.u32 %v141, 31
  %v5240 = vand.u32 %v142, 31
  %v5241 = vld [vmem:[#allocation3] sm:$0xc]
  %v5242 = vld [vmem:[#allocation3 + $0x4] sm:$0xf]
  %v5243 = vld [vmem:[#allocation3 + $0x8] sm:$0xf]
  %v5244 = vld [vmem:[#allocation3 + $0xc] sm:$0xf]
  %v5245 = vld [vmem:[#allocation3 + $0x10] sm:$0xf]
  %v5246 = vld [vmem:[#allocation3 + $0x14] sm:$0xf]
  %v5247 = vld [vmem:[#allocation3 + $0x18] sm:$0xf]
  %v5248 = vld [vmem:[#allocation3 + $0x1c] sm:$0xf]
  %v5249 = vld [vmem:[#allocation3 + $0x20] sm:$0x7]
  %vm5250 = vcmp.ge.s32.totalorder %v5233, 3
  %vm5251 = vcmp.ge.s32.totalorder %v5234, 3
  %vm5252 = vcmp.ge.s32.totalorder %v5235, 3
  %vm5253 = vcmp.ge.s32.totalorder %v5236, 3
  %vm5254 = vcmp.ge.s32.totalorder %v5237, 3
  %vm5255 = vcmp.ge.s32.totalorder %v5238, 3
  %vm5256 = vcmp.ge.s32.totalorder %v5239, 3
  %vm5257 = vcmp.ge.s32.totalorder %v5240, 3
  %v5258 = vsel %vm5250, 1, 0
  %v5259 = vsel %vm5251, 1, 0
  %v5260 = vsel %vm5252, 1, 0
  %v5261 = vsel %vm5253, 1, 0
  %v5262 = vsel %vm5254, 1, 0
  %v5263 = vsel %vm5255, 1, 0
  %v5264 = vsel %vm5256, 1, 0
  %v5265 = vsel %vm5257, 1, 0
  %vm5266 = vcmp.eq.s32.totalorder %v5258, 1
  %vm5267 = vcmp.eq.s32.totalorder %v5259, 1
  %vm5268 = vcmp.eq.s32.totalorder %v5260, 1
  %vm5269 = vcmp.eq.s32.totalorder %v5261, 1
  %vm5270 = vcmp.eq.s32.totalorder %v5262, 1
  %vm5271 = vcmp.eq.s32.totalorder %v5263, 1
  %vm5272 = vcmp.eq.s32.totalorder %v5264, 1
  %vm5273 = vcmp.eq.s32.totalorder %v5265, 1
  %vm5274 = vmpackc.low %vm5266, %vm5266
  %vm5275 = vmpackc.low %vm5267, %vm5267
  %vm5276 = vmpackc.low %vm5268, %vm5268
  %vm5277 = vmpackc.low %vm5269, %vm5269
  %vm5278 = vmpackc.low %vm5270, %vm5270
  %vm5279 = vmpackc.low %vm5271, %vm5271
  %vm5280 = vmpackc.low %vm5272, %vm5272
  %vm5281 = vmpackc.low %vm5273, %vm5273
  %v5282 = vsel %vm5274, 65537, 0
  %v5283 = vsel %vm5275, 65537, 0
  %v5284 = vsel %vm5276, 65537, 0
  %v5285 = vsel %vm5277, 65537, 0
  %v5286 = vsel %vm5278, 65537, 0
  %v5287 = vsel %vm5279, 65537, 0
  %v5288 = vsel %vm5280, 65537, 0
  %v5289 = vsel %vm5281, 65537, 0
  %v5291 = vshrl.u32 %v5282, 16
  %v5293 = vrot.slane %v5291, 5
  %v5294 = vshll.u32 %v5282, 16
  %v5296 = vrot.slane %v5294, 6
  %v5297 = vor.u32 %v5293, %v5296
  %v5298 = vrot.slane %v5297, 4
  %v5300 = vshrl.u32 %v5283, 16
  %v5302 = vrot.slane %v5300, 5
  %v5303 = vshll.u32 %v5283, 16
  %v5305 = vrot.slane %v5303, 6
  %v5306 = vor.u32 %v5302, %v5305
  %v5307 = vsel %vm394, %v5298, %v5306
  %v5308 = vrot.slane %v5306, 4
  %v5310 = vshrl.u32 %v5284, 16
  %v5312 = vrot.slane %v5310, 5
  %v5313 = vshll.u32 %v5284, 16
  %v5315 = vrot.slane %v5313, 6
  %v5316 = vor.u32 %v5312, %v5315
  %v5317 = vsel %vm394, %v5308, %v5316
  %v5318 = vrot.slane %v5316, 4
  %v5320 = vshrl.u32 %v5285, 16
  %v5322 = vrot.slane %v5320, 5
  %v5323 = vshll.u32 %v5285, 16
  %v5325 = vrot.slane %v5323, 6
  %v5326 = vor.u32 %v5322, %v5325
  %v5327 = vsel %vm394, %v5318, %v5326
  %v5328 = vrot.slane %v5326, 4
  %v5330 = vshrl.u32 %v5286, 16
  %v5332 = vrot.slane %v5330, 5
  %v5333 = vshll.u32 %v5286, 16
  %v5335 = vrot.slane %v5333, 6
  %v5336 = vor.u32 %v5332, %v5335
  %v5337 = vsel %vm394, %v5328, %v5336
  %v5338 = vrot.slane %v5336, 4
  %v5340 = vshrl.u32 %v5287, 16
  %v5342 = vrot.slane %v5340, 5
  %v5343 = vshll.u32 %v5287, 16
  %v5345 = vrot.slane %v5343, 6
  %v5346 = vor.u32 %v5342, %v5345
  %v5347 = vsel %vm394, %v5338, %v5346
  %v5348 = vrot.slane %v5346, 4
  %v5350 = vshrl.u32 %v5288, 16
  %v5352 = vrot.slane %v5350, 5
  %v5353 = vshll.u32 %v5288, 16
  %v5355 = vrot.slane %v5353, 6
  %v5356 = vor.u32 %v5352, %v5355
  %v5357 = vsel %vm394, %v5348, %v5356
  %v5358 = vrot.slane %v5356, 4
  %v5360 = vshrl.u32 %v5289, 16
  %v5362 = vrot.slane %v5360, 5
  %v5363 = vshll.u32 %v5289, 16
  %v5365 = vrot.slane %v5363, 6
  %v5366 = vor.u32 %v5362, %v5365
  %v5367 = vsel %vm394, %v5358, %v5366
  %v5368 = vrot.slane %v5366, 4
  %vm5369 = vcmp.ne.s16.totalorder %v5297, 0
  %vm5370 = vcmp.ne.s16.totalorder %v5307, 0
  %vm5371 = vcmp.ne.s16.totalorder %v5317, 0
  %vm5372 = vcmp.ne.s16.totalorder %v5327, 0
  %vm5373 = vcmp.ne.s16.totalorder %v5337, 0
  %vm5374 = vcmp.ne.s16.totalorder %v5347, 0
  %vm5375 = vcmp.ne.s16.totalorder %v5357, 0
  %vm5376 = vcmp.ne.s16.totalorder %v5367, 0
  %vm5377 = vcmp.ne.s16.totalorder %v5368, 0
  %v5378 = vsel %vm5369, %v5241, 0
  %v5379 = vsel %vm5370, %v5242, 0
  %v5380 = vsel %vm5371, %v5243, 0
  %v5381 = vsel %vm5372, %v5244, 0
  %v5382 = vsel %vm5373, %v5245, 0
  %v5383 = vsel %vm5374, %v5246, 0
  %v5384 = vsel %vm5375, %v5247, 0
  %v5385 = vsel %vm5376, %v5248, 0
  %v5386 = vsel %vm5377, %v5249, 0
  %v5387 = vld [vmem:[#allocation3] sm:$0x8]
  %vm5388 = vcmp.ge.s32.totalorder %v5233, 2
  %vm5389 = vcmp.ge.s32.totalorder %v5234, 2
  %vm5390 = vcmp.ge.s32.totalorder %v5235, 2
  %vm5391 = vcmp.ge.s32.totalorder %v5236, 2
  %vm5392 = vcmp.ge.s32.totalorder %v5237, 2
  %vm5393 = vcmp.ge.s32.totalorder %v5238, 2
  %vm5394 = vcmp.ge.s32.totalorder %v5239, 2
  %vm5395 = vcmp.ge.s32.totalorder %v5240, 2
  %v5396 = vsel %vm5388, 1, 0
  %v5397 = vsel %vm5389, 1, 0
  %v5398 = vsel %vm5390, 1, 0
  %v5399 = vsel %vm5391, 1, 0
  %v5400 = vsel %vm5392, 1, 0
  %v5401 = vsel %vm5393, 1, 0
  %v5402 = vsel %vm5394, 1, 0
  %v5403 = vsel %vm5395, 1, 0
  %vm5404 = vcmp.eq.s32.totalorder %v5396, 1
  %vm5405 = vcmp.eq.s32.totalorder %v5397, 1
  %vm5406 = vcmp.eq.s32.totalorder %v5398, 1
  %vm5407 = vcmp.eq.s32.totalorder %v5399, 1
  %vm5408 = vcmp.eq.s32.totalorder %v5400, 1
  %vm5409 = vcmp.eq.s32.totalorder %v5401, 1
  %vm5410 = vcmp.eq.s32.totalorder %v5402, 1
  %vm5411 = vcmp.eq.s32.totalorder %v5403, 1
  %vm5412 = vmpackc.low %vm5404, %vm5404
  %vm5413 = vmpackc.low %vm5405, %vm5405
  %vm5414 = vmpackc.low %vm5406, %vm5406
  %vm5415 = vmpackc.low %vm5407, %vm5407
  %vm5416 = vmpackc.low %vm5408, %vm5408
  %vm5417 = vmpackc.low %vm5409, %vm5409
  %vm5418 = vmpackc.low %vm5410, %vm5410
  %vm5419 = vmpackc.low %vm5411, %vm5411
  %v5420 = vsel %vm5412, 65537, 0
  %v5421 = vsel %vm5413, 65537, 0
  %v5422 = vsel %vm5414, 65537, 0
  %v5423 = vsel %vm5415, 65537, 0
  %v5424 = vsel %vm5416, 65537, 0
  %v5425 = vsel %vm5417, 65537, 0
  %v5426 = vsel %vm5418, 65537, 0
  %v5427 = vsel %vm5419, 65537, 0
  %v5428 = vrot.slane %v5420, 5
  %v5429 = vrot.slane %v5428, 4
  %v5430 = vrot.slane %v5421, 5
  %v5431 = vsel %vm943, %v5429, %v5430
  %v5432 = vrot.slane %v5430, 4
  %v5433 = vrot.slane %v5422, 5
  %v5434 = vsel %vm943, %v5432, %v5433
  %v5435 = vrot.slane %v5433, 4
  %v5436 = vrot.slane %v5423, 5
  %v5437 = vsel %vm943, %v5435, %v5436
  %v5438 = vrot.slane %v5436, 4
  %v5439 = vrot.slane %v5424, 5
  %v5440 = vsel %vm943, %v5438, %v5439
  %v5441 = vrot.slane %v5439, 4
  %v5442 = vrot.slane %v5425, 5
  %v5443 = vsel %vm943, %v5441, %v5442
  %v5444 = vrot.slane %v5442, 4
  %v5445 = vrot.slane %v5426, 5
  %v5446 = vsel %vm943, %v5444, %v5445
  %v5447 = vrot.slane %v5445, 4
  %v5448 = vrot.slane %v5427, 5
  %v5449 = vsel %vm943, %v5447, %v5448
  %v5450 = vrot.slane %v5448, 4
  %vm5451 = vcmp.ne.s16.totalorder %v5428, 0
  %vm5452 = vcmp.ne.s16.totalorder %v5431, 0
  %vm5453 = vcmp.ne.s16.totalorder %v5434, 0
  %vm5454 = vcmp.ne.s16.totalorder %v5437, 0
  %vm5455 = vcmp.ne.s16.totalorder %v5440, 0
  %vm5456 = vcmp.ne.s16.totalorder %v5443, 0
  %vm5457 = vcmp.ne.s16.totalorder %v5446, 0
  %vm5458 = vcmp.ne.s16.totalorder %v5449, 0
  %vm5459 = vcmp.ne.s16.totalorder %v5450, 0
  %v5460 = vsel %vm5451, %v5387, 0
  %v5461 = vsel %vm5452, %v5242, 0
  %v5462 = vsel %vm5453, %v5243, 0
  %v5463 = vsel %vm5454, %v5244, 0
  %v5464 = vsel %vm5455, %v5245, 0
  %v5465 = vsel %vm5456, %v5246, 0
  %v5466 = vsel %vm5457, %v5247, 0
  %v5467 = vsel %vm5458, %v5248, 0
  %v5468 = vsel %vm5459, %v5249, 0
  %v5469 = vld [vmem:[#allocation3 + $0x20] sm:$0xf]
  %vm5470 = vcmp.ge.s32.totalorder %v5233, 1
  %vm5471 = vcmp.ge.s32.totalorder %v5234, 1
  %vm5472 = vcmp.ge.s32.totalorder %v5235, 1
  %vm5473 = vcmp.ge.s32.totalorder %v5236, 1
  %vm5474 = vcmp.ge.s32.totalorder %v5237, 1
  %vm5475 = vcmp.ge.s32.totalorder %v5238, 1
  %vm5476 = vcmp.ge.s32.totalorder %v5239, 1
  %vm5477 = vcmp.ge.s32.totalorder %v5240, 1
  %v5478 = vsel %vm5470, 1, 0
  %v5479 = vsel %vm5471, 1, 0
  %v5480 = vsel %vm5472, 1, 0
  %v5481 = vsel %vm5473, 1, 0
  %v5482 = vsel %vm5474, 1, 0
  %v5483 = vsel %vm5475, 1, 0
  %v5484 = vsel %vm5476, 1, 0
  %v5485 = vsel %vm5477, 1, 0
  %vm5486 = vcmp.eq.s32.totalorder %v5478, 1
  %vm5487 = vcmp.eq.s32.totalorder %v5479, 1
  %vm5488 = vcmp.eq.s32.totalorder %v5480, 1
  %vm5489 = vcmp.eq.s32.totalorder %v5481, 1
  %vm5490 = vcmp.eq.s32.totalorder %v5482, 1
  %vm5491 = vcmp.eq.s32.totalorder %v5483, 1
  %vm5492 = vcmp.eq.s32.totalorder %v5484, 1
  %vm5493 = vcmp.eq.s32.totalorder %v5485, 1
  %vm5494 = vmpackc.low %vm5486, %vm5486
  %vm5495 = vmpackc.low %vm5487, %vm5487
  %vm5496 = vmpackc.low %vm5488, %vm5488
  %vm5497 = vmpackc.low %vm5489, %vm5489
  %vm5498 = vmpackc.low %vm5490, %vm5490
  %vm5499 = vmpackc.low %vm5491, %vm5491
  %vm5500 = vmpackc.low %vm5492, %vm5492
  %vm5501 = vmpackc.low %vm5493, %vm5493
  %v5502 = vsel %vm5494, 65537, 0
  %v5503 = vsel %vm5495, 65537, 0
  %v5504 = vsel %vm5496, 65537, 0
  %v5505 = vsel %vm5497, 65537, 0
  %v5506 = vsel %vm5498, 65537, 0
  %v5507 = vsel %vm5499, 65537, 0
  %v5508 = vsel %vm5500, 65537, 0
  %v5509 = vsel %vm5501, 65537, 0
  %v5511 = vshll.u32 %v5502, 16
  %v5513 = vrot.slane %v5511, 5
  %v5514 = vshrl.u32 %v5502, 16
  %v5516 = vrot.slane %v5514, 4
  %v5517 = vor.u32 %v5516, %v5513
  %v5518 = vrot.slane %v5517, 4
  %v5520 = vshll.u32 %v5503, 16
  %v5522 = vrot.slane %v5520, 5
  %v5523 = vsel %vm1268, %v5518, %v5522
  %v5524 = vshrl.u32 %v5503, 16
  %v5526 = vrot.slane %v5524, 4
  %v5527 = vor.u32 %v5526, %v5522
  %v5528 = vrot.slane %v5527, 4
  %v5530 = vshll.u32 %v5504, 16
  %v5532 = vrot.slane %v5530, 5
  %v5533 = vsel %vm1268, %v5528, %v5532
  %v5534 = vshrl.u32 %v5504, 16
  %v5536 = vrot.slane %v5534, 4
  %v5537 = vor.u32 %v5536, %v5532
  %v5538 = vrot.slane %v5537, 4
  %v5540 = vshll.u32 %v5505, 16
  %v5542 = vrot.slane %v5540, 5
  %v5543 = vsel %vm1268, %v5538, %v5542
  %v5544 = vshrl.u32 %v5505, 16
  %v5546 = vrot.slane %v5544, 4
  %v5547 = vor.u32 %v5546, %v5542
  %v5548 = vrot.slane %v5547, 4
  %v5550 = vshll.u32 %v5506, 16
  %v5552 = vrot.slane %v5550, 5
  %v5553 = vsel %vm1268, %v5548, %v5552
  %v5554 = vshrl.u32 %v5506, 16
  %v5556 = vrot.slane %v5554, 4
  %v5557 = vor.u32 %v5556, %v5552
  %v5558 = vrot.slane %v5557, 4
  %v5560 = vshll.u32 %v5507, 16
  %v5562 = vrot.slane %v5560, 5
  %v5563 = vsel %vm1268, %v5558, %v5562
  %v5564 = vshrl.u32 %v5507, 16
  %v5566 = vrot.slane %v5564, 4
  %v5567 = vor.u32 %v5566, %v5562
  %v5568 = vrot.slane %v5567, 4
  %v5570 = vshll.u32 %v5508, 16
  %v5572 = vrot.slane %v5570, 5
  %v5573 = vsel %vm1268, %v5568, %v5572
  %v5574 = vshrl.u32 %v5508, 16
  %v5576 = vrot.slane %v5574, 4
  %v5577 = vor.u32 %v5576, %v5572
  %v5578 = vrot.slane %v5577, 4
  %v5580 = vshll.u32 %v5509, 16
  %v5582 = vrot.slane %v5580, 5
  %v5583 = vsel %vm1268, %v5578, %v5582
  %v5584 = vshrl.u32 %v5509, 16
  %v5586 = vrot.slane %v5584, 4
  %v5587 = vor.u32 %v5586, %v5582
  %v5588 = vrot.slane %v5587, 4
  %vm5589 = vcmp.ne.s16.totalorder %v5513, 0
  %vm5590 = vcmp.ne.s16.totalorder %v5523, 0
  %vm5591 = vcmp.ne.s16.totalorder %v5533, 0
  %vm5592 = vcmp.ne.s16.totalorder %v5543, 0
  %vm5593 = vcmp.ne.s16.totalorder %v5553, 0
  %vm5594 = vcmp.ne.s16.totalorder %v5563, 0
  %vm5595 = vcmp.ne.s16.totalorder %v5573, 0
  %vm5596 = vcmp.ne.s16.totalorder %v5583, 0
  %vm5597 = vcmp.ne.s16.totalorder %v5588, 0
  %v5598 = vsel %vm5589, %v5387, 0
  %v5599 = vsel %vm5590, %v5242, 0
  %v5600 = vsel %vm5591, %v5243, 0
  %v5601 = vsel %vm5592, %v5244, 0
  %v5602 = vsel %vm5593, %v5245, 0
  %v5603 = vsel %vm5594, %v5246, 0
  %v5604 = vsel %vm5595, %v5247, 0
  %v5605 = vsel %vm5596, %v5248, 0
  %v5606 = vsel %vm5597, %v5469, 0
  %v5607 = vld [vmem:[#allocation3 + $0x24] sm:$0x1]
  %vm5608 = vcmp.lt.s32.totalorder %v5233, 31
  %vm5609 = vcmp.lt.s32.totalorder %v5234, 31
  %vm5610 = vcmp.lt.s32.totalorder %v5235, 31
  %vm5611 = vcmp.lt.s32.totalorder %v5236, 31
  %vm5612 = vcmp.lt.s32.totalorder %v5237, 31
  %vm5613 = vcmp.lt.s32.totalorder %v5238, 31
  %vm5614 = vcmp.lt.s32.totalorder %v5239, 31
  %vm5615 = vcmp.lt.s32.totalorder %v5240, 31
  %v5616 = vsel %vm5608, 1, 0
  %v5617 = vsel %vm5609, 1, 0
  %v5618 = vsel %vm5610, 1, 0
  %v5619 = vsel %vm5611, 1, 0
  %v5620 = vsel %vm5612, 1, 0
  %v5621 = vsel %vm5613, 1, 0
  %v5622 = vsel %vm5614, 1, 0
  %v5623 = vsel %vm5615, 1, 0
  %vm5624 = vcmp.eq.s32.totalorder %v5616, 1
  %vm5625 = vcmp.eq.s32.totalorder %v5617, 1
  %vm5626 = vcmp.eq.s32.totalorder %v5618, 1
  %vm5627 = vcmp.eq.s32.totalorder %v5619, 1
  %vm5628 = vcmp.eq.s32.totalorder %v5620, 1
  %vm5629 = vcmp.eq.s32.totalorder %v5621, 1
  %vm5630 = vcmp.eq.s32.totalorder %v5622, 1
  %vm5631 = vcmp.eq.s32.totalorder %v5623, 1
  %vm5632 = vmpackc.low %vm5624, %vm5624
  %vm5633 = vmpackc.low %vm5625, %vm5625
  %vm5634 = vmpackc.low %vm5626, %vm5626
  %vm5635 = vmpackc.low %vm5627, %vm5627
  %vm5636 = vmpackc.low %vm5628, %vm5628
  %vm5637 = vmpackc.low %vm5629, %vm5629
  %vm5638 = vmpackc.low %vm5630, %vm5630
  %vm5639 = vmpackc.low %vm5631, %vm5631
  %v5640 = vsel %vm5632, 65537, 0
  %v5641 = vsel %vm5633, 65537, 0
  %v5642 = vsel %vm5634, 65537, 0
  %v5643 = vsel %vm5635, 65537, 0
  %v5644 = vsel %vm5636, 65537, 0
  %v5645 = vsel %vm5637, 65537, 0
  %v5646 = vsel %vm5638, 65537, 0
  %v5647 = vsel %vm5639, 65537, 0
  %v5649 = vshrl.u32 %v5640, 16
  %v5651 = vrot.slane %v5649, 7
  %v5652 = vshll.u32 %v5640, 16
  %v5654 = vor.u32 %v5651, %v5652
  %v5655 = vrot.slane %v5651, 4
  %v5657 = vshrl.u32 %v5641, 16
  %v5659 = vrot.slane %v5657, 7
  %v5660 = vshll.u32 %v5641, 16
  %v5662 = vor.u32 %v5659, %v5660
  %v5663 = vsel %vm1817, %v5655, %v5662
  %v5664 = vrot.slane %v5659, 4
  %v5666 = vshrl.u32 %v5642, 16
  %v5668 = vrot.slane %v5666, 7
  %v5669 = vshll.u32 %v5642, 16
  %v5671 = vor.u32 %v5668, %v5669
  %v5672 = vsel %vm1817, %v5664, %v5671
  %v5673 = vrot.slane %v5668, 4
  %v5675 = vshrl.u32 %v5643, 16
  %v5677 = vrot.slane %v5675, 7
  %v5678 = vshll.u32 %v5643, 16
  %v5680 = vor.u32 %v5677, %v5678
  %v5681 = vsel %vm1817, %v5673, %v5680
  %v5682 = vrot.slane %v5677, 4
  %v5684 = vshrl.u32 %v5644, 16
  %v5686 = vrot.slane %v5684, 7
  %v5687 = vshll.u32 %v5644, 16
  %v5689 = vor.u32 %v5686, %v5687
  %v5690 = vsel %vm1817, %v5682, %v5689
  %v5691 = vrot.slane %v5686, 4
  %v5693 = vshrl.u32 %v5645, 16
  %v5695 = vrot.slane %v5693, 7
  %v5696 = vshll.u32 %v5645, 16
  %v5698 = vor.u32 %v5695, %v5696
  %v5699 = vsel %vm1817, %v5691, %v5698
  %v5700 = vrot.slane %v5695, 4
  %v5702 = vshrl.u32 %v5646, 16
  %v5704 = vrot.slane %v5702, 7
  %v5705 = vshll.u32 %v5646, 16
  %v5707 = vor.u32 %v5704, %v5705
  %v5708 = vsel %vm1817, %v5700, %v5707
  %v5709 = vrot.slane %v5704, 4
  %v5711 = vshrl.u32 %v5647, 16
  %v5713 = vrot.slane %v5711, 7
  %v5714 = vshll.u32 %v5647, 16
  %v5716 = vor.u32 %v5713, %v5714
  %v5717 = vsel %vm1817, %v5709, %v5716
  %v5718 = vrot.slane %v5713, 4
  %vm5719 = vcmp.ne.s16.totalorder %v5654, 0
  %vm5720 = vcmp.ne.s16.totalorder %v5663, 0
  %vm5721 = vcmp.ne.s16.totalorder %v5672, 0
  %vm5722 = vcmp.ne.s16.totalorder %v5681, 0
  %vm5723 = vcmp.ne.s16.totalorder %v5690, 0
  %vm5724 = vcmp.ne.s16.totalorder %v5699, 0
  %vm5725 = vcmp.ne.s16.totalorder %v5708, 0
  %vm5726 = vcmp.ne.s16.totalorder %v5717, 0
  %vm5727 = vcmp.ne.s16.totalorder %v5718, 0
  %v5728 = vsel %vm5719, %v5242, 0
  %v5729 = vsel %vm5720, %v5243, 0
  %v5730 = vsel %vm5721, %v5244, 0
  %v5731 = vsel %vm5722, %v5245, 0
  %v5732 = vsel %vm5723, %v5246, 0
  %v5733 = vsel %vm5724, %v5247, 0
  %v5734 = vsel %vm5725, %v5248, 0
  %v5735 = vsel %vm5726, %v5469, 0
  %v5736 = vsel %vm5727, %v5607, 0
  %v5737 = vld [vmem:[#allocation3 + $0x4] sm:$0xe]
  %vm5738 = vcmp.lt.s32.totalorder %v5233, 30
  %vm5739 = vcmp.lt.s32.totalorder %v5234, 30
  %vm5740 = vcmp.lt.s32.totalorder %v5235, 30
  %vm5741 = vcmp.lt.s32.totalorder %v5236, 30
  %vm5742 = vcmp.lt.s32.totalorder %v5237, 30
  %vm5743 = vcmp.lt.s32.totalorder %v5238, 30
  %vm5744 = vcmp.lt.s32.totalorder %v5239, 30
  %vm5745 = vcmp.lt.s32.totalorder %v5240, 30
  %v5746 = vsel %vm5738, 1, 0
  %v5747 = vsel %vm5739, 1, 0
  %v5748 = vsel %vm5740, 1, 0
  %v5749 = vsel %vm5741, 1, 0
  %v5750 = vsel %vm5742, 1, 0
  %v5751 = vsel %vm5743, 1, 0
  %v5752 = vsel %vm5744, 1, 0
  %v5753 = vsel %vm5745, 1, 0
  %vm5754 = vcmp.eq.s32.totalorder %v5746, 1
  %vm5755 = vcmp.eq.s32.totalorder %v5747, 1
  %vm5756 = vcmp.eq.s32.totalorder %v5748, 1
  %vm5757 = vcmp.eq.s32.totalorder %v5749, 1
  %vm5758 = vcmp.eq.s32.totalorder %v5750, 1
  %vm5759 = vcmp.eq.s32.totalorder %v5751, 1
  %vm5760 = vcmp.eq.s32.totalorder %v5752, 1
  %vm5761 = vcmp.eq.s32.totalorder %v5753, 1
  %vm5762 = vmpackc.low %vm5754, %vm5754
  %vm5763 = vmpackc.low %vm5755, %vm5755
  %vm5764 = vmpackc.low %vm5756, %vm5756
  %vm5765 = vmpackc.low %vm5757, %vm5757
  %vm5766 = vmpackc.low %vm5758, %vm5758
  %vm5767 = vmpackc.low %vm5759, %vm5759
  %vm5768 = vmpackc.low %vm5760, %vm5760
  %vm5769 = vmpackc.low %vm5761, %vm5761
  %v5770 = vsel %vm5762, 65537, 0
  %v5771 = vsel %vm5763, 65537, 0
  %v5772 = vsel %vm5764, 65537, 0
  %v5773 = vsel %vm5765, 65537, 0
  %v5774 = vsel %vm5766, 65537, 0
  %v5775 = vsel %vm5767, 65537, 0
  %v5776 = vsel %vm5768, 65537, 0
  %v5777 = vsel %vm5769, 65537, 0
  %v5778 = vrot.slane %v5770, 7
  %v5779 = vrot.slane %v5778, 4
  %v5780 = vrot.slane %v5771, 7
  %v5781 = vsel %vm2334, %v5779, %v5780
  %v5782 = vrot.slane %v5780, 4
  %v5783 = vrot.slane %v5772, 7
  %v5784 = vsel %vm2334, %v5782, %v5783
  %v5785 = vrot.slane %v5783, 4
  %v5786 = vrot.slane %v5773, 7
  %v5787 = vsel %vm2334, %v5785, %v5786
  %v5788 = vrot.slane %v5786, 4
  %v5789 = vrot.slane %v5774, 7
  %v5790 = vsel %vm2334, %v5788, %v5789
  %v5791 = vrot.slane %v5789, 4
  %v5792 = vrot.slane %v5775, 7
  %v5793 = vsel %vm2334, %v5791, %v5792
  %v5794 = vrot.slane %v5792, 4
  %v5795 = vrot.slane %v5776, 7
  %v5796 = vsel %vm2334, %v5794, %v5795
  %v5797 = vrot.slane %v5795, 4
  %v5798 = vrot.slane %v5777, 7
  %v5799 = vsel %vm2334, %v5797, %v5798
  %v5800 = vrot.slane %v5798, 4
  %vm5801 = vcmp.ne.s16.totalorder %v5778, 0
  %vm5802 = vcmp.ne.s16.totalorder %v5781, 0
  %vm5803 = vcmp.ne.s16.totalorder %v5784, 0
  %vm5804 = vcmp.ne.s16.totalorder %v5787, 0
  %vm5805 = vcmp.ne.s16.totalorder %v5790, 0
  %vm5806 = vcmp.ne.s16.totalorder %v5793, 0
  %vm5807 = vcmp.ne.s16.totalorder %v5796, 0
  %vm5808 = vcmp.ne.s16.totalorder %v5799, 0
  %vm5809 = vcmp.ne.s16.totalorder %v5800, 0
  %v5810 = vsel %vm5801, %v5737, 0
  %v5811 = vsel %vm5802, %v5243, 0
  %v5812 = vsel %vm5803, %v5244, 0
  %v5813 = vsel %vm5804, %v5245, 0
  %v5814 = vsel %vm5805, %v5246, 0
  %v5815 = vsel %vm5806, %v5247, 0
  %v5816 = vsel %vm5807, %v5248, 0
  %v5817 = vsel %vm5808, %v5469, 0
  %v5818 = vsel %vm5809, %v5607, 0
  %v5819 = vld [vmem:[#allocation3 + $0x24] sm:$0x3]
  %vm5820 = vcmp.lt.s32.totalorder %v5233, 29
  %vm5821 = vcmp.lt.s32.totalorder %v5234, 29
  %vm5822 = vcmp.lt.s32.totalorder %v5235, 29
  %vm5823 = vcmp.lt.s32.totalorder %v5236, 29
  %vm5824 = vcmp.lt.s32.totalorder %v5237, 29
  %vm5825 = vcmp.lt.s32.totalorder %v5238, 29
  %vm5826 = vcmp.lt.s32.totalorder %v5239, 29
  %vm5827 = vcmp.lt.s32.totalorder %v5240, 29
  %v5828 = vsel %vm5820, 1, 0
  %v5829 = vsel %vm5821, 1, 0
  %v5830 = vsel %vm5822, 1, 0
  %v5831 = vsel %vm5823, 1, 0
  %v5832 = vsel %vm5824, 1, 0
  %v5833 = vsel %vm5825, 1, 0
  %v5834 = vsel %vm5826, 1, 0
  %v5835 = vsel %vm5827, 1, 0
  %vm5836 = vcmp.eq.s32.totalorder %v5828, 1
  %vm5837 = vcmp.eq.s32.totalorder %v5829, 1
  %vm5838 = vcmp.eq.s32.totalorder %v5830, 1
  %vm5839 = vcmp.eq.s32.totalorder %v5831, 1
  %vm5840 = vcmp.eq.s32.totalorder %v5832, 1
  %vm5841 = vcmp.eq.s32.totalorder %v5833, 1
  %vm5842 = vcmp.eq.s32.totalorder %v5834, 1
  %vm5843 = vcmp.eq.s32.totalorder %v5835, 1
  %vm5844 = vmpackc.low %vm5836, %vm5836
  %vm5845 = vmpackc.low %vm5837, %vm5837
  %vm5846 = vmpackc.low %vm5838, %vm5838
  %vm5847 = vmpackc.low %vm5839, %vm5839
  %vm5848 = vmpackc.low %vm5840, %vm5840
  %vm5849 = vmpackc.low %vm5841, %vm5841
  %vm5850 = vmpackc.low %vm5842, %vm5842
  %vm5851 = vmpackc.low %vm5843, %vm5843
  %v5852 = vsel %vm5844, 65537, 0
  %v5853 = vsel %vm5845, 65537, 0
  %v5854 = vsel %vm5846, 65537, 0
  %v5855 = vsel %vm5847, 65537, 0
  %v5856 = vsel %vm5848, 65537, 0
  %v5857 = vsel %vm5849, 65537, 0
  %v5858 = vsel %vm5850, 65537, 0
  %v5859 = vsel %vm5851, 65537, 0
  %v5861 = vshrl.u32 %v5852, 16
  %v5863 = vrot.slane %v5861, 6
  %v5864 = vshll.u32 %v5852, 16
  %v5866 = vrot.slane %v5864, 7
  %v5867 = vor.u32 %v5863, %v5866
  %v5868 = vrot.slane %v5867, 4
  %v5870 = vshrl.u32 %v5853, 16
  %v5872 = vrot.slane %v5870, 6
  %v5873 = vshll.u32 %v5853, 16
  %v5875 = vrot.slane %v5873, 7
  %v5876 = vor.u32 %v5872, %v5875
  %v5877 = vsel %vm2659, %v5868, %v5876
  %v5878 = vrot.slane %v5876, 4
  %v5880 = vshrl.u32 %v5854, 16
  %v5882 = vrot.slane %v5880, 6
  %v5883 = vshll.u32 %v5854, 16
  %v5885 = vrot.slane %v5883, 7
  %v5886 = vor.u32 %v5882, %v5885
  %v5887 = vsel %vm2659, %v5878, %v5886
  %v5888 = vrot.slane %v5886, 4
  %v5890 = vshrl.u32 %v5855, 16
  %v5892 = vrot.slane %v5890, 6
  %v5893 = vshll.u32 %v5855, 16
  %v5895 = vrot.slane %v5893, 7
  %v5896 = vor.u32 %v5892, %v5895
  %v5897 = vsel %vm2659, %v5888, %v5896
  %v5898 = vrot.slane %v5896, 4
  %v5900 = vshrl.u32 %v5856, 16
  %v5902 = vrot.slane %v5900, 6
  %v5903 = vshll.u32 %v5856, 16
  %v5905 = vrot.slane %v5903, 7
  %v5906 = vor.u32 %v5902, %v5905
  %v5907 = vsel %vm2659, %v5898, %v5906
  %v5908 = vrot.slane %v5906, 4
  %v5910 = vshrl.u32 %v5857, 16
  %v5912 = vrot.slane %v5910, 6
  %v5913 = vshll.u32 %v5857, 16
  %v5915 = vrot.slane %v5913, 7
  %v5916 = vor.u32 %v5912, %v5915
  %v5917 = vsel %vm2659, %v5908, %v5916
  %v5918 = vrot.slane %v5916, 4
  %v5920 = vshrl.u32 %v5858, 16
  %v5922 = vrot.slane %v5920, 6
  %v5923 = vshll.u32 %v5858, 16
  %v5925 = vrot.slane %v5923, 7
  %v5926 = vor.u32 %v5922, %v5925
  %v5927 = vsel %vm2659, %v5918, %v5926
  %v5928 = vrot.slane %v5926, 4
  %v5930 = vshrl.u32 %v5859, 16
  %v5932 = vrot.slane %v5930, 6
  %v5933 = vshll.u32 %v5859, 16
  %v5935 = vrot.slane %v5933, 7
  %v5936 = vor.u32 %v5932, %v5935
  %v5937 = vsel %vm2659, %v5928, %v5936
  %v5938 = vrot.slane %v5936, 4
  %vm5939 = vcmp.ne.s16.totalorder %v5867, 0
  %vm5940 = vcmp.ne.s16.totalorder %v5877, 0
  %vm5941 = vcmp.ne.s16.totalorder %v5887, 0
  %vm5942 = vcmp.ne.s16.totalorder %v5897, 0
  %vm5943 = vcmp.ne.s16.totalorder %v5907, 0
  %vm5944 = vcmp.ne.s16.totalorder %v5917, 0
  %vm5945 = vcmp.ne.s16.totalorder %v5927, 0
  %vm5946 = vcmp.ne.s16.totalorder %v5937, 0
  %vm5947 = vcmp.ne.s16.totalorder %v5938, 0
  %v5948 = vsel %vm5939, %v5737, 0
  %v5949 = vsel %vm5940, %v5243, 0
  %v5950 = vsel %vm5941, %v5244, 0
  %v5951 = vsel %vm5942, %v5245, 0
  %v5952 = vsel %vm5943, %v5246, 0
  %v5953 = vsel %vm5944, %v5247, 0
  %v5954 = vsel %vm5945, %v5248, 0
  %v5955 = vsel %vm5946, %v5469, 0
  %v5956 = vsel %vm5947, %v5819, 0
  %v5966 = vunpack.c.l.b16 %v5378
  %v5967 = vunpack.c.l.b16 %v5379
  %v5968 = vunpack.c.l.b16 %v5380
  %v5969 = vunpack.c.l.b16 %v5381
  %v5970 = vunpack.c.l.b16 %v5382
  %v5971 = vunpack.c.l.b16 %v5383
  %v5972 = vunpack.c.l.b16 %v5384
  %v5973 = vunpack.c.l.b16 %v5385
  %v5974 = vunpack.c.l.b16 %v5386
  %v5975 = vpack.c.b16 %v5967, %v5966
  %v5976 = vpack.c.b16 %v5969, %v5968
  %v5977 = vpack.c.b16 %v5971, %v5970
  %v5978 = vpack.c.b16 %v5973, %v5972
  %v5979 = vpack.c.b16 %v5974, %v5974
  %v5989 = vunpack.c.l.b16 %v5460
  %v5990 = vunpack.c.l.b16 %v5461
  %v5991 = vunpack.c.l.b16 %v5462
  %v5992 = vunpack.c.l.b16 %v5463
  %v5993 = vunpack.c.l.b16 %v5464
  %v5994 = vunpack.c.l.b16 %v5465
  %v5995 = vunpack.c.l.b16 %v5466
  %v5996 = vunpack.c.l.b16 %v5467
  %v5997 = vunpack.c.l.b16 %v5468
  %v5998 = vpack.c.b16 %v5990, %v5989
  %v5999 = vpack.c.b16 %v5992, %v5991
  %v6000 = vpack.c.b16 %v5994, %v5993
  %v6001 = vpack.c.b16 %v5996, %v5995
  %v6002 = vpack.c.b16 %v5997, %v5997
  %v6004 = vshrl.u32 %v5998, 16
  %v6006 = vshll.u32 %v5998, 16
  %v6008 = vrot.slane %v6006, 1
  %v6009 = vor.u32 %v6004, %v6008
  %v6011 = vshll.u32 %v5999, 16
  %v6013 = vrot.slane %v6011, 1
  %v6014 = vsel %vm3211, %v6009, %v6013
  %v6015 = vshrl.u32 %v5999, 16
  %v6017 = vor.u32 %v6015, %v6013
  %v6019 = vshll.u32 %v6000, 16
  %v6021 = vrot.slane %v6019, 1
  %v6022 = vsel %vm3211, %v6017, %v6021
  %v6023 = vshrl.u32 %v6000, 16
  %v6025 = vor.u32 %v6023, %v6021
  %v6027 = vshll.u32 %v6001, 16
  %v6029 = vrot.slane %v6027, 1
  %v6030 = vsel %vm3211, %v6025, %v6029
  %v6031 = vshrl.u32 %v6001, 16
  %v6033 = vor.u32 %v6031, %v6029
  %v6035 = vshll.u32 %v6002, 16
  %v6037 = vrot.slane %v6035, 1
  %v6038 = vsel %vm3211, %v6033, %v6037
  %v6039 = vshrl.u32 %v6002, 16
  %v6041 = vor.u32 %v6039, %v6037
  %6042 = vrot.lane.b32.xlu0 %v6014, 8
  %v6043 = vpop.permute.xlu0 %6042
  %6044 = vrot.lane.b32.xlu0 %v6022, 8
  %v6045 = vpop.permute.xlu0 %6044
  %6046 = vrot.lane.b32.xlu0 %v6030, 8
  %v6047 = vpop.permute.xlu0 %6046
  %6048 = vrot.lane.b32.xlu0 %v6038, 8
  %v6049 = vpop.permute.xlu0 %6048
  %6050 = vrot.lane.b32.xlu0 %v6041, 8
  %v6051 = vpop.permute.xlu0 %6050
  %v6061 = vunpack.c.l.b16 %v5598
  %v6062 = vunpack.c.l.b16 %v5599
  %v6063 = vunpack.c.l.b16 %v5600
  %v6064 = vunpack.c.l.b16 %v5601
  %v6065 = vunpack.c.l.b16 %v5602
  %v6066 = vunpack.c.l.b16 %v5603
  %v6067 = vunpack.c.l.b16 %v5604
  %v6068 = vunpack.c.l.b16 %v5605
  %v6069 = vunpack.c.l.b16 %v5606
  %v6070 = vpack.c.b16 %v6062, %v6061
  %v6071 = vpack.c.b16 %v6064, %v6063
  %v6072 = vpack.c.b16 %v6066, %v6065
  %v6073 = vpack.c.b16 %v6068, %v6067
  %v6074 = vpack.c.b16 %v6069, %v6069
  %v6075 = vrot.slane %v6070, 1
  %v6076 = vrot.slane %v6071, 1
  %v6077 = vsel %vm3464, %v6075, %v6076
  %v6078 = vrot.slane %v6072, 1
  %v6079 = vsel %vm3464, %v6076, %v6078
  %v6080 = vrot.slane %v6073, 1
  %v6081 = vsel %vm3464, %v6078, %v6080
  %v6082 = vrot.slane %v6074, 1
  %v6083 = vsel %vm3464, %v6080, %v6082
  %6084 = vrot.lane.b32.xlu0 %v6077, 16
  %v6085 = vpop.permute.xlu0 %6084
  %6086 = vrot.lane.b32.xlu0 %v6079, 16
  %v6087 = vpop.permute.xlu0 %6086
  %6088 = vrot.lane.b32.xlu0 %v6081, 16
  %v6089 = vpop.permute.xlu0 %6088
  %6090 = vrot.lane.b32.xlu0 %v6083, 16
  %v6091 = vpop.permute.xlu0 %6090
  %6092 = vrot.lane.b32.xlu0 %v6082, 16
  %v6093 = vpop.permute.xlu0 %6092
  %v6102 = vunpack.c.l.b16 %v5242
  %v6103 = vunpack.c.l.b16 %v5243
  %v6104 = vunpack.c.l.b16 %v5244
  %v6105 = vunpack.c.l.b16 %v5245
  %v6106 = vunpack.c.l.b16 %v5246
  %v6107 = vunpack.c.l.b16 %v5247
  %v6108 = vunpack.c.l.b16 %v5248
  %v6109 = vunpack.c.l.b16 %v5469
  %v6110 = vpack.c.b16 %v6103, %v6102
  %v6111 = vpack.c.b16 %v6105, %v6104
  %v6112 = vpack.c.b16 %v6107, %v6106
  %v6113 = vpack.c.b16 %v6109, %v6108
  %v6115 = vshrl.u32 %v6110, 16
  %v6117 = vrot.slane %v6115, 5
  %v6118 = vshll.u32 %v6110, 16
  %v6120 = vrot.slane %v6118, 6
  %v6121 = vor.u32 %v6117, %v6120
  %v6123 = vshrl.u32 %v6111, 16
  %v6125 = vrot.slane %v6123, 5
  %v6126 = vshll.u32 %v6111, 16
  %v6128 = vrot.slane %v6126, 6
  %v6129 = vor.u32 %v6125, %v6128
  %v6130 = vsel %vm392, %v6121, %v6129
  %v6132 = vshrl.u32 %v6112, 16
  %v6134 = vrot.slane %v6132, 5
  %v6135 = vshll.u32 %v6112, 16
  %v6137 = vrot.slane %v6135, 6
  %v6138 = vor.u32 %v6134, %v6137
  %v6139 = vsel %vm392, %v6129, %v6138
  %v6141 = vshrl.u32 %v6113, 16
  %v6143 = vrot.slane %v6141, 5
  %v6144 = vshll.u32 %v6113, 16
  %v6146 = vrot.slane %v6144, 6
  %v6147 = vor.u32 %v6143, %v6146
  %v6148 = vsel %vm392, %v6138, %v6147
  %6149 = vrot.lane.b32.xlu0 %v6121, 24
  %v6150 = vpop.permute.xlu0 %6149
  %6151 = vrot.lane.b32.xlu0 %v6130, 24
  %v6152 = vpop.permute.xlu0 %6151
  %6153 = vrot.lane.b32.xlu0 %v6139, 24
  %v6154 = vpop.permute.xlu0 %6153
  %6155 = vrot.lane.b32.xlu0 %v6148, 24
  %v6156 = vpop.permute.xlu0 %6155
  %6157 = vrot.lane.b32.xlu0 %v6147, 24
  %v6158 = vpop.permute.xlu0 %6157
  %v6168 = vunpack.c.l.b16 %v5728
  %v6169 = vunpack.c.l.b16 %v5729
  %v6170 = vunpack.c.l.b16 %v5730
  %v6171 = vunpack.c.l.b16 %v5731
  %v6172 = vunpack.c.l.b16 %v5732
  %v6173 = vunpack.c.l.b16 %v5733
  %v6174 = vunpack.c.l.b16 %v5734
  %v6175 = vunpack.c.l.b16 %v5735
  %v6176 = vunpack.c.l.b16 %v5736
  %v6177 = vpack.c.b16 %v6169, %v6168
  %v6178 = vpack.c.b16 %v6171, %v6170
  %v6179 = vpack.c.b16 %v6173, %v6172
  %v6180 = vpack.c.b16 %v6175, %v6174
  %v6181 = vpack.c.b16 %v6176, %v6176
  %v6182 = vrot.slane %v6177, 6
  %v6183 = vrot.slane %v6178, 6
  %v6184 = vsel %vm3872, %v6182, %v6183
  %v6185 = vrot.slane %v6179, 6
  %v6186 = vsel %vm3872, %v6183, %v6185
  %v6187 = vrot.slane %v6180, 6
  %v6188 = vsel %vm3872, %v6185, %v6187
  %v6189 = vrot.slane %v6181, 6
  %v6190 = vsel %vm3872, %v6187, %v6189
  %6191 = vrot.lane.b32.xlu0 %v6182, 32
  %v6192 = vpop.permute.xlu0 %6191
  %6193 = vrot.lane.b32.xlu0 %v6184, 32
  %v6194 = vpop.permute.xlu0 %6193
  %6195 = vrot.lane.b32.xlu0 %v6186, 32
  %v6196 = vpop.permute.xlu0 %6195
  %6197 = vrot.lane.b32.xlu0 %v6188, 32
  %v6198 = vpop.permute.xlu0 %6197
  %6199 = vrot.lane.b32.xlu0 %v6190, 32
  %v6200 = vpop.permute.xlu0 %6199
  %v6210 = vunpack.c.l.b16 %v5810
  %v6211 = vunpack.c.l.b16 %v5811
  %v6212 = vunpack.c.l.b16 %v5812
  %v6213 = vunpack.c.l.b16 %v5813
  %v6214 = vunpack.c.l.b16 %v5814
  %v6215 = vunpack.c.l.b16 %v5815
  %v6216 = vunpack.c.l.b16 %v5816
  %v6217 = vunpack.c.l.b16 %v5817
  %v6218 = vunpack.c.l.b16 %v5818
  %v6219 = vpack.c.b16 %v6211, %v6210
  %v6220 = vpack.c.b16 %v6213, %v6212
  %v6221 = vpack.c.b16 %v6215, %v6214
  %v6222 = vpack.c.b16 %v6217, %v6216
  %v6223 = vpack.c.b16 %v6218, %v6218
  %v6225 = vshrl.u32 %v6219, 16
  %v6227 = vrot.slane %v6225, 6
  %v6228 = vshll.u32 %v6219, 16
  %v6230 = vrot.slane %v6228, 7
  %v6231 = vor.u32 %v6227, %v6230
  %v6233 = vshrl.u32 %v6220, 16
  %v6235 = vrot.slane %v6233, 6
  %v6236 = vshll.u32 %v6220, 16
  %v6238 = vrot.slane %v6236, 7
  %v6239 = vor.u32 %v6235, %v6238
  %v6240 = vsel %vm2657, %v6231, %v6239
  %v6242 = vshrl.u32 %v6221, 16
  %v6244 = vrot.slane %v6242, 6
  %v6245 = vshll.u32 %v6221, 16
  %v6247 = vrot.slane %v6245, 7
  %v6248 = vor.u32 %v6244, %v6247
  %v6249 = vsel %vm2657, %v6239, %v6248
  %v6251 = vshrl.u32 %v6222, 16
  %v6253 = vrot.slane %v6251, 6
  %v6254 = vshll.u32 %v6222, 16
  %v6256 = vrot.slane %v6254, 7
  %v6257 = vor.u32 %v6253, %v6256
  %v6258 = vsel %vm2657, %v6248, %v6257
  %v6260 = vshrl.u32 %v6223, 16
  %v6262 = vrot.slane %v6260, 6
  %v6263 = vshll.u32 %v6223, 16
  %v6265 = vrot.slane %v6263, 7
  %v6266 = vor.u32 %v6262, %v6265
  %v6267 = vsel %vm2657, %v6257, %v6266
  %6268 = vrot.lane.b32.xlu0 %v6231, 40
  %v6269 = vpop.permute.xlu0 %6268
  %6270 = vrot.lane.b32.xlu0 %v6240, 40
  %v6271 = vpop.permute.xlu0 %6270
  %6272 = vrot.lane.b32.xlu0 %v6249, 40
  %v6273 = vpop.permute.xlu0 %6272
  %6274 = vrot.lane.b32.xlu0 %v6258, 40
  %v6275 = vpop.permute.xlu0 %6274
  %6276 = vrot.lane.b32.xlu0 %v6267, 40
  %v6277 = vpop.permute.xlu0 %6276
  %v6287 = vunpack.c.l.b16 %v5948
  %v6288 = vunpack.c.l.b16 %v5949
  %v6289 = vunpack.c.l.b16 %v5950
  %v6290 = vunpack.c.l.b16 %v5951
  %v6291 = vunpack.c.l.b16 %v5952
  %v6292 = vunpack.c.l.b16 %v5953
  %v6293 = vunpack.c.l.b16 %v5954
  %v6294 = vunpack.c.l.b16 %v5955
  %v6295 = vunpack.c.l.b16 %v5956
  %v6296 = vpack.c.b16 %v6288, %v6287
  %v6297 = vpack.c.b16 %v6290, %v6289
  %v6298 = vpack.c.b16 %v6292, %v6291
  %v6299 = vpack.c.b16 %v6294, %v6293
  %v6300 = vpack.c.b16 %v6295, %v6295
  %v6301 = vrot.slane %v6296, 7
  %v6302 = vrot.slane %v6297, 7
  %v6303 = vsel %vm2332, %v6301, %v6302
  %v6304 = vrot.slane %v6298, 7
  %v6305 = vsel %vm2332, %v6302, %v6304
  %v6306 = vrot.slane %v6299, 7
  %v6307 = vsel %vm2332, %v6304, %v6306
  %v6308 = vrot.slane %v6300, 7
  %v6309 = vsel %vm2332, %v6306, %v6308
  %6310 = vrot.lane.b32.xlu0 %v6301, 48
  %v6311 = vpop.permute.xlu0 %6310
  %6312 = vrot.lane.b32.xlu0 %v6303, 48
  %v6313 = vpop.permute.xlu0 %6312
  %6314 = vrot.lane.b32.xlu0 %v6305, 48
  %v6315 = vpop.permute.xlu0 %6314
  %6316 = vrot.lane.b32.xlu0 %v6307, 48
  %v6317 = vpop.permute.xlu0 %6316
  %6318 = vrot.lane.b32.xlu0 %v6309, 48
  %v6319 = vpop.permute.xlu0 %6318
  %v6322 = vsel %vm4359, %v5975, %v6043
  %v6325 = vsel %vm4359, %v5976, %v6045
  %v6328 = vsel %vm4359, %v5977, %v6047
  %v6331 = vsel %vm4359, %v5978, %v6049
  %v6334 = vsel %vm4359, %v5979, %v6051
  %v6336 = vsel %vm4411, %v6322, %v6085
  %v6338 = vsel %vm4411, %v6325, %v6087
  %v6340 = vsel %vm4411, %v6328, %v6089
  %v6342 = vsel %vm4411, %v6331, %v6091
  %v6344 = vsel %vm4411, %v6334, %v6093
  %v6346 = vsel %vm4446, %v6336, %v6150
  %v6348 = vsel %vm4446, %v6338, %v6152
  %v6350 = vsel %vm4446, %v6340, %v6154
  %v6352 = vsel %vm4446, %v6342, %v6156
  %v6354 = vsel %vm4446, %v6344, %v6158
  %v6356 = vsel %vm4481, %v6346, %v6192
  %v6358 = vsel %vm4481, %v6348, %v6194
  %v6360 = vsel %vm4481, %v6350, %v6196
  %v6362 = vsel %vm4481, %v6352, %v6198
  %v6364 = vsel %vm4481, %v6354, %v6200
  %v6366 = vsel %vm4516, %v6356, %v6269
  %v6368 = vsel %vm4516, %v6358, %v6271
  %v6370 = vsel %vm4516, %v6360, %v6273
  %v6372 = vsel %vm4516, %v6362, %v6275
  %v6374 = vsel %vm4516, %v6364, %v6277
  %v6376 = vsel %vm4551, %v6366, %v6311
  %v6378 = vsel %vm4551, %v6368, %v6313
  %v6380 = vsel %vm4551, %v6370, %v6315
  %v6382 = vsel %vm4551, %v6372, %v6317
  %v6384 = vsel %vm4551, %v6374, %v6319
  %v6385 = vld [vmem:[%s4] sm:$0xf]
  %v6386 = vld [vmem:[%s4 + $0x4] sm:$0xf]
  %v6387 = vld [vmem:[%s4 + $0x8] sm:$0xf]
  %v6388 = vld [vmem:[%s4 + $0xc] sm:$0xf]
  %v6389 = vld [vmem:[%s4 + $0x10] sm:$0xf]
  %v6390 = vld [vmem:[%s4 + $0x14] sm:$0xf]
  %v6391 = vld [vmem:[%s4 + $0x18] sm:$0xf]
  %v6392 = vshrl.u32 %v6376, 16
  %v6394 = vrot.slane %v6392, 2
  %v6395 = vshll.u32 %v6376, 16
  %v6397 = vrot.slane %v6395, 3
  %v6398 = vor.u32 %v6394, %v6397
  %v6399 = vshrl.u32 %v6378, 16
  %v6401 = vrot.slane %v6399, 2
  %v6402 = vshll.u32 %v6378, 16
  %v6404 = vrot.slane %v6402, 3
  %v6405 = vor.u32 %v6401, %v6404
  %v6406 = vsel %vm4593, %v6398, %v6405
  %v6407 = vshrl.u32 %v6380, 16
  %v6409 = vrot.slane %v6407, 2
  %v6410 = vshll.u32 %v6380, 16
  %v6412 = vrot.slane %v6410, 3
  %v6413 = vor.u32 %v6409, %v6412
  %v6414 = vsel %vm4593, %v6405, %v6413
  %v6415 = vshrl.u32 %v6382, 16
  %v6417 = vrot.slane %v6415, 2
  %v6418 = vshll.u32 %v6382, 16
  %v6420 = vrot.slane %v6418, 3
  %v6421 = vor.u32 %v6417, %v6420
  %v6422 = vsel %vm4593, %v6413, %v6421
  %v6423 = vshrl.u32 %v6384, 16
  %v6425 = vrot.slane %v6423, 2
  %v6426 = vshll.u32 %v6384, 16
  %v6428 = vrot.slane %v6426, 3
  %v6429 = vor.u32 %v6425, %v6428
  %v6430 = vsel %vm4593, %v6421, %v6429
  %v6438 = vunpack.c.l.b16 %v6385
  %v6439 = vunpack.c.l.b16 %v6386
  %v6440 = vunpack.c.l.b16 %v6387
  %v6441 = vunpack.c.l.b16 %v6388
  %v6442 = vunpack.c.l.b16 %v6389
  %v6443 = vunpack.c.l.b16 %v6390
  %v6444 = vunpack.c.l.b16 %v6391
  %v6445 = vpack.c.b16 %v6439, %v6438
  %v6446 = vpack.c.b16 %v6441, %v6440
  %v6447 = vpack.c.b16 %v6443, %v6442
  %v6448 = vpack.c.b16 %v6444, %v6444
  %v6453 = vsel %vm4750, %v6406, 0
  %v6456 = vsel %vm4750, %v6414, 0
  %v6459 = vsel %vm4750, %v6422, 0
  %v6462 = vsel %vm4750, %v6430, 0
  %v6465 = vsel %vm4799, %v6448, 0
  %6467 = vmatprep.subr.bf16.mxu0 0
  %6468 = vmatpush1.bf16.msra.mxu0 0
  %6469 = vmatprep.subr.bf16.mxu0 0
  %6470 = vmatpush1.bf16.msra.mxu0 0
  %6471 = vmatprep.subr.bf16.mxu0 0
  %6472 = vmatpush1.bf16.msra.mxu0 0
  %6473 = vmatprep.subr.bf16.mxu0 0
  %6474 = vmatpush1.bf16.msra.mxu0 0
  %6475 = vmatprep.subr.bf16.mxu0 0
  %6476 = vmatpush1.bf16.msra.mxu0 %v6465
  %6477 = vmatprep.subr.bf16.mxu0 0
  %6478 = vmatpush1.bf16.msra.mxu0 %v6447
  %6479 = vmatprep.subr.bf16.mxu0 0
  %6480 = vmatpush1.bf16.msra.mxu0 %v6446
  %6481 = vmatprep.subr.bf16.mxu0 0
  %6482 = vmatpush1.bf16.msra.mxu0 %v6445
  %6483 = vmatprep.subr.bf16.mxu0 0
  %6484 = vmatpush2.bf16.msra.mxu0 0
  %6485 = vmatprep.subr.bf16.mxu0 0
  %6486 = vmatpush2.bf16.msra.mxu0 0
  %6487 = vmatprep.subr.bf16.mxu0 0
  %6488 = vmatpush2.bf16.msra.mxu0 0
  %6489 = vmatprep.subr.bf16.mxu0 0
  %6490 = vmatpush2.bf16.msra.mxu0 0
  %6491 = vmatprep.subr.bf16.mxu0 0
  %6492 = vmatpush2.bf16.msra.mxu0 0
  %6493 = vmatprep.subr.bf16.mxu0 0
  %6494 = vmatpush2.bf16.msra.mxu0 0
  %6495 = vmatprep.subr.bf16.mxu0 0
  %6496 = vmatpush2.bf16.msra.mxu0 0
  %6497 = vmatprep.subr.bf16.mxu0 0
  %6498 = vmatpush2.bf16.msra.mxu0 0
  %6499 = vmatprep.mubr.bf16.mxu0 0
  %6500 = vmatmul.mubr.bf16.gmra.mxu0 %v6453
  %v6501 = vpop.f32.mrf.mxu0
  %v6502 = vadd.f32 0.0, %v6501
  %v6503 = vpop.f32.mrf.mxu0
  %v6504 = vpop.f32.mrf.mxu0
  %v6505 = vadd.f32 0.0, %v6504
  %v6506 = vpop.f32.mrf.mxu0
  %6507 = vmatprep.mubr.bf16.mxu0 0
  %6508 = vmatmul.mubr.bf16.gmra.mxu0 %v6456
  %v6509 = vpop.f32.mrf.mxu0
  %v6510 = vadd.f32 0.0, %v6509
  %v6511 = vpop.f32.mrf.mxu0
  %v6512 = vpop.f32.mrf.mxu0
  %v6513 = vadd.f32 0.0, %v6512
  %v6514 = vpop.f32.mrf.mxu0
  %6515 = vmatprep.mubr.bf16.mxu0 0
  %6516 = vmatmul.mubr.bf16.gmra.mxu0 %v6459
  %v6517 = vpop.f32.mrf.mxu0
  %v6518 = vadd.f32 0.0, %v6517
  %v6519 = vpop.f32.mrf.mxu0
  %v6520 = vpop.f32.mrf.mxu0
  %v6521 = vadd.f32 0.0, %v6520
  %v6522 = vpop.f32.mrf.mxu0
  %6523 = vmatprep.mubr.bf16.mxu0 0
  %6524 = vmatmul.mubr.bf16.gmra.mxu0 %v6462
  %v6525 = vpop.f32.mrf.mxu0
  %v6526 = vadd.f32 0.0, %v6525
  %v6527 = vpop.f32.mrf.mxu0
  %v6528 = vpop.f32.mrf.mxu0
  %v6529 = vadd.f32 0.0, %v6528
  %v6530 = vpop.f32.mrf.mxu0
  %6531 = vdwg.mxu0
  %v6532 = vld [vmem:[%s5] sm:$0x1]
  %v6534 = vlaneseq
  %v6535 = vshrl.u32 %v6534, 7
  %v6536 = vsub.s32 0, %v6535
  %v6537 = vrot.slane %v6532, %v6536
  %v6539 = vmul.f32 %v6502, %v6537
  %v6540 = vmul.f32 %v6505, %v6537
  %v6541 = vmul.f32 %v6510, %v6537
  %v6542 = vmul.f32 %v6513, %v6537
  %v6543 = vmul.f32 %v6518, %v6537
  %v6544 = vmul.f32 %v6521, %v6537
  %v6545 = vmul.f32 %v6526, %v6537
  %v6546 = vmul.f32 %v6529, %v6537
  %v6547 = vld [vmem:[%s6] sm:$0x1]
  %v6549 = vlaneseq
  %v6550 = vshrl.u32 %v6549, 7
  %v6551 = vsub.s32 0, %v6550
  %v6552 = vrot.slane %v6547, %v6551
  %v6554 = vadd.f32 %v6539, %v6552
  %v6555 = vadd.f32 %v6540, %v6552
  %v6556 = vadd.f32 %v6541, %v6552
  %v6557 = vadd.f32 %v6542, %v6552
  %v6558 = vadd.f32 %v6543, %v6552
  %v6559 = vadd.f32 %v6544, %v6552
  %v6560 = vadd.f32 %v6545, %v6552
  %v6561 = vadd.f32 %v6546, %v6552
  %v6562 = vmax.f32 %v6554, 0.0
  %v6563 = vmax.f32 %v6555, 0.0
  %v6564 = vmax.f32 %v6556, 0.0
  %v6565 = vmax.f32 %v6557, 0.0
  %v6566 = vmax.f32 %v6558, 0.0
  %v6567 = vmax.f32 %v6559, 0.0
  %v6568 = vmax.f32 %v6560, 0.0
  %v6569 = vmax.f32 %v6561, 0.0
  %6570 = vst.msk [vmem:[#allocation9] sm:$0xff] %vm4411, %v6562
  %6571 = vst.msk [vmem:[#allocation9 + $0x8] sm:$0xff] %vm4411, %v6563
  %6572 = vst.msk [vmem:[#allocation9 + $0x10] sm:$0xff] %vm4411, %v6564
  %6573 = vst.msk [vmem:[#allocation9 + $0x18] sm:$0xff] %vm4411, %v6565
  %6574 = vst.msk [vmem:[#allocation9 + $0x20] sm:$0xff] %vm4411, %v6566
  %6575 = vst.msk [vmem:[#allocation9 + $0x28] sm:$0xff] %vm4411, %v6567
  %6576 = vst.msk [vmem:[#allocation9 + $0x30] sm:$0xff] %vm4411, %v6568
  %6577 = vst.msk [vmem:[#allocation9 + $0x38] sm:$0xff] %vm4411, %v6569
  %v6578 = vld [vmem:[#allocation9] ss:$2 sm:$0xff]
  %s6579 = scalar_lea.vmem [#allocation9], 16
  %v6580 = vld [vmem:[%s6579] ss:$2 sm:$0xff]
  %s6581 = scalar_lea.vmem [#allocation9], 32
  %v6582 = vld [vmem:[%s6581] ss:$2 sm:$0xff]
  %s6583 = scalar_lea.vmem [#allocation9], 48
  %v6584 = vld [vmem:[%s6583] ss:$2 sm:$0xff]
  %s6585 = scalar_lea.vmem [#allocation9], 1
  %v6586 = vld [vmem:[%s6585] ss:$2 sm:$0xff]
  %s6587 = scalar_lea.vmem [#allocation9], 17
  %v6588 = vld [vmem:[%s6587] ss:$2 sm:$0xff]
  %s6589 = scalar_lea.vmem [#allocation9], 33
  %v6590 = vld [vmem:[%s6589] ss:$2 sm:$0xff]
  %s6591 = scalar_lea.vmem [#allocation9], 49
  %v6592 = vld [vmem:[%s6591] ss:$2 sm:$0xff]
  %v6593 = vmax.f32 %v6578, %v6586
  %v6594 = vmax.f32 %v6580, %v6588
  %v6595 = vmax.f32 %v6582, %v6590
  %v6596 = vmax.f32 %v6584, %v6592
  %v6597 = vpack.c.bf16 %v6594, %v6593
  %v6598 = vpack.c.bf16 %v6596, %v6595
  %v6601 = vunpack.c.l.b16 %v6597
  %v6602 = vunpack.c.h.b16 %v6597
  %v6603 = vunpack.c.l.b16 %v6598
  %v6604 = vunpack.c.h.b16 %v6598
  %v6605 = vpack.c.b16 %v6601, %v6601
  %v6606 = vpack.c.b16 %v6602, %v6602
  %v6607 = vpack.c.b16 %v6603, %v6603
  %v6608 = vpack.c.b16 %v6604, %v6604
  %vm6613 = vcmask 125952
  %6614 = vst.msk [vmem:[#allocation4 + $0x4] sm:$0xf] %vm6613, %v6605
  %6615 = vst.msk [vmem:[#allocation4 + $0x8] sm:$0xf] %vm6613, %v6606
  %6616 = vst.msk [vmem:[#allocation4 + $0xc] sm:$0xf] %vm6613, %v6607
  %6617 = vst.msk [vmem:[#allocation4 + $0x10] sm:$0xf] %vm6613, %v6608
  %v6618 = vand.u32 %v135, 15
  %v6619 = vand.u32 %v136, 15
  %v6620 = vand.u32 %v137, 15
  %v6621 = vand.u32 %v138, 15
  %v6622 = vld [vmem:[#allocation4] sm:$0xc]
  %v6623 = vld [vmem:[#allocation4 + $0x4] sm:$0xf]
  %v6624 = vld [vmem:[#allocation4 + $0x8] sm:$0xf]
  %v6625 = vld [vmem:[#allocation4 + $0xc] sm:$0xf]
  %v6626 = vld [vmem:[#allocation4 + $0x10] sm:$0x7]
  %vm6627 = vcmp.ge.s32.totalorder %v6618, 3
  %vm6628 = vcmp.ge.s32.totalorder %v6619, 3
  %vm6629 = vcmp.ge.s32.totalorder %v6620, 3
  %vm6630 = vcmp.ge.s32.totalorder %v6621, 3
  %v6631 = vsel %vm6627, 1, 0
  %v6632 = vsel %vm6628, 1, 0
  %v6633 = vsel %vm6629, 1, 0
  %v6634 = vsel %vm6630, 1, 0
  %vm6635 = vcmp.eq.s32.totalorder %v6631, 1
  %vm6636 = vcmp.eq.s32.totalorder %v6632, 1
  %vm6637 = vcmp.eq.s32.totalorder %v6633, 1
  %vm6638 = vcmp.eq.s32.totalorder %v6634, 1
  %vm6639 = vmpackc.low %vm6635, %vm6635
  %vm6640 = vmpackc.low %vm6636, %vm6636
  %vm6641 = vmpackc.low %vm6637, %vm6637
  %vm6642 = vmpackc.low %vm6638, %vm6638
  %v6643 = vsel %vm6639, 65537, 0
  %v6644 = vsel %vm6640, 65537, 0
  %v6645 = vsel %vm6641, 65537, 0
  %v6646 = vsel %vm6642, 65537, 0
  %v6648 = vshrl.u32 %v6643, 16
  %v6650 = vrot.slane %v6648, 5
  %v6651 = vshll.u32 %v6643, 16
  %v6653 = vrot.slane %v6651, 6
  %v6654 = vor.u32 %v6650, %v6653
  %v6655 = vrot.slane %v6654, 4
  %v6657 = vshrl.u32 %v6644, 16
  %v6659 = vrot.slane %v6657, 5
  %v6660 = vshll.u32 %v6644, 16
  %v6662 = vrot.slane %v6660, 6
  %v6663 = vor.u32 %v6659, %v6662
  %v6664 = vsel %vm394, %v6655, %v6663
  %v6665 = vrot.slane %v6663, 4
  %v6667 = vshrl.u32 %v6645, 16
  %v6669 = vrot.slane %v6667, 5
  %v6670 = vshll.u32 %v6645, 16
  %v6672 = vrot.slane %v6670, 6
  %v6673 = vor.u32 %v6669, %v6672
  %v6674 = vsel %vm394, %v6665, %v6673
  %v6675 = vrot.slane %v6673, 4
  %v6677 = vshrl.u32 %v6646, 16
  %v6679 = vrot.slane %v6677, 5
  %v6680 = vshll.u32 %v6646, 16
  %v6682 = vrot.slane %v6680, 6
  %v6683 = vor.u32 %v6679, %v6682
  %v6684 = vsel %vm394, %v6675, %v6683
  %v6685 = vrot.slane %v6683, 4
  %vm6686 = vcmp.ne.s16.totalorder %v6654, 0
  %vm6687 = vcmp.ne.s16.totalorder %v6664, 0
  %vm6688 = vcmp.ne.s16.totalorder %v6674, 0
  %vm6689 = vcmp.ne.s16.totalorder %v6684, 0
  %vm6690 = vcmp.ne.s16.totalorder %v6685, 0
  %v6691 = vsel %vm6686, %v6622, 0
  %v6692 = vsel %vm6687, %v6623, 0
  %v6693 = vsel %vm6688, %v6624, 0
  %v6694 = vsel %vm6689, %v6625, 0
  %v6695 = vsel %vm6690, %v6626, 0
  %v6696 = vld [vmem:[#allocation4] sm:$0x8]
  %vm6697 = vcmp.ge.s32.totalorder %v6618, 2
  %vm6698 = vcmp.ge.s32.totalorder %v6619, 2
  %vm6699 = vcmp.ge.s32.totalorder %v6620, 2
  %vm6700 = vcmp.ge.s32.totalorder %v6621, 2
  %v6701 = vsel %vm6697, 1, 0
  %v6702 = vsel %vm6698, 1, 0
  %v6703 = vsel %vm6699, 1, 0
  %v6704 = vsel %vm6700, 1, 0
  %vm6705 = vcmp.eq.s32.totalorder %v6701, 1
  %vm6706 = vcmp.eq.s32.totalorder %v6702, 1
  %vm6707 = vcmp.eq.s32.totalorder %v6703, 1
  %vm6708 = vcmp.eq.s32.totalorder %v6704, 1
  %vm6709 = vmpackc.low %vm6705, %vm6705
  %vm6710 = vmpackc.low %vm6706, %vm6706
  %vm6711 = vmpackc.low %vm6707, %vm6707
  %vm6712 = vmpackc.low %vm6708, %vm6708
  %v6713 = vsel %vm6709, 65537, 0
  %v6714 = vsel %vm6710, 65537, 0
  %v6715 = vsel %vm6711, 65537, 0
  %v6716 = vsel %vm6712, 65537, 0
  %v6717 = vrot.slane %v6713, 5
  %v6718 = vrot.slane %v6717, 4
  %v6719 = vrot.slane %v6714, 5
  %v6720 = vsel %vm943, %v6718, %v6719
  %v6721 = vrot.slane %v6719, 4
  %v6722 = vrot.slane %v6715, 5
  %v6723 = vsel %vm943, %v6721, %v6722
  %v6724 = vrot.slane %v6722, 4
  %v6725 = vrot.slane %v6716, 5
  %v6726 = vsel %vm943, %v6724, %v6725
  %v6727 = vrot.slane %v6725, 4
  %vm6728 = vcmp.ne.s16.totalorder %v6717, 0
  %vm6729 = vcmp.ne.s16.totalorder %v6720, 0
  %vm6730 = vcmp.ne.s16.totalorder %v6723, 0
  %vm6731 = vcmp.ne.s16.totalorder %v6726, 0
  %vm6732 = vcmp.ne.s16.totalorder %v6727, 0
  %v6733 = vsel %vm6728, %v6696, 0
  %v6734 = vsel %vm6729, %v6623, 0
  %v6735 = vsel %vm6730, %v6624, 0
  %v6736 = vsel %vm6731, %v6625, 0
  %v6737 = vsel %vm6732, %v6626, 0
  %v6738 = vld [vmem:[#allocation4 + $0x10] sm:$0xf]
  %vm6739 = vcmp.ge.s32.totalorder %v6618, 1
  %vm6740 = vcmp.ge.s32.totalorder %v6619, 1
  %vm6741 = vcmp.ge.s32.totalorder %v6620, 1
  %vm6742 = vcmp.ge.s32.totalorder %v6621, 1
  %v6743 = vsel %vm6739, 1, 0
  %v6744 = vsel %vm6740, 1, 0
  %v6745 = vsel %vm6741, 1, 0
  %v6746 = vsel %vm6742, 1, 0
  %vm6747 = vcmp.eq.s32.totalorder %v6743, 1
  %vm6748 = vcmp.eq.s32.totalorder %v6744, 1
  %vm6749 = vcmp.eq.s32.totalorder %v6745, 1
  %vm6750 = vcmp.eq.s32.totalorder %v6746, 1
  %vm6751 = vmpackc.low %vm6747, %vm6747
  %vm6752 = vmpackc.low %vm6748, %vm6748
  %vm6753 = vmpackc.low %vm6749, %vm6749
  %vm6754 = vmpackc.low %vm6750, %vm6750
  %v6755 = vsel %vm6751, 65537, 0
  %v6756 = vsel %vm6752, 65537, 0
  %v6757 = vsel %vm6753, 65537, 0
  %v6758 = vsel %vm6754, 65537, 0
  %v6760 = vshll.u32 %v6755, 16
  %v6762 = vrot.slane %v6760, 5
  %v6763 = vshrl.u32 %v6755, 16
  %v6765 = vrot.slane %v6763, 4
  %v6766 = vor.u32 %v6765, %v6762
  %v6767 = vrot.slane %v6766, 4
  %v6769 = vshll.u32 %v6756, 16
  %v6771 = vrot.slane %v6769, 5
  %v6772 = vsel %vm1268, %v6767, %v6771
  %v6773 = vshrl.u32 %v6756, 16
  %v6775 = vrot.slane %v6773, 4
  %v6776 = vor.u32 %v6775, %v6771
  %v6777 = vrot.slane %v6776, 4
  %v6779 = vshll.u32 %v6757, 16
  %v6781 = vrot.slane %v6779, 5
  %v6782 = vsel %vm1268, %v6777, %v6781
  %v6783 = vshrl.u32 %v6757, 16
  %v6785 = vrot.slane %v6783, 4
  %v6786 = vor.u32 %v6785, %v6781
  %v6787 = vrot.slane %v6786, 4
  %v6789 = vshll.u32 %v6758, 16
  %v6791 = vrot.slane %v6789, 5
  %v6792 = vsel %vm1268, %v6787, %v6791
  %v6793 = vshrl.u32 %v6758, 16
  %v6795 = vrot.slane %v6793, 4
  %v6796 = vor.u32 %v6795, %v6791
  %v6797 = vrot.slane %v6796, 4
  %vm6798 = vcmp.ne.s16.totalorder %v6762, 0
  %vm6799 = vcmp.ne.s16.totalorder %v6772, 0
  %vm6800 = vcmp.ne.s16.totalorder %v6782, 0
  %vm6801 = vcmp.ne.s16.totalorder %v6792, 0
  %vm6802 = vcmp.ne.s16.totalorder %v6797, 0
  %v6803 = vsel %vm6798, %v6696, 0
  %v6804 = vsel %vm6799, %v6623, 0
  %v6805 = vsel %vm6800, %v6624, 0
  %v6806 = vsel %vm6801, %v6625, 0
  %v6807 = vsel %vm6802, %v6738, 0
  %v6808 = vld [vmem:[#allocation4 + $0x14] sm:$0x1]
  %vm6809 = vcmp.lt.s32.totalorder %v6618, 15
  %vm6810 = vcmp.lt.s32.totalorder %v6619, 15
  %vm6811 = vcmp.lt.s32.totalorder %v6620, 15
  %vm6812 = vcmp.lt.s32.totalorder %v6621, 15
  %v6813 = vsel %vm6809, 1, 0
  %v6814 = vsel %vm6810, 1, 0
  %v6815 = vsel %vm6811, 1, 0
  %v6816 = vsel %vm6812, 1, 0
  %vm6817 = vcmp.eq.s32.totalorder %v6813, 1
  %vm6818 = vcmp.eq.s32.totalorder %v6814, 1
  %vm6819 = vcmp.eq.s32.totalorder %v6815, 1
  %vm6820 = vcmp.eq.s32.totalorder %v6816, 1
  %vm6821 = vmpackc.low %vm6817, %vm6817
  %vm6822 = vmpackc.low %vm6818, %vm6818
  %vm6823 = vmpackc.low %vm6819, %vm6819
  %vm6824 = vmpackc.low %vm6820, %vm6820
  %v6825 = vsel %vm6821, 65537, 0
  %v6826 = vsel %vm6822, 65537, 0
  %v6827 = vsel %vm6823, 65537, 0
  %v6828 = vsel %vm6824, 65537, 0
  %v6830 = vshrl.u32 %v6825, 16
  %v6832 = vrot.slane %v6830, 7
  %v6833 = vshll.u32 %v6825, 16
  %v6835 = vor.u32 %v6832, %v6833
  %v6836 = vrot.slane %v6832, 4
  %v6838 = vshrl.u32 %v6826, 16
  %v6840 = vrot.slane %v6838, 7
  %v6841 = vshll.u32 %v6826, 16
  %v6843 = vor.u32 %v6840, %v6841
  %v6844 = vsel %vm1817, %v6836, %v6843
  %v6845 = vrot.slane %v6840, 4
  %v6847 = vshrl.u32 %v6827, 16
  %v6849 = vrot.slane %v6847, 7
  %v6850 = vshll.u32 %v6827, 16
  %v6852 = vor.u32 %v6849, %v6850
  %v6853 = vsel %vm1817, %v6845, %v6852
  %v6854 = vrot.slane %v6849, 4
  %v6856 = vshrl.u32 %v6828, 16
  %v6858 = vrot.slane %v6856, 7
  %v6859 = vshll.u32 %v6828, 16
  %v6861 = vor.u32 %v6858, %v6859
  %v6862 = vsel %vm1817, %v6854, %v6861
  %v6863 = vrot.slane %v6858, 4
  %vm6864 = vcmp.ne.s16.totalorder %v6835, 0
  %vm6865 = vcmp.ne.s16.totalorder %v6844, 0
  %vm6866 = vcmp.ne.s16.totalorder %v6853, 0
  %vm6867 = vcmp.ne.s16.totalorder %v6862, 0
  %vm6868 = vcmp.ne.s16.totalorder %v6863, 0
  %v6869 = vsel %vm6864, %v6623, 0
  %v6870 = vsel %vm6865, %v6624, 0
  %v6871 = vsel %vm6866, %v6625, 0
  %v6872 = vsel %vm6867, %v6738, 0
  %v6873 = vsel %vm6868, %v6808, 0
  %v6874 = vld [vmem:[#allocation4 + $0x4] sm:$0xe]
  %vm6875 = vcmp.lt.s32.totalorder %v6618, 14
  %vm6876 = vcmp.lt.s32.totalorder %v6619, 14
  %vm6877 = vcmp.lt.s32.totalorder %v6620, 14
  %vm6878 = vcmp.lt.s32.totalorder %v6621, 14
  %v6879 = vsel %vm6875, 1, 0
  %v6880 = vsel %vm6876, 1, 0
  %v6881 = vsel %vm6877, 1, 0
  %v6882 = vsel %vm6878, 1, 0
  %vm6883 = vcmp.eq.s32.totalorder %v6879, 1
  %vm6884 = vcmp.eq.s32.totalorder %v6880, 1
  %vm6885 = vcmp.eq.s32.totalorder %v6881, 1
  %vm6886 = vcmp.eq.s32.totalorder %v6882, 1
  %vm6887 = vmpackc.low %vm6883, %vm6883
  %vm6888 = vmpackc.low %vm6884, %vm6884
  %vm6889 = vmpackc.low %vm6885, %vm6885
  %vm6890 = vmpackc.low %vm6886, %vm6886
  %v6891 = vsel %vm6887, 65537, 0
  %v6892 = vsel %vm6888, 65537, 0
  %v6893 = vsel %vm6889, 65537, 0
  %v6894 = vsel %vm6890, 65537, 0
  %v6895 = vrot.slane %v6891, 7
  %v6896 = vrot.slane %v6895, 4
  %v6897 = vrot.slane %v6892, 7
  %v6898 = vsel %vm2334, %v6896, %v6897
  %v6899 = vrot.slane %v6897, 4
  %v6900 = vrot.slane %v6893, 7
  %v6901 = vsel %vm2334, %v6899, %v6900
  %v6902 = vrot.slane %v6900, 4
  %v6903 = vrot.slane %v6894, 7
  %v6904 = vsel %vm2334, %v6902, %v6903
  %v6905 = vrot.slane %v6903, 4
  %vm6906 = vcmp.ne.s16.totalorder %v6895, 0
  %vm6907 = vcmp.ne.s16.totalorder %v6898, 0
  %vm6908 = vcmp.ne.s16.totalorder %v6901, 0
  %vm6909 = vcmp.ne.s16.totalorder %v6904, 0
  %vm6910 = vcmp.ne.s16.totalorder %v6905, 0
  %v6911 = vsel %vm6906, %v6874, 0
  %v6912 = vsel %vm6907, %v6624, 0
  %v6913 = vsel %vm6908, %v6625, 0
  %v6914 = vsel %vm6909, %v6738, 0
  %v6915 = vsel %vm6910, %v6808, 0
  %v6916 = vld [vmem:[#allocation4 + $0x14] sm:$0x3]
  %vm6917 = vcmp.lt.s32.totalorder %v6618, 13
  %vm6918 = vcmp.lt.s32.totalorder %v6619, 13
  %vm6919 = vcmp.lt.s32.totalorder %v6620, 13
  %vm6920 = vcmp.lt.s32.totalorder %v6621, 13
  %v6921 = vsel %vm6917, 1, 0
  %v6922 = vsel %vm6918, 1, 0
  %v6923 = vsel %vm6919, 1, 0
  %v6924 = vsel %vm6920, 1, 0
  %vm6925 = vcmp.eq.s32.totalorder %v6921, 1
  %vm6926 = vcmp.eq.s32.totalorder %v6922, 1
  %vm6927 = vcmp.eq.s32.totalorder %v6923, 1
  %vm6928 = vcmp.eq.s32.totalorder %v6924, 1
  %vm6929 = vmpackc.low %vm6925, %vm6925
  %vm6930 = vmpackc.low %vm6926, %vm6926
  %vm6931 = vmpackc.low %vm6927, %vm6927
  %vm6932 = vmpackc.low %vm6928, %vm6928
  %v6933 = vsel %vm6929, 65537, 0
  %v6934 = vsel %vm6930, 65537, 0
  %v6935 = vsel %vm6931, 65537, 0
  %v6936 = vsel %vm6932, 65537, 0
  %v6938 = vshrl.u32 %v6933, 16
  %v6940 = vrot.slane %v6938, 6
  %v6941 = vshll.u32 %v6933, 16
  %v6943 = vrot.slane %v6941, 7
  %v6944 = vor.u32 %v6940, %v6943
  %v6945 = vrot.slane %v6944, 4
  %v6947 = vshrl.u32 %v6934, 16
  %v6949 = vrot.slane %v6947, 6
  %v6950 = vshll.u32 %v6934, 16
  %v6952 = vrot.slane %v6950, 7
  %v6953 = vor.u32 %v6949, %v6952
  %v6954 = vsel %vm2659, %v6945, %v6953
  %v6955 = vrot.slane %v6953, 4
  %v6957 = vshrl.u32 %v6935, 16
  %v6959 = vrot.slane %v6957, 6
  %v6960 = vshll.u32 %v6935, 16
  %v6962 = vrot.slane %v6960, 7
  %v6963 = vor.u32 %v6959, %v6962
  %v6964 = vsel %vm2659, %v6955, %v6963
  %v6965 = vrot.slane %v6963, 4
  %v6967 = vshrl.u32 %v6936, 16
  %v6969 = vrot.slane %v6967, 6
  %v6970 = vshll.u32 %v6936, 16
  %v6972 = vrot.slane %v6970, 7
  %v6973 = vor.u32 %v6969, %v6972
  %v6974 = vsel %vm2659, %v6965, %v6973
  %v6975 = vrot.slane %v6973, 4
  %vm6976 = vcmp.ne.s16.totalorder %v6944, 0
  %vm6977 = vcmp.ne.s16.totalorder %v6954, 0
  %vm6978 = vcmp.ne.s16.totalorder %v6964, 0
  %vm6979 = vcmp.ne.s16.totalorder %v6974, 0
  %vm6980 = vcmp.ne.s16.totalorder %v6975, 0
  %v6981 = vsel %vm6976, %v6874, 0
  %v6982 = vsel %vm6977, %v6624, 0
  %v6983 = vsel %vm6978, %v6625, 0
  %v6984 = vsel %vm6979, %v6738, 0
  %v6985 = vsel %vm6980, %v6916, 0
  %v6991 = vunpack.c.l.b16 %v6691
  %v6992 = vunpack.c.l.b16 %v6692
  %v6993 = vunpack.c.l.b16 %v6693
  %v6994 = vunpack.c.l.b16 %v6694
  %v6995 = vunpack.c.l.b16 %v6695
  %v6996 = vpack.c.b16 %v6992, %v6991
  %v6997 = vpack.c.b16 %v6994, %v6993
  %v6998 = vpack.c.b16 %v6995, %v6995
  %v7004 = vunpack.c.l.b16 %v6733
  %v7005 = vunpack.c.l.b16 %v6734
  %v7006 = vunpack.c.l.b16 %v6735
  %v7007 = vunpack.c.l.b16 %v6736
  %v7008 = vunpack.c.l.b16 %v6737
  %v7009 = vpack.c.b16 %v7005, %v7004
  %v7010 = vpack.c.b16 %v7007, %v7006
  %v7011 = vpack.c.b16 %v7008, %v7008
  %v7013 = vshrl.u32 %v7009, 16
  %v7015 = vshll.u32 %v7009, 16
  %v7017 = vrot.slane %v7015, 1
  %v7018 = vor.u32 %v7013, %v7017
  %v7020 = vshll.u32 %v7010, 16
  %v7022 = vrot.slane %v7020, 1
  %v7023 = vsel %vm3211, %v7018, %v7022
  %v7024 = vshrl.u32 %v7010, 16
  %v7026 = vor.u32 %v7024, %v7022
  %v7028 = vshll.u32 %v7011, 16
  %v7030 = vrot.slane %v7028, 1
  %v7031 = vsel %vm3211, %v7026, %v7030
  %v7032 = vshrl.u32 %v7011, 16
  %v7034 = vor.u32 %v7032, %v7030
  %7035 = vrot.lane.b32.xlu0 %v7023, 16
  %v7036 = vpop.permute.xlu0 %7035
  %7037 = vrot.lane.b32.xlu0 %v7031, 16
  %v7038 = vpop.permute.xlu0 %7037
  %7039 = vrot.lane.b32.xlu0 %v7034, 16
  %v7040 = vpop.permute.xlu0 %7039
  %v7046 = vunpack.c.l.b16 %v6803
  %v7047 = vunpack.c.l.b16 %v6804
  %v7048 = vunpack.c.l.b16 %v6805
  %v7049 = vunpack.c.l.b16 %v6806
  %v7050 = vunpack.c.l.b16 %v6807
  %v7051 = vpack.c.b16 %v7047, %v7046
  %v7052 = vpack.c.b16 %v7049, %v7048
  %v7053 = vpack.c.b16 %v7050, %v7050
  %v7054 = vrot.slane %v7051, 1
  %v7055 = vrot.slane %v7052, 1
  %v7056 = vsel %vm3464, %v7054, %v7055
  %v7057 = vrot.slane %v7053, 1
  %v7058 = vsel %vm3464, %v7055, %v7057
  %7059 = vrot.lane.b32.xlu0 %v7056, 32
  %v7060 = vpop.permute.xlu0 %7059
  %7061 = vrot.lane.b32.xlu0 %v7058, 32
  %v7062 = vpop.permute.xlu0 %7061
  %7063 = vrot.lane.b32.xlu0 %v7057, 32
  %v7064 = vpop.permute.xlu0 %7063
  %v7069 = vunpack.c.l.b16 %v6623
  %v7070 = vunpack.c.l.b16 %v6624
  %v7071 = vunpack.c.l.b16 %v6625
  %v7072 = vunpack.c.l.b16 %v6738
  %v7073 = vpack.c.b16 %v7070, %v7069
  %v7074 = vpack.c.b16 %v7072, %v7071
  %v7076 = vshrl.u32 %v7073, 16
  %v7078 = vrot.slane %v7076, 5
  %v7079 = vshll.u32 %v7073, 16
  %v7081 = vrot.slane %v7079, 6
  %v7082 = vor.u32 %v7078, %v7081
  %v7084 = vshrl.u32 %v7074, 16
  %v7086 = vrot.slane %v7084, 5
  %v7087 = vshll.u32 %v7074, 16
  %v7089 = vrot.slane %v7087, 6
  %v7090 = vor.u32 %v7086, %v7089
  %v7091 = vsel %vm392, %v7082, %v7090
  %7092 = vrot.lane.b32.xlu0 %v7082, 48
  %v7093 = vpop.permute.xlu0 %7092
  %7094 = vrot.lane.b32.xlu0 %v7091, 48
  %v7095 = vpop.permute.xlu0 %7094
  %7096 = vrot.lane.b32.xlu0 %v7090, 48
  %v7097 = vpop.permute.xlu0 %7096
  %v7103 = vunpack.c.l.b16 %v6869
  %v7104 = vunpack.c.l.b16 %v6870
  %v7105 = vunpack.c.l.b16 %v6871
  %v7106 = vunpack.c.l.b16 %v6872
  %v7107 = vunpack.c.l.b16 %v6873
  %v7108 = vpack.c.b16 %v7104, %v7103
  %v7109 = vpack.c.b16 %v7106, %v7105
  %v7110 = vpack.c.b16 %v7107, %v7107
  %v7111 = vrot.slane %v7108, 6
  %v7112 = vrot.slane %v7109, 6
  %v7113 = vsel %vm3872, %v7111, %v7112
  %v7114 = vrot.slane %v7110, 6
  %v7115 = vsel %vm3872, %v7112, %v7114
  %7116 = vrot.lane.b32.xlu0 %v7111, 64
  %v7117 = vpop.permute.xlu0 %7116
  %7118 = vrot.lane.b32.xlu0 %v7113, 64
  %v7119 = vpop.permute.xlu0 %7118
  %7120 = vrot.lane.b32.xlu0 %v7115, 64
  %v7121 = vpop.permute.xlu0 %7120
  %v7127 = vunpack.c.l.b16 %v6911
  %v7128 = vunpack.c.l.b16 %v6912
  %v7129 = vunpack.c.l.b16 %v6913
  %v7130 = vunpack.c.l.b16 %v6914
  %v7131 = vunpack.c.l.b16 %v6915
  %v7132 = vpack.c.b16 %v7128, %v7127
  %v7133 = vpack.c.b16 %v7130, %v7129
  %v7134 = vpack.c.b16 %v7131, %v7131
  %v7136 = vshrl.u32 %v7132, 16
  %v7138 = vrot.slane %v7136, 6
  %v7139 = vshll.u32 %v7132, 16
  %v7141 = vrot.slane %v7139, 7
  %v7142 = vor.u32 %v7138, %v7141
  %v7144 = vshrl.u32 %v7133, 16
  %v7146 = vrot.slane %v7144, 6
  %v7147 = vshll.u32 %v7133, 16
  %v7149 = vrot.slane %v7147, 7
  %v7150 = vor.u32 %v7146, %v7149
  %v7151 = vsel %vm2657, %v7142, %v7150
  %v7153 = vshrl.u32 %v7134, 16
  %v7155 = vrot.slane %v7153, 6
  %v7156 = vshll.u32 %v7134, 16
  %v7158 = vrot.slane %v7156, 7
  %v7159 = vor.u32 %v7155, %v7158
  %v7160 = vsel %vm2657, %v7150, %v7159
  %7161 = vrot.lane.b32.xlu0 %v7142, 80
  %v7162 = vpop.permute.xlu0 %7161
  %7163 = vrot.lane.b32.xlu0 %v7151, 80
  %v7164 = vpop.permute.xlu0 %7163
  %7165 = vrot.lane.b32.xlu0 %v7160, 80
  %v7166 = vpop.permute.xlu0 %7165
  %v7172 = vunpack.c.l.b16 %v6981
  %v7173 = vunpack.c.l.b16 %v6982
  %v7174 = vunpack.c.l.b16 %v6983
  %v7175 = vunpack.c.l.b16 %v6984
  %v7176 = vunpack.c.l.b16 %v6985
  %v7177 = vpack.c.b16 %v7173, %v7172
  %v7178 = vpack.c.b16 %v7175, %v7174
  %v7179 = vpack.c.b16 %v7176, %v7176
  %v7180 = vrot.slane %v7177, 7
  %v7181 = vrot.slane %v7178, 7
  %v7182 = vsel %vm2332, %v7180, %v7181
  %v7183 = vrot.slane %v7179, 7
  %v7184 = vsel %vm2332, %v7181, %v7183
  %7185 = vrot.lane.b32.xlu0 %v7180, 96
  %v7186 = vpop.permute.xlu0 %7185
  %7187 = vrot.lane.b32.xlu0 %v7182, 96
  %v7188 = vpop.permute.xlu0 %7187
  %7189 = vrot.lane.b32.xlu0 %v7184, 96
  %v7190 = vpop.permute.xlu0 %7189
  %v7193 = vsel %vm4411, %v6996, %v7036
  %v7196 = vsel %vm4411, %v6997, %v7038
  %v7199 = vsel %vm4411, %v6998, %v7040
  %v7201 = vsel %vm4481, %v7193, %v7060
  %v7203 = vsel %vm4481, %v7196, %v7062
  %v7205 = vsel %vm4481, %v7199, %v7064
  %v7207 = vsel %vm4551, %v7201, %v7093
  %v7209 = vsel %vm4551, %v7203, %v7095
  %v7211 = vsel %vm4551, %v7205, %v7097
  %vm7212 = vcmask 523264
  %v7214 = vsel %vm7212, %v7207, %v7117
  %v7216 = vsel %vm7212, %v7209, %v7119
  %v7218 = vsel %vm7212, %v7211, %v7121
  %vm7219 = vcmask 654336
  %v7221 = vsel %vm7219, %v7214, %v7162
  %v7223 = vsel %vm7219, %v7216, %v7164
  %v7225 = vsel %vm7219, %v7218, %v7166
  %vm7226 = vcmask 785408
  %v7228 = vsel %vm7226, %v7221, %v7186
  %v7230 = vsel %vm7226, %v7223, %v7188
  %v7232 = vsel %vm7226, %v7225, %v7190
  %v7233 = vld [vmem:[%s7] sm:$0xf]
  %v7234 = vld [vmem:[%s7 + $0x4] sm:$0xf]
  %v7235 = vld [vmem:[%s7 + $0x8] sm:$0xf]
  %v7236 = vld [vmem:[%s7 + $0xc] sm:$0xf]
  %v7237 = vld [vmem:[%s7 + $0x10] sm:$0xf]
  %v7238 = vld [vmem:[%s7 + $0x14] sm:$0xf]
  %v7239 = vld [vmem:[%s7 + $0x18] sm:$0xf]
  %v7240 = vld [vmem:[%s7 + $0x1c] sm:$0xf]
  %v7241 = vld [vmem:[%s7 + $0x20] sm:$0xf]
  %v7242 = vld [vmem:[%s7 + $0x24] sm:$0xf]
  %v7243 = vld [vmem:[%s7 + $0x28] sm:$0xf]
  %v7244 = vld [vmem:[%s7 + $0x2c] sm:$0xf]
  %v7245 = vld [vmem:[%s7 + $0x30] sm:$0xf]
  %v7246 = vld [vmem:[%s7 + $0x34] sm:$0xf]
  %v7247 = vshrl.u32 %v7228, 16
  %v7249 = vrot.slane %v7247, 2
  %v7250 = vshll.u32 %v7228, 16
  %v7252 = vrot.slane %v7250, 3
  %v7253 = vor.u32 %v7249, %v7252
  %v7254 = vshrl.u32 %v7230, 16
  %v7256 = vrot.slane %v7254, 2
  %v7257 = vshll.u32 %v7230, 16
  %v7259 = vrot.slane %v7257, 3
  %v7260 = vor.u32 %v7256, %v7259
  %v7261 = vsel %vm4593, %v7253, %v7260
  %v7262 = vshrl.u32 %v7232, 16
  %v7264 = vrot.slane %v7262, 2
  %v7265 = vshll.u32 %v7232, 16
  %v7267 = vrot.slane %v7265, 3
  %v7268 = vor.u32 %v7264, %v7267
  %v7269 = vsel %vm4593, %v7260, %v7268
  %v7284 = vunpack.c.l.b16 %v7233
  %v7285 = vunpack.c.l.b16 %v7234
  %v7286 = vunpack.c.l.b16 %v7235
  %v7287 = vunpack.c.l.b16 %v7236
  %v7288 = vunpack.c.l.b16 %v7237
  %v7289 = vunpack.c.l.b16 %v7238
  %v7290 = vunpack.c.l.b16 %v7239
  %v7291 = vunpack.c.l.b16 %v7240
  %v7292 = vunpack.c.l.b16 %v7241
  %v7293 = vunpack.c.l.b16 %v7242
  %v7294 = vunpack.c.l.b16 %v7243
  %v7295 = vunpack.c.l.b16 %v7244
  %v7296 = vunpack.c.l.b16 %v7245
  %v7297 = vunpack.c.l.b16 %v7246
  %v7298 = vpack.c.b16 %v7285, %v7284
  %v7299 = vpack.c.b16 %v7287, %v7286
  %v7300 = vpack.c.b16 %v7289, %v7288
  %v7301 = vpack.c.b16 %v7291, %v7290
  %v7302 = vpack.c.b16 %v7293, %v7292
  %v7303 = vpack.c.b16 %v7295, %v7294
  %v7304 = vpack.c.b16 %v7297, %v7296
  %vm7312 = vcmask 916480
  %v7314 = vsel %vm7312, %v7261, 0
  %v7317 = vsel %vm7312, %v7269, 0
  %7319 = vmatprep.subr.bf16.mxu0 0
  %7320 = vmatpush1.bf16.msra.mxu0 0
  %7321 = vmatprep.subr.bf16.mxu0 0
  %7322 = vmatpush1.bf16.msra.mxu0 %v7304
  %7323 = vmatprep.subr.bf16.mxu0 0
  %7324 = vmatpush1.bf16.msra.mxu0 %v7303
  %7325 = vmatprep.subr.bf16.mxu0 0
  %7326 = vmatpush1.bf16.msra.mxu0 %v7302
  %7327 = vmatprep.subr.bf16.mxu0 0
  %7328 = vmatpush1.bf16.msra.mxu0 %v7301
  %7329 = vmatprep.subr.bf16.mxu0 0
  %7330 = vmatpush1.bf16.msra.mxu0 %v7300
  %7331 = vmatprep.subr.bf16.mxu0 0
  %7332 = vmatpush1.bf16.msra.mxu0 %v7299
  %7333 = vmatprep.subr.bf16.mxu0 0
  %7334 = vmatpush1.bf16.msra.mxu0 %v7298
  %7335 = vmatprep.subr.bf16.mxu0 0
  %7336 = vmatpush2.bf16.msra.mxu0 0
  %7337 = vmatprep.subr.bf16.mxu0 0
  %7338 = vmatpush2.bf16.msra.mxu0 0
  %7339 = vmatprep.subr.bf16.mxu0 0
  %7340 = vmatpush2.bf16.msra.mxu0 0
  %7341 = vmatprep.subr.bf16.mxu0 0
  %7342 = vmatpush2.bf16.msra.mxu0 0
  %7343 = vmatprep.subr.bf16.mxu0 0
  %7344 = vmatpush2.bf16.msra.mxu0 0
  %7345 = vmatprep.subr.bf16.mxu0 0
  %7346 = vmatpush2.bf16.msra.mxu0 0
  %7347 = vmatprep.subr.bf16.mxu0 0
  %7348 = vmatpush2.bf16.msra.mxu0 0
  %7349 = vmatprep.subr.bf16.mxu0 0
  %7350 = vmatpush2.bf16.msra.mxu0 0
  %7351 = vmatprep.mubr.bf16.mxu0 0
  %7352 = vmatmul.mubr.bf16.gmra.mxu0 %v7314
  %v7353 = vpop.f32.mrf.mxu0
  %v7354 = vadd.f32 0.0, %v7353
  %v7355 = vpop.f32.mrf.mxu0
  %v7356 = vpop.f32.mrf.mxu0
  %v7357 = vadd.f32 0.0, %v7356
  %v7358 = vpop.f32.mrf.mxu0
  %7359 = vmatprep.mubr.bf16.mxu0 0
  %7360 = vmatmul.mubr.bf16.gmra.mxu0 %v7317
  %v7361 = vpop.f32.mrf.mxu0
  %v7362 = vadd.f32 0.0, %v7361
  %v7363 = vpop.f32.mrf.mxu0
  %v7364 = vpop.f32.mrf.mxu0
  %v7365 = vadd.f32 0.0, %v7364
  %v7366 = vpop.f32.mrf.mxu0
  %7367 = vdwg.mxu0
  %v7368 = vld [vmem:[%s8] sm:$0x1]
  %v7370 = vlaneseq
  %v7371 = vshrl.u32 %v7370, 7
  %v7372 = vsub.s32 0, %v7371
  %v7373 = vrot.slane %v7368, %v7372
  %v7375 = vmul.f32 %v7354, %v7373
  %v7376 = vmul.f32 %v7357, %v7373
  %v7377 = vmul.f32 %v7362, %v7373
  %v7378 = vmul.f32 %v7365, %v7373
  %v7379 = vld [vmem:[%s9] sm:$0x1]
  %v7381 = vlaneseq
  %v7382 = vshrl.u32 %v7381, 7
  %v7383 = vsub.s32 0, %v7382
  %v7384 = vrot.slane %v7379, %v7383
  %v7386 = vadd.f32 %v7375, %v7384
  %v7387 = vadd.f32 %v7376, %v7384
  %v7388 = vadd.f32 %v7377, %v7384
  %v7389 = vadd.f32 %v7378, %v7384
  %v7390 = vmax.f32 %v7386, 0.0
  %v7391 = vmax.f32 %v7387, 0.0
  %v7392 = vmax.f32 %v7388, 0.0
  %v7393 = vmax.f32 %v7389, 0.0
  %7394 = vst.msk [vmem:[#allocation10] sm:$0xff] %vm4481, %v7390
  %7395 = vst.msk [vmem:[#allocation10 + $0x8] sm:$0xff] %vm4481, %v7391
  %7396 = vst.msk [vmem:[#allocation10 + $0x10] sm:$0xff] %vm4481, %v7392
  %7397 = vst.msk [vmem:[#allocation10 + $0x18] sm:$0xff] %vm4481, %v7393
  %v7398 = vld [vmem:[#allocation10] ss:$2 sm:$0xff]
  %s7399 = scalar_lea.vmem [#allocation10], 16
  %v7400 = vld [vmem:[%s7399] ss:$2 sm:$0xff]
  %s7401 = scalar_lea.vmem [#allocation10], 1
  %v7402 = vld [vmem:[%s7401] ss:$2 sm:$0xff]
  %s7403 = scalar_lea.vmem [#allocation10], 17
  %v7404 = vld [vmem:[%s7403] ss:$2 sm:$0xff]
  %v7405 = vmax.f32 %v7398, %v7402
  %v7406 = vmax.f32 %v7400, %v7404
  %v7407 = vpack.c.bf16 %v7406, %v7405
  %v7409 = vunpack.c.l.b16 %v7407
  %v7410 = vunpack.c.h.b16 %v7407
  %v7411 = vpack.c.b16 %v7409, %v7409
  %v7412 = vpack.c.b16 %v7410, %v7410
  %vm7415 = vcmask 257024
  %7416 = vst.msk [vmem:[#allocation5 + $0x4] sm:$0xf] %vm7415, %v7411
  %7417 = vst.msk [vmem:[#allocation5 + $0x8] sm:$0xf] %vm7415, %v7412
  %v7418 = vand.u32 %v135, 7
  %v7419 = vand.u32 %v136, 7
  %v7420 = vld [vmem:[#allocation5] sm:$0x8]
  %v7421 = vld [vmem:[#allocation5 + $0x4] sm:$0xf]
  %v7422 = vld [vmem:[#allocation5 + $0x8] sm:$0x7]
  %vm7423 = vcmp.ge.s32.totalorder %v7418, 2
  %vm7424 = vcmp.ge.s32.totalorder %v7419, 2
  %v7425 = vsel %vm7423, 1, 0
  %v7426 = vsel %vm7424, 1, 0
  %vm7427 = vcmp.eq.s32.totalorder %v7425, 1
  %vm7428 = vcmp.eq.s32.totalorder %v7426, 1
  %vm7429 = vmpackc.low %vm7427, %vm7427
  %vm7430 = vmpackc.low %vm7428, %vm7428
  %v7431 = vsel %vm7429, 65537, 0
  %v7432 = vsel %vm7430, 65537, 0
  %v7433 = vrot.slane %v7431, 5
  %v7434 = vrot.slane %v7433, 4
  %v7435 = vrot.slane %v7432, 5
  %v7436 = vsel %vm943, %v7434, %v7435
  %v7437 = vrot.slane %v7435, 4
  %vm7438 = vcmp.ne.s16.totalorder %v7433, 0
  %vm7439 = vcmp.ne.s16.totalorder %v7436, 0
  %vm7440 = vcmp.ne.s16.totalorder %v7437, 0
  %v7441 = vsel %vm7438, %v7420, 0
  %v7442 = vsel %vm7439, %v7421, 0
  %v7443 = vsel %vm7440, %v7422, 0
  %v7444 = vld [vmem:[#allocation5 + $0x8] sm:$0xf]
  %vm7445 = vcmp.ge.s32.totalorder %v7418, 1
  %vm7446 = vcmp.ge.s32.totalorder %v7419, 1
  %v7447 = vsel %vm7445, 1, 0
  %v7448 = vsel %vm7446, 1, 0
  %vm7449 = vcmp.eq.s32.totalorder %v7447, 1
  %vm7450 = vcmp.eq.s32.totalorder %v7448, 1
  %vm7451 = vmpackc.low %vm7449, %vm7449
  %vm7452 = vmpackc.low %vm7450, %vm7450
  %v7453 = vsel %vm7451, 65537, 0
  %v7454 = vsel %vm7452, 65537, 0
  %v7456 = vshll.u32 %v7453, 16
  %v7458 = vrot.slane %v7456, 5
  %v7459 = vshrl.u32 %v7453, 16
  %v7461 = vrot.slane %v7459, 4
  %v7462 = vor.u32 %v7461, %v7458
  %v7463 = vrot.slane %v7462, 4
  %v7465 = vshll.u32 %v7454, 16
  %v7467 = vrot.slane %v7465, 5
  %v7468 = vsel %vm1268, %v7463, %v7467
  %v7469 = vshrl.u32 %v7454, 16
  %v7471 = vrot.slane %v7469, 4
  %v7472 = vor.u32 %v7471, %v7467
  %v7473 = vrot.slane %v7472, 4
  %vm7474 = vcmp.ne.s16.totalorder %v7458, 0
  %vm7475 = vcmp.ne.s16.totalorder %v7468, 0
  %vm7476 = vcmp.ne.s16.totalorder %v7473, 0
  %v7477 = vsel %vm7474, %v7420, 0
  %v7478 = vsel %vm7475, %v7421, 0
  %v7479 = vsel %vm7476, %v7444, 0
  %v7480 = vld [vmem:[#allocation5 + $0xc] sm:$0x1]
  %vm7481 = vcmp.lt.s32.totalorder %v7418, 7
  %vm7482 = vcmp.lt.s32.totalorder %v7419, 7
  %v7483 = vsel %vm7481, 1, 0
  %v7484 = vsel %vm7482, 1, 0
  %vm7485 = vcmp.eq.s32.totalorder %v7483, 1
  %vm7486 = vcmp.eq.s32.totalorder %v7484, 1
  %vm7487 = vmpackc.low %vm7485, %vm7485
  %vm7488 = vmpackc.low %vm7486, %vm7486
  %v7489 = vsel %vm7487, 65537, 0
  %v7490 = vsel %vm7488, 65537, 0
  %v7492 = vshrl.u32 %v7489, 16
  %v7494 = vrot.slane %v7492, 7
  %v7495 = vshll.u32 %v7489, 16
  %v7497 = vor.u32 %v7494, %v7495
  %v7498 = vrot.slane %v7494, 4
  %v7500 = vshrl.u32 %v7490, 16
  %v7502 = vrot.slane %v7500, 7
  %v7503 = vshll.u32 %v7490, 16
  %v7505 = vor.u32 %v7502, %v7503
  %v7506 = vsel %vm1817, %v7498, %v7505
  %v7507 = vrot.slane %v7502, 4
  %vm7508 = vcmp.ne.s16.totalorder %v7497, 0
  %vm7509 = vcmp.ne.s16.totalorder %v7506, 0
  %vm7510 = vcmp.ne.s16.totalorder %v7507, 0
  %v7511 = vsel %vm7508, %v7421, 0
  %v7512 = vsel %vm7509, %v7444, 0
  %v7513 = vsel %vm7510, %v7480, 0
  %v7514 = vld [vmem:[#allocation5 + $0x4] sm:$0xe]
  %vm7515 = vcmp.lt.s32.totalorder %v7418, 6
  %vm7516 = vcmp.lt.s32.totalorder %v7419, 6
  %v7517 = vsel %vm7515, 1, 0
  %v7518 = vsel %vm7516, 1, 0
  %vm7519 = vcmp.eq.s32.totalorder %v7517, 1
  %vm7520 = vcmp.eq.s32.totalorder %v7518, 1
  %vm7521 = vmpackc.low %vm7519, %vm7519
  %vm7522 = vmpackc.low %vm7520, %vm7520
  %v7523 = vsel %vm7521, 65537, 0
  %v7524 = vsel %vm7522, 65537, 0
  %v7525 = vrot.slane %v7523, 7
  %v7526 = vrot.slane %v7525, 4
  %v7527 = vrot.slane %v7524, 7
  %v7528 = vsel %vm2334, %v7526, %v7527
  %v7529 = vrot.slane %v7527, 4
  %vm7530 = vcmp.ne.s16.totalorder %v7525, 0
  %vm7531 = vcmp.ne.s16.totalorder %v7528, 0
  %vm7532 = vcmp.ne.s16.totalorder %v7529, 0
  %v7533 = vsel %vm7530, %v7514, 0
  %v7534 = vsel %vm7531, %v7444, 0
  %v7535 = vsel %vm7532, %v7480, 0
  %v7539 = vunpack.c.l.b16 %v7441
  %v7540 = vunpack.c.l.b16 %v7442
  %v7541 = vunpack.c.l.b16 %v7443
  %v7542 = vpack.c.b16 %v7540, %v7539
  %v7543 = vpack.c.b16 %v7541, %v7541
  %v7547 = vunpack.c.l.b16 %v7477
  %v7548 = vunpack.c.l.b16 %v7478
  %v7549 = vunpack.c.l.b16 %v7479
  %v7550 = vpack.c.b16 %v7548, %v7547
  %v7551 = vpack.c.b16 %v7549, %v7549
  %v7553 = vshrl.u32 %v7550, 16
  %v7555 = vshll.u32 %v7550, 16
  %v7557 = vrot.slane %v7555, 1
  %v7558 = vor.u32 %v7553, %v7557
  %v7560 = vshll.u32 %v7551, 16
  %v7562 = vrot.slane %v7560, 1
  %v7563 = vsel %vm3211, %v7558, %v7562
  %v7564 = vshrl.u32 %v7551, 16
  %v7566 = vor.u32 %v7564, %v7562
  %7567 = vrot.lane.b32.xlu0 %v7563, 32
  %v7568 = vpop.permute.xlu0 %7567
  %7569 = vrot.lane.b32.xlu0 %v7566, 32
  %v7570 = vpop.permute.xlu0 %7569
  %v7573 = vunpack.c.l.b16 %v7421
  %v7574 = vunpack.c.l.b16 %v7444
  %v7575 = vpack.c.b16 %v7574, %v7573
  %v7576 = vrot.slane %v7575, 5
  %7577 = vrot.lane.b32.xlu0 %v7576, 64
  %v7578 = vpop.permute.xlu0 %7577
  %v7582 = vunpack.c.l.b16 %v7511
  %v7583 = vunpack.c.l.b16 %v7512
  %v7584 = vunpack.c.l.b16 %v7513
  %v7585 = vpack.c.b16 %v7583, %v7582
  %v7586 = vpack.c.b16 %v7584, %v7584
  %v7588 = vshrl.u32 %v7585, 16
  %v7590 = vrot.slane %v7588, 5
  %v7591 = vshll.u32 %v7585, 16
  %v7593 = vrot.slane %v7591, 6
  %v7594 = vor.u32 %v7590, %v7593
  %v7596 = vshll.u32 %v7586, 16
  %v7598 = vrot.slane %v7596, 6
  %v7599 = vsel %vm392, %v7594, %v7598
  %7600 = vrot.lane.b32.xlu0 %v7594, 96
  %v7601 = vpop.permute.xlu0 %7600
  %7602 = vrot.lane.b32.xlu0 %v7599, 96
  %v7603 = vpop.permute.xlu0 %7602
  %v7607 = vunpack.c.l.b16 %v7533
  %v7608 = vunpack.c.l.b16 %v7534
  %v7609 = vunpack.c.l.b16 %v7535
  %v7610 = vpack.c.b16 %v7608, %v7607
  %v7611 = vpack.c.b16 %v7609, %v7609
  %v7612 = vrot.slane %v7610, 6
  %v7613 = vrot.slane %v7611, 6
  %v7614 = vsel %vm3872, %v7612, %v7613
  %v7617 = vsel %vm4481, %v7542, %v7568
  %v7620 = vsel %vm4481, %v7543, %v7570
  %v7622 = vsel %vm7212, %v7617, %v7578
  %v7623 = vsel %vm7212, %v7620, %v7578
  %v7625 = vsel %vm7226, %v7622, %v7601
  %v7627 = vsel %vm7226, %v7623, %v7603
  %v7628 = vld [vmem:[%s10] sm:$0xf]
  %v7629 = vld [vmem:[%s10 + $0x4] sm:$0xf]
  %v7630 = vld [vmem:[%s10 + $0x8] sm:$0xf]
  %v7631 = vld [vmem:[%s10 + $0xc] sm:$0xf]
  %v7632 = vld [vmem:[%s10 + $0x10] sm:$0xf]
  %v7633 = vld [vmem:[%s10 + $0x14] sm:$0xf]
  %v7634 = vld [vmem:[%s10 + $0x18] sm:$0xf]
  %v7635 = vld [vmem:[%s10 + $0x1c] sm:$0xf]
  %v7636 = vld [vmem:[%s10 + $0x20] sm:$0xf]
  %v7637 = vld [vmem:[%s10 + $0x24] sm:$0xf]
  %v7638 = vld [vmem:[%s10 + $0x28] sm:$0xf]
  %v7639 = vld [vmem:[%s10 + $0x2c] sm:$0xf]
  %v7640 = vld [vmem:[%s10 + $0x30] sm:$0xf]
  %v7641 = vld [vmem:[%s10 + $0x34] sm:$0xf]
  %v7642 = vld [vmem:[%s10 + $0x38] sm:$0xf]
  %v7643 = vld [vmem:[%s10 + $0x3c] sm:$0xf]
  %v7644 = vld [vmem:[%s10 + $0x40] sm:$0xf]
  %v7645 = vld [vmem:[%s10 + $0x44] sm:$0xf]
  %v7646 = vld [vmem:[%s10 + $0x48] sm:$0xf]
  %v7647 = vld [vmem:[%s10 + $0x4c] sm:$0xf]
  %vm7650 = vcmask 1044480
  %v7651 = vrot.slane %v7625, 3
  %v7652 = vrot.slane %v7627, 3
  %v7653 = vsel %vm7650, %v7651, %v7652
  %v7654 = vrot.slane %v7612, 3
  %v7655 = vrot.slane %v7614, 3
  %v7656 = vsel %vm7650, %v7654, %v7655
  %v7678 = vunpack.c.l.b16 %v7628
  %v7679 = vunpack.c.l.b16 %v7629
  %v7680 = vunpack.c.l.b16 %v7630
  %v7681 = vunpack.c.l.b16 %v7631
  %v7682 = vunpack.c.l.b16 %v7632
  %v7683 = vunpack.c.l.b16 %v7633
  %v7684 = vunpack.c.l.b16 %v7634
  %v7685 = vunpack.c.l.b16 %v7635
  %v7686 = vunpack.c.l.b16 %v7636
  %v7687 = vunpack.c.l.b16 %v7637
  %v7688 = vunpack.c.l.b16 %v7638
  %v7689 = vunpack.c.l.b16 %v7639
  %v7690 = vunpack.c.l.b16 %v7640
  %v7691 = vunpack.c.l.b16 %v7641
  %v7692 = vunpack.c.l.b16 %v7642
  %v7693 = vunpack.c.l.b16 %v7643
  %v7694 = vunpack.c.l.b16 %v7644
  %v7695 = vunpack.c.l.b16 %v7645
  %v7696 = vunpack.c.l.b16 %v7646
  %v7697 = vunpack.c.l.b16 %v7647
  %v7698 = vpack.c.b16 %v7679, %v7678
  %v7699 = vpack.c.b16 %v7681, %v7680
  %v7700 = vpack.c.b16 %v7683, %v7682
  %v7701 = vpack.c.b16 %v7685, %v7684
  %v7702 = vpack.c.b16 %v7687, %v7686
  %v7703 = vpack.c.b16 %v7689, %v7688
  %v7704 = vpack.c.b16 %v7691, %v7690
  %v7705 = vpack.c.b16 %v7693, %v7692
  %v7706 = vpack.c.b16 %v7695, %v7694
  %v7707 = vpack.c.b16 %v7697, %v7696
  %v7719 = vsel %vm4481, %v7656, 0
  %7721 = vmatprep.subr.bf16.mxu0 0
  %7722 = vmatpush1.bf16.msra.mxu0 %v7705
  %7723 = vmatprep.subr.bf16.mxu0 0
  %7724 = vmatpush1.bf16.msra.mxu0 %v7704
  %7725 = vmatprep.subr.bf16.mxu0 0
  %7726 = vmatpush1.bf16.msra.mxu0 %v7703
  %7727 = vmatprep.subr.bf16.mxu0 0
  %7728 = vmatpush1.bf16.msra.mxu0 %v7702
  %7729 = vmatprep.subr.bf16.mxu0 0
  %7730 = vmatpush1.bf16.msra.mxu0 %v7701
  %7731 = vmatprep.subr.bf16.mxu0 0
  %7732 = vmatpush1.bf16.msra.mxu0 %v7700
  %7733 = vmatprep.subr.bf16.mxu0 0
  %7734 = vmatpush1.bf16.msra.mxu0 %v7699
  %7735 = vmatprep.subr.bf16.mxu0 0
  %7736 = vmatpush1.bf16.msra.mxu0 %v7698
  %7737 = vmatprep.subr.bf16.mxu0 0
  %7738 = vmatpush2.bf16.msra.mxu0 0
  %7739 = vmatprep.subr.bf16.mxu0 0
  %7740 = vmatpush2.bf16.msra.mxu0 0
  %7741 = vmatprep.subr.bf16.mxu0 0
  %7742 = vmatpush2.bf16.msra.mxu0 0
  %7743 = vmatprep.subr.bf16.mxu0 0
  %7744 = vmatpush2.bf16.msra.mxu0 0
  %7745 = vmatprep.subr.bf16.mxu0 0
  %7746 = vmatpush2.bf16.msra.mxu0 0
  %7747 = vmatprep.subr.bf16.mxu0 0
  %7748 = vmatpush2.bf16.msra.mxu0 0
  %7749 = vmatprep.subr.bf16.mxu0 0
  %7750 = vmatpush2.bf16.msra.mxu0 %v7707
  %7751 = vmatprep.subr.bf16.mxu0 0
  %7752 = vmatpush2.bf16.msra.mxu0 %v7706
  %7753 = vmatprep.mubr.bf16.mxu0 %v7719
  %7754 = vmatmul.mubr.bf16.gmra.mxu0 %v7653
  %v7755 = vpop.f32.mrf.mxu0
  %v7756 = vadd.f32 0.0, %v7755
  %v7757 = vpop.f32.mrf.mxu0
  %v7758 = vpop.f32.mrf.mxu0
  %v7759 = vadd.f32 0.0, %v7758
  %v7760 = vpop.f32.mrf.mxu0
  %7761 = vdwg.mxu0
  %v7762 = vld [vmem:[%s11] sm:$0x1]
  %v7764 = vlaneseq
  %v7765 = vshrl.u32 %v7764, 7
  %v7766 = vsub.s32 0, %v7765
  %v7767 = vrot.slane %v7762, %v7766
  %v7769 = vmul.f32 %v7756, %v7767
  %v7770 = vmul.f32 %v7759, %v7767
  %v7771 = vld [vmem:[%s12] sm:$0x1]
  %v7773 = vlaneseq
  %v7774 = vshrl.u32 %v7773, 7
  %v7775 = vsub.s32 0, %v7774
  %v7776 = vrot.slane %v7771, %v7775
  %v7778 = vadd.f32 %v7769, %v7776
  %v7779 = vadd.f32 %v7770, %v7776
  %v7780 = vmax.f32 %v7778, 0.0
  %v7781 = vmax.f32 %v7779, 0.0
  %7782 = vst.msk [vmem:[#allocation11] sm:$0xff] %vm7212, %v7780
  %7783 = vst.msk [vmem:[#allocation11 + $0x8] sm:$0xff] %vm7212, %v7781
  %v7784 = vld [vmem:[#allocation11] ss:$2 sm:$0xff]
  %s7785 = scalar_lea.vmem [#allocation11], 1
  %v7786 = vld [vmem:[%s7785] ss:$2 sm:$0xff]
  %v7787 = vmax.f32 %v7784, %v7786
  %v7788 = vpack.c.bf16 %v7787, %v7787
  %vm7789 = vcmask 519168
  %7790 = vst.msk [vmem:[#allocation6 + $0x4] sm:$0xf] %vm7789, %v7788
  %v7791 = vand.u32 %v135, 3
  %v7792 = vld [vmem:[#allocation6] sm:$0x8]
  %v7793 = vld [vmem:[#allocation6 + $0x4] sm:$0x7]
  %vm7794 = vcmp.ge.s32.totalorder %v7791, 2
  %v7795 = vsel %vm7794, 1, 0
  %vm7796 = vcmp.eq.s32.totalorder %v7795, 1
  %vm7797 = vmpackc.low %vm7796, %vm7796
  %v7798 = vsel %vm7797, 65537, 0
  %v7799 = vrot.slane %v7798, 5
  %v7800 = vrot.slane %v7799, 4
  %vm7801 = vcmp.ne.s16.totalorder %v7799, 0
  %vm7802 = vcmp.ne.s16.totalorder %v7800, 0
  %v7803 = vsel %vm7801, %v7792, 0
  %v7804 = vsel %vm7802, %v7793, 0
  %v7805 = vld [vmem:[#allocation6 + $0x4] sm:$0xf]
  %vm7806 = vcmp.ge.s32.totalorder %v7791, 1
  %v7807 = vsel %vm7806, 1, 0
  %vm7808 = vcmp.eq.s32.totalorder %v7807, 1
  %vm7809 = vmpackc.low %vm7808, %vm7808
  %v7810 = vsel %vm7809, 65537, 0
  %v7812 = vshll.u32 %v7810, 16
  %v7814 = vrot.slane %v7812, 5
  %v7815 = vshrl.u32 %v7810, 16
  %v7817 = vrot.slane %v7815, 4
  %v7818 = vor.u32 %v7817, %v7814
  %v7819 = vrot.slane %v7818, 4
  %vm7820 = vcmp.ne.s16.totalorder %v7814, 0
  %vm7821 = vcmp.ne.s16.totalorder %v7819, 0
  %v7822 = vsel %vm7820, %v7792, 0
  %v7823 = vsel %vm7821, %v7805, 0
  %v7824 = vld [vmem:[#allocation6 + $0x8] sm:$0x1]
  %vm7825 = vcmp.lt.s32.totalorder %v7791, 3
  %v7826 = vsel %vm7825, 1, 0
  %vm7827 = vcmp.eq.s32.totalorder %v7826, 1
  %vm7828 = vmpackc.low %vm7827, %vm7827
  %v7829 = vsel %vm7828, 65537, 0
  %v7831 = vshrl.u32 %v7829, 16
  %v7833 = vrot.slane %v7831, 7
  %v7834 = vshll.u32 %v7829, 16
  %v7836 = vor.u32 %v7833, %v7834
  %v7837 = vrot.slane %v7833, 4
  %vm7838 = vcmp.ne.s16.totalorder %v7836, 0
  %vm7839 = vcmp.ne.s16.totalorder %v7837, 0
  %v7840 = vsel %vm7838, %v7805, 0
  %v7841 = vsel %vm7839, %v7824, 0
  %v7842 = vld [vmem:[#allocation6 + $0x4] sm:$0xe]
  %vm7843 = vcmp.lt.s32.totalorder %v7791, 2
  %v7844 = vsel %vm7843, 1, 0
  %vm7845 = vcmp.eq.s32.totalorder %v7844, 1
  %vm7846 = vmpackc.low %vm7845, %vm7845
  %v7847 = vsel %vm7846, 65537, 0
  %v7848 = vrot.slane %v7847, 7
  %v7849 = vrot.slane %v7848, 4
  %vm7850 = vcmp.ne.s16.totalorder %v7848, 0
  %vm7851 = vcmp.ne.s16.totalorder %v7849, 0
  %v7852 = vsel %vm7850, %v7842, 0
  %v7853 = vsel %vm7851, %v7824, 0
  %v7856 = vunpack.c.l.b16 %v7803
  %v7857 = vunpack.c.l.b16 %v7804
  %v7858 = vpack.c.b16 %v7857, %v7856
  %v7861 = vunpack.c.l.b16 %v7822
  %v7862 = vunpack.c.l.b16 %v7823
  %v7863 = vpack.c.b16 %v7862, %v7861
  %v7865 = vshrl.u32 %v7863, 16
  %v7867 = vshll.u32 %v7863, 16
  %v7869 = vrot.slane %v7867, 1
  %v7870 = vor.u32 %v7865, %v7869
  %7871 = vrot.lane.b32.xlu0 %v7870, 64
  %v7872 = vpop.permute.xlu0 %7871
  %v7874 = vunpack.c.l.b16 %v7805
  %v7875 = vpack.c.b16 %v7874, %v7874
  %v7876 = vrot.slane %v7875, 5
  %v7879 = vunpack.c.l.b16 %v7840
  %v7880 = vunpack.c.l.b16 %v7841
  %v7881 = vpack.c.b16 %v7880, %v7879
  %v7883 = vshrl.u32 %v7881, 16
  %v7885 = vrot.slane %v7883, 5
  %v7886 = vshll.u32 %v7881, 16
  %v7888 = vrot.slane %v7886, 6
  %v7889 = vor.u32 %v7885, %v7888
  %7890 = vrot.lane.b32.xlu0 %v7889, 64
  %v7891 = vpop.permute.xlu0 %7890
  %v7894 = vunpack.c.l.b16 %v7852
  %v7895 = vunpack.c.l.b16 %v7853
  %v7896 = vpack.c.b16 %v7895, %v7894
  %v7897 = vrot.slane %v7896, 6
  %v7900 = vsel %vm7212, %v7858, %v7872
  %v7903 = vsel %vm7212, %v7876, %v7891
  %v7904 = vld [vmem:[%s13] sm:$0xf]
  %v7905 = vld [vmem:[%s13 + $0x4] sm:$0xf]
  %v7906 = vld [vmem:[%s13 + $0x8] sm:$0xf]
  %v7907 = vld [vmem:[%s13 + $0xc] sm:$0xf]
  %v7908 = vld [vmem:[%s13 + $0x10] sm:$0xf]
  %v7909 = vld [vmem:[%s13 + $0x14] sm:$0xf]
  %v7910 = vld [vmem:[%s13 + $0x18] sm:$0xf]
  %v7911 = vld [vmem:[%s13 + $0x1c] sm:$0xf]
  %v7912 = vld [vmem:[%s13 + $0x20] sm:$0xf]
  %v7913 = vld [vmem:[%s13 + $0x24] sm:$0xf]
  %v7914 = vld [vmem:[%s13 + $0x28] sm:$0xf]
  %v7915 = vld [vmem:[%s13 + $0x2c] sm:$0xf]
  %v7916 = vld [vmem:[%s13 + $0x30] sm:$0xf]
  %v7917 = vld [vmem:[%s13 + $0x34] sm:$0xf]
  %v7918 = vld [vmem:[%s13 + $0x38] sm:$0xf]
  %v7919 = vld [vmem:[%s13 + $0x3c] sm:$0xf]
  %v7920 = vld [vmem:[%s13 + $0x40] sm:$0xf]
  %v7921 = vld [vmem:[%s13 + $0x44] sm:$0xf]
  %v7922 = vld [vmem:[%s13 + $0x48] sm:$0xf]
  %v7923 = vld [vmem:[%s13 + $0x4c] sm:$0xf]
  %v7924 = vld [vmem:[%s13 + $0x50] sm:$0xf]
  %v7925 = vld [vmem:[%s13 + $0x54] sm:$0xf]
  %v7926 = vld [vmem:[%s13 + $0x58] sm:$0xf]
  %v7927 = vld [vmem:[%s13 + $0x5c] sm:$0xf]
  %v7928 = vld [vmem:[%s13 + $0x60] sm:$0xf]
  %v7929 = vld [vmem:[%s13 + $0x64] sm:$0xf]
  %v7930 = vld [vmem:[%s13 + $0x68] sm:$0xf]
  %v7931 = vld [vmem:[%s13 + $0x6c] sm:$0xf]
  %v7932 = vld [vmem:[%s13 + $0x70] sm:$0xf]
  %v7933 = vld [vmem:[%s13 + $0x74] sm:$0xf]
  %v7934 = vld [vmem:[%s13 + $0x78] sm:$0xf]
  %v7935 = vld [vmem:[%s13 + $0x7c] sm:$0xf]
  %v7936 = vld [vmem:[%s13 + $0x80] sm:$0xf]
  %v7937 = vld [vmem:[%s13 + $0x84] sm:$0xf]
  %v7938 = vld [vmem:[%s13 + $0x88] sm:$0xf]
  %v7939 = vld [vmem:[%s13 + $0x8c] sm:$0xf]
  %v7940 = vld [vmem:[%s13 + $0x90] sm:$0xf]
  %v7941 = vld [vmem:[%s13 + $0x94] sm:$0xf]
  %v7942 = vld [vmem:[%s13 + $0x98] sm:$0xf]
  %v7943 = vld [vmem:[%s13 + $0x9c] sm:$0xf]
  %v7946 = vrot.slane %v7900, 3
  %v7947 = vrot.slane %v7903, 3
  %v7948 = vrot.slane %v7897, 3
  %v7991 = vunpack.c.l.b16 %v7904
  %v7992 = vunpack.c.l.b16 %v7905
  %v7993 = vunpack.c.l.b16 %v7906
  %v7994 = vunpack.c.l.b16 %v7907
  %v7995 = vunpack.c.l.b16 %v7908
  %v7996 = vunpack.c.l.b16 %v7909
  %v7997 = vunpack.c.l.b16 %v7910
  %v7998 = vunpack.c.l.b16 %v7911
  %v7999 = vunpack.c.l.b16 %v7912
  %v8000 = vunpack.c.l.b16 %v7913
  %v8001 = vunpack.c.l.b16 %v7914
  %v8002 = vunpack.c.l.b16 %v7915
  %v8003 = vunpack.c.l.b16 %v7916
  %v8004 = vunpack.c.l.b16 %v7917
  %v8005 = vunpack.c.l.b16 %v7918
  %v8006 = vunpack.c.l.b16 %v7919
  %v8007 = vunpack.c.l.b16 %v7920
  %v8008 = vunpack.c.l.b16 %v7921
  %v8009 = vunpack.c.l.b16 %v7922
  %v8010 = vunpack.c.l.b16 %v7923
  %v8011 = vunpack.c.l.b16 %v7924
  %v8012 = vunpack.c.l.b16 %v7925
  %v8013 = vunpack.c.l.b16 %v7926
  %v8014 = vunpack.c.l.b16 %v7927
  %v8015 = vunpack.c.l.b16 %v7928
  %v8016 = vunpack.c.l.b16 %v7929
  %v8017 = vunpack.c.l.b16 %v7930
  %v8018 = vunpack.c.l.b16 %v7931
  %v8019 = vunpack.c.l.b16 %v7932
  %v8020 = vunpack.c.l.b16 %v7933
  %v8021 = vunpack.c.l.b16 %v7934
  %v8022 = vunpack.c.l.b16 %v7935
  %v8023 = vunpack.c.l.b16 %v7936
  %v8024 = vunpack.c.l.b16 %v7937
  %v8025 = vunpack.c.l.b16 %v7938
  %v8026 = vunpack.c.l.b16 %v7939
  %v8027 = vunpack.c.l.b16 %v7940
  %v8028 = vunpack.c.l.b16 %v7941
  %v8029 = vunpack.c.l.b16 %v7942
  %v8030 = vunpack.c.l.b16 %v7943
  %v8031 = vpack.c.b16 %v7992, %v7991
  %v8032 = vpack.c.b16 %v7994, %v7993
  %v8033 = vpack.c.b16 %v7996, %v7995
  %v8034 = vpack.c.b16 %v7998, %v7997
  %v8035 = vpack.c.b16 %v8000, %v7999
  %v8036 = vpack.c.b16 %v8002, %v8001
  %v8037 = vpack.c.b16 %v8004, %v8003
  %v8038 = vpack.c.b16 %v8006, %v8005
  %v8039 = vpack.c.b16 %v8008, %v8007
  %v8040 = vpack.c.b16 %v8010, %v8009
  %v8041 = vpack.c.b16 %v8012, %v8011
  %v8042 = vpack.c.b16 %v8014, %v8013
  %v8043 = vpack.c.b16 %v8016, %v8015
  %v8044 = vpack.c.b16 %v8018, %v8017
  %v8045 = vpack.c.b16 %v8020, %v8019
  %v8046 = vpack.c.b16 %v8022, %v8021
  %v8047 = vpack.c.b16 %v8024, %v8023
  %v8048 = vpack.c.b16 %v8026, %v8025
  %v8049 = vpack.c.b16 %v8028, %v8027
  %v8050 = vpack.c.b16 %v8030, %v8029
  %v8072 = vsel %vm7212, %v7948, 0
  %8074 = vmatprep.subr.bf16.mxu0 0
  %8075 = vmatpush1.bf16.msra.mxu0 %v8038
  %8076 = vmatprep.subr.bf16.mxu0 0
  %8077 = vmatpush1.bf16.msra.mxu0 %v8037
  %8078 = vmatprep.subr.bf16.mxu0 0
  %8079 = vmatpush1.bf16.msra.mxu0 %v8036
  %8080 = vmatprep.subr.bf16.mxu0 0
  %8081 = vmatpush1.bf16.msra.mxu0 %v8035
  %8082 = vmatprep.subr.bf16.mxu0 0
  %8083 = vmatpush1.bf16.msra.mxu0 %v8034
  %8084 = vmatprep.subr.bf16.mxu0 0
  %8085 = vmatpush1.bf16.msra.mxu0 %v8033
  %8086 = vmatprep.subr.bf16.mxu0 0
  %8087 = vmatpush1.bf16.msra.mxu0 %v8032
  %8088 = vmatprep.subr.bf16.mxu0 0
  %8089 = vmatpush1.bf16.msra.mxu0 %v8031
  %8090 = vmatprep.subr.bf16.mxu0 0
  %8091 = vmatpush2.bf16.msra.mxu0 %v8046
  %8092 = vmatprep.subr.bf16.mxu0 0
  %8093 = vmatpush2.bf16.msra.mxu0 %v8045
  %8094 = vmatprep.subr.bf16.mxu0 0
  %8095 = vmatpush2.bf16.msra.mxu0 %v8044
  %8096 = vmatprep.subr.bf16.mxu0 0
  %8097 = vmatpush2.bf16.msra.mxu0 %v8043
  %8098 = vmatprep.subr.bf16.mxu0 0
  %8099 = vmatpush2.bf16.msra.mxu0 %v8042
  %8100 = vmatprep.subr.bf16.mxu0 0
  %8101 = vmatpush2.bf16.msra.mxu0 %v8041
  %8102 = vmatprep.subr.bf16.mxu0 0
  %8103 = vmatpush2.bf16.msra.mxu0 %v8040
  %8104 = vmatprep.subr.bf16.mxu0 0
  %8105 = vmatpush2.bf16.msra.mxu0 %v8039
  %8106 = vmatprep.mubr.bf16.mxu0 %v7947
  %8107 = vmatmul.mubr.bf16.gmra.mxu0 %v7946
  %v8108 = vpop.f32.mrf.mxu0
  %v8109 = vadd.f32 0.0, %v8108
  %v8110 = vpop.f32.mrf.mxu0
  %v8111 = vpop.f32.mrf.mxu0
  %v8112 = vpop.f32.mrf.mxu0
  %8113 = vdwg.mxu0
  %8114 = vmatprep.subr.bf16.mxu0 0
  %8115 = vmatpush1.bf16.msra.mxu0 0
  %8116 = vmatprep.subr.bf16.mxu0 0
  %8117 = vmatpush1.bf16.msra.mxu0 0
  %8118 = vmatprep.subr.bf16.mxu0 0
  %8119 = vmatpush1.bf16.msra.mxu0 0
  %8120 = vmatprep.subr.bf16.mxu0 0
  %8121 = vmatpush1.bf16.msra.mxu0 0
  %8122 = vmatprep.subr.bf16.mxu0 0
  %8123 = vmatpush1.bf16.msra.mxu0 %v8050
  %8124 = vmatprep.subr.bf16.mxu0 0
  %8125 = vmatpush1.bf16.msra.mxu0 %v8049
  %8126 = vmatprep.subr.bf16.mxu0 0
  %8127 = vmatpush1.bf16.msra.mxu0 %v8048
  %8128 = vmatprep.subr.bf16.mxu0 0
  %8129 = vmatpush1.bf16.msra.mxu0 %v8047
  %8130 = vmatprep.subr.bf16.mxu0 0
  %8131 = vmatpush2.bf16.msra.mxu0 0
  %8132 = vmatprep.subr.bf16.mxu0 0
  %8133 = vmatpush2.bf16.msra.mxu0 0
  %8134 = vmatprep.subr.bf16.mxu0 0
  %8135 = vmatpush2.bf16.msra.mxu0 0
  %8136 = vmatprep.subr.bf16.mxu0 0
  %8137 = vmatpush2.bf16.msra.mxu0 0
  %8138 = vmatprep.subr.bf16.mxu0 0
  %8139 = vmatpush2.bf16.msra.mxu0 0
  %8140 = vmatprep.subr.bf16.mxu0 0
  %8141 = vmatpush2.bf16.msra.mxu0 0
  %8142 = vmatprep.subr.bf16.mxu0 0
  %8143 = vmatpush2.bf16.msra.mxu0 0
  %8144 = vmatprep.subr.bf16.mxu0 0
  %8145 = vmatpush2.bf16.msra.mxu0 0
  %8146 = vmatprep.mubr.bf16.mxu0 0
  %8147 = vmatmul.mubr.bf16.gmra.mxu0 %v8072
  %v8148 = vpop.f32.mrf.mxu0
  %v8149 = vadd.f32 %v8109, %v8148
  %v8150 = vpop.f32.mrf.mxu0
  %v8151 = vpop.f32.mrf.mxu0
  %v8152 = vpop.f32.mrf.mxu0
  %8153 = vdwg.mxu0
  %v8154 = vld [vmem:[%s14] sm:$0x1]
  %v8156 = vlaneseq
  %v8157 = vshrl.u32 %v8156, 7
  %v8158 = vsub.s32 0, %v8157
  %v8159 = vrot.slane %v8154, %v8158
  %v8161 = vmul.f32 %v8149, %v8159
  %v8162 = vld [vmem:[%s15] sm:$0x1]
  %v8164 = vlaneseq
  %v8165 = vshrl.u32 %v8164, 7
  %v8166 = vsub.s32 0, %v8165
  %v8167 = vrot.slane %v8162, %v8166
  %v8169 = vadd.f32 %v8161, %v8167
  %v8170 = vmax.f32 %v8169, 0.0
  %8171 = vst.msk [vmem:[#allocation12] sm:$0xff] %vm7212, %v8170
  %v8172 = vld [vmem:[#allocation12] ss:$2 sm:$0xf]
  %s8173 = scalar_lea.vmem [#allocation12], 1
  %v8174 = vld [vmem:[%s8173] ss:$2 sm:$0xf]
  %v8175 = vmax.f32 %v8172, %v8174
  %v8176 = vpack.c.bf16 %v8175, %v8175
  %vm8177 = vcmask 517120
  %8178 = vst.msk [vmem:[#allocation7 + $0x4] sm:$0x3] %vm8177, %v8176
  %v8179 = vand.u32 %v135, 1
  %v8180 = vld [vmem:[#allocation7 + $0x4] sm:$0x3]
  %v8181 = vld [vmem:[#allocation7 + $0x4] sm:$0x7]
  %vm8182 = vcmp.lt.s32.totalorder %v8179, 1
  %v8183 = vsel %vm8182, 1, 0
  %vm8184 = vcmp.eq.s32.totalorder %v8183, 1
  %vm8185 = vmpackc.low %vm8184, %vm8184
  %v8186 = vsel %vm8185, 65537, 0
  %v8188 = vshrl.u32 %v8186, 16
  %v8190 = vrot.slane %v8188, 7
  %v8191 = vshll.u32 %v8186, 16
  %v8193 = vor.u32 %v8190, %v8191
  %vm8194 = vcmp.ne.s16.totalorder %v8193, 0
  %v8195 = vsel %vm8194, %v8181, 0
  %v8197 = vunpack.c.l.b16 %v8195
  %v8198 = vpack.c.b16 %v8197, %v8197
  %v8200 = vshrl.u32 %v8198, 16
  %v8202 = vshll.u32 %v8198, 16
  %v8204 = vrot.slane %v8202, 1
  %v8205 = vor.u32 %v8200, %v8204
  %8206 = vrot.lane.b32.xlu0 %v8205, 64
  %v8207 = vpop.permute.xlu0 %8206
  %v8210 = vsel %vm7212, %v8180, %v8207
  %v8212 = vld [vmem:[%s16] sm:$0xf]
  %v8213 = vld [vmem:[%s16 + $0x4] sm:$0xf]
  %v8214 = vld [vmem:[%s16 + $0x8] sm:$0xf]
  %v8215 = vld [vmem:[%s16 + $0xc] sm:$0xf]
  %v8216 = vld [vmem:[%s16 + $0x10] sm:$0xf]
  %v8217 = vld [vmem:[%s16 + $0x14] sm:$0xf]
  %v8218 = vld [vmem:[%s16 + $0x18] sm:$0xf]
  %v8219 = vld [vmem:[%s16 + $0x1c] sm:$0xf]
  %v8220 = vld [vmem:[%s16 + $0x20] sm:$0xf]
  %v8221 = vld [vmem:[%s16 + $0x24] sm:$0xf]
  %v8222 = vld [vmem:[%s16 + $0x28] sm:$0xf]
  %v8223 = vld [vmem:[%s16 + $0x2c] sm:$0xf]
  %v8224 = vld [vmem:[%s16 + $0x30] sm:$0xf]
  %v8225 = vld [vmem:[%s16 + $0x34] sm:$0xf]
  %v8226 = vld [vmem:[%s16 + $0x38] sm:$0xf]
  %v8227 = vld [vmem:[%s16 + $0x3c] sm:$0xf]
  %v8244 = vunpack.c.l.b16 %v8212
  %v8245 = vunpack.c.l.b16 %v8213
  %v8246 = vunpack.c.l.b16 %v8214
  %v8247 = vunpack.c.l.b16 %v8215
  %v8248 = vunpack.c.l.b16 %v8216
  %v8249 = vunpack.c.l.b16 %v8217
  %v8250 = vunpack.c.l.b16 %v8218
  %v8251 = vunpack.c.l.b16 %v8219
  %v8252 = vunpack.c.l.b16 %v8220
  %v8253 = vunpack.c.l.b16 %v8221
  %v8254 = vunpack.c.l.b16 %v8222
  %v8255 = vunpack.c.l.b16 %v8223
  %v8256 = vunpack.c.l.b16 %v8224
  %v8257 = vunpack.c.l.b16 %v8225
  %v8258 = vunpack.c.l.b16 %v8226
  %v8259 = vunpack.c.l.b16 %v8227
  %v8260 = vpack.c.b16 %v8245, %v8244
  %v8261 = vpack.c.b16 %v8247, %v8246
  %v8262 = vpack.c.b16 %v8249, %v8248
  %v8263 = vpack.c.b16 %v8251, %v8250
  %v8264 = vpack.c.b16 %v8253, %v8252
  %v8265 = vpack.c.b16 %v8255, %v8254
  %v8266 = vpack.c.b16 %v8257, %v8256
  %v8267 = vpack.c.b16 %v8259, %v8258
  %8276 = vmatprep.subr.bf16.mxu0 0
  %8277 = vmatpush1.bf16.msra.mxu0 %v8267
  %8278 = vmatprep.subr.bf16.mxu0 0
  %8279 = vmatpush1.bf16.msra.mxu0 %v8266
  %8280 = vmatprep.subr.bf16.mxu0 0
  %8281 = vmatpush1.bf16.msra.mxu0 %v8265
  %8282 = vmatprep.subr.bf16.mxu0 0
  %8283 = vmatpush1.bf16.msra.mxu0 %v8264
  %8284 = vmatprep.subr.bf16.mxu0 0
  %8285 = vmatpush1.bf16.msra.mxu0 %v8263
  %8286 = vmatprep.subr.bf16.mxu0 0
  %8287 = vmatpush1.bf16.msra.mxu0 %v8262
  %8288 = vmatprep.subr.bf16.mxu0 0
  %8289 = vmatpush1.bf16.msra.mxu0 %v8261
  %8290 = vmatprep.subr.bf16.mxu0 0
  %8291 = vmatpush1.bf16.msra.mxu0 %v8260
  %8292 = vmatprep.subr.bf16.mxu0 0
  %8293 = vmatpush2.bf16.msra.mxu0 0
  %8294 = vmatprep.subr.bf16.mxu0 0
  %8295 = vmatpush2.bf16.msra.mxu0 0
  %8296 = vmatprep.subr.bf16.mxu0 0
  %8297 = vmatpush2.bf16.msra.mxu0 0
  %8298 = vmatprep.subr.bf16.mxu0 0
  %8299 = vmatpush2.bf16.msra.mxu0 0
  %8300 = vmatprep.subr.bf16.mxu0 0
  %8301 = vmatpush2.bf16.msra.mxu0 0
  %8302 = vmatprep.subr.bf16.mxu0 0
  %8303 = vmatpush2.bf16.msra.mxu0 0
  %8304 = vmatprep.subr.bf16.mxu0 0
  %8305 = vmatpush2.bf16.msra.mxu0 0
  %8306 = vmatprep.subr.bf16.mxu0 0
  %8307 = vmatpush2.bf16.msra.mxu0 0
  %8308 = vmatprep.mubr.bf16.mxu0 0
  %8309 = vmatmul.mubr.bf16.gmra.mxu0 %v8210
  %v8310 = vpop.f32.mrf.mxu0
  %v8311 = vadd.f32 0.0, %v8310
  %v8312 = vpop.f32.mrf.mxu0
  %v8313 = vpop.f32.mrf.mxu0
  %v8314 = vpop.f32.mrf.mxu0
  %8315 = vdwg.mxu0
  %v8316 = vld [vmem:[#allocation14] sm:$0x1]
  %v8318 = vlaneseq
  %v8319 = vshrl.u32 %v8318, 7
  %v8320 = vsub.s32 0, %v8319
  %v8321 = vrot.slane %v8316, %v8320
  %v8323 = vmul.f32 %v8311, %v8321
  %v8324 = vld [vmem:[#allocation15] sm:$0x1]
  %v8326 = vlaneseq
  %v8327 = vshrl.u32 %v8326, 7
  %v8328 = vsub.s32 0, %v8327
  %v8329 = vrot.slane %v8324, %v8328
  %v8331 = vadd.f32 %v8323, %v8329
  %v8332 = vxor.u32 %v8331, 2147483648
  %v8333 = vmul.f32 %v8332, 1.442695
  %v8334 = vpow.pop %v8333
  %v8335 = vadd.f32 %v8334, 1.0
  %v8336 = vrcp.pop %v8335
  %v8337 = vmul.f32 1.0, %v8336
  %vm8338 = vcmask 3072
  %8339 = vst.msk [vmem:[#allocation13] sm:$0xf] %vm8338, %v8337
  %v8340 = vld [vmem:[#allocation13] ss:$2 sm:$0x3]
  %vm8341 = vcmask 1024
  %8342 = vst.msk [vmem:[%s19] sm:$0x3] %vm8341, %v8340
  // Predicated region
  $region78: #{tpu_custom_call.1} parent=0 // pred_check
    _
  $region79: #{tpu_custom_call.1} parent=0 // pred_check_branch
    %8344 = sbr.rel (0) target = $region81
  $region80: #{tpu_custom_call.1} parent=0 // pred_region
    _
  $region81: #{tpu_custom_call.1} parent=0 // pred_fallthru
    _
  // Predicated region
  $region82: #{tpu_custom_call.1} parent=0 // pred_check
    _
  $region83: #{tpu_custom_call.1} parent=0 // pred_check_branch
    %8346 = sbr.rel (0) target = $region85
  $region84: #{tpu_custom_call.1} parent=0 // pred_region
    _
  $region85: #{tpu_custom_call.1} parent=0 // pred_fallthru
    _

</llo_original>
